<compile_context>
chip_gen: v6e
topology: v6e:2x2x1
jax: 0.10.0
libtpu: 0.0.40
codegen_flags: <defaults>
</compile_context>

<pallas_src>
import functools

import jax
import jax.numpy as jnp
from jax import lax
from jax.experimental import pallas as pl
from jax.experimental.pallas import tpu as pltpu

EPS = 1e-5  # nn.BatchNorm2d default eps


# ----------------------------------------------------------------------------
# One-time capability checks (cached; NOT per-call try/except on the fwd path)
# ----------------------------------------------------------------------------
@functools.lru_cache(maxsize=None)
def _vmem_capacity_bytes():
    try:
        return int(pltpu.get_tpu_info().vmem_capacity_bytes)
    except Exception:
        return 64 * 1024 * 1024  # v7x floor; safe lower bound everywhere


@functools.lru_cache(maxsize=None)
def _default_fat_k():
    # v5e / v6e (MRF result FIFO): one fat-K im2col matmul avoids 9x MXU
    # drain/refill.  v7x (MRB, in-place accumulation): chained K=C matmuls are
    # free and the im2col patch scratch is pure VMEM waste (64 MiB budget).
    try:
        kind = jax.devices()[0].device_kind.lower()
    except Exception:
        return True
    return "v7" not in kind


# ----------------------------------------------------------------------------
# In-kernel building blocks
# ----------------------------------------------------------------------------
def _write_padded(dst_ref, interior):
    """Write `interior` into a (1px H / 2px W)-halo scratch, zeroing only the
    border strips (4 thin stores) instead of memsetting the whole slab."""
    n, hp, wp, c = dst_ref.shape
    h, w = hp - 2, wp - 4
    dt = dst_ref.dtype
    dst_ref[:, 0:1, :, :] = jnp.zeros((n, 1, wp, c), dt)
    dst_ref[:, hp - 1:hp, :, :] = jnp.zeros((n, 1, wp, c), dt)
    dst_ref[:, :, 0:2, :] = jnp.zeros((n, hp, 2, c), dt)
    dst_ref[:, :, wp - 2:wp, :] = jnp.zeros((n, hp, 2, c), dt)
    dst_ref[:, 1:1 + h, 2:2 + w, :] = interior.astype(dt)


def _conv3x3(src_ref, w_ref, patches_ref, *, stride, ho, wo, fat_k):
    """3x3 'same' conv over a zero-bordered NHWC VMEM scratch.

    Taps are read with ref-level static slices of the padded slab (no
    value-level slicing of a preloaded value).  fat_k=True packs the nine taps
    along K into an im2col scratch -> one K=9*C MXU matmul (MRF chips);
    fat_k=False chains nine K=C matmuls with f32 accumulation (MRB chips),
    with no patch scratch at all.
    """
    n, _, _, c = src_ref.shape
    m = n * ho * wo

    def tap(kh, kw):
        if stride == 1:
            t = src_ref[:, kh:kh + ho, kw + 1:kw + 1 + wo, :]
        else:
            # TODO(synk): stride > 1 relies on ref-level strided loads
            # (pl.ds(..., stride)); only stride == 1 blocks are exercised here.
            t = src_ref[:, pl.ds(kh, ho, stride), pl.ds(kw + 1, wo, stride), :]
        return t.reshape(m, c).astype(w_ref.dtype)

    if fat_k:
        # Per-tap patch stores are lane-masked when c % 128 != 0 (ResNet
        # layer1) -- acceptable on MRF chips vs. 9x MXU drain/refill.
        for kh in range(3):
            for kw in range(3):
                t = kh * 3 + kw
                patches_ref[:, t * c:(t + 1) * c] = tap(kh, kw)
        return jnp.dot(patches_ref[...], w_ref[...],
                       preferred_element_type=jnp.float32)

    acc = None
    for kh in range(3):
        for kw in range(3):
            t = kh * 3 + kw
            z = jnp.dot(tap(kh, kw), w_ref[t * c:(t + 1) * c, :],
                        preferred_element_type=jnp.float32)
            acc = z if acc is None else acc + z
    return acc


def _bn_act(z, gamma, beta, *, relu):
    """Training-mode BatchNorm on a flat (M, C) f32 activation.  Two-pass
    variance (mean, then centered sum of squares) -- no E[x^2]-E[x]^2
    cancellation; the centered value is reused for the normalization."""
    mean = jnp.mean(z, axis=0, keepdims=True)
    zc = z - mean
    var = jnp.mean(zc * zc, axis=0, keepdims=True)
    y = zc * lax.rsqrt(var + EPS) * gamma + beta
    return jnp.maximum(y, 0.0) if relu else y


# ----------------------------------------------------------------------------
# Fused kernel: conv1 -> bn1 -> relu -> conv2 -> bn2 -> (+ shortcut) -> relu
# ----------------------------------------------------------------------------
def _basic_block_kernel(*refs, stride, has_proj, separate_xs, fat_k):
    it = iter(refs)
    x_ref = next(it)
    xs_ref = next(it) if separate_xs else None
    w1_ref = next(it); g1_ref = next(it); b1_ref = next(it)
    w2_ref = next(it); g2_ref = next(it); b2_ref = next(it)
    if has_proj:
        wsc_ref = next(it); gsc_ref = next(it); bsc_ref = next(it)
    o_ref = next(it)
    xpad_s = next(it)
    o1pad_s = next(it)
    p1_s = next(it) if fat_k else None
    p2_s = next(it) if fat_k else None

    n, h, w, cin = x_ref.shape
    cout = g1_ref.shape[-1]
    ho = (h - 1) // stride + 1
    wo = (w - 1) // stride + 1
    m = n * ho * wo

    # conv1 input: interior + zeroed halo strips (stored in the MXU dtype)
    xv = x_ref[...]                                   # f32; reused by shortcut
    _write_padded(xpad_s, xv)

    # conv1 -> bn1 -> relu  (z1/o1 are f32 (M, C) values; never leave VMEM)
    z1 = _conv3x3(xpad_s, w1_ref, p1_s, stride=stride, ho=ho, wo=wo, fat_k=fat_k)
    o1 = _bn_act(z1, g1_ref[...], b1_ref[...], relu=True)

    # the relu(bn1(conv1(x))) intermediate goes straight into the second
    # padded scratch -- no HBM round trip, no XLA pad, one kernel launch
    _write_padded(o1pad_s, o1.reshape(n, ho, wo, cout))

    # conv2 -> bn2
    z2 = _conv3x3(o1pad_s, w2_ref, p2_s, stride=1, ho=ho, wo=wo, fat_k=fat_k)
    o2 = _bn_act(z2, g2_ref[...], b2_ref[...], relu=False)

    # shortcut: identity-spatial blocks reuse x_ref (no duplicate xs DMA);
    # only stride > 1 blocks get a pre-strided xs from the wrapper.
    xs = xs_ref[...] if separate_xs else xv
    xs = xs.reshape(m, xs.shape[-1])
    if has_proj:
        sc = jnp.dot(xs.astype(wsc_ref.dtype), wsc_ref[...],
                     preferred_element_type=jnp.float32)
        sc = _bn_act(sc, gsc_ref[...], bsc_ref[...], relu=False)
    else:
        sc = xs                                       # exact f32 identity

    # residual add + relu; flat (M, C) store (no XLU (M,C)->(N*Ho,Wo*C)
    # relayout; lane-dense & unmasked whenever C >= 128)
    o_ref[...] = jnp.maximum(o2 + sc, 0.0)


# ----------------------------------------------------------------------------
# One-time probe: can this Mosaic build slice packed (bf16) padded slabs at
# the +-1-column tap offsets the bf16-scratch fast path relies on?
# ----------------------------------------------------------------------------
@functools.lru_cache(maxsize=None)
def _packed_pad_scratch_ok():
    def probe(x_ref, w_ref, o_ref, pad_s):
        n, h, w, c = x_ref.shape
        _write_padded(pad_s, x_ref[...])
        a = pad_s[:, 0:h, 1:1 + w, :].reshape(n * h * w, c)      # odd W offset
        b = pad_s[:, 2:2 + h, 3:3 + w, :].reshape(n * h * w, c)  # odd W offset
        o_ref[...] = jnp.dot(a + b, w_ref[...],
                             preferred_element_type=jnp.float32)

    try:
        x = jnp.zeros((1, 8, 16, 8), jnp.float32)
        wgt = jnp.zeros((8, 8), jnp.bfloat16)
        out = pl.pallas_call(
            probe,
            out_shape=jax.ShapeDtypeStruct((1 * 8 * 16, 8), jnp.float32),
            in_specs=[pl.BlockSpec(memory_space=pltpu.MemorySpace.VMEM)] * 2,
            out_specs=pl.BlockSpec(memory_space=pltpu.MemorySpace.VMEM),
            scratch_shapes=[pltpu.VMEM((1, 10, 20, 8), jnp.bfloat16)],
        )(x, wgt)
        jax.block_until_ready(out)
        return True
    except Exception:
        return False


# ----------------------------------------------------------------------------
# Parameters (deterministic, in-script)
# ----------------------------------------------------------------------------
def init_params(key, in_planes, planes, stride):
    ks = jax.random.split(key, 9)

    def conv_w(k, kh, kw, cin, cout):
        fan_in = cin * kh * kw
        return jax.random.normal(k, (kh, kw, cin, cout), jnp.float32) * (2.0 / fan_in) ** 0.5

    def bn_gb(kg, kb, c):
        g = 1.0 + 0.1 * jax.random.normal(kg, (1, 1, 1, c), jnp.float32)
        b = 0.1 * jax.random.normal(kb, (1, 1, 1, c), jnp.float32)
        return g, b

    p = {"has_proj": (stride != 1) or (in_planes != planes)}
    p["w1"] = conv_w(ks[0], 3, 3, in_planes, planes)        # HWIO
    p["g1"], p["b1"] = bn_gb(ks[1], ks[2], planes)
    p["w2"] = conv_w(ks[3], 3, 3, planes, planes)
    p["g2"], p["b2"] = bn_gb(ks[4], ks[5], planes)
    if p["has_proj"]:
        p["wsc"] = conv_w(ks[6], 1, 1, in_planes, planes).reshape(in_planes, planes)
        p["gsc"], p["bsc"] = bn_gb(ks[7], ks[8], planes)
    return p


# ----------------------------------------------------------------------------
# Forward pass (wrapper: NCHW in / NCHW out)
# ----------------------------------------------------------------------------
def basic_block_forward(params, x_nchw, stride, *, mxu_dtype=jnp.bfloat16, fat_k=None):
    if fat_k is None:
        fat_k = _default_fat_k()

    x = jnp.transpose(x_nchw, (0, 2, 3, 1)).astype(jnp.float32)     # -> NHWC (glue)
    n, h, w, cin = x.shape
    cout = params["w1"].shape[-1]
    ho = (h - 1) // stride + 1
    wo = (w - 1) // stride + 1
    m = n * ho * wo
    has_proj = params["has_proj"]
    separate_xs = stride != 1    # identity-spatial blocks reuse x_ref in-kernel

    # padded scratches in the MXU dtype when supported; f32 fallback otherwise
    pad_dtype = mxu_dtype
    if jnp.dtype(mxu_dtype).itemsize < 4 and not _packed_pad_scratch_ok():
        pad_dtype = jnp.float32

    # im2col weight layout: K ordered (kh, kw, c_in); MXU operands in mxu_dtype
    w1 = params["w1"].reshape(9 * cin, cout).astype(mxu_dtype)
    w2 = params["w2"].reshape(9 * cout, cout).astype(mxu_dtype)
    g1 = params["g1"].reshape(1, cout); b1 = params["b1"].reshape(1, cout)
    g2 = params["g2"].reshape(1, cout); b2 = params["b2"].reshape(1, cout)

    inputs = [x]
    if separate_xs:
        inputs.append(x[:, ::stride, ::stride, :])   # pre-strided shortcut (glue)
    inputs += [w1, g1, b1, w2, g2, b2]
    if has_proj:
        inputs += [params["wsc"].astype(mxu_dtype),
                   params["gsc"].reshape(1, cout),
                   params["bsc"].reshape(1, cout)]

    # 1px H halo, 2px W halo: keeps every store into a packed scratch aligned
    scratch_shapes = [
        pltpu.VMEM((n, h + 2, w + 4, cin), pad_dtype),      # padded x
        pltpu.VMEM((n, ho + 2, wo + 4, cout), pad_dtype),   # padded relu(bn1(conv1))
    ]
    if fat_k:
        scratch_shapes += [pltpu.VMEM((m, 9 * cin), mxu_dtype),
                           pltpu.VMEM((m, 9 * cout), mxu_dtype)]

    pad_isz = jnp.dtype(pad_dtype).itemsize
    mxu_isz = jnp.dtype(mxu_dtype).itemsize
    scratch_bytes = (n * (h + 2) * (w + 4) * cin
                     + n * (ho + 2) * (wo + 4) * cout) * pad_isz
    if fat_k:
        scratch_bytes += m * 9 * (cin + cout) * mxu_isz
    io_bytes = sum(int(a.size) * a.dtype.itemsize for a in inputs) + 4 * m * cout

    # explicit scoped-VMEM budget (defaults are 16 MiB v5e / 32 MiB v6e,v7x),
    # clamped to the physical capacity reported by the runtime
    vmem_limit = int(min(_vmem_capacity_bytes(),
                         max(2 * (scratch_bytes + io_bytes), 32 * 1024 * 1024)))

    flops = (2 * m * 9 * cin * cout            # conv1
             + 2 * m * 9 * cout * cout         # conv2
             + (2 * m * cin * cout if has_proj else 0)
             + 12 * m * cout)                  # BN / add / relu epilogues
    cost = pl.CostEstimate(flops=int(flops),
                           transcendentals=int((3 if has_proj else 2) * cout),
                           bytes_accessed=int(io_bytes))

    kern = functools.partial(_basic_block_kernel, stride=stride,
                             has_proj=has_proj, separate_xs=separate_xs,
                             fat_k=fat_k)

    out = pl.pallas_call(
        kern,
        out_shape=jax.ShapeDtypeStruct((m, cout), jnp.float32),
        in_specs=[pl.BlockSpec(memory_space=pltpu.MemorySpace.VMEM)] * len(inputs),
        out_specs=pl.BlockSpec(memory_space=pltpu.MemorySpace.VMEM),
        scratch_shapes=scratch_shapes,
        compiler_params=pltpu.CompilerParams(vmem_limit_bytes=vmem_limit),
        cost_estimate=cost,
    )(*inputs)

    out = out.reshape(n, ho, wo, cout)
    return jnp.transpose(out, (0, 3, 1, 2))                          # -> NCHW


# ----------------------------------------------------------------------------
# Pure-JAX reference (mirrors the PyTorch module, NCHW) for verification
# ----------------------------------------------------------------------------
def reference_forward(params, x_nchw, stride):
    def conv(x, w_hwio, s, pad):
        return lax.conv_general_dilated(
            x, w_hwio, window_strides=(s, s), padding=pad,
            dimension_numbers=("NCHW", "HWIO", "NCHW"))

    def bn(x, g, b):
        mean = jnp.mean(x, axis=(0, 2, 3), keepdims=True)
        var = jnp.mean(jnp.square(x - mean), axis=(0, 2, 3), keepdims=True)
        g = g.reshape(1, -1, 1, 1)
        b = b.reshape(1, -1, 1, 1)
        return (x - mean) * lax.rsqrt(var + EPS) * g + b

    x = x_nchw.astype(jnp.float32)
    o = conv(x, params["w1"], stride, ((1, 1), (1, 1)))
    o = jax.nn.relu(bn(o, params["g1"], params["b1"]))
    o = conv(o, params["w2"], 1, ((1, 1), (1, 1)))
    o = bn(o, params["g2"], params["b2"])
    if params["has_proj"]:
        cin, cout = params["wsc"].shape
        sc = conv(x, params["wsc"].reshape(1, 1, cin, cout), stride, ((0, 0), (0, 0)))
        sc = bn(sc, params["gsc"], params["bsc"])
    else:
        sc = x
    return jax.nn.relu(o + sc)


if __name__ == "__main__":
    key = jax.random.PRNGKey(0)
    n, h, w = 2, 16, 16
    configs = [
        (4, 8, 1),   # in_planes != planes -> 1x1 projection shortcut
        (8, 8, 1),   # identity shortcut (x_ref reused in-kernel, no dup input)
    ]
    for idx, (in_planes, planes, stride) in enumerate(configs):
        params = init_params(jax.random.fold_in(key, idx), in_planes, planes, stride)
        x = jax.random.normal(jax.random.fold_in(key, 100 + idx),
                              (n, in_planes, h, w), jnp.float32)
        ref = reference_forward(params, x, stride)

        for fat_k in (True, False):   # fat-K im2col (v5e/v6e) and chained (v7x)
            # f32 MXU operands: must match the f32 reference tightly.
            out = jax.block_until_ready(basic_block_forward(
                params, x, stride, mxu_dtype=jnp.float32, fat_k=fat_k))
            assert out.shape == (n, planes, h // stride, w // stride), out.shape
            if not bool(jnp.allclose(out, ref, atol=1e-4, rtol=1e-4)):
                err = float(jnp.max(jnp.abs(out - ref)))
                raise AssertionError(
                    f"f32 mismatch (config {idx}, fat_k={fat_k}), max abs err = {err}")

            # bf16 MXU operands (production default): ~2^-8 operand rounding
            # compounded through two convs + BN rescaling -> loose tolerance.
            out_bf16 = jax.block_until_ready(basic_block_forward(
                params, x, stride, mxu_dtype=jnp.bfloat16, fat_k=fat_k))
            if not bool(jnp.allclose(out_bf16, ref, atol=1e-1, rtol=1e-1)):
                err = float(jnp.max(jnp.abs(out_bf16 - ref)))
                raise AssertionError(
                    f"bf16 mismatch (config {idx}, fat_k={fat_k}), max abs err = {err}")

    print("KERNEL_OK")
</pallas_src>

<mosaic_0001>
module attributes {stable_mosaic.version = 11 : i64} {
  func.func @_basic_block_kernel(%arg0: memref<2x16x16x4xf32, #tpu.memory_space<vmem>>, %arg1: memref<36x8xf32, #tpu.memory_space<vmem>>, %arg2: memref<1x8xf32, #tpu.memory_space<vmem>>, %arg3: memref<1x8xf32, #tpu.memory_space<vmem>>, %arg4: memref<72x8xf32, #tpu.memory_space<vmem>>, %arg5: memref<1x8xf32, #tpu.memory_space<vmem>>, %arg6: memref<1x8xf32, #tpu.memory_space<vmem>>, %arg7: memref<4x8xf32, #tpu.memory_space<vmem>>, %arg8: memref<1x8xf32, #tpu.memory_space<vmem>>, %arg9: memref<1x8xf32, #tpu.memory_space<vmem>>, %arg10: memref<512x8xf32, #tpu.memory_space<vmem>>, %arg11: memref<2x18x20x4xf32, #tpu.memory_space<vmem>>, %arg12: memref<2x18x20x8xf32, #tpu.memory_space<vmem>>, %arg13: memref<512x36xf32, #tpu.memory_space<vmem>>, %arg14: memref<512x72xf32, #tpu.memory_space<vmem>>) attributes {dimension_semantics = [], scalar_prefetch = 0 : i64, scratch_operands = 4 : i64, tpu.core_type = #tpu.core_type<tc>} {
    %c0 = arith.constant 0 : index
    %c0_0 = arith.constant 0 : index
    %c0_1 = arith.constant 0 : index
    %c0_2 = arith.constant 0 : index
    %0 = vector.load %arg0[%c0, %c0_0, %c0_1, %c0_2] : memref<2x16x16x4xf32, #tpu.memory_space<vmem>>, vector<2x16x16x4xf32>
    %cst = arith.constant 0.000000e+00 : f32
    %1 = vector.broadcast %cst : f32 to vector<2x1x20x4xf32>
    %c0_3 = arith.constant 0 : index
    %c0_4 = arith.constant 0 : index
    %c0_5 = arith.constant 0 : index
    %c0_6 = arith.constant 0 : index
    %2 = vector.load %arg11[%c0_3, %c0_4, %c0_5, %c0_6] : memref<2x18x20x4xf32, #tpu.memory_space<vmem>>, vector<2x1x20x4xf32>
    tpu.vector_store %arg11[%c0_3, %c0_4, %c0_5, %c0_6], %1 {strides = array<i32>} : memref<2x18x20x4xf32, #tpu.memory_space<vmem>>, vector<2x1x20x4xf32>,
    %cst_7 = arith.constant 0.000000e+00 : f32
    %3 = vector.broadcast %cst_7 : f32 to vector<2x1x20x4xf32>
    %c0_8 = arith.constant 0 : index
    %c17 = arith.constant 17 : index
    %c0_9 = arith.constant 0 : index
    %c0_10 = arith.constant 0 : index
    %4 = vector.load %arg11[%c0_8, %c17, %c0_9, %c0_10] : memref<2x18x20x4xf32, #tpu.memory_space<vmem>>, vector<2x1x20x4xf32>
    tpu.vector_store %arg11[%c0_8, %c17, %c0_9, %c0_10], %3 {strides = array<i32>} : memref<2x18x20x4xf32, #tpu.memory_space<vmem>>, vector<2x1x20x4xf32>,
    %cst_11 = arith.constant 0.000000e+00 : f32
    %5 = vector.broadcast %cst_11 : f32 to vector<2x18x2x4xf32>
    %c0_12 = arith.constant 0 : index
    %c0_13 = arith.constant 0 : index
    %c0_14 = arith.constant 0 : index
    %c0_15 = arith.constant 0 : index
    %6 = vector.load %arg11[%c0_12, %c0_13, %c0_14, %c0_15] : memref<2x18x20x4xf32, #tpu.memory_space<vmem>>, vector<2x18x2x4xf32>
    tpu.vector_store %arg11[%c0_12, %c0_13, %c0_14, %c0_15], %5 {strides = array<i32>} : memref<2x18x20x4xf32, #tpu.memory_space<vmem>>, vector<2x18x2x4xf32>,
    %cst_16 = arith.constant 0.000000e+00 : f32
    %7 = vector.broadcast %cst_16 : f32 to vector<2x18x2x4xf32>
    %c0_17 = arith.constant 0 : index
    %c0_18 = arith.constant 0 : index
    %c18 = arith.constant 18 : index
    %c0_19 = arith.constant 0 : index
    %8 = vector.load %arg11[%c0_17, %c0_18, %c18, %c0_19] : memref<2x18x20x4xf32, #tpu.memory_space<vmem>>, vector<2x18x2x4xf32>
    tpu.vector_store %arg11[%c0_17, %c0_18, %c18, %c0_19], %7 {strides = array<i32>} : memref<2x18x20x4xf32, #tpu.memory_space<vmem>>, vector<2x18x2x4xf32>,
    %c0_20 = arith.constant 0 : index
    %c1 = arith.constant 1 : index
    %c2 = arith.constant 2 : index
    %c0_21 = arith.constant 0 : index
    %9 = vector.load %arg11[%c0_20, %c1, %c2, %c0_21] : memref<2x18x20x4xf32, #tpu.memory_space<vmem>>, vector<2x16x16x4xf32>
    tpu.vector_store %arg11[%c0_20, %c1, %c2, %c0_21], %0 {strides = array<i32>} : memref<2x18x20x4xf32, #tpu.memory_space<vmem>>, vector<2x16x16x4xf32>,
    %c0_22 = arith.constant 0 : index
    %c0_23 = arith.constant 0 : index
    %c1_24 = arith.constant 1 : index
    %c0_25 = arith.constant 0 : index
    %10 = vector.load %arg11[%c0_22, %c0_23, %c1_24, %c0_25] : memref<2x18x20x4xf32, #tpu.memory_space<vmem>>, vector<2x16x16x4xf32>
    %11 = vector.shape_cast %10 : vector<2x16x16x4xf32> to vector<512x4xf32>
    %c0_26 = arith.constant 0 : index
    %c0_27 = arith.constant 0 : index
    %12 = vector.load %arg13[%c0_26, %c0_27] : memref<512x36xf32, #tpu.memory_space<vmem>>, vector<512x4xf32>
    tpu.vector_store %arg13[%c0_26, %c0_27], %11 {strides = array<i32>} : memref<512x36xf32, #tpu.memory_space<vmem>>, vector<512x4xf32>,
    %c0_28 = arith.constant 0 : index
    %c0_29 = arith.constant 0 : index
    %c2_30 = arith.constant 2 : index
    %c0_31 = arith.constant 0 : index
    %13 = vector.load %arg11[%c0_28, %c0_29, %c2_30, %c0_31] : memref<2x18x20x4xf32, #tpu.memory_space<vmem>>, vector<2x16x16x4xf32>
    %14 = vector.shape_cast %13 : vector<2x16x16x4xf32> to vector<512x4xf32>
    %c0_32 = arith.constant 0 : index
    %c4 = arith.constant 4 : index
    %15 = vector.load %arg13[%c0_32, %c4] : memref<512x36xf32, #tpu.memory_space<vmem>>, vector<512x4xf32>
    tpu.vector_store %arg13[%c0_32, %c4], %14 {strides = array<i32>} : memref<512x36xf32, #tpu.memory_space<vmem>>, vector<512x4xf32>,
    %c0_33 = arith.constant 0 : index
    %c0_34 = arith.constant 0 : index
    %c3 = arith.constant 3 : index
    %c0_35 = arith.constant 0 : index
    %16 = vector.load %arg11[%c0_33, %c0_34, %c3, %c0_35] : memref<2x18x20x4xf32, #tpu.memory_space<vmem>>, vector<2x16x16x4xf32>
    %17 = vector.shape_cast %16 : vector<2x16x16x4xf32> to vector<512x4xf32>
    %c0_36 = arith.constant 0 : index
    %c8 = arith.constant 8 : index
    %18 = vector.load %arg13[%c0_36, %c8] : memref<512x36xf32, #tpu.memory_space<vmem>>, vector<512x4xf32>
    tpu.vector_store %arg13[%c0_36, %c8], %17 {strides = array<i32>} : memref<512x36xf32, #tpu.memory_space<vmem>>, vector<512x4xf32>,
    %c0_37 = arith.constant 0 : index
    %c1_38 = arith.constant 1 : index
    %c1_39 = arith.constant 1 : index
    %c0_40 = arith.constant 0 : index
    %19 = vector.load %arg11[%c0_37, %c1_38, %c1_39, %c0_40] : memref<2x18x20x4xf32, #tpu.memory_space<vmem>>, vector<2x16x16x4xf32>
    %20 = vector.shape_cast %19 : vector<2x16x16x4xf32> to vector<512x4xf32>
    %c0_41 = arith.constant 0 : index
    %c12 = arith.constant 12 : index
    %21 = vector.load %arg13[%c0_41, %c12] : memref<512x36xf32, #tpu.memory_space<vmem>>, vector<512x4xf32>
    tpu.vector_store %arg13[%c0_41, %c12], %20 {strides = array<i32>} : memref<512x36xf32, #tpu.memory_space<vmem>>, vector<512x4xf32>,
    %c0_42 = arith.constant 0 : index
    %c1_43 = arith.constant 1 : index
    %c2_44 = arith.constant 2 : index
    %c0_45 = arith.constant 0 : index
    %22 = vector.load %arg11[%c0_42, %c1_43, %c2_44, %c0_45] : memref<2x18x20x4xf32, #tpu.memory_space<vmem>>, vector<2x16x16x4xf32>
    %23 = vector.shape_cast %22 : vector<2x16x16x4xf32> to vector<512x4xf32>
    %c0_46 = arith.constant 0 : index
    %c16 = arith.constant 16 : index
    %24 = vector.load %arg13[%c0_46, %c16] : memref<512x36xf32, #tpu.memory_space<vmem>>, vector<512x4xf32>
    tpu.vector_store %arg13[%c0_46, %c16], %23 {strides = array<i32>} : memref<512x36xf32, #tpu.memory_space<vmem>>, vector<512x4xf32>,
    %c0_47 = arith.constant 0 : index
    %c1_48 = arith.constant 1 : index
    %c3_49 = arith.constant 3 : index
    %c0_50 = arith.constant 0 : index
    %25 = vector.load %arg11[%c0_47, %c1_48, %c3_49, %c0_50] : memref<2x18x20x4xf32, #tpu.memory_space<vmem>>, vector<2x16x16x4xf32>
    %26 = vector.shape_cast %25 : vector<2x16x16x4xf32> to vector<512x4xf32>
    %c0_51 = arith.constant 0 : index
    %c20 = arith.constant 20 : index
    %27 = vector.load %arg13[%c0_51, %c20] : memref<512x36xf32, #tpu.memory_space<vmem>>, vector<512x4xf32>
    tpu.vector_store %arg13[%c0_51, %c20], %26 {strides = array<i32>} : memref<512x36xf32, #tpu.memory_space<vmem>>, vector<512x4xf32>,
    %c0_52 = arith.constant 0 : index
    %c2_53 = arith.constant 2 : index
    %c1_54 = arith.constant 1 : index
    %c0_55 = arith.constant 0 : index
    %28 = vector.load %arg11[%c0_52, %c2_53, %c1_54, %c0_55] : memref<2x18x20x4xf32, #tpu.memory_space<vmem>>, vector<2x16x16x4xf32>
    %29 = vector.shape_cast %28 : vector<2x16x16x4xf32> to vector<512x4xf32>
    %c0_56 = arith.constant 0 : index
    %c24 = arith.constant 24 : index
    %30 = vector.load %arg13[%c0_56, %c24] : memref<512x36xf32, #tpu.memory_space<vmem>>, vector<512x4xf32>
    tpu.vector_store %arg13[%c0_56, %c24], %29 {strides = array<i32>} : memref<512x36xf32, #tpu.memory_space<vmem>>, vector<512x4xf32>,
    %c0_57 = arith.constant 0 : index
    %c2_58 = arith.constant 2 : index
    %c2_59 = arith.constant 2 : index
    %c0_60 = arith.constant 0 : index
    %31 = vector.load %arg11[%c0_57, %c2_58, %c2_59, %c0_60] : memref<2x18x20x4xf32, #tpu.memory_space<vmem>>, vector<2x16x16x4xf32>
    %32 = vector.shape_cast %31 : vector<2x16x16x4xf32> to vector<512x4xf32>
    %c0_61 = arith.constant 0 : index
    %c28 = arith.constant 28 : index
    %33 = vector.load %arg13[%c0_61, %c28] : memref<512x36xf32, #tpu.memory_space<vmem>>, vector<512x4xf32>
    tpu.vector_store %arg13[%c0_61, %c28], %32 {strides = array<i32>} : memref<512x36xf32, #tpu.memory_space<vmem>>, vector<512x4xf32>,
    %c0_62 = arith.constant 0 : index
    %c2_63 = arith.constant 2 : index
    %c3_64 = arith.constant 3 : index
    %c0_65 = arith.constant 0 : index
    %34 = vector.load %arg11[%c0_62, %c2_63, %c3_64, %c0_65] : memref<2x18x20x4xf32, #tpu.memory_space<vmem>>, vector<2x16x16x4xf32>
    %35 = vector.shape_cast %34 : vector<2x16x16x4xf32> to vector<512x4xf32>
    %c0_66 = arith.constant 0 : index
    %c32 = arith.constant 32 : index
    %36 = vector.load %arg13[%c0_66, %c32] : memref<512x36xf32, #tpu.memory_space<vmem>>, vector<512x4xf32>
    tpu.vector_store %arg13[%c0_66, %c32], %35 {strides = array<i32>} : memref<512x36xf32, #tpu.memory_space<vmem>>, vector<512x4xf32>,
    %c0_67 = arith.constant 0 : index
    %c0_68 = arith.constant 0 : index
    %37 = vector.load %arg13[%c0_67, %c0_68] : memref<512x36xf32, #tpu.memory_space<vmem>>, vector<512x36xf32>
    %c0_69 = arith.constant 0 : index
    %c0_70 = arith.constant 0 : index
    %38 = vector.load %arg1[%c0_69, %c0_70] : memref<36x8xf32, #tpu.memory_space<vmem>>, vector<36x8xf32>
    %cst_71 = arith.constant dense<0.000000e+00> : vector<512x8xf32>
    %39 = tpu.matmul %37, %38, %cst_71 {dimension_numbers = #tpu.dot_dimension_numbers<[1], [0], [0], [1], [0, 0, 1, 1], [], []>} : vector<512x36xf32>, vector<36x8xf32>, vector<512x8xf32> -> vector<512x8xf32>
    %c0_72 = arith.constant 0 : index
    %c0_73 = arith.constant 0 : index
    %40 = vector.load %arg2[%c0_72, %c0_73] : memref<1x8xf32, #tpu.memory_space<vmem>>, vector<1x8xf32>
    %c0_74 = arith.constant 0 : index
    %c0_75 = arith.constant 0 : index
    %41 = vector.load %arg3[%c0_74, %c0_75] : memref<1x8xf32, #tpu.memory_space<vmem>>, vector<1x8xf32>
    %cst_76 = arith.constant dense<0.000000e+00> : vector<8xf32>
    %42 = vector.multi_reduction <add>, %39, %cst_76 [0] : vector<512x8xf32> to vector<8xf32>
    %43 = vector.shape_cast %42 : vector<8xf32> to vector<1x8xf32>
    %cst_77 = arith.constant 5.120000e+02 : f32
    %44 = vector.broadcast %cst_77 : f32 to vector<1x8xf32>
    %45 = arith.divf %43, %44 : vector<1x8xf32>
    %46 = vector.broadcast %45 : vector<1x8xf32> to vector<512x8xf32>
    %47 = arith.subf %39, %46 : vector<512x8xf32>
    %48 = arith.mulf %47, %47 : vector<512x8xf32>
    %cst_78 = arith.constant dense<0.000000e+00> : vector<8xf32>
    %49 = vector.multi_reduction <add>, %48, %cst_78 [0] : vector<512x8xf32> to vector<8xf32>
    %50 = vector.shape_cast %49 : vector<8xf32> to vector<1x8xf32>
    %cst_79 = arith.constant 5.120000e+02 : f32
    %51 = vector.broadcast %cst_79 : f32 to vector<1x8xf32>
    %52 = arith.divf %50, %51 : vector<1x8xf32>
    %cst_80 = arith.constant 9.99999974E-6 : f32
    %53 = vector.broadcast %cst_80 : f32 to vector<1x8xf32>
    %54 = arith.addf %52, %53 : vector<1x8xf32>
    %55 = math.rsqrt %54 : vector<1x8xf32>
    %56 = vector.broadcast %55 : vector<1x8xf32> to vector<512x8xf32>
    %57 = arith.mulf %47, %56 : vector<512x8xf32>
    %58 = vector.broadcast %40 : vector<1x8xf32> to vector<512x8xf32>
    %59 = arith.mulf %57, %58 : vector<512x8xf32>
    %60 = vector.broadcast %41 : vector<1x8xf32> to vector<512x8xf32>
    %61 = arith.addf %59, %60 : vector<512x8xf32>
    %cst_81 = arith.constant 0.000000e+00 : f32
    %62 = vector.broadcast %cst_81 : f32 to vector<512x8xf32>
    %63 = arith.maximumf %61, %62 : vector<512x8xf32>
    %64 = vector.shape_cast %63 : vector<512x8xf32> to vector<2x16x16x8xf32>
    %cst_82 = arith.constant 0.000000e+00 : f32
    %65 = vector.broadcast %cst_82 : f32 to vector<2x1x20x8xf32>
    %c0_83 = arith.constant 0 : index
    %c0_84 = arith.constant 0 : index
    %c0_85 = arith.constant 0 : index
    %c0_86 = arith.constant 0 : index
    %66 = vector.load %arg12[%c0_83, %c0_84, %c0_85, %c0_86] : memref<2x18x20x8xf32, #tpu.memory_space<vmem>>, vector<2x1x20x8xf32>
    tpu.vector_store %arg12[%c0_83, %c0_84, %c0_85, %c0_86], %65 {strides = array<i32>} : memref<2x18x20x8xf32, #tpu.memory_space<vmem>>, vector<2x1x20x8xf32>,
    %cst_87 = arith.constant 0.000000e+00 : f32
    %67 = vector.broadcast %cst_87 : f32 to vector<2x1x20x8xf32>
    %c0_88 = arith.constant 0 : index
    %c17_89 = arith.constant 17 : index
    %c0_90 = arith.constant 0 : index
    %c0_91 = arith.constant 0 : index
    %68 = vector.load %arg12[%c0_88, %c17_89, %c0_90, %c0_91] : memref<2x18x20x8xf32, #tpu.memory_space<vmem>>, vector<2x1x20x8xf32>
    tpu.vector_store %arg12[%c0_88, %c17_89, %c0_90, %c0_91], %67 {strides = array<i32>} : memref<2x18x20x8xf32, #tpu.memory_space<vmem>>, vector<2x1x20x8xf32>,
    %cst_92 = arith.constant 0.000000e+00 : f32
    %69 = vector.broadcast %cst_92 : f32 to vector<2x18x2x8xf32>
    %c0_93 = arith.constant 0 : index
    %c0_94 = arith.constant 0 : index
    %c0_95 = arith.constant 0 : index
    %c0_96 = arith.constant 0 : index
    %70 = vector.load %arg12[%c0_93, %c0_94, %c0_95, %c0_96] : memref<2x18x20x8xf32, #tpu.memory_space<vmem>>, vector<2x18x2x8xf32>
    tpu.vector_store %arg12[%c0_93, %c0_94, %c0_95, %c0_96], %69 {strides = array<i32>} : memref<2x18x20x8xf32, #tpu.memory_space<vmem>>, vector<2x18x2x8xf32>,
    %cst_97 = arith.constant 0.000000e+00 : f32
    %71 = vector.broadcast %cst_97 : f32 to vector<2x18x2x8xf32>
    %c0_98 = arith.constant 0 : index
    %c0_99 = arith.constant 0 : index
    %c18_100 = arith.constant 18 : index
    %c0_101 = arith.constant 0 : index
    %72 = vector.load %arg12[%c0_98, %c0_99, %c18_100, %c0_101] : memref<2x18x20x8xf32, #tpu.memory_space<vmem>>, vector<2x18x2x8xf32>
    tpu.vector_store %arg12[%c0_98, %c0_99, %c18_100, %c0_101], %71 {strides = array<i32>} : memref<2x18x20x8xf32, #tpu.memory_space<vmem>>, vector<2x18x2x8xf32>,
    %c0_102 = arith.constant 0 : index
    %c1_103 = arith.constant 1 : index
    %c2_104 = arith.constant 2 : index
    %c0_105 = arith.constant 0 : index
    %73 = vector.load %arg12[%c0_102, %c1_103, %c2_104, %c0_105] : memref<2x18x20x8xf32, #tpu.memory_space<vmem>>, vector<2x16x16x8xf32>
    tpu.vector_store %arg12[%c0_102, %c1_103, %c2_104, %c0_105], %64 {strides = array<i32>} : memref<2x18x20x8xf32, #tpu.memory_space<vmem>>, vector<2x16x16x8xf32>,
    %c0_106 = arith.constant 0 : index
    %c0_107 = arith.constant 0 : index
    %c1_108 = arith.constant 1 : index
    %c0_109 = arith.constant 0 : index
    %74 = vector.load %arg12[%c0_106, %c0_107, %c1_108, %c0_109] : memref<2x18x20x8xf32, #tpu.memory_space<vmem>>, vector<2x16x16x8xf32>
    %75 = vector.shape_cast %74 : vector<2x16x16x8xf32> to vector<512x8xf32>
    %c0_110 = arith.constant 0 : index
    %c0_111 = arith.constant 0 : index
    %76 = vector.load %arg14[%c0_110, %c0_111] : memref<512x72xf32, #tpu.memory_space<vmem>>, vector<512x8xf32>
    tpu.vector_store %arg14[%c0_110, %c0_111], %75 {strides = array<i32>} : memref<512x72xf32, #tpu.memory_space<vmem>>, vector<512x8xf32>,
    %c0_112 = arith.constant 0 : index
    %c0_113 = arith.constant 0 : index
    %c2_114 = arith.constant 2 : index
    %c0_115 = arith.constant 0 : index
    %77 = vector.load %arg12[%c0_112, %c0_113, %c2_114, %c0_115] : memref<2x18x20x8xf32, #tpu.memory_space<vmem>>, vector<2x16x16x8xf32>
    %78 = vector.shape_cast %77 : vector<2x16x16x8xf32> to vector<512x8xf32>
    %c0_116 = arith.constant 0 : index
    %c8_117 = arith.constant 8 : index
    %79 = vector.load %arg14[%c0_116, %c8_117] : memref<512x72xf32, #tpu.memory_space<vmem>>, vector<512x8xf32>
    tpu.vector_store %arg14[%c0_116, %c8_117], %78 {strides = array<i32>} : memref<512x72xf32, #tpu.memory_space<vmem>>, vector<512x8xf32>,
    %c0_118 = arith.constant 0 : index
    %c0_119 = arith.constant 0 : index
    %c3_120 = arith.constant 3 : index
    %c0_121 = arith.constant 0 : index
    %80 = vector.load %arg12[%c0_118, %c0_119, %c3_120, %c0_121] : memref<2x18x20x8xf32, #tpu.memory_space<vmem>>, vector<2x16x16x8xf32>
    %81 = vector.shape_cast %80 : vector<2x16x16x8xf32> to vector<512x8xf32>
    %c0_122 = arith.constant 0 : index
    %c16_123 = arith.constant 16 : index
    %82 = vector.load %arg14[%c0_122, %c16_123] : memref<512x72xf32, #tpu.memory_space<vmem>>, vector<512x8xf32>
    tpu.vector_store %arg14[%c0_122, %c16_123], %81 {strides = array<i32>} : memref<512x72xf32, #tpu.memory_space<vmem>>, vector<512x8xf32>,
    %c0_124 = arith.constant 0 : index
    %c1_125 = arith.constant 1 : index
    %c1_126 = arith.constant 1 : index
    %c0_127 = arith.constant 0 : index
    %83 = vector.load %arg12[%c0_124, %c1_125, %c1_126, %c0_127] : memref<2x18x20x8xf32, #tpu.memory_space<vmem>>, vector<2x16x16x8xf32>
    %84 = vector.shape_cast %83 : vector<2x16x16x8xf32> to vector<512x8xf32>
    %c0_128 = arith.constant 0 : index
    %c24_129 = arith.constant 24 : index
    %85 = vector.load %arg14[%c0_128, %c24_129] : memref<512x72xf32, #tpu.memory_space<vmem>>, vector<512x8xf32>
    tpu.vector_store %arg14[%c0_128, %c24_129], %84 {strides = array<i32>} : memref<512x72xf32, #tpu.memory_space<vmem>>, vector<512x8xf32>,
    %c0_130 = arith.constant 0 : index
    %c1_131 = arith.constant 1 : index
    %c2_132 = arith.constant 2 : index
    %c0_133 = arith.constant 0 : index
    %86 = vector.load %arg12[%c0_130, %c1_131, %c2_132, %c0_133] : memref<2x18x20x8xf32, #tpu.memory_space<vmem>>, vector<2x16x16x8xf32>
    %87 = vector.shape_cast %86 : vector<2x16x16x8xf32> to vector<512x8xf32>
    %c0_134 = arith.constant 0 : index
    %c32_135 = arith.constant 32 : index
    %88 = vector.load %arg14[%c0_134, %c32_135] : memref<512x72xf32, #tpu.memory_space<vmem>>, vector<512x8xf32>
    tpu.vector_store %arg14[%c0_134, %c32_135], %87 {strides = array<i32>} : memref<512x72xf32, #tpu.memory_space<vmem>>, vector<512x8xf32>,
    %c0_136 = arith.constant 0 : index
    %c1_137 = arith.constant 1 : index
    %c3_138 = arith.constant 3 : index
    %c0_139 = arith.constant 0 : index
    %89 = vector.load %arg12[%c0_136, %c1_137, %c3_138, %c0_139] : memref<2x18x20x8xf32, #tpu.memory_space<vmem>>, vector<2x16x16x8xf32>
    %90 = vector.shape_cast %89 : vector<2x16x16x8xf32> to vector<512x8xf32>
    %c0_140 = arith.constant 0 : index
    %c40 = arith.constant 40 : index
    %91 = vector.load %arg14[%c0_140, %c40] : memref<512x72xf32, #tpu.memory_space<vmem>>, vector<512x8xf32>
    tpu.vector_store %arg14[%c0_140, %c40], %90 {strides = array<i32>} : memref<512x72xf32, #tpu.memory_space<vmem>>, vector<512x8xf32>,
    %c0_141 = arith.constant 0 : index
    %c2_142 = arith.constant 2 : index
    %c1_143 = arith.constant 1 : index
    %c0_144 = arith.constant 0 : index
    %92 = vector.load %arg12[%c0_141, %c2_142, %c1_143, %c0_144] : memref<2x18x20x8xf32, #tpu.memory_space<vmem>>, vector<2x16x16x8xf32>
    %93 = vector.shape_cast %92 : vector<2x16x16x8xf32> to vector<512x8xf32>
    %c0_145 = arith.constant 0 : index
    %c48 = arith.constant 48 : index
    %94 = vector.load %arg14[%c0_145, %c48] : memref<512x72xf32, #tpu.memory_space<vmem>>, vector<512x8xf32>
    tpu.vector_store %arg14[%c0_145, %c48], %93 {strides = array<i32>} : memref<512x72xf32, #tpu.memory_space<vmem>>, vector<512x8xf32>,
    %c0_146 = arith.constant 0 : index
    %c2_147 = arith.constant 2 : index
    %c2_148 = arith.constant 2 : index
    %c0_149 = arith.constant 0 : index
    %95 = vector.load %arg12[%c0_146, %c2_147, %c2_148, %c0_149] : memref<2x18x20x8xf32, #tpu.memory_space<vmem>>, vector<2x16x16x8xf32>
    %96 = vector.shape_cast %95 : vector<2x16x16x8xf32> to vector<512x8xf32>
    %c0_150 = arith.constant 0 : index
    %c56 = arith.constant 56 : index
    %97 = vector.load %arg14[%c0_150, %c56] : memref<512x72xf32, #tpu.memory_space<vmem>>, vector<512x8xf32>
    tpu.vector_store %arg14[%c0_150, %c56], %96 {strides = array<i32>} : memref<512x72xf32, #tpu.memory_space<vmem>>, vector<512x8xf32>,
    %c0_151 = arith.constant 0 : index
    %c2_152 = arith.constant 2 : index
    %c3_153 = arith.constant 3 : index
    %c0_154 = arith.constant 0 : index
    %98 = vector.load %arg12[%c0_151, %c2_152, %c3_153, %c0_154] : memref<2x18x20x8xf32, #tpu.memory_space<vmem>>, vector<2x16x16x8xf32>
    %99 = vector.shape_cast %98 : vector<2x16x16x8xf32> to vector<512x8xf32>
    %c0_155 = arith.constant 0 : index
    %c64 = arith.constant 64 : index
    %100 = vector.load %arg14[%c0_155, %c64] : memref<512x72xf32, #tpu.memory_space<vmem>>, vector<512x8xf32>
    tpu.vector_store %arg14[%c0_155, %c64], %99 {strides = array<i32>} : memref<512x72xf32, #tpu.memory_space<vmem>>, vector<512x8xf32>,
    %c0_156 = arith.constant 0 : index
    %c0_157 = arith.constant 0 : index
    %101 = vector.load %arg14[%c0_156, %c0_157] : memref<512x72xf32, #tpu.memory_space<vmem>>, vector<512x72xf32>
    %c0_158 = arith.constant 0 : index
    %c0_159 = arith.constant 0 : index
    %102 = vector.load %arg4[%c0_158, %c0_159] : memref<72x8xf32, #tpu.memory_space<vmem>>, vector<72x8xf32>
    %cst_160 = arith.constant dense<0.000000e+00> : vector<512x8xf32>
    %103 = tpu.matmul %101, %102, %cst_160 {dimension_numbers = #tpu.dot_dimension_numbers<[1], [0], [0], [1], [0, 0, 1, 1], [], []>} : vector<512x72xf32>, vector<72x8xf32>, vector<512x8xf32> -> vector<512x8xf32>
    %c0_161 = arith.constant 0 : index
    %c0_162 = arith.constant 0 : index
    %104 = vector.load %arg5[%c0_161, %c0_162] : memref<1x8xf32, #tpu.memory_space<vmem>>, vector<1x8xf32>
    %c0_163 = arith.constant 0 : index
    %c0_164 = arith.constant 0 : index
    %105 = vector.load %arg6[%c0_163, %c0_164] : memref<1x8xf32, #tpu.memory_space<vmem>>, vector<1x8xf32>
    %cst_165 = arith.constant dense<0.000000e+00> : vector<8xf32>
    %106 = vector.multi_reduction <add>, %103, %cst_165 [0] : vector<512x8xf32> to vector<8xf32>
    %107 = vector.shape_cast %106 : vector<8xf32> to vector<1x8xf32>
    %cst_166 = arith.constant 5.120000e+02 : f32
    %108 = vector.broadcast %cst_166 : f32 to vector<1x8xf32>
    %109 = arith.divf %107, %108 : vector<1x8xf32>
    %110 = vector.broadcast %109 : vector<1x8xf32> to vector<512x8xf32>
    %111 = arith.subf %103, %110 : vector<512x8xf32>
    %112 = arith.mulf %111, %111 : vector<512x8xf32>
    %cst_167 = arith.constant dense<0.000000e+00> : vector<8xf32>
    %113 = vector.multi_reduction <add>, %112, %cst_167 [0] : vector<512x8xf32> to vector<8xf32>
    %114 = vector.shape_cast %113 : vector<8xf32> to vector<1x8xf32>
    %cst_168 = arith.constant 5.120000e+02 : f32
    %115 = vector.broadcast %cst_168 : f32 to vector<1x8xf32>
    %116 = arith.divf %114, %115 : vector<1x8xf32>
    %cst_169 = arith.constant 9.99999974E-6 : f32
    %117 = vector.broadcast %cst_169 : f32 to vector<1x8xf32>
    %118 = arith.addf %116, %117 : vector<1x8xf32>
    %119 = math.rsqrt %118 : vector<1x8xf32>
    %120 = vector.broadcast %119 : vector<1x8xf32> to vector<512x8xf32>
    %121 = arith.mulf %111, %120 : vector<512x8xf32>
    %122 = vector.broadcast %104 : vector<1x8xf32> to vector<512x8xf32>
    %123 = arith.mulf %121, %122 : vector<512x8xf32>
    %124 = vector.broadcast %105 : vector<1x8xf32> to vector<512x8xf32>
    %125 = arith.addf %123, %124 : vector<512x8xf32>
    %126 = vector.shape_cast %0 : vector<2x16x16x4xf32> to vector<512x4xf32>
    %c0_170 = arith.constant 0 : index
    %c0_171 = arith.constant 0 : index
    %127 = vector.load %arg7[%c0_170, %c0_171] : memref<4x8xf32, #tpu.memory_space<vmem>>, vector<4x8xf32>
    %cst_172 = arith.constant dense<0.000000e+00> : vector<512x8xf32>
    %128 = tpu.matmul %126, %127, %cst_172 {dimension_numbers = #tpu.dot_dimension_numbers<[1], [0], [0], [1], [0, 0, 1, 1], [], []>} : vector<512x4xf32>, vector<4x8xf32>, vector<512x8xf32> -> vector<512x8xf32>
    %c0_173 = arith.constant 0 : index
    %c0_174 = arith.constant 0 : index
    %129 = vector.load %arg8[%c0_173, %c0_174] : memref<1x8xf32, #tpu.memory_space<vmem>>, vector<1x8xf32>
    %c0_175 = arith.constant 0 : index
    %c0_176 = arith.constant 0 : index
    %130 = vector.load %arg9[%c0_175, %c0_176] : memref<1x8xf32, #tpu.memory_space<vmem>>, vector<1x8xf32>
    %cst_177 = arith.constant dense<0.000000e+00> : vector<8xf32>
    %131 = vector.multi_reduction <add>, %128, %cst_177 [0] : vector<512x8xf32> to vector<8xf32>
    %132 = vector.shape_cast %131 : vector<8xf32> to vector<1x8xf32>
    %cst_178 = arith.constant 5.120000e+02 : f32
    %133 = vector.broadcast %cst_178 : f32 to vector<1x8xf32>
    %134 = arith.divf %132, %133 : vector<1x8xf32>
    %135 = vector.broadcast %134 : vector<1x8xf32> to vector<512x8xf32>
    %136 = arith.subf %128, %135 : vector<512x8xf32>
    %137 = arith.mulf %136, %136 : vector<512x8xf32>
    %cst_179 = arith.constant dense<0.000000e+00> : vector<8xf32>
    %138 = vector.multi_reduction <add>, %137, %cst_179 [0] : vector<512x8xf32> to vector<8xf32>
    %139 = vector.shape_cast %138 : vector<8xf32> to vector<1x8xf32>
    %cst_180 = arith.constant 5.120000e+02 : f32
    %140 = vector.broadcast %cst_180 : f32 to vector<1x8xf32>
    %141 = arith.divf %139, %140 : vector<1x8xf32>
    %cst_181 = arith.constant 9.99999974E-6 : f32
    %142 = vector.broadcast %cst_181 : f32 to vector<1x8xf32>
    %143 = arith.addf %141, %142 : vector<1x8xf32>
    %144 = math.rsqrt %143 : vector<1x8xf32>
    %145 = vector.broadcast %144 : vector<1x8xf32> to vector<512x8xf32>
    %146 = arith.mulf %136, %145 : vector<512x8xf32>
    %147 = vector.broadcast %129 : vector<1x8xf32> to vector<512x8xf32>
    %148 = arith.mulf %146, %147 : vector<512x8xf32>
    %149 = vector.broadcast %130 : vector<1x8xf32> to vector<512x8xf32>
    %150 = arith.addf %148, %149 : vector<512x8xf32>
    %151 = arith.addf %125, %150 : vector<512x8xf32>
    %cst_182 = arith.constant 0.000000e+00 : f32
    %152 = vector.broadcast %cst_182 : f32 to vector<512x8xf32>
    %153 = arith.maximumf %151, %152 : vector<512x8xf32>
    %c0_183 = arith.constant 0 : index
    %c0_184 = arith.constant 0 : index
    %154 = vector.load %arg10[%c0_183, %c0_184] : memref<512x8xf32, #tpu.memory_space<vmem>>, vector<512x8xf32>
    tpu.vector_store %arg10[%c0_183, %c0_184], %153 {strides = array<i32>} : memref<512x8xf32, #tpu.memory_space<vmem>>, vector<512x8xf32>,
    return
  }
}

</mosaic_0001>

<llo_original>
// kernel: tpu_custom_call.1
$region0: #{tpu_custom_call.1}
  #allocation0 [shape = 'u32[]', space=smem, size = 0x4, offset = 0x4, fixed_abs, tag = 'smem constant byte address 0x4 - core index']
  #allocation1 [shape = 'u32[144,128]{1,0:T(1,128)}', space=vmem, size = 0x12000, scoped, tag = 'internal scratch']
  #allocation2 [shape = 'f32[2,18,20,4]{3,2,1,0:T(8,128)}', space=vmem, size = 0x6c000, scoped, tag = 'scratch operand']
  #allocation3 [shape = 'f32[2,18,20,8]{3,2,1,0:T(8,128)}', space=vmem, size = 0x6c000, scoped, tag = 'scratch operand']
  #allocation4 [shape = 'f32[512,36]{1,0:T(8,128)}', space=vmem, size = 0x40000, scoped, tag = 'scratch operand']
  #allocation5 [shape = 'f32[512,72]{1,0:T(8,128)}', space=vmem, size = 0x40000, scoped, tag = 'scratch operand']
  %s0 = inlined_call_operand.vmem [shape: f32[2,16,16,4], index: 0, kind: input, shape index: {}]
  %s1 = inlined_call_operand.vmem [shape: f32[36,8], index: 1, kind: input, shape index: {}]
  %s2 = inlined_call_operand.vmem [shape: f32[1,8], index: 2, kind: input, shape index: {}]
  %s3 = inlined_call_operand.vmem [shape: f32[1,8], index: 3, kind: input, shape index: {}]
  %s4 = inlined_call_operand.vmem [shape: f32[72,8], index: 4, kind: input, shape index: {}]
  %s5 = inlined_call_operand.vmem [shape: f32[1,8], index: 5, kind: input, shape index: {}]
  %s6 = inlined_call_operand.vmem [shape: f32[1,8], index: 6, kind: input, shape index: {}]
  %s7 = inlined_call_operand.vmem [shape: f32[4,8], index: 7, kind: input, shape index: {}]
  %s8 = inlined_call_operand.vmem [shape: f32[1,8], index: 8, kind: input, shape index: {}]
  %s9 = inlined_call_operand.vmem [shape: f32[1,8], index: 9, kind: input, shape index: {}]
  %s10 = inlined_call_operand.vmem [shape: f32[512,8], index: 10, kind: output, shape index: {}]
  %s11 = sld [smem:[#allocation0]]
  $region50: #{tpu_custom_call.1} parent=0
    _
  %s13 = ssub.s32 1, %s11
  %s14 = scalar_select 0, %s13, %s11
  // Predicated region
  $region2: #{tpu_custom_call.1} parent=0 // pred_check
    _
  $region3: #{tpu_custom_call.1} parent=0 // pred_check_branch
    %16 = sbr.rel (0) target = $region5
  $region4: #{tpu_custom_call.1} parent=0 // pred_region
    _
  $region5: #{tpu_custom_call.1} parent=0 // pred_fallthru
    _
  // Predicated region
  $region6: #{tpu_custom_call.1} parent=0 // pred_check
    _
  $region7: #{tpu_custom_call.1} parent=0 // pred_check_branch
    %18 = sbr.rel (0) target = $region9
  $region8: #{tpu_custom_call.1} parent=0 // pred_region
    _
  $region9: #{tpu_custom_call.1} parent=0 // pred_fallthru
    _
  // Predicated region
  $region10: #{tpu_custom_call.1} parent=0 // pred_check
    _
  $region11: #{tpu_custom_call.1} parent=0 // pred_check_branch
    %20 = sbr.rel (0) target = $region13
  $region12: #{tpu_custom_call.1} parent=0 // pred_region
    _
  $region13: #{tpu_custom_call.1} parent=0 // pred_fallthru
    _
  // Predicated region
  $region14: #{tpu_custom_call.1} parent=0 // pred_check
    _
  $region15: #{tpu_custom_call.1} parent=0 // pred_check_branch
    %22 = sbr.rel (0) target = $region17
  $region16: #{tpu_custom_call.1} parent=0 // pred_region
    _
  $region17: #{tpu_custom_call.1} parent=0 // pred_fallthru
    _
  // Predicated region
  $region18: #{tpu_custom_call.1} parent=0 // pred_check
    _
  $region19: #{tpu_custom_call.1} parent=0 // pred_check_branch
    %24 = sbr.rel (0) target = $region21
  $region20: #{tpu_custom_call.1} parent=0 // pred_region
    _
  $region21: #{tpu_custom_call.1} parent=0 // pred_fallthru
    _
  // Predicated region
  $region22: #{tpu_custom_call.1} parent=0 // pred_check
    _
  $region23: #{tpu_custom_call.1} parent=0 // pred_check_branch
    %26 = sbr.rel (0) target = $region25
  $region24: #{tpu_custom_call.1} parent=0 // pred_region
    _
  $region25: #{tpu_custom_call.1} parent=0 // pred_fallthru
    _
  // Predicated region
  $region26: #{tpu_custom_call.1} parent=0 // pred_check
    _
  $region27: #{tpu_custom_call.1} parent=0 // pred_check_branch
    %28 = sbr.rel (0) target = $region29
  $region28: #{tpu_custom_call.1} parent=0 // pred_region
    _
  $region29: #{tpu_custom_call.1} parent=0 // pred_fallthru
    _
  // Predicated region
  $region30: #{tpu_custom_call.1} parent=0 // pred_check
    _
  $region31: #{tpu_custom_call.1} parent=0 // pred_check_branch
    %30 = sbr.rel (0) target = $region33
  $region32: #{tpu_custom_call.1} parent=0 // pred_region
    _
  $region33: #{tpu_custom_call.1} parent=0 // pred_fallthru
    _
  // Predicated region
  $region34: #{tpu_custom_call.1} parent=0 // pred_check
    _
  $region35: #{tpu_custom_call.1} parent=0 // pred_check_branch
    %32 = sbr.rel (0) target = $region37
  $region36: #{tpu_custom_call.1} parent=0 // pred_region
    _
  $region37: #{tpu_custom_call.1} parent=0 // pred_fallthru
    _
  // Predicated region
  $region38: #{tpu_custom_call.1} parent=0 // pred_check
    _
  $region39: #{tpu_custom_call.1} parent=0 // pred_check_branch
    %34 = sbr.rel (0) target = $region41
  $region40: #{tpu_custom_call.1} parent=0 // pred_region
    _
  $region41: #{tpu_custom_call.1} parent=0 // pred_fallthru
    _
  %v35 = vld [vmem:[%s0] sm:$0xff]
  %v36 = vld [vmem:[%s0 + $0x8] sm:$0xff]
  %v37 = vld [vmem:[%s0 + $0x10] sm:$0xff]
  %v38 = vld [vmem:[%s0 + $0x18] sm:$0xff]
  %v39 = vld [vmem:[%s0 + $0x20] sm:$0xff]
  %v40 = vld [vmem:[%s0 + $0x28] sm:$0xff]
  %v41 = vld [vmem:[%s0 + $0x30] sm:$0xff]
  %v42 = vld [vmem:[%s0 + $0x38] sm:$0xff]
  %v43 = vld [vmem:[%s0 + $0x40] sm:$0xff]
  %v44 = vld [vmem:[%s0 + $0x48] sm:$0xff]
  %v45 = vld [vmem:[%s0 + $0x50] sm:$0xff]
  %v46 = vld [vmem:[%s0 + $0x58] sm:$0xff]
  %v47 = vld [vmem:[%s0 + $0x60] sm:$0xff]
  %v48 = vld [vmem:[%s0 + $0x68] sm:$0xff]
  %v49 = vld [vmem:[%s0 + $0x70] sm:$0xff]
  %v50 = vld [vmem:[%s0 + $0x78] sm:$0xff]
  %v51 = vld [vmem:[%s0 + $0x80] sm:$0xff]
  %v52 = vld [vmem:[%s0 + $0x88] sm:$0xff]
  %v53 = vld [vmem:[%s0 + $0x90] sm:$0xff]
  %v54 = vld [vmem:[%s0 + $0x98] sm:$0xff]
  %v55 = vld [vmem:[%s0 + $0xa0] sm:$0xff]
  %v56 = vld [vmem:[%s0 + $0xa8] sm:$0xff]
  %v57 = vld [vmem:[%s0 + $0xb0] sm:$0xff]
  %v58 = vld [vmem:[%s0 + $0xb8] sm:$0xff]
  %v59 = vld [vmem:[%s0 + $0xc0] sm:$0xff]
  %v60 = vld [vmem:[%s0 + $0xc8] sm:$0xff]
  %v61 = vld [vmem:[%s0 + $0xd0] sm:$0xff]
  %v62 = vld [vmem:[%s0 + $0xd8] sm:$0xff]
  %v63 = vld [vmem:[%s0 + $0xe0] sm:$0xff]
  %v64 = vld [vmem:[%s0 + $0xe8] sm:$0xff]
  %v65 = vld [vmem:[%s0 + $0xf0] sm:$0xff]
  %v66 = vld [vmem:[%s0 + $0xf8] sm:$0xff]
  %v67 = vld [vmem:[%s0 + $0x100] sm:$0xff]
  %v68 = vld [vmem:[%s0 + $0x108] sm:$0xff]
  %v69 = vld [vmem:[%s0 + $0x110] sm:$0xff]
  %v70 = vld [vmem:[%s0 + $0x118] sm:$0xff]
  %v71 = vld [vmem:[%s0 + $0x120] sm:$0xff]
  %v72 = vld [vmem:[%s0 + $0x128] sm:$0xff]
  %v73 = vld [vmem:[%s0 + $0x130] sm:$0xff]
  %v74 = vld [vmem:[%s0 + $0x138] sm:$0xff]
  %v75 = vld [vmem:[%s0 + $0x140] sm:$0xff]
  %v76 = vld [vmem:[%s0 + $0x148] sm:$0xff]
  %v77 = vld [vmem:[%s0 + $0x150] sm:$0xff]
  %v78 = vld [vmem:[%s0 + $0x158] sm:$0xff]
  %v79 = vld [vmem:[%s0 + $0x160] sm:$0xff]
  %v80 = vld [vmem:[%s0 + $0x168] sm:$0xff]
  %v81 = vld [vmem:[%s0 + $0x170] sm:$0xff]
  %v82 = vld [vmem:[%s0 + $0x178] sm:$0xff]
  %v83 = vld [vmem:[%s0 + $0x180] sm:$0xff]
  %v84 = vld [vmem:[%s0 + $0x188] sm:$0xff]
  %v85 = vld [vmem:[%s0 + $0x190] sm:$0xff]
  %v86 = vld [vmem:[%s0 + $0x198] sm:$0xff]
  %v87 = vld [vmem:[%s0 + $0x1a0] sm:$0xff]
  %v88 = vld [vmem:[%s0 + $0x1a8] sm:$0xff]
  %v89 = vld [vmem:[%s0 + $0x1b0] sm:$0xff]
  %v90 = vld [vmem:[%s0 + $0x1b8] sm:$0xff]
  %v91 = vld [vmem:[%s0 + $0x1c0] sm:$0xff]
  %v92 = vld [vmem:[%s0 + $0x1c8] sm:$0xff]
  %v93 = vld [vmem:[%s0 + $0x1d0] sm:$0xff]
  %v94 = vld [vmem:[%s0 + $0x1d8] sm:$0xff]
  %v95 = vld [vmem:[%s0 + $0x1e0] sm:$0xff]
  %v96 = vld [vmem:[%s0 + $0x1e8] sm:$0xff]
  %v97 = vld [vmem:[%s0 + $0x1f0] sm:$0xff]
  %v98 = vld [vmem:[%s0 + $0x1f8] sm:$0xff]
  %vm99 = vcmask 31744
  %100 = vst.msk [vmem:[#allocation2] sm:$0xff] %vm99, 0.0
  %101 = vst.msk [vmem:[#allocation2 + $0x8] sm:$0xff] %vm99, 0.0
  %vm102 = vcmask 27648
  %103 = vst.msk [vmem:[#allocation2 + $0x10] sm:$0xf] %vm102, 0.0
  %104 = vst.msk [vmem:[#allocation2 + $0x1b0] sm:$0xff] %vm99, 0.0
  %105 = vst.msk [vmem:[#allocation2 + $0x1b8] sm:$0xff] %vm99, 0.0
  %106 = vst.msk [vmem:[#allocation2 + $0x1c0] sm:$0xf] %vm102, 0.0
  %s107 = scalar_lea.vmem [#allocation2], 408
  %108 = vst.msk [vmem:[%s107] sm:$0xff] %vm99, 0.0
  %109 = vst.msk [vmem:[%s107 + $0x8] sm:$0xff] %vm99, 0.0
  %110 = vst.msk [vmem:[%s107 + $0x10] sm:$0xf] %vm102, 0.0
  %111 = vst.msk [vmem:[%s107 + $0x1b0] sm:$0xff] %vm99, 0.0
  %112 = vst.msk [vmem:[%s107 + $0x1b8] sm:$0xff] %vm99, 0.0
  %113 = vst.msk [vmem:[%s107 + $0x1c0] sm:$0xf] %vm102, 0.0
  %vm114 = vcmask 25600
  %115 = vst.msk [vmem:[#allocation2] sm:$0x3] %vm114, 0.0
  %116 = vst.msk [vmem:[#allocation2 + $0x18] sm:$0x3] %vm114, 0.0
  %117 = vst.msk [vmem:[#allocation2 + $0x30] sm:$0x3] %vm114, 0.0
  %118 = vst.msk [vmem:[#allocation2 + $0x48] sm:$0x3] %vm114, 0.0
  %119 = vst.msk [vmem:[#allocation2 + $0x60] sm:$0x3] %vm114, 0.0
  %120 = vst.msk [vmem:[#allocation2 + $0x78] sm:$0x3] %vm114, 0.0
  %121 = vst.msk [vmem:[#allocation2 + $0x90] sm:$0x3] %vm114, 0.0
  %122 = vst.msk [vmem:[#allocation2 + $0xa8] sm:$0x3] %vm114, 0.0
  %123 = vst.msk [vmem:[#allocation2 + $0xc0] sm:$0x3] %vm114, 0.0
  %124 = vst.msk [vmem:[#allocation2 + $0xd8] sm:$0x3] %vm114, 0.0
  %125 = vst.msk [vmem:[#allocation2 + $0xf0] sm:$0x3] %vm114, 0.0
  %126 = vst.msk [vmem:[#allocation2 + $0x108] sm:$0x3] %vm114, 0.0
  %127 = vst.msk [vmem:[#allocation2 + $0x120] sm:$0x3] %vm114, 0.0
  %128 = vst.msk [vmem:[#allocation2 + $0x138] sm:$0x3] %vm114, 0.0
  %129 = vst.msk [vmem:[#allocation2 + $0x150] sm:$0x3] %vm114, 0.0
  %130 = vst.msk [vmem:[#allocation2 + $0x168] sm:$0x3] %vm114, 0.0
  %131 = vst.msk [vmem:[#allocation2 + $0x180] sm:$0x3] %vm114, 0.0
  %132 = vst.msk [vmem:[#allocation2 + $0x198] sm:$0x3] %vm114, 0.0
  %133 = vst.msk [vmem:[#allocation2 + $0x1b0] sm:$0x3] %vm114, 0.0
  %134 = vst.msk [vmem:[#allocation2 + $0x1c8] sm:$0x3] %vm114, 0.0
  %135 = vst.msk [vmem:[#allocation2 + $0x1e0] sm:$0x3] %vm114, 0.0
  %136 = vst.msk [vmem:[#allocation2 + $0x1f8] sm:$0x3] %vm114, 0.0
  %137 = vst.msk [vmem:[#allocation2 + $0x210] sm:$0x3] %vm114, 0.0
  %138 = vst.msk [vmem:[#allocation2 + $0x228] sm:$0x3] %vm114, 0.0
  %139 = vst.msk [vmem:[#allocation2 + $0x240] sm:$0x3] %vm114, 0.0
  %140 = vst.msk [vmem:[#allocation2 + $0x258] sm:$0x3] %vm114, 0.0
  %141 = vst.msk [vmem:[#allocation2 + $0x270] sm:$0x3] %vm114, 0.0
  %142 = vst.msk [vmem:[#allocation2 + $0x288] sm:$0x3] %vm114, 0.0
  %143 = vst.msk [vmem:[#allocation2 + $0x2a0] sm:$0x3] %vm114, 0.0
  %144 = vst.msk [vmem:[#allocation2 + $0x2b8] sm:$0x3] %vm114, 0.0
  %145 = vst.msk [vmem:[#allocation2 + $0x2d0] sm:$0x3] %vm114, 0.0
  %146 = vst.msk [vmem:[#allocation2 + $0x2e8] sm:$0x3] %vm114, 0.0
  %147 = vst.msk [vmem:[#allocation2 + $0x300] sm:$0x3] %vm114, 0.0
  %148 = vst.msk [vmem:[#allocation2 + $0x318] sm:$0x3] %vm114, 0.0
  %149 = vst.msk [vmem:[#allocation2 + $0x330] sm:$0x3] %vm114, 0.0
  %150 = vst.msk [vmem:[#allocation2 + $0x348] sm:$0x3] %vm114, 0.0
  %151 = vst.msk [vmem:[#allocation2 + $0x12] sm:$0x3] %vm114, 0.0
  %152 = vst.msk [vmem:[#allocation2 + $0x2a] sm:$0x3] %vm114, 0.0
  %153 = vst.msk [vmem:[#allocation2 + $0x42] sm:$0x3] %vm114, 0.0
  %154 = vst.msk [vmem:[#allocation2 + $0x5a] sm:$0x3] %vm114, 0.0
  %155 = vst.msk [vmem:[#allocation2 + $0x72] sm:$0x3] %vm114, 0.0
  %156 = vst.msk [vmem:[#allocation2 + $0x8a] sm:$0x3] %vm114, 0.0
  %157 = vst.msk [vmem:[#allocation2 + $0xa2] sm:$0x3] %vm114, 0.0
  %158 = vst.msk [vmem:[#allocation2 + $0xba] sm:$0x3] %vm114, 0.0
  %159 = vst.msk [vmem:[#allocation2 + $0xd2] sm:$0x3] %vm114, 0.0
  %160 = vst.msk [vmem:[#allocation2 + $0xea] sm:$0x3] %vm114, 0.0
  %161 = vst.msk [vmem:[#allocation2 + $0x102] sm:$0x3] %vm114, 0.0
  %162 = vst.msk [vmem:[#allocation2 + $0x11a] sm:$0x3] %vm114, 0.0
  %163 = vst.msk [vmem:[#allocation2 + $0x132] sm:$0x3] %vm114, 0.0
  %164 = vst.msk [vmem:[#allocation2 + $0x14a] sm:$0x3] %vm114, 0.0
  %165 = vst.msk [vmem:[#allocation2 + $0x162] sm:$0x3] %vm114, 0.0
  %166 = vst.msk [vmem:[#allocation2 + $0x17a] sm:$0x3] %vm114, 0.0
  %167 = vst.msk [vmem:[#allocation2 + $0x192] sm:$0x3] %vm114, 0.0
  %168 = vst.msk [vmem:[#allocation2 + $0x1aa] sm:$0x3] %vm114, 0.0
  %169 = vst.msk [vmem:[#allocation2 + $0x1c2] sm:$0x3] %vm114, 0.0
  %170 = vst.msk [vmem:[#allocation2 + $0x1da] sm:$0x3] %vm114, 0.0
  %171 = vst.msk [vmem:[#allocation2 + $0x1f2] sm:$0x3] %vm114, 0.0
  %172 = vst.msk [vmem:[#allocation2 + $0x20a] sm:$0x3] %vm114, 0.0
  %173 = vst.msk [vmem:[#allocation2 + $0x222] sm:$0x3] %vm114, 0.0
  %174 = vst.msk [vmem:[#allocation2 + $0x23a] sm:$0x3] %vm114, 0.0
  %175 = vst.msk [vmem:[#allocation2 + $0x252] sm:$0x3] %vm114, 0.0
  %176 = vst.msk [vmem:[#allocation2 + $0x26a] sm:$0x3] %vm114, 0.0
  %177 = vst.msk [vmem:[#allocation2 + $0x282] sm:$0x3] %vm114, 0.0
  %178 = vst.msk [vmem:[#allocation2 + $0x29a] sm:$0x3] %vm114, 0.0
  %179 = vst.msk [vmem:[#allocation2 + $0x2b2] sm:$0x3] %vm114, 0.0
  %180 = vst.msk [vmem:[#allocation2 + $0x2ca] sm:$0x3] %vm114, 0.0
  %181 = vst.msk [vmem:[#allocation2 + $0x2e2] sm:$0x3] %vm114, 0.0
  %182 = vst.msk [vmem:[#allocation2 + $0x2fa] sm:$0x3] %vm114, 0.0
  %183 = vst.msk [vmem:[#allocation2 + $0x312] sm:$0x3] %vm114, 0.0
  %184 = vst.msk [vmem:[#allocation2 + $0x32a] sm:$0x3] %vm114, 0.0
  %185 = vst.msk [vmem:[#allocation2 + $0x342] sm:$0x3] %vm114, 0.0
  %186 = vst.msk [vmem:[#allocation2 + $0x35a] sm:$0x3] %vm114, 0.0
  %s187 = scalar_lea.vmem [#allocation2], 24
  %188 = vst.msk [vmem:[%s187 + $0x2] sm:$0xff] %vm99, %v35
  %189 = vst.msk [vmem:[%s187 + $0xa] sm:$0xff] %vm99, %v36
  %190 = vst.msk [vmem:[%s187 + $0x1a] sm:$0xff] %vm99, %v37
  %191 = vst.msk [vmem:[%s187 + $0x22] sm:$0xff] %vm99, %v38
  %192 = vst.msk [vmem:[%s187 + $0x32] sm:$0xff] %vm99, %v39
  %193 = vst.msk [vmem:[%s187 + $0x3a] sm:$0xff] %vm99, %v40
  %194 = vst.msk [vmem:[%s187 + $0x4a] sm:$0xff] %vm99, %v41
  %195 = vst.msk [vmem:[%s187 + $0x52] sm:$0xff] %vm99, %v42
  %196 = vst.msk [vmem:[%s187 + $0x62] sm:$0xff] %vm99, %v43
  %197 = vst.msk [vmem:[%s187 + $0x6a] sm:$0xff] %vm99, %v44
  %198 = vst.msk [vmem:[%s187 + $0x7a] sm:$0xff] %vm99, %v45
  %199 = vst.msk [vmem:[%s187 + $0x82] sm:$0xff] %vm99, %v46
  %200 = vst.msk [vmem:[%s187 + $0x92] sm:$0xff] %vm99, %v47
  %201 = vst.msk [vmem:[%s187 + $0x9a] sm:$0xff] %vm99, %v48
  %202 = vst.msk [vmem:[%s187 + $0xaa] sm:$0xff] %vm99, %v49
  %203 = vst.msk [vmem:[%s187 + $0xb2] sm:$0xff] %vm99, %v50
  %204 = vst.msk [vmem:[%s187 + $0xc2] sm:$0xff] %vm99, %v51
  %205 = vst.msk [vmem:[%s187 + $0xca] sm:$0xff] %vm99, %v52
  %206 = vst.msk [vmem:[%s187 + $0xda] sm:$0xff] %vm99, %v53
  %207 = vst.msk [vmem:[%s187 + $0xe2] sm:$0xff] %vm99, %v54
  %208 = vst.msk [vmem:[%s187 + $0xf2] sm:$0xff] %vm99, %v55
  %209 = vst.msk [vmem:[%s187 + $0xfa] sm:$0xff] %vm99, %v56
  %210 = vst.msk [vmem:[%s187 + $0x10a] sm:$0xff] %vm99, %v57
  %211 = vst.msk [vmem:[%s187 + $0x112] sm:$0xff] %vm99, %v58
  %212 = vst.msk [vmem:[%s187 + $0x122] sm:$0xff] %vm99, %v59
  %213 = vst.msk [vmem:[%s187 + $0x12a] sm:$0xff] %vm99, %v60
  %214 = vst.msk [vmem:[%s187 + $0x13a] sm:$0xff] %vm99, %v61
  %215 = vst.msk [vmem:[%s187 + $0x142] sm:$0xff] %vm99, %v62
  %216 = vst.msk [vmem:[%s187 + $0x152] sm:$0xff] %vm99, %v63
  %217 = vst.msk [vmem:[%s187 + $0x15a] sm:$0xff] %vm99, %v64
  %218 = vst.msk [vmem:[%s187 + $0x16a] sm:$0xff] %vm99, %v65
  %219 = vst.msk [vmem:[%s187 + $0x172] sm:$0xff] %vm99, %v66
  %220 = vst.msk [vmem:[%s187 + $0x1b2] sm:$0xff] %vm99, %v67
  %221 = vst.msk [vmem:[%s187 + $0x1ba] sm:$0xff] %vm99, %v68
  %222 = vst.msk [vmem:[%s187 + $0x1ca] sm:$0xff] %vm99, %v69
  %223 = vst.msk [vmem:[%s187 + $0x1d2] sm:$0xff] %vm99, %v70
  %224 = vst.msk [vmem:[%s187 + $0x1e2] sm:$0xff] %vm99, %v71
  %225 = vst.msk [vmem:[%s187 + $0x1ea] sm:$0xff] %vm99, %v72
  %226 = vst.msk [vmem:[%s187 + $0x1fa] sm:$0xff] %vm99, %v73
  %227 = vst.msk [vmem:[%s187 + $0x202] sm:$0xff] %vm99, %v74
  %228 = vst.msk [vmem:[%s187 + $0x212] sm:$0xff] %vm99, %v75
  %229 = vst.msk [vmem:[%s187 + $0x21a] sm:$0xff] %vm99, %v76
  %230 = vst.msk [vmem:[%s187 + $0x22a] sm:$0xff] %vm99, %v77
  %231 = vst.msk [vmem:[%s187 + $0x232] sm:$0xff] %vm99, %v78
  %232 = vst.msk [vmem:[%s187 + $0x242] sm:$0xff] %vm99, %v79
  %233 = vst.msk [vmem:[%s187 + $0x24a] sm:$0xff] %vm99, %v80
  %234 = vst.msk [vmem:[%s187 + $0x25a] sm:$0xff] %vm99, %v81
  %235 = vst.msk [vmem:[%s187 + $0x262] sm:$0xff] %vm99, %v82
  %236 = vst.msk [vmem:[%s187 + $0x272] sm:$0xff] %vm99, %v83
  %237 = vst.msk [vmem:[%s187 + $0x27a] sm:$0xff] %vm99, %v84
  %238 = vst.msk [vmem:[%s187 + $0x28a] sm:$0xff] %vm99, %v85
  %239 = vst.msk [vmem:[%s187 + $0x292] sm:$0xff] %vm99, %v86
  %240 = vst.msk [vmem:[%s187 + $0x2a2] sm:$0xff] %vm99, %v87
  %241 = vst.msk [vmem:[%s187 + $0x2aa] sm:$0xff] %vm99, %v88
  %242 = vst.msk [vmem:[%s187 + $0x2ba] sm:$0xff] %vm99, %v89
  %243 = vst.msk [vmem:[%s187 + $0x2c2] sm:$0xff] %vm99, %v90
  %244 = vst.msk [vmem:[%s187 + $0x2d2] sm:$0xff] %vm99, %v91
  %245 = vst.msk [vmem:[%s187 + $0x2da] sm:$0xff] %vm99, %v92
  %246 = vst.msk [vmem:[%s187 + $0x2ea] sm:$0xff] %vm99, %v93
  %247 = vst.msk [vmem:[%s187 + $0x2f2] sm:$0xff] %vm99, %v94
  %248 = vst.msk [vmem:[%s187 + $0x302] sm:$0xff] %vm99, %v95
  %249 = vst.msk [vmem:[%s187 + $0x30a] sm:$0xff] %vm99, %v96
  %250 = vst.msk [vmem:[%s187 + $0x31a] sm:$0xff] %vm99, %v97
  %251 = vst.msk [vmem:[%s187 + $0x322] sm:$0xff] %vm99, %v98
  %v252 = vld [vmem:[#allocation2 + $0x1] sm:$0xff]
  %v253 = vld [vmem:[#allocation2 + $0x9] sm:$0xff]
  %v254 = vld [vmem:[#allocation2 + $0x19] sm:$0xff]
  %v255 = vld [vmem:[#allocation2 + $0x21] sm:$0xff]
  %v256 = vld [vmem:[#allocation2 + $0x31] sm:$0xff]
  %v257 = vld [vmem:[#allocation2 + $0x39] sm:$0xff]
  %v258 = vld [vmem:[#allocation2 + $0x49] sm:$0xff]
  %v259 = vld [vmem:[#allocation2 + $0x51] sm:$0xff]
  %v260 = vld [vmem:[#allocation2 + $0x61] sm:$0xff]
  %v261 = vld [vmem:[#allocation2 + $0x69] sm:$0xff]
  %v262 = vld [vmem:[#allocation2 + $0x79] sm:$0xff]
  %v263 = vld [vmem:[#allocation2 + $0x81] sm:$0xff]
  %v264 = vld [vmem:[#allocation2 + $0x91] sm:$0xff]
  %v265 = vld [vmem:[#allocation2 + $0x99] sm:$0xff]
  %v266 = vld [vmem:[#allocation2 + $0xa9] sm:$0xff]
  %v267 = vld [vmem:[#allocation2 + $0xb1] sm:$0xff]
  %v268 = vld [vmem:[#allocation2 + $0xc1] sm:$0xff]
  %v269 = vld [vmem:[#allocation2 + $0xc9] sm:$0xff]
  %v270 = vld [vmem:[#allocation2 + $0xd9] sm:$0xff]
  %v271 = vld [vmem:[#allocation2 + $0xe1] sm:$0xff]
  %v272 = vld [vmem:[#allocation2 + $0xf1] sm:$0xff]
  %v273 = vld [vmem:[#allocation2 + $0xf9] sm:$0xff]
  %v274 = vld [vmem:[#allocation2 + $0x109] sm:$0xff]
  %v275 = vld [vmem:[#allocation2 + $0x111] sm:$0xff]
  %v276 = vld [vmem:[#allocation2 + $0x121] sm:$0xff]
  %v277 = vld [vmem:[#allocation2 + $0x129] sm:$0xff]
  %v278 = vld [vmem:[#allocation2 + $0x139] sm:$0xff]
  %v279 = vld [vmem:[#allocation2 + $0x141] sm:$0xff]
  %v280 = vld [vmem:[#allocation2 + $0x151] sm:$0xff]
  %v281 = vld [vmem:[#allocation2 + $0x159] sm:$0xff]
  %v282 = vld [vmem:[#allocation2 + $0x169] sm:$0xff]
  %v283 = vld [vmem:[#allocation2 + $0x171] sm:$0xff]
  %v284 = vld [vmem:[#allocation2 + $0x1b1] sm:$0xff]
  %v285 = vld [vmem:[#allocation2 + $0x1b9] sm:$0xff]
  %v286 = vld [vmem:[#allocation2 + $0x1c9] sm:$0xff]
  %v287 = vld [vmem:[#allocation2 + $0x1d1] sm:$0xff]
  %v288 = vld [vmem:[#allocation2 + $0x1e1] sm:$0xff]
  %v289 = vld [vmem:[#allocation2 + $0x1e9] sm:$0xff]
  %v290 = vld [vmem:[#allocation2 + $0x1f9] sm:$0xff]
  %v291 = vld [vmem:[#allocation2 + $0x201] sm:$0xff]
  %v292 = vld [vmem:[#allocation2 + $0x211] sm:$0xff]
  %v293 = vld [vmem:[#allocation2 + $0x219] sm:$0xff]
  %v294 = vld [vmem:[#allocation2 + $0x229] sm:$0xff]
  %v295 = vld [vmem:[#allocation2 + $0x231] sm:$0xff]
  %v296 = vld [vmem:[#allocation2 + $0x241] sm:$0xff]
  %v297 = vld [vmem:[#allocation2 + $0x249] sm:$0xff]
  %v298 = vld [vmem:[#allocation2 + $0x259] sm:$0xff]
  %v299 = vld [vmem:[#allocation2 + $0x261] sm:$0xff]
  %v300 = vld [vmem:[#allocation2 + $0x271] sm:$0xff]
  %v301 = vld [vmem:[#allocation2 + $0x279] sm:$0xff]
  %v302 = vld [vmem:[#allocation2 + $0x289] sm:$0xff]
  %v303 = vld [vmem:[#allocation2 + $0x291] sm:$0xff]
  %v304 = vld [vmem:[#allocation2 + $0x2a1] sm:$0xff]
  %v305 = vld [vmem:[#allocation2 + $0x2a9] sm:$0xff]
  %v306 = vld [vmem:[#allocation2 + $0x2b9] sm:$0xff]
  %v307 = vld [vmem:[#allocation2 + $0x2c1] sm:$0xff]
  %v308 = vld [vmem:[#allocation2 + $0x2d1] sm:$0xff]
  %v309 = vld [vmem:[#allocation2 + $0x2d9] sm:$0xff]
  %v310 = vld [vmem:[#allocation2 + $0x2e9] sm:$0xff]
  %v311 = vld [vmem:[#allocation2 + $0x2f1] sm:$0xff]
  %v312 = vld [vmem:[#allocation2 + $0x301] sm:$0xff]
  %v313 = vld [vmem:[#allocation2 + $0x309] sm:$0xff]
  %v314 = vld [vmem:[#allocation2 + $0x319] sm:$0xff]
  %v315 = vld [vmem:[#allocation2 + $0x321] sm:$0xff]
  %316 = vst.msk [vmem:[#allocation4] sm:$0xff] %vm99, %v252
  %317 = vst.msk [vmem:[#allocation4 + $0x8] sm:$0xff] %vm99, %v253
  %318 = vst.msk [vmem:[#allocation4 + $0x10] sm:$0xff] %vm99, %v254
  %319 = vst.msk [vmem:[#allocation4 + $0x18] sm:$0xff] %vm99, %v255
  %320 = vst.msk [vmem:[#allocation4 + $0x20] sm:$0xff] %vm99, %v256
  %321 = vst.msk [vmem:[#allocation4 + $0x28] sm:$0xff] %vm99, %v257
  %322 = vst.msk [vmem:[#allocation4 + $0x30] sm:$0xff] %vm99, %v258
  %323 = vst.msk [vmem:[#allocation4 + $0x38] sm:$0xff] %vm99, %v259
  %324 = vst.msk [vmem:[#allocation4 + $0x40] sm:$0xff] %vm99, %v260
  %325 = vst.msk [vmem:[#allocation4 + $0x48] sm:$0xff] %vm99, %v261
  %326 = vst.msk [vmem:[#allocation4 + $0x50] sm:$0xff] %vm99, %v262
  %327 = vst.msk [vmem:[#allocation4 + $0x58] sm:$0xff] %vm99, %v263
  %328 = vst.msk [vmem:[#allocation4 + $0x60] sm:$0xff] %vm99, %v264
  %329 = vst.msk [vmem:[#allocation4 + $0x68] sm:$0xff] %vm99, %v265
  %330 = vst.msk [vmem:[#allocation4 + $0x70] sm:$0xff] %vm99, %v266
  %331 = vst.msk [vmem:[#allocation4 + $0x78] sm:$0xff] %vm99, %v267
  %332 = vst.msk [vmem:[#allocation4 + $0x80] sm:$0xff] %vm99, %v268
  %333 = vst.msk [vmem:[#allocation4 + $0x88] sm:$0xff] %vm99, %v269
  %334 = vst.msk [vmem:[#allocation4 + $0x90] sm:$0xff] %vm99, %v270
  %335 = vst.msk [vmem:[#allocation4 + $0x98] sm:$0xff] %vm99, %v271
  %336 = vst.msk [vmem:[#allocation4 + $0xa0] sm:$0xff] %vm99, %v272
  %337 = vst.msk [vmem:[#allocation4 + $0xa8] sm:$0xff] %vm99, %v273
  %338 = vst.msk [vmem:[#allocation4 + $0xb0] sm:$0xff] %vm99, %v274
  %339 = vst.msk [vmem:[#allocation4 + $0xb8] sm:$0xff] %vm99, %v275
  %340 = vst.msk [vmem:[#allocation4 + $0xc0] sm:$0xff] %vm99, %v276
  %341 = vst.msk [vmem:[#allocation4 + $0xc8] sm:$0xff] %vm99, %v277
  %342 = vst.msk [vmem:[#allocation4 + $0xd0] sm:$0xff] %vm99, %v278
  %343 = vst.msk [vmem:[#allocation4 + $0xd8] sm:$0xff] %vm99, %v279
  %344 = vst.msk [vmem:[#allocation4 + $0xe0] sm:$0xff] %vm99, %v280
  %345 = vst.msk [vmem:[#allocation4 + $0xe8] sm:$0xff] %vm99, %v281
  %346 = vst.msk [vmem:[#allocation4 + $0xf0] sm:$0xff] %vm99, %v282
  %347 = vst.msk [vmem:[#allocation4 + $0xf8] sm:$0xff] %vm99, %v283
  %348 = vst.msk [vmem:[#allocation4 + $0x100] sm:$0xff] %vm99, %v284
  %349 = vst.msk [vmem:[#allocation4 + $0x108] sm:$0xff] %vm99, %v285
  %350 = vst.msk [vmem:[#allocation4 + $0x110] sm:$0xff] %vm99, %v286
  %351 = vst.msk [vmem:[#allocation4 + $0x118] sm:$0xff] %vm99, %v287
  %352 = vst.msk [vmem:[#allocation4 + $0x120] sm:$0xff] %vm99, %v288
  %353 = vst.msk [vmem:[#allocation4 + $0x128] sm:$0xff] %vm99, %v289
  %354 = vst.msk [vmem:[#allocation4 + $0x130] sm:$0xff] %vm99, %v290
  %355 = vst.msk [vmem:[#allocation4 + $0x138] sm:$0xff] %vm99, %v291
  %356 = vst.msk [vmem:[#allocation4 + $0x140] sm:$0xff] %vm99, %v292
  %357 = vst.msk [vmem:[#allocation4 + $0x148] sm:$0xff] %vm99, %v293
  %358 = vst.msk [vmem:[#allocation4 + $0x150] sm:$0xff] %vm99, %v294
  %359 = vst.msk [vmem:[#allocation4 + $0x158] sm:$0xff] %vm99, %v295
  %360 = vst.msk [vmem:[#allocation4 + $0x160] sm:$0xff] %vm99, %v296
  %361 = vst.msk [vmem:[#allocation4 + $0x168] sm:$0xff] %vm99, %v297
  %362 = vst.msk [vmem:[#allocation4 + $0x170] sm:$0xff] %vm99, %v298
  %363 = vst.msk [vmem:[#allocation4 + $0x178] sm:$0xff] %vm99, %v299
  %364 = vst.msk [vmem:[#allocation4 + $0x180] sm:$0xff] %vm99, %v300
  %365 = vst.msk [vmem:[#allocation4 + $0x188] sm:$0xff] %vm99, %v301
  %366 = vst.msk [vmem:[#allocation4 + $0x190] sm:$0xff] %vm99, %v302
  %367 = vst.msk [vmem:[#allocation4 + $0x198] sm:$0xff] %vm99, %v303
  %368 = vst.msk [vmem:[#allocation4 + $0x1a0] sm:$0xff] %vm99, %v304
  %369 = vst.msk [vmem:[#allocation4 + $0x1a8] sm:$0xff] %vm99, %v305
  %370 = vst.msk [vmem:[#allocation4 + $0x1b0] sm:$0xff] %vm99, %v306
  %371 = vst.msk [vmem:[#allocation4 + $0x1b8] sm:$0xff] %vm99, %v307
  %372 = vst.msk [vmem:[#allocation4 + $0x1c0] sm:$0xff] %vm99, %v308
  %373 = vst.msk [vmem:[#allocation4 + $0x1c8] sm:$0xff] %vm99, %v309
  %374 = vst.msk [vmem:[#allocation4 + $0x1d0] sm:$0xff] %vm99, %v310
  %375 = vst.msk [vmem:[#allocation4 + $0x1d8] sm:$0xff] %vm99, %v311
  %376 = vst.msk [vmem:[#allocation4 + $0x1e0] sm:$0xff] %vm99, %v312
  %377 = vst.msk [vmem:[#allocation4 + $0x1e8] sm:$0xff] %vm99, %v313
  %378 = vst.msk [vmem:[#allocation4 + $0x1f0] sm:$0xff] %vm99, %v314
  %379 = vst.msk [vmem:[#allocation4 + $0x1f8] sm:$0xff] %vm99, %v315
  %v380 = vld [vmem:[#allocation2 + $0x2] sm:$0xff]
  %v381 = vld [vmem:[#allocation2 + $0xa] sm:$0xff]
  %v382 = vld [vmem:[#allocation2 + $0x1a] sm:$0xff]
  %v383 = vld [vmem:[#allocation2 + $0x22] sm:$0xff]
  %v384 = vld [vmem:[#allocation2 + $0x32] sm:$0xff]
  %v385 = vld [vmem:[#allocation2 + $0x3a] sm:$0xff]
  %v386 = vld [vmem:[#allocation2 + $0x4a] sm:$0xff]
  %v387 = vld [vmem:[#allocation2 + $0x52] sm:$0xff]
  %v388 = vld [vmem:[#allocation2 + $0x62] sm:$0xff]
  %v389 = vld [vmem:[#allocation2 + $0x6a] sm:$0xff]
  %v390 = vld [vmem:[#allocation2 + $0x7a] sm:$0xff]
  %v391 = vld [vmem:[#allocation2 + $0x82] sm:$0xff]
  %v392 = vld [vmem:[#allocation2 + $0x92] sm:$0xff]
  %v393 = vld [vmem:[#allocation2 + $0x9a] sm:$0xff]
  %v394 = vld [vmem:[#allocation2 + $0xaa] sm:$0xff]
  %v395 = vld [vmem:[#allocation2 + $0xb2] sm:$0xff]
  %v396 = vld [vmem:[#allocation2 + $0xc2] sm:$0xff]
  %v397 = vld [vmem:[#allocation2 + $0xca] sm:$0xff]
  %v398 = vld [vmem:[#allocation2 + $0xda] sm:$0xff]
  %v399 = vld [vmem:[#allocation2 + $0xe2] sm:$0xff]
  %v400 = vld [vmem:[#allocation2 + $0xf2] sm:$0xff]
  %v401 = vld [vmem:[#allocation2 + $0xfa] sm:$0xff]
  %v402 = vld [vmem:[#allocation2 + $0x10a] sm:$0xff]
  %v403 = vld [vmem:[#allocation2 + $0x112] sm:$0xff]
  %v404 = vld [vmem:[#allocation2 + $0x122] sm:$0xff]
  %v405 = vld [vmem:[#allocation2 + $0x12a] sm:$0xff]
  %v406 = vld [vmem:[#allocation2 + $0x13a] sm:$0xff]
  %v407 = vld [vmem:[#allocation2 + $0x142] sm:$0xff]
  %v408 = vld [vmem:[#allocation2 + $0x152] sm:$0xff]
  %v409 = vld [vmem:[#allocation2 + $0x15a] sm:$0xff]
  %v410 = vld [vmem:[#allocation2 + $0x16a] sm:$0xff]
  %v411 = vld [vmem:[#allocation2 + $0x172] sm:$0xff]
  %v412 = vld [vmem:[#allocation2 + $0x1b2] sm:$0xff]
  %v413 = vld [vmem:[#allocation2 + $0x1ba] sm:$0xff]
  %v414 = vld [vmem:[#allocation2 + $0x1ca] sm:$0xff]
  %v415 = vld [vmem:[#allocation2 + $0x1d2] sm:$0xff]
  %v416 = vld [vmem:[#allocation2 + $0x1e2] sm:$0xff]
  %v417 = vld [vmem:[#allocation2 + $0x1ea] sm:$0xff]
  %v418 = vld [vmem:[#allocation2 + $0x1fa] sm:$0xff]
  %v419 = vld [vmem:[#allocation2 + $0x202] sm:$0xff]
  %v420 = vld [vmem:[#allocation2 + $0x212] sm:$0xff]
  %v421 = vld [vmem:[#allocation2 + $0x21a] sm:$0xff]
  %v422 = vld [vmem:[#allocation2 + $0x22a] sm:$0xff]
  %v423 = vld [vmem:[#allocation2 + $0x232] sm:$0xff]
  %v424 = vld [vmem:[#allocation2 + $0x242] sm:$0xff]
  %v425 = vld [vmem:[#allocation2 + $0x24a] sm:$0xff]
  %v426 = vld [vmem:[#allocation2 + $0x25a] sm:$0xff]
  %v427 = vld [vmem:[#allocation2 + $0x262] sm:$0xff]
  %v428 = vld [vmem:[#allocation2 + $0x272] sm:$0xff]
  %v429 = vld [vmem:[#allocation2 + $0x27a] sm:$0xff]
  %v430 = vld [vmem:[#allocation2 + $0x28a] sm:$0xff]
  %v431 = vld [vmem:[#allocation2 + $0x292] sm:$0xff]
  %v432 = vld [vmem:[#allocation2 + $0x2a2] sm:$0xff]
  %v433 = vld [vmem:[#allocation2 + $0x2aa] sm:$0xff]
  %v434 = vld [vmem:[#allocation2 + $0x2ba] sm:$0xff]
  %v435 = vld [vmem:[#allocation2 + $0x2c2] sm:$0xff]
  %v436 = vld [vmem:[#allocation2 + $0x2d2] sm:$0xff]
  %v437 = vld [vmem:[#allocation2 + $0x2da] sm:$0xff]
  %v438 = vld [vmem:[#allocation2 + $0x2ea] sm:$0xff]
  %v439 = vld [vmem:[#allocation2 + $0x2f2] sm:$0xff]
  %v440 = vld [vmem:[#allocation2 + $0x302] sm:$0xff]
  %v441 = vld [vmem:[#allocation2 + $0x30a] sm:$0xff]
  %v442 = vld [vmem:[#allocation2 + $0x31a] sm:$0xff]
  %v443 = vld [vmem:[#allocation2 + $0x322] sm:$0xff]
  %508 = vrot.lane.b32.xlu0 %v380, 4
  %v509 = vpop.permute.xlu0 %508
  %510 = vrot.lane.b32.xlu0 %v381, 4
  %v511 = vpop.permute.xlu0 %510
  %512 = vrot.lane.b32.xlu0 %v382, 4
  %v513 = vpop.permute.xlu0 %512
  %514 = vrot.lane.b32.xlu0 %v383, 4
  %v515 = vpop.permute.xlu0 %514
  %516 = vrot.lane.b32.xlu0 %v384, 4
  %v517 = vpop.permute.xlu0 %516
  %518 = vrot.lane.b32.xlu0 %v385, 4
  %v519 = vpop.permute.xlu0 %518
  %520 = vrot.lane.b32.xlu0 %v386, 4
  %v521 = vpop.permute.xlu0 %520
  %522 = vrot.lane.b32.xlu0 %v387, 4
  %v523 = vpop.permute.xlu0 %522
  %524 = vrot.lane.b32.xlu0 %v388, 4
  %v525 = vpop.permute.xlu0 %524
  %526 = vrot.lane.b32.xlu0 %v389, 4
  %v527 = vpop.permute.xlu0 %526
  %528 = vrot.lane.b32.xlu0 %v390, 4
  %v529 = vpop.permute.xlu0 %528
  %530 = vrot.lane.b32.xlu0 %v391, 4
  %v531 = vpop.permute.xlu0 %530
  %532 = vrot.lane.b32.xlu0 %v392, 4
  %v533 = vpop.permute.xlu0 %532
  %534 = vrot.lane.b32.xlu0 %v393, 4
  %v535 = vpop.permute.xlu0 %534
  %536 = vrot.lane.b32.xlu0 %v394, 4
  %v537 = vpop.permute.xlu0 %536
  %538 = vrot.lane.b32.xlu0 %v395, 4
  %v539 = vpop.permute.xlu0 %538
  %540 = vrot.lane.b32.xlu0 %v396, 4
  %v541 = vpop.permute.xlu0 %540
  %542 = vrot.lane.b32.xlu0 %v397, 4
  %v543 = vpop.permute.xlu0 %542
  %544 = vrot.lane.b32.xlu0 %v398, 4
  %v545 = vpop.permute.xlu0 %544
  %546 = vrot.lane.b32.xlu0 %v399, 4
  %v547 = vpop.permute.xlu0 %546
  %548 = vrot.lane.b32.xlu0 %v400, 4
  %v549 = vpop.permute.xlu0 %548
  %550 = vrot.lane.b32.xlu0 %v401, 4
  %v551 = vpop.permute.xlu0 %550
  %552 = vrot.lane.b32.xlu0 %v402, 4
  %v553 = vpop.permute.xlu0 %552
  %554 = vrot.lane.b32.xlu0 %v403, 4
  %v555 = vpop.permute.xlu0 %554
  %556 = vrot.lane.b32.xlu0 %v404, 4
  %v557 = vpop.permute.xlu0 %556
  %558 = vrot.lane.b32.xlu0 %v405, 4
  %v559 = vpop.permute.xlu0 %558
  %560 = vrot.lane.b32.xlu0 %v406, 4
  %v561 = vpop.permute.xlu0 %560
  %562 = vrot.lane.b32.xlu0 %v407, 4
  %v563 = vpop.permute.xlu0 %562
  %564 = vrot.lane.b32.xlu0 %v408, 4
  %v565 = vpop.permute.xlu0 %564
  %566 = vrot.lane.b32.xlu0 %v409, 4
  %v567 = vpop.permute.xlu0 %566
  %568 = vrot.lane.b32.xlu0 %v410, 4
  %v569 = vpop.permute.xlu0 %568
  %570 = vrot.lane.b32.xlu0 %v411, 4
  %v571 = vpop.permute.xlu0 %570
  %572 = vrot.lane.b32.xlu0 %v412, 4
  %v573 = vpop.permute.xlu0 %572
  %574 = vrot.lane.b32.xlu0 %v413, 4
  %v575 = vpop.permute.xlu0 %574
  %576 = vrot.lane.b32.xlu0 %v414, 4
  %v577 = vpop.permute.xlu0 %576
  %578 = vrot.lane.b32.xlu0 %v415, 4
  %v579 = vpop.permute.xlu0 %578
  %580 = vrot.lane.b32.xlu0 %v416, 4
  %v581 = vpop.permute.xlu0 %580
  %582 = vrot.lane.b32.xlu0 %v417, 4
  %v583 = vpop.permute.xlu0 %582
  %584 = vrot.lane.b32.xlu0 %v418, 4
  %v585 = vpop.permute.xlu0 %584
  %586 = vrot.lane.b32.xlu0 %v419, 4
  %v587 = vpop.permute.xlu0 %586
  %588 = vrot.lane.b32.xlu0 %v420, 4
  %v589 = vpop.permute.xlu0 %588
  %590 = vrot.lane.b32.xlu0 %v421, 4
  %v591 = vpop.permute.xlu0 %590
  %592 = vrot.lane.b32.xlu0 %v422, 4
  %v593 = vpop.permute.xlu0 %592
  %594 = vrot.lane.b32.xlu0 %v423, 4
  %v595 = vpop.permute.xlu0 %594
  %596 = vrot.lane.b32.xlu0 %v424, 4
  %v597 = vpop.permute.xlu0 %596
  %598 = vrot.lane.b32.xlu0 %v425, 4
  %v599 = vpop.permute.xlu0 %598
  %600 = vrot.lane.b32.xlu0 %v426, 4
  %v601 = vpop.permute.xlu0 %600
  %602 = vrot.lane.b32.xlu0 %v427, 4
  %v603 = vpop.permute.xlu0 %602
  %604 = vrot.lane.b32.xlu0 %v428, 4
  %v605 = vpop.permute.xlu0 %604
  %606 = vrot.lane.b32.xlu0 %v429, 4
  %v607 = vpop.permute.xlu0 %606
  %608 = vrot.lane.b32.xlu0 %v430, 4
  %v609 = vpop.permute.xlu0 %608
  %610 = vrot.lane.b32.xlu0 %v431, 4
  %v611 = vpop.permute.xlu0 %610
  %612 = vrot.lane.b32.xlu0 %v432, 4
  %v613 = vpop.permute.xlu0 %612
  %614 = vrot.lane.b32.xlu0 %v433, 4
  %v615 = vpop.permute.xlu0 %614
  %616 = vrot.lane.b32.xlu0 %v434, 4
  %v617 = vpop.permute.xlu0 %616
  %618 = vrot.lane.b32.xlu0 %v435, 4
  %v619 = vpop.permute.xlu0 %618
  %620 = vrot.lane.b32.xlu0 %v436, 4
  %v621 = vpop.permute.xlu0 %620
  %622 = vrot.lane.b32.xlu0 %v437, 4
  %v623 = vpop.permute.xlu0 %622
  %624 = vrot.lane.b32.xlu0 %v438, 4
  %v625 = vpop.permute.xlu0 %624
  %626 = vrot.lane.b32.xlu0 %v439, 4
  %v627 = vpop.permute.xlu0 %626
  %628 = vrot.lane.b32.xlu0 %v440, 4
  %v629 = vpop.permute.xlu0 %628
  %630 = vrot.lane.b32.xlu0 %v441, 4
  %v631 = vpop.permute.xlu0 %630
  %632 = vrot.lane.b32.xlu0 %v442, 4
  %v633 = vpop.permute.xlu0 %632
  %634 = vrot.lane.b32.xlu0 %v443, 4
  %v635 = vpop.permute.xlu0 %634
  %vm700 = vcmask 64544
  %701 = vst.msk [vmem:[#allocation4] sm:$0xff] %vm700, %v509
  %702 = vst.msk [vmem:[#allocation4 + $0x8] sm:$0xff] %vm700, %v511
  %703 = vst.msk [vmem:[#allocation4 + $0x10] sm:$0xff] %vm700, %v513
  %704 = vst.msk [vmem:[#allocation4 + $0x18] sm:$0xff] %vm700, %v515
  %705 = vst.msk [vmem:[#allocation4 + $0x20] sm:$0xff] %vm700, %v517
  %706 = vst.msk [vmem:[#allocation4 + $0x28] sm:$0xff] %vm700, %v519
  %707 = vst.msk [vmem:[#allocation4 + $0x30] sm:$0xff] %vm700, %v521
  %708 = vst.msk [vmem:[#allocation4 + $0x38] sm:$0xff] %vm700, %v523
  %709 = vst.msk [vmem:[#allocation4 + $0x40] sm:$0xff] %vm700, %v525
  %710 = vst.msk [vmem:[#allocation4 + $0x48] sm:$0xff] %vm700, %v527
  %711 = vst.msk [vmem:[#allocation4 + $0x50] sm:$0xff] %vm700, %v529
  %712 = vst.msk [vmem:[#allocation4 + $0x58] sm:$0xff] %vm700, %v531
  %713 = vst.msk [vmem:[#allocation4 + $0x60] sm:$0xff] %vm700, %v533
  %714 = vst.msk [vmem:[#allocation4 + $0x68] sm:$0xff] %vm700, %v535
  %715 = vst.msk [vmem:[#allocation4 + $0x70] sm:$0xff] %vm700, %v537
  %716 = vst.msk [vmem:[#allocation4 + $0x78] sm:$0xff] %vm700, %v539
  %717 = vst.msk [vmem:[#allocation4 + $0x80] sm:$0xff] %vm700, %v541
  %718 = vst.msk [vmem:[#allocation4 + $0x88] sm:$0xff] %vm700, %v543
  %719 = vst.msk [vmem:[#allocation4 + $0x90] sm:$0xff] %vm700, %v545
  %720 = vst.msk [vmem:[#allocation4 + $0x98] sm:$0xff] %vm700, %v547
  %721 = vst.msk [vmem:[#allocation4 + $0xa0] sm:$0xff] %vm700, %v549
  %722 = vst.msk [vmem:[#allocation4 + $0xa8] sm:$0xff] %vm700, %v551
  %723 = vst.msk [vmem:[#allocation4 + $0xb0] sm:$0xff] %vm700, %v553
  %724 = vst.msk [vmem:[#allocation4 + $0xb8] sm:$0xff] %vm700, %v555
  %725 = vst.msk [vmem:[#allocation4 + $0xc0] sm:$0xff] %vm700, %v557
  %726 = vst.msk [vmem:[#allocation4 + $0xc8] sm:$0xff] %vm700, %v559
  %727 = vst.msk [vmem:[#allocation4 + $0xd0] sm:$0xff] %vm700, %v561
  %728 = vst.msk [vmem:[#allocation4 + $0xd8] sm:$0xff] %vm700, %v563
  %729 = vst.msk [vmem:[#allocation4 + $0xe0] sm:$0xff] %vm700, %v565
  %730 = vst.msk [vmem:[#allocation4 + $0xe8] sm:$0xff] %vm700, %v567
  %731 = vst.msk [vmem:[#allocation4 + $0xf0] sm:$0xff] %vm700, %v569
  %732 = vst.msk [vmem:[#allocation4 + $0xf8] sm:$0xff] %vm700, %v571
  %733 = vst.msk [vmem:[#allocation4 + $0x100] sm:$0xff] %vm700, %v573
  %734 = vst.msk [vmem:[#allocation4 + $0x108] sm:$0xff] %vm700, %v575
  %735 = vst.msk [vmem:[#allocation4 + $0x110] sm:$0xff] %vm700, %v577
  %736 = vst.msk [vmem:[#allocation4 + $0x118] sm:$0xff] %vm700, %v579
  %737 = vst.msk [vmem:[#allocation4 + $0x120] sm:$0xff] %vm700, %v581
  %738 = vst.msk [vmem:[#allocation4 + $0x128] sm:$0xff] %vm700, %v583
  %739 = vst.msk [vmem:[#allocation4 + $0x130] sm:$0xff] %vm700, %v585
  %740 = vst.msk [vmem:[#allocation4 + $0x138] sm:$0xff] %vm700, %v587
  %741 = vst.msk [vmem:[#allocation4 + $0x140] sm:$0xff] %vm700, %v589
  %742 = vst.msk [vmem:[#allocation4 + $0x148] sm:$0xff] %vm700, %v591
  %743 = vst.msk [vmem:[#allocation4 + $0x150] sm:$0xff] %vm700, %v593
  %744 = vst.msk [vmem:[#allocation4 + $0x158] sm:$0xff] %vm700, %v595
  %745 = vst.msk [vmem:[#allocation4 + $0x160] sm:$0xff] %vm700, %v597
  %746 = vst.msk [vmem:[#allocation4 + $0x168] sm:$0xff] %vm700, %v599
  %747 = vst.msk [vmem:[#allocation4 + $0x170] sm:$0xff] %vm700, %v601
  %748 = vst.msk [vmem:[#allocation4 + $0x178] sm:$0xff] %vm700, %v603
  %749 = vst.msk [vmem:[#allocation4 + $0x180] sm:$0xff] %vm700, %v605
  %750 = vst.msk [vmem:[#allocation4 + $0x188] sm:$0xff] %vm700, %v607
  %751 = vst.msk [vmem:[#allocation4 + $0x190] sm:$0xff] %vm700, %v609
  %752 = vst.msk [vmem:[#allocation4 + $0x198] sm:$0xff] %vm700, %v611
  %753 = vst.msk [vmem:[#allocation4 + $0x1a0] sm:$0xff] %vm700, %v613
  %754 = vst.msk [vmem:[#allocation4 + $0x1a8] sm:$0xff] %vm700, %v615
  %755 = vst.msk [vmem:[#allocation4 + $0x1b0] sm:$0xff] %vm700, %v617
  %756 = vst.msk [vmem:[#allocation4 + $0x1b8] sm:$0xff] %vm700, %v619
  %757 = vst.msk [vmem:[#allocation4 + $0x1c0] sm:$0xff] %vm700, %v621
  %758 = vst.msk [vmem:[#allocation4 + $0x1c8] sm:$0xff] %vm700, %v623
  %759 = vst.msk [vmem:[#allocation4 + $0x1d0] sm:$0xff] %vm700, %v625
  %760 = vst.msk [vmem:[#allocation4 + $0x1d8] sm:$0xff] %vm700, %v627
  %761 = vst.msk [vmem:[#allocation4 + $0x1e0] sm:$0xff] %vm700, %v629
  %762 = vst.msk [vmem:[#allocation4 + $0x1e8] sm:$0xff] %vm700, %v631
  %763 = vst.msk [vmem:[#allocation4 + $0x1f0] sm:$0xff] %vm700, %v633
  %764 = vst.msk [vmem:[#allocation4 + $0x1f8] sm:$0xff] %vm700, %v635
  %v765 = vld [vmem:[#allocation2 + $0x3] sm:$0xff]
  %v766 = vld [vmem:[#allocation2 + $0xb] sm:$0xff]
  %v767 = vld [vmem:[#allocation2 + $0x1b] sm:$0xff]
  %v768 = vld [vmem:[#allocation2 + $0x23] sm:$0xff]
  %v769 = vld [vmem:[#allocation2 + $0x33] sm:$0xff]
  %v770 = vld [vmem:[#allocation2 + $0x3b] sm:$0xff]
  %v771 = vld [vmem:[#allocation2 + $0x4b] sm:$0xff]
  %v772 = vld [vmem:[#allocation2 + $0x53] sm:$0xff]
  %v773 = vld [vmem:[#allocation2 + $0x63] sm:$0xff]
  %v774 = vld [vmem:[#allocation2 + $0x6b] sm:$0xff]
  %v775 = vld [vmem:[#allocation2 + $0x7b] sm:$0xff]
  %v776 = vld [vmem:[#allocation2 + $0x83] sm:$0xff]
  %v777 = vld [vmem:[#allocation2 + $0x93] sm:$0xff]
  %v778 = vld [vmem:[#allocation2 + $0x9b] sm:$0xff]
  %v779 = vld [vmem:[#allocation2 + $0xab] sm:$0xff]
  %v780 = vld [vmem:[#allocation2 + $0xb3] sm:$0xff]
  %v781 = vld [vmem:[#allocation2 + $0xc3] sm:$0xff]
  %v782 = vld [vmem:[#allocation2 + $0xcb] sm:$0xff]
  %v783 = vld [vmem:[#allocation2 + $0xdb] sm:$0xff]
  %v784 = vld [vmem:[#allocation2 + $0xe3] sm:$0xff]
  %v785 = vld [vmem:[#allocation2 + $0xf3] sm:$0xff]
  %v786 = vld [vmem:[#allocation2 + $0xfb] sm:$0xff]
  %v787 = vld [vmem:[#allocation2 + $0x10b] sm:$0xff]
  %v788 = vld [vmem:[#allocation2 + $0x113] sm:$0xff]
  %v789 = vld [vmem:[#allocation2 + $0x123] sm:$0xff]
  %v790 = vld [vmem:[#allocation2 + $0x12b] sm:$0xff]
  %v791 = vld [vmem:[#allocation2 + $0x13b] sm:$0xff]
  %v792 = vld [vmem:[#allocation2 + $0x143] sm:$0xff]
  %v793 = vld [vmem:[#allocation2 + $0x153] sm:$0xff]
  %v794 = vld [vmem:[#allocation2 + $0x15b] sm:$0xff]
  %v795 = vld [vmem:[#allocation2 + $0x16b] sm:$0xff]
  %v796 = vld [vmem:[#allocation2 + $0x173] sm:$0xff]
  %v797 = vld [vmem:[#allocation2 + $0x1b3] sm:$0xff]
  %v798 = vld [vmem:[#allocation2 + $0x1bb] sm:$0xff]
  %v799 = vld [vmem:[#allocation2 + $0x1cb] sm:$0xff]
  %v800 = vld [vmem:[#allocation2 + $0x1d3] sm:$0xff]
  %v801 = vld [vmem:[#allocation2 + $0x1e3] sm:$0xff]
  %v802 = vld [vmem:[#allocation2 + $0x1eb] sm:$0xff]
  %v803 = vld [vmem:[#allocation2 + $0x1fb] sm:$0xff]
  %v804 = vld [vmem:[#allocation2 + $0x203] sm:$0xff]
  %v805 = vld [vmem:[#allocation2 + $0x213] sm:$0xff]
  %v806 = vld [vmem:[#allocation2 + $0x21b] sm:$0xff]
  %v807 = vld [vmem:[#allocation2 + $0x22b] sm:$0xff]
  %v808 = vld [vmem:[#allocation2 + $0x233] sm:$0xff]
  %v809 = vld [vmem:[#allocation2 + $0x243] sm:$0xff]
  %v810 = vld [vmem:[#allocation2 + $0x24b] sm:$0xff]
  %v811 = vld [vmem:[#allocation2 + $0x25b] sm:$0xff]
  %v812 = vld [vmem:[#allocation2 + $0x263] sm:$0xff]
  %v813 = vld [vmem:[#allocation2 + $0x273] sm:$0xff]
  %v814 = vld [vmem:[#allocation2 + $0x27b] sm:$0xff]
  %v815 = vld [vmem:[#allocation2 + $0x28b] sm:$0xff]
  %v816 = vld [vmem:[#allocation2 + $0x293] sm:$0xff]
  %v817 = vld [vmem:[#allocation2 + $0x2a3] sm:$0xff]
  %v818 = vld [vmem:[#allocation2 + $0x2ab] sm:$0xff]
  %v819 = vld [vmem:[#allocation2 + $0x2bb] sm:$0xff]
  %v820 = vld [vmem:[#allocation2 + $0x2c3] sm:$0xff]
  %v821 = vld [vmem:[#allocation2 + $0x2d3] sm:$0xff]
  %v822 = vld [vmem:[#allocation2 + $0x2db] sm:$0xff]
  %v823 = vld [vmem:[#allocation2 + $0x2eb] sm:$0xff]
  %v824 = vld [vmem:[#allocation2 + $0x2f3] sm:$0xff]
  %v825 = vld [vmem:[#allocation2 + $0x303] sm:$0xff]
  %v826 = vld [vmem:[#allocation2 + $0x30b] sm:$0xff]
  %v827 = vld [vmem:[#allocation2 + $0x31b] sm:$0xff]
  %v828 = vld [vmem:[#allocation2 + $0x323] sm:$0xff]
  %893 = vrot.lane.b32.xlu0 %v765, 8
  %v894 = vpop.permute.xlu0 %893
  %895 = vrot.lane.b32.xlu0 %v766, 8
  %v896 = vpop.permute.xlu0 %895
  %897 = vrot.lane.b32.xlu0 %v767, 8
  %v898 = vpop.permute.xlu0 %897
  %899 = vrot.lane.b32.xlu0 %v768, 8
  %v900 = vpop.permute.xlu0 %899
  %901 = vrot.lane.b32.xlu0 %v769, 8
  %v902 = vpop.permute.xlu0 %901
  %903 = vrot.lane.b32.xlu0 %v770, 8
  %v904 = vpop.permute.xlu0 %903
  %905 = vrot.lane.b32.xlu0 %v771, 8
  %v906 = vpop.permute.xlu0 %905
  %907 = vrot.lane.b32.xlu0 %v772, 8
  %v908 = vpop.permute.xlu0 %907
  %909 = vrot.lane.b32.xlu0 %v773, 8
  %v910 = vpop.permute.xlu0 %909
  %911 = vrot.lane.b32.xlu0 %v774, 8
  %v912 = vpop.permute.xlu0 %911
  %913 = vrot.lane.b32.xlu0 %v775, 8
  %v914 = vpop.permute.xlu0 %913
  %915 = vrot.lane.b32.xlu0 %v776, 8
  %v916 = vpop.permute.xlu0 %915
  %917 = vrot.lane.b32.xlu0 %v777, 8
  %v918 = vpop.permute.xlu0 %917
  %919 = vrot.lane.b32.xlu0 %v778, 8
  %v920 = vpop.permute.xlu0 %919
  %921 = vrot.lane.b32.xlu0 %v779, 8
  %v922 = vpop.permute.xlu0 %921
  %923 = vrot.lane.b32.xlu0 %v780, 8
  %v924 = vpop.permute.xlu0 %923
  %925 = vrot.lane.b32.xlu0 %v781, 8
  %v926 = vpop.permute.xlu0 %925
  %927 = vrot.lane.b32.xlu0 %v782, 8
  %v928 = vpop.permute.xlu0 %927
  %929 = vrot.lane.b32.xlu0 %v783, 8
  %v930 = vpop.permute.xlu0 %929
  %931 = vrot.lane.b32.xlu0 %v784, 8
  %v932 = vpop.permute.xlu0 %931
  %933 = vrot.lane.b32.xlu0 %v785, 8
  %v934 = vpop.permute.xlu0 %933
  %935 = vrot.lane.b32.xlu0 %v786, 8
  %v936 = vpop.permute.xlu0 %935
  %937 = vrot.lane.b32.xlu0 %v787, 8
  %v938 = vpop.permute.xlu0 %937
  %939 = vrot.lane.b32.xlu0 %v788, 8
  %v940 = vpop.permute.xlu0 %939
  %941 = vrot.lane.b32.xlu0 %v789, 8
  %v942 = vpop.permute.xlu0 %941
  %943 = vrot.lane.b32.xlu0 %v790, 8
  %v944 = vpop.permute.xlu0 %943
  %945 = vrot.lane.b32.xlu0 %v791, 8
  %v946 = vpop.permute.xlu0 %945
  %947 = vrot.lane.b32.xlu0 %v792, 8
  %v948 = vpop.permute.xlu0 %947
  %949 = vrot.lane.b32.xlu0 %v793, 8
  %v950 = vpop.permute.xlu0 %949
  %951 = vrot.lane.b32.xlu0 %v794, 8
  %v952 = vpop.permute.xlu0 %951
  %953 = vrot.lane.b32.xlu0 %v795, 8
  %v954 = vpop.permute.xlu0 %953
  %955 = vrot.lane.b32.xlu0 %v796, 8
  %v956 = vpop.permute.xlu0 %955
  %957 = vrot.lane.b32.xlu0 %v797, 8
  %v958 = vpop.permute.xlu0 %957
  %959 = vrot.lane.b32.xlu0 %v798, 8
  %v960 = vpop.permute.xlu0 %959
  %961 = vrot.lane.b32.xlu0 %v799, 8
  %v962 = vpop.permute.xlu0 %961
  %963 = vrot.lane.b32.xlu0 %v800, 8
  %v964 = vpop.permute.xlu0 %963
  %965 = vrot.lane.b32.xlu0 %v801, 8
  %v966 = vpop.permute.xlu0 %965
  %967 = vrot.lane.b32.xlu0 %v802, 8
  %v968 = vpop.permute.xlu0 %967
  %969 = vrot.lane.b32.xlu0 %v803, 8
  %v970 = vpop.permute.xlu0 %969
  %971 = vrot.lane.b32.xlu0 %v804, 8
  %v972 = vpop.permute.xlu0 %971
  %973 = vrot.lane.b32.xlu0 %v805, 8
  %v974 = vpop.permute.xlu0 %973
  %975 = vrot.lane.b32.xlu0 %v806, 8
  %v976 = vpop.permute.xlu0 %975
  %977 = vrot.lane.b32.xlu0 %v807, 8
  %v978 = vpop.permute.xlu0 %977
  %979 = vrot.lane.b32.xlu0 %v808, 8
  %v980 = vpop.permute.xlu0 %979
  %981 = vrot.lane.b32.xlu0 %v809, 8
  %v982 = vpop.permute.xlu0 %981
  %983 = vrot.lane.b32.xlu0 %v810, 8
  %v984 = vpop.permute.xlu0 %983
  %985 = vrot.lane.b32.xlu0 %v811, 8
  %v986 = vpop.permute.xlu0 %985
  %987 = vrot.lane.b32.xlu0 %v812, 8
  %v988 = vpop.permute.xlu0 %987
  %989 = vrot.lane.b32.xlu0 %v813, 8
  %v990 = vpop.permute.xlu0 %989
  %991 = vrot.lane.b32.xlu0 %v814, 8
  %v992 = vpop.permute.xlu0 %991
  %993 = vrot.lane.b32.xlu0 %v815, 8
  %v994 = vpop.permute.xlu0 %993
  %995 = vrot.lane.b32.xlu0 %v816, 8
  %v996 = vpop.permute.xlu0 %995
  %997 = vrot.lane.b32.xlu0 %v817, 8
  %v998 = vpop.permute.xlu0 %997
  %999 = vrot.lane.b32.xlu0 %v818, 8
  %v1000 = vpop.permute.xlu0 %999
  %1001 = vrot.lane.b32.xlu0 %v819, 8
  %v1002 = vpop.permute.xlu0 %1001
  %1003 = vrot.lane.b32.xlu0 %v820, 8
  %v1004 = vpop.permute.xlu0 %1003
  %1005 = vrot.lane.b32.xlu0 %v821, 8
  %v1006 = vpop.permute.xlu0 %1005
  %1007 = vrot.lane.b32.xlu0 %v822, 8
  %v1008 = vpop.permute.xlu0 %1007
  %1009 = vrot.lane.b32.xlu0 %v823, 8
  %v1010 = vpop.permute.xlu0 %1009
  %1011 = vrot.lane.b32.xlu0 %v824, 8
  %v1012 = vpop.permute.xlu0 %1011
  %1013 = vrot.lane.b32.xlu0 %v825, 8
  %v1014 = vpop.permute.xlu0 %1013
  %1015 = vrot.lane.b32.xlu0 %v826, 8
  %v1016 = vpop.permute.xlu0 %1015
  %1017 = vrot.lane.b32.xlu0 %v827, 8
  %v1018 = vpop.permute.xlu0 %1017
  %1019 = vrot.lane.b32.xlu0 %v828, 8
  %v1020 = vpop.permute.xlu0 %1019
  %vm1085 = vcmask 97344
  %1086 = vst.msk [vmem:[#allocation4] sm:$0xff] %vm1085, %v894
  %1087 = vst.msk [vmem:[#allocation4 + $0x8] sm:$0xff] %vm1085, %v896
  %1088 = vst.msk [vmem:[#allocation4 + $0x10] sm:$0xff] %vm1085, %v898
  %1089 = vst.msk [vmem:[#allocation4 + $0x18] sm:$0xff] %vm1085, %v900
  %1090 = vst.msk [vmem:[#allocation4 + $0x20] sm:$0xff] %vm1085, %v902
  %1091 = vst.msk [vmem:[#allocation4 + $0x28] sm:$0xff] %vm1085, %v904
  %1092 = vst.msk [vmem:[#allocation4 + $0x30] sm:$0xff] %vm1085, %v906
  %1093 = vst.msk [vmem:[#allocation4 + $0x38] sm:$0xff] %vm1085, %v908
  %1094 = vst.msk [vmem:[#allocation4 + $0x40] sm:$0xff] %vm1085, %v910
  %1095 = vst.msk [vmem:[#allocation4 + $0x48] sm:$0xff] %vm1085, %v912
  %1096 = vst.msk [vmem:[#allocation4 + $0x50] sm:$0xff] %vm1085, %v914
  %1097 = vst.msk [vmem:[#allocation4 + $0x58] sm:$0xff] %vm1085, %v916
  %1098 = vst.msk [vmem:[#allocation4 + $0x60] sm:$0xff] %vm1085, %v918
  %1099 = vst.msk [vmem:[#allocation4 + $0x68] sm:$0xff] %vm1085, %v920
  %1100 = vst.msk [vmem:[#allocation4 + $0x70] sm:$0xff] %vm1085, %v922
  %1101 = vst.msk [vmem:[#allocation4 + $0x78] sm:$0xff] %vm1085, %v924
  %1102 = vst.msk [vmem:[#allocation4 + $0x80] sm:$0xff] %vm1085, %v926
  %1103 = vst.msk [vmem:[#allocation4 + $0x88] sm:$0xff] %vm1085, %v928
  %1104 = vst.msk [vmem:[#allocation4 + $0x90] sm:$0xff] %vm1085, %v930
  %1105 = vst.msk [vmem:[#allocation4 + $0x98] sm:$0xff] %vm1085, %v932
  %1106 = vst.msk [vmem:[#allocation4 + $0xa0] sm:$0xff] %vm1085, %v934
  %1107 = vst.msk [vmem:[#allocation4 + $0xa8] sm:$0xff] %vm1085, %v936
  %1108 = vst.msk [vmem:[#allocation4 + $0xb0] sm:$0xff] %vm1085, %v938
  %1109 = vst.msk [vmem:[#allocation4 + $0xb8] sm:$0xff] %vm1085, %v940
  %1110 = vst.msk [vmem:[#allocation4 + $0xc0] sm:$0xff] %vm1085, %v942
  %1111 = vst.msk [vmem:[#allocation4 + $0xc8] sm:$0xff] %vm1085, %v944
  %1112 = vst.msk [vmem:[#allocation4 + $0xd0] sm:$0xff] %vm1085, %v946
  %1113 = vst.msk [vmem:[#allocation4 + $0xd8] sm:$0xff] %vm1085, %v948
  %1114 = vst.msk [vmem:[#allocation4 + $0xe0] sm:$0xff] %vm1085, %v950
  %1115 = vst.msk [vmem:[#allocation4 + $0xe8] sm:$0xff] %vm1085, %v952
  %1116 = vst.msk [vmem:[#allocation4 + $0xf0] sm:$0xff] %vm1085, %v954
  %1117 = vst.msk [vmem:[#allocation4 + $0xf8] sm:$0xff] %vm1085, %v956
  %1118 = vst.msk [vmem:[#allocation4 + $0x100] sm:$0xff] %vm1085, %v958
  %1119 = vst.msk [vmem:[#allocation4 + $0x108] sm:$0xff] %vm1085, %v960
  %1120 = vst.msk [vmem:[#allocation4 + $0x110] sm:$0xff] %vm1085, %v962
  %1121 = vst.msk [vmem:[#allocation4 + $0x118] sm:$0xff] %vm1085, %v964
  %1122 = vst.msk [vmem:[#allocation4 + $0x120] sm:$0xff] %vm1085, %v966
  %1123 = vst.msk [vmem:[#allocation4 + $0x128] sm:$0xff] %vm1085, %v968
  %1124 = vst.msk [vmem:[#allocation4 + $0x130] sm:$0xff] %vm1085, %v970
  %1125 = vst.msk [vmem:[#allocation4 + $0x138] sm:$0xff] %vm1085, %v972
  %1126 = vst.msk [vmem:[#allocation4 + $0x140] sm:$0xff] %vm1085, %v974
  %1127 = vst.msk [vmem:[#allocation4 + $0x148] sm:$0xff] %vm1085, %v976
  %1128 = vst.msk [vmem:[#allocation4 + $0x150] sm:$0xff] %vm1085, %v978
  %1129 = vst.msk [vmem:[#allocation4 + $0x158] sm:$0xff] %vm1085, %v980
  %1130 = vst.msk [vmem:[#allocation4 + $0x160] sm:$0xff] %vm1085, %v982
  %1131 = vst.msk [vmem:[#allocation4 + $0x168] sm:$0xff] %vm1085, %v984
  %1132 = vst.msk [vmem:[#allocation4 + $0x170] sm:$0xff] %vm1085, %v986
  %1133 = vst.msk [vmem:[#allocation4 + $0x178] sm:$0xff] %vm1085, %v988
  %1134 = vst.msk [vmem:[#allocation4 + $0x180] sm:$0xff] %vm1085, %v990
  %1135 = vst.msk [vmem:[#allocation4 + $0x188] sm:$0xff] %vm1085, %v992
  %1136 = vst.msk [vmem:[#allocation4 + $0x190] sm:$0xff] %vm1085, %v994
  %1137 = vst.msk [vmem:[#allocation4 + $0x198] sm:$0xff] %vm1085, %v996
  %1138 = vst.msk [vmem:[#allocation4 + $0x1a0] sm:$0xff] %vm1085, %v998
  %1139 = vst.msk [vmem:[#allocation4 + $0x1a8] sm:$0xff] %vm1085, %v1000
  %1140 = vst.msk [vmem:[#allocation4 + $0x1b0] sm:$0xff] %vm1085, %v1002
  %1141 = vst.msk [vmem:[#allocation4 + $0x1b8] sm:$0xff] %vm1085, %v1004
  %1142 = vst.msk [vmem:[#allocation4 + $0x1c0] sm:$0xff] %vm1085, %v1006
  %1143 = vst.msk [vmem:[#allocation4 + $0x1c8] sm:$0xff] %vm1085, %v1008
  %1144 = vst.msk [vmem:[#allocation4 + $0x1d0] sm:$0xff] %vm1085, %v1010
  %1145 = vst.msk [vmem:[#allocation4 + $0x1d8] sm:$0xff] %vm1085, %v1012
  %1146 = vst.msk [vmem:[#allocation4 + $0x1e0] sm:$0xff] %vm1085, %v1014
  %1147 = vst.msk [vmem:[#allocation4 + $0x1e8] sm:$0xff] %vm1085, %v1016
  %1148 = vst.msk [vmem:[#allocation4 + $0x1f0] sm:$0xff] %vm1085, %v1018
  %1149 = vst.msk [vmem:[#allocation4 + $0x1f8] sm:$0xff] %vm1085, %v1020
  %v1150 = vld [vmem:[%s187 + $0x1] sm:$0xff]
  %v1151 = vld [vmem:[%s187 + $0x9] sm:$0xff]
  %v1152 = vld [vmem:[%s187 + $0x19] sm:$0xff]
  %v1153 = vld [vmem:[%s187 + $0x21] sm:$0xff]
  %v1154 = vld [vmem:[%s187 + $0x31] sm:$0xff]
  %v1155 = vld [vmem:[%s187 + $0x39] sm:$0xff]
  %v1156 = vld [vmem:[%s187 + $0x49] sm:$0xff]
  %v1157 = vld [vmem:[%s187 + $0x51] sm:$0xff]
  %v1158 = vld [vmem:[%s187 + $0x61] sm:$0xff]
  %v1159 = vld [vmem:[%s187 + $0x69] sm:$0xff]
  %v1160 = vld [vmem:[%s187 + $0x79] sm:$0xff]
  %v1161 = vld [vmem:[%s187 + $0x81] sm:$0xff]
  %v1162 = vld [vmem:[%s187 + $0x91] sm:$0xff]
  %v1163 = vld [vmem:[%s187 + $0x99] sm:$0xff]
  %v1164 = vld [vmem:[%s187 + $0xa9] sm:$0xff]
  %v1165 = vld [vmem:[%s187 + $0xb1] sm:$0xff]
  %v1166 = vld [vmem:[%s187 + $0xc1] sm:$0xff]
  %v1167 = vld [vmem:[%s187 + $0xc9] sm:$0xff]
  %v1168 = vld [vmem:[%s187 + $0xd9] sm:$0xff]
  %v1169 = vld [vmem:[%s187 + $0xe1] sm:$0xff]
  %v1170 = vld [vmem:[%s187 + $0xf1] sm:$0xff]
  %v1171 = vld [vmem:[%s187 + $0xf9] sm:$0xff]
  %v1172 = vld [vmem:[%s187 + $0x109] sm:$0xff]
  %v1173 = vld [vmem:[%s187 + $0x111] sm:$0xff]
  %v1174 = vld [vmem:[%s187 + $0x121] sm:$0xff]
  %v1175 = vld [vmem:[%s187 + $0x129] sm:$0xff]
  %v1176 = vld [vmem:[%s187 + $0x139] sm:$0xff]
  %v1177 = vld [vmem:[%s187 + $0x141] sm:$0xff]
  %v1178 = vld [vmem:[%s187 + $0x151] sm:$0xff]
  %v1179 = vld [vmem:[%s187 + $0x159] sm:$0xff]
  %v1180 = vld [vmem:[%s187 + $0x169] sm:$0xff]
  %v1181 = vld [vmem:[%s187 + $0x171] sm:$0xff]
  %v1182 = vld [vmem:[%s187 + $0x1b1] sm:$0xff]
  %v1183 = vld [vmem:[%s187 + $0x1b9] sm:$0xff]
  %v1184 = vld [vmem:[%s187 + $0x1c9] sm:$0xff]
  %v1185 = vld [vmem:[%s187 + $0x1d1] sm:$0xff]
  %v1186 = vld [vmem:[%s187 + $0x1e1] sm:$0xff]
  %v1187 = vld [vmem:[%s187 + $0x1e9] sm:$0xff]
  %v1188 = vld [vmem:[%s187 + $0x1f9] sm:$0xff]
  %v1189 = vld [vmem:[%s187 + $0x201] sm:$0xff]
  %v1190 = vld [vmem:[%s187 + $0x211] sm:$0xff]
  %v1191 = vld [vmem:[%s187 + $0x219] sm:$0xff]
  %v1192 = vld [vmem:[%s187 + $0x229] sm:$0xff]
  %v1193 = vld [vmem:[%s187 + $0x231] sm:$0xff]
  %v1194 = vld [vmem:[%s187 + $0x241] sm:$0xff]
  %v1195 = vld [vmem:[%s187 + $0x249] sm:$0xff]
  %v1196 = vld [vmem:[%s187 + $0x259] sm:$0xff]
  %v1197 = vld [vmem:[%s187 + $0x261] sm:$0xff]
  %v1198 = vld [vmem:[%s187 + $0x271] sm:$0xff]
  %v1199 = vld [vmem:[%s187 + $0x279] sm:$0xff]
  %v1200 = vld [vmem:[%s187 + $0x289] sm:$0xff]
  %v1201 = vld [vmem:[%s187 + $0x291] sm:$0xff]
  %v1202 = vld [vmem:[%s187 + $0x2a1] sm:$0xff]
  %v1203 = vld [vmem:[%s187 + $0x2a9] sm:$0xff]
  %v1204 = vld [vmem:[%s187 + $0x2b9] sm:$0xff]
  %v1205 = vld [vmem:[%s187 + $0x2c1] sm:$0xff]
  %v1206 = vld [vmem:[%s187 + $0x2d1] sm:$0xff]
  %v1207 = vld [vmem:[%s187 + $0x2d9] sm:$0xff]
  %v1208 = vld [vmem:[%s187 + $0x2e9] sm:$0xff]
  %v1209 = vld [vmem:[%s187 + $0x2f1] sm:$0xff]
  %v1210 = vld [vmem:[%s187 + $0x301] sm:$0xff]
  %v1211 = vld [vmem:[%s187 + $0x309] sm:$0xff]
  %v1212 = vld [vmem:[%s187 + $0x319] sm:$0xff]
  %v1213 = vld [vmem:[%s187 + $0x321] sm:$0xff]
  %1278 = vrot.lane.b32.xlu0 %v1150, 12
  %v1279 = vpop.permute.xlu0 %1278
  %1280 = vrot.lane.b32.xlu0 %v1151, 12
  %v1281 = vpop.permute.xlu0 %1280
  %1282 = vrot.lane.b32.xlu0 %v1152, 12
  %v1283 = vpop.permute.xlu0 %1282
  %1284 = vrot.lane.b32.xlu0 %v1153, 12
  %v1285 = vpop.permute.xlu0 %1284
  %1286 = vrot.lane.b32.xlu0 %v1154, 12
  %v1287 = vpop.permute.xlu0 %1286
  %1288 = vrot.lane.b32.xlu0 %v1155, 12
  %v1289 = vpop.permute.xlu0 %1288
  %1290 = vrot.lane.b32.xlu0 %v1156, 12
  %v1291 = vpop.permute.xlu0 %1290
  %1292 = vrot.lane.b32.xlu0 %v1157, 12
  %v1293 = vpop.permute.xlu0 %1292
  %1294 = vrot.lane.b32.xlu0 %v1158, 12
  %v1295 = vpop.permute.xlu0 %1294
  %1296 = vrot.lane.b32.xlu0 %v1159, 12
  %v1297 = vpop.permute.xlu0 %1296
  %1298 = vrot.lane.b32.xlu0 %v1160, 12
  %v1299 = vpop.permute.xlu0 %1298
  %1300 = vrot.lane.b32.xlu0 %v1161, 12
  %v1301 = vpop.permute.xlu0 %1300
  %1302 = vrot.lane.b32.xlu0 %v1162, 12
  %v1303 = vpop.permute.xlu0 %1302
  %1304 = vrot.lane.b32.xlu0 %v1163, 12
  %v1305 = vpop.permute.xlu0 %1304
  %1306 = vrot.lane.b32.xlu0 %v1164, 12
  %v1307 = vpop.permute.xlu0 %1306
  %1308 = vrot.lane.b32.xlu0 %v1165, 12
  %v1309 = vpop.permute.xlu0 %1308
  %1310 = vrot.lane.b32.xlu0 %v1166, 12
  %v1311 = vpop.permute.xlu0 %1310
  %1312 = vrot.lane.b32.xlu0 %v1167, 12
  %v1313 = vpop.permute.xlu0 %1312
  %1314 = vrot.lane.b32.xlu0 %v1168, 12
  %v1315 = vpop.permute.xlu0 %1314
  %1316 = vrot.lane.b32.xlu0 %v1169, 12
  %v1317 = vpop.permute.xlu0 %1316
  %1318 = vrot.lane.b32.xlu0 %v1170, 12
  %v1319 = vpop.permute.xlu0 %1318
  %1320 = vrot.lane.b32.xlu0 %v1171, 12
  %v1321 = vpop.permute.xlu0 %1320
  %1322 = vrot.lane.b32.xlu0 %v1172, 12
  %v1323 = vpop.permute.xlu0 %1322
  %1324 = vrot.lane.b32.xlu0 %v1173, 12
  %v1325 = vpop.permute.xlu0 %1324
  %1326 = vrot.lane.b32.xlu0 %v1174, 12
  %v1327 = vpop.permute.xlu0 %1326
  %1328 = vrot.lane.b32.xlu0 %v1175, 12
  %v1329 = vpop.permute.xlu0 %1328
  %1330 = vrot.lane.b32.xlu0 %v1176, 12
  %v1331 = vpop.permute.xlu0 %1330
  %1332 = vrot.lane.b32.xlu0 %v1177, 12
  %v1333 = vpop.permute.xlu0 %1332
  %1334 = vrot.lane.b32.xlu0 %v1178, 12
  %v1335 = vpop.permute.xlu0 %1334
  %1336 = vrot.lane.b32.xlu0 %v1179, 12
  %v1337 = vpop.permute.xlu0 %1336
  %1338 = vrot.lane.b32.xlu0 %v1180, 12
  %v1339 = vpop.permute.xlu0 %1338
  %1340 = vrot.lane.b32.xlu0 %v1181, 12
  %v1341 = vpop.permute.xlu0 %1340
  %1342 = vrot.lane.b32.xlu0 %v1182, 12
  %v1343 = vpop.permute.xlu0 %1342
  %1344 = vrot.lane.b32.xlu0 %v1183, 12
  %v1345 = vpop.permute.xlu0 %1344
  %1346 = vrot.lane.b32.xlu0 %v1184, 12
  %v1347 = vpop.permute.xlu0 %1346
  %1348 = vrot.lane.b32.xlu0 %v1185, 12
  %v1349 = vpop.permute.xlu0 %1348
  %1350 = vrot.lane.b32.xlu0 %v1186, 12
  %v1351 = vpop.permute.xlu0 %1350
  %1352 = vrot.lane.b32.xlu0 %v1187, 12
  %v1353 = vpop.permute.xlu0 %1352
  %1354 = vrot.lane.b32.xlu0 %v1188, 12
  %v1355 = vpop.permute.xlu0 %1354
  %1356 = vrot.lane.b32.xlu0 %v1189, 12
  %v1357 = vpop.permute.xlu0 %1356
  %1358 = vrot.lane.b32.xlu0 %v1190, 12
  %v1359 = vpop.permute.xlu0 %1358
  %1360 = vrot.lane.b32.xlu0 %v1191, 12
  %v1361 = vpop.permute.xlu0 %1360
  %1362 = vrot.lane.b32.xlu0 %v1192, 12
  %v1363 = vpop.permute.xlu0 %1362
  %1364 = vrot.lane.b32.xlu0 %v1193, 12
  %v1365 = vpop.permute.xlu0 %1364
  %1366 = vrot.lane.b32.xlu0 %v1194, 12
  %v1367 = vpop.permute.xlu0 %1366
  %1368 = vrot.lane.b32.xlu0 %v1195, 12
  %v1369 = vpop.permute.xlu0 %1368
  %1370 = vrot.lane.b32.xlu0 %v1196, 12
  %v1371 = vpop.permute.xlu0 %1370
  %1372 = vrot.lane.b32.xlu0 %v1197, 12
  %v1373 = vpop.permute.xlu0 %1372
  %1374 = vrot.lane.b32.xlu0 %v1198, 12
  %v1375 = vpop.permute.xlu0 %1374
  %1376 = vrot.lane.b32.xlu0 %v1199, 12
  %v1377 = vpop.permute.xlu0 %1376
  %1378 = vrot.lane.b32.xlu0 %v1200, 12
  %v1379 = vpop.permute.xlu0 %1378
  %1380 = vrot.lane.b32.xlu0 %v1201, 12
  %v1381 = vpop.permute.xlu0 %1380
  %1382 = vrot.lane.b32.xlu0 %v1202, 12
  %v1383 = vpop.permute.xlu0 %1382
  %1384 = vrot.lane.b32.xlu0 %v1203, 12
  %v1385 = vpop.permute.xlu0 %1384
  %1386 = vrot.lane.b32.xlu0 %v1204, 12
  %v1387 = vpop.permute.xlu0 %1386
  %1388 = vrot.lane.b32.xlu0 %v1205, 12
  %v1389 = vpop.permute.xlu0 %1388
  %1390 = vrot.lane.b32.xlu0 %v1206, 12
  %v1391 = vpop.permute.xlu0 %1390
  %1392 = vrot.lane.b32.xlu0 %v1207, 12
  %v1393 = vpop.permute.xlu0 %1392
  %1394 = vrot.lane.b32.xlu0 %v1208, 12
  %v1395 = vpop.permute.xlu0 %1394
  %1396 = vrot.lane.b32.xlu0 %v1209, 12
  %v1397 = vpop.permute.xlu0 %1396
  %1398 = vrot.lane.b32.xlu0 %v1210, 12
  %v1399 = vpop.permute.xlu0 %1398
  %1400 = vrot.lane.b32.xlu0 %v1211, 12
  %v1401 = vpop.permute.xlu0 %1400
  %1402 = vrot.lane.b32.xlu0 %v1212, 12
  %v1403 = vpop.permute.xlu0 %1402
  %1404 = vrot.lane.b32.xlu0 %v1213, 12
  %v1405 = vpop.permute.xlu0 %1404
  %vm1470 = vcmask 130144
  %1471 = vst.msk [vmem:[#allocation4] sm:$0xff] %vm1470, %v1279
  %1472 = vst.msk [vmem:[#allocation4 + $0x8] sm:$0xff] %vm1470, %v1281
  %1473 = vst.msk [vmem:[#allocation4 + $0x10] sm:$0xff] %vm1470, %v1283
  %1474 = vst.msk [vmem:[#allocation4 + $0x18] sm:$0xff] %vm1470, %v1285
  %1475 = vst.msk [vmem:[#allocation4 + $0x20] sm:$0xff] %vm1470, %v1287
  %1476 = vst.msk [vmem:[#allocation4 + $0x28] sm:$0xff] %vm1470, %v1289
  %1477 = vst.msk [vmem:[#allocation4 + $0x30] sm:$0xff] %vm1470, %v1291
  %1478 = vst.msk [vmem:[#allocation4 + $0x38] sm:$0xff] %vm1470, %v1293
  %1479 = vst.msk [vmem:[#allocation4 + $0x40] sm:$0xff] %vm1470, %v1295
  %1480 = vst.msk [vmem:[#allocation4 + $0x48] sm:$0xff] %vm1470, %v1297
  %1481 = vst.msk [vmem:[#allocation4 + $0x50] sm:$0xff] %vm1470, %v1299
  %1482 = vst.msk [vmem:[#allocation4 + $0x58] sm:$0xff] %vm1470, %v1301
  %1483 = vst.msk [vmem:[#allocation4 + $0x60] sm:$0xff] %vm1470, %v1303
  %1484 = vst.msk [vmem:[#allocation4 + $0x68] sm:$0xff] %vm1470, %v1305
  %1485 = vst.msk [vmem:[#allocation4 + $0x70] sm:$0xff] %vm1470, %v1307
  %1486 = vst.msk [vmem:[#allocation4 + $0x78] sm:$0xff] %vm1470, %v1309
  %1487 = vst.msk [vmem:[#allocation4 + $0x80] sm:$0xff] %vm1470, %v1311
  %1488 = vst.msk [vmem:[#allocation4 + $0x88] sm:$0xff] %vm1470, %v1313
  %1489 = vst.msk [vmem:[#allocation4 + $0x90] sm:$0xff] %vm1470, %v1315
  %1490 = vst.msk [vmem:[#allocation4 + $0x98] sm:$0xff] %vm1470, %v1317
  %1491 = vst.msk [vmem:[#allocation4 + $0xa0] sm:$0xff] %vm1470, %v1319
  %1492 = vst.msk [vmem:[#allocation4 + $0xa8] sm:$0xff] %vm1470, %v1321
  %1493 = vst.msk [vmem:[#allocation4 + $0xb0] sm:$0xff] %vm1470, %v1323
  %1494 = vst.msk [vmem:[#allocation4 + $0xb8] sm:$0xff] %vm1470, %v1325
  %1495 = vst.msk [vmem:[#allocation4 + $0xc0] sm:$0xff] %vm1470, %v1327
  %1496 = vst.msk [vmem:[#allocation4 + $0xc8] sm:$0xff] %vm1470, %v1329
  %1497 = vst.msk [vmem:[#allocation4 + $0xd0] sm:$0xff] %vm1470, %v1331
  %1498 = vst.msk [vmem:[#allocation4 + $0xd8] sm:$0xff] %vm1470, %v1333
  %1499 = vst.msk [vmem:[#allocation4 + $0xe0] sm:$0xff] %vm1470, %v1335
  %1500 = vst.msk [vmem:[#allocation4 + $0xe8] sm:$0xff] %vm1470, %v1337
  %1501 = vst.msk [vmem:[#allocation4 + $0xf0] sm:$0xff] %vm1470, %v1339
  %1502 = vst.msk [vmem:[#allocation4 + $0xf8] sm:$0xff] %vm1470, %v1341
  %1503 = vst.msk [vmem:[#allocation4 + $0x100] sm:$0xff] %vm1470, %v1343
  %1504 = vst.msk [vmem:[#allocation4 + $0x108] sm:$0xff] %vm1470, %v1345
  %1505 = vst.msk [vmem:[#allocation4 + $0x110] sm:$0xff] %vm1470, %v1347
  %1506 = vst.msk [vmem:[#allocation4 + $0x118] sm:$0xff] %vm1470, %v1349
  %1507 = vst.msk [vmem:[#allocation4 + $0x120] sm:$0xff] %vm1470, %v1351
  %1508 = vst.msk [vmem:[#allocation4 + $0x128] sm:$0xff] %vm1470, %v1353
  %1509 = vst.msk [vmem:[#allocation4 + $0x130] sm:$0xff] %vm1470, %v1355
  %1510 = vst.msk [vmem:[#allocation4 + $0x138] sm:$0xff] %vm1470, %v1357
  %1511 = vst.msk [vmem:[#allocation4 + $0x140] sm:$0xff] %vm1470, %v1359
  %1512 = vst.msk [vmem:[#allocation4 + $0x148] sm:$0xff] %vm1470, %v1361
  %1513 = vst.msk [vmem:[#allocation4 + $0x150] sm:$0xff] %vm1470, %v1363
  %1514 = vst.msk [vmem:[#allocation4 + $0x158] sm:$0xff] %vm1470, %v1365
  %1515 = vst.msk [vmem:[#allocation4 + $0x160] sm:$0xff] %vm1470, %v1367
  %1516 = vst.msk [vmem:[#allocation4 + $0x168] sm:$0xff] %vm1470, %v1369
  %1517 = vst.msk [vmem:[#allocation4 + $0x170] sm:$0xff] %vm1470, %v1371
  %1518 = vst.msk [vmem:[#allocation4 + $0x178] sm:$0xff] %vm1470, %v1373
  %1519 = vst.msk [vmem:[#allocation4 + $0x180] sm:$0xff] %vm1470, %v1375
  %1520 = vst.msk [vmem:[#allocation4 + $0x188] sm:$0xff] %vm1470, %v1377
  %1521 = vst.msk [vmem:[#allocation4 + $0x190] sm:$0xff] %vm1470, %v1379
  %1522 = vst.msk [vmem:[#allocation4 + $0x198] sm:$0xff] %vm1470, %v1381
  %1523 = vst.msk [vmem:[#allocation4 + $0x1a0] sm:$0xff] %vm1470, %v1383
  %1524 = vst.msk [vmem:[#allocation4 + $0x1a8] sm:$0xff] %vm1470, %v1385
  %1525 = vst.msk [vmem:[#allocation4 + $0x1b0] sm:$0xff] %vm1470, %v1387
  %1526 = vst.msk [vmem:[#allocation4 + $0x1b8] sm:$0xff] %vm1470, %v1389
  %1527 = vst.msk [vmem:[#allocation4 + $0x1c0] sm:$0xff] %vm1470, %v1391
  %1528 = vst.msk [vmem:[#allocation4 + $0x1c8] sm:$0xff] %vm1470, %v1393
  %1529 = vst.msk [vmem:[#allocation4 + $0x1d0] sm:$0xff] %vm1470, %v1395
  %1530 = vst.msk [vmem:[#allocation4 + $0x1d8] sm:$0xff] %vm1470, %v1397
  %1531 = vst.msk [vmem:[#allocation4 + $0x1e0] sm:$0xff] %vm1470, %v1399
  %1532 = vst.msk [vmem:[#allocation4 + $0x1e8] sm:$0xff] %vm1470, %v1401
  %1533 = vst.msk [vmem:[#allocation4 + $0x1f0] sm:$0xff] %vm1470, %v1403
  %1534 = vst.msk [vmem:[#allocation4 + $0x1f8] sm:$0xff] %vm1470, %v1405
  %v1535 = vld [vmem:[%s187 + $0x2] sm:$0xff]
  %v1536 = vld [vmem:[%s187 + $0xa] sm:$0xff]
  %v1537 = vld [vmem:[%s187 + $0x1a] sm:$0xff]
  %v1538 = vld [vmem:[%s187 + $0x22] sm:$0xff]
  %v1539 = vld [vmem:[%s187 + $0x32] sm:$0xff]
  %v1540 = vld [vmem:[%s187 + $0x3a] sm:$0xff]
  %v1541 = vld [vmem:[%s187 + $0x4a] sm:$0xff]
  %v1542 = vld [vmem:[%s187 + $0x52] sm:$0xff]
  %v1543 = vld [vmem:[%s187 + $0x62] sm:$0xff]
  %v1544 = vld [vmem:[%s187 + $0x6a] sm:$0xff]
  %v1545 = vld [vmem:[%s187 + $0x7a] sm:$0xff]
  %v1546 = vld [vmem:[%s187 + $0x82] sm:$0xff]
  %v1547 = vld [vmem:[%s187 + $0x92] sm:$0xff]
  %v1548 = vld [vmem:[%s187 + $0x9a] sm:$0xff]
  %v1549 = vld [vmem:[%s187 + $0xaa] sm:$0xff]
  %v1550 = vld [vmem:[%s187 + $0xb2] sm:$0xff]
  %v1551 = vld [vmem:[%s187 + $0xc2] sm:$0xff]
  %v1552 = vld [vmem:[%s187 + $0xca] sm:$0xff]
  %v1553 = vld [vmem:[%s187 + $0xda] sm:$0xff]
  %v1554 = vld [vmem:[%s187 + $0xe2] sm:$0xff]
  %v1555 = vld [vmem:[%s187 + $0xf2] sm:$0xff]
  %v1556 = vld [vmem:[%s187 + $0xfa] sm:$0xff]
  %v1557 = vld [vmem:[%s187 + $0x10a] sm:$0xff]
  %v1558 = vld [vmem:[%s187 + $0x112] sm:$0xff]
  %v1559 = vld [vmem:[%s187 + $0x122] sm:$0xff]
  %v1560 = vld [vmem:[%s187 + $0x12a] sm:$0xff]
  %v1561 = vld [vmem:[%s187 + $0x13a] sm:$0xff]
  %v1562 = vld [vmem:[%s187 + $0x142] sm:$0xff]
  %v1563 = vld [vmem:[%s187 + $0x152] sm:$0xff]
  %v1564 = vld [vmem:[%s187 + $0x15a] sm:$0xff]
  %v1565 = vld [vmem:[%s187 + $0x16a] sm:$0xff]
  %v1566 = vld [vmem:[%s187 + $0x172] sm:$0xff]
  %v1567 = vld [vmem:[%s187 + $0x1b2] sm:$0xff]
  %v1568 = vld [vmem:[%s187 + $0x1ba] sm:$0xff]
  %v1569 = vld [vmem:[%s187 + $0x1ca] sm:$0xff]
  %v1570 = vld [vmem:[%s187 + $0x1d2] sm:$0xff]
  %v1571 = vld [vmem:[%s187 + $0x1e2] sm:$0xff]
  %v1572 = vld [vmem:[%s187 + $0x1ea] sm:$0xff]
  %v1573 = vld [vmem:[%s187 + $0x1fa] sm:$0xff]
  %v1574 = vld [vmem:[%s187 + $0x202] sm:$0xff]
  %v1575 = vld [vmem:[%s187 + $0x212] sm:$0xff]
  %v1576 = vld [vmem:[%s187 + $0x21a] sm:$0xff]
  %v1577 = vld [vmem:[%s187 + $0x22a] sm:$0xff]
  %v1578 = vld [vmem:[%s187 + $0x232] sm:$0xff]
  %v1579 = vld [vmem:[%s187 + $0x242] sm:$0xff]
  %v1580 = vld [vmem:[%s187 + $0x24a] sm:$0xff]
  %v1581 = vld [vmem:[%s187 + $0x25a] sm:$0xff]
  %v1582 = vld [vmem:[%s187 + $0x262] sm:$0xff]
  %v1583 = vld [vmem:[%s187 + $0x272] sm:$0xff]
  %v1584 = vld [vmem:[%s187 + $0x27a] sm:$0xff]
  %v1585 = vld [vmem:[%s187 + $0x28a] sm:$0xff]
  %v1586 = vld [vmem:[%s187 + $0x292] sm:$0xff]
  %v1587 = vld [vmem:[%s187 + $0x2a2] sm:$0xff]
  %v1588 = vld [vmem:[%s187 + $0x2aa] sm:$0xff]
  %v1589 = vld [vmem:[%s187 + $0x2ba] sm:$0xff]
  %v1590 = vld [vmem:[%s187 + $0x2c2] sm:$0xff]
  %v1591 = vld [vmem:[%s187 + $0x2d2] sm:$0xff]
  %v1592 = vld [vmem:[%s187 + $0x2da] sm:$0xff]
  %v1593 = vld [vmem:[%s187 + $0x2ea] sm:$0xff]
  %v1594 = vld [vmem:[%s187 + $0x2f2] sm:$0xff]
  %v1595 = vld [vmem:[%s187 + $0x302] sm:$0xff]
  %v1596 = vld [vmem:[%s187 + $0x30a] sm:$0xff]
  %v1597 = vld [vmem:[%s187 + $0x31a] sm:$0xff]
  %v1598 = vld [vmem:[%s187 + $0x322] sm:$0xff]
  %1663 = vrot.lane.b32.xlu0 %v1535, 16
  %v1664 = vpop.permute.xlu0 %1663
  %1665 = vrot.lane.b32.xlu0 %v1536, 16
  %v1666 = vpop.permute.xlu0 %1665
  %1667 = vrot.lane.b32.xlu0 %v1537, 16
  %v1668 = vpop.permute.xlu0 %1667
  %1669 = vrot.lane.b32.xlu0 %v1538, 16
  %v1670 = vpop.permute.xlu0 %1669
  %1671 = vrot.lane.b32.xlu0 %v1539, 16
  %v1672 = vpop.permute.xlu0 %1671
  %1673 = vrot.lane.b32.xlu0 %v1540, 16
  %v1674 = vpop.permute.xlu0 %1673
  %1675 = vrot.lane.b32.xlu0 %v1541, 16
  %v1676 = vpop.permute.xlu0 %1675
  %1677 = vrot.lane.b32.xlu0 %v1542, 16
  %v1678 = vpop.permute.xlu0 %1677
  %1679 = vrot.lane.b32.xlu0 %v1543, 16
  %v1680 = vpop.permute.xlu0 %1679
  %1681 = vrot.lane.b32.xlu0 %v1544, 16
  %v1682 = vpop.permute.xlu0 %1681
  %1683 = vrot.lane.b32.xlu0 %v1545, 16
  %v1684 = vpop.permute.xlu0 %1683
  %1685 = vrot.lane.b32.xlu0 %v1546, 16
  %v1686 = vpop.permute.xlu0 %1685
  %1687 = vrot.lane.b32.xlu0 %v1547, 16
  %v1688 = vpop.permute.xlu0 %1687
  %1689 = vrot.lane.b32.xlu0 %v1548, 16
  %v1690 = vpop.permute.xlu0 %1689
  %1691 = vrot.lane.b32.xlu0 %v1549, 16
  %v1692 = vpop.permute.xlu0 %1691
  %1693 = vrot.lane.b32.xlu0 %v1550, 16
  %v1694 = vpop.permute.xlu0 %1693
  %1695 = vrot.lane.b32.xlu0 %v1551, 16
  %v1696 = vpop.permute.xlu0 %1695
  %1697 = vrot.lane.b32.xlu0 %v1552, 16
  %v1698 = vpop.permute.xlu0 %1697
  %1699 = vrot.lane.b32.xlu0 %v1553, 16
  %v1700 = vpop.permute.xlu0 %1699
  %1701 = vrot.lane.b32.xlu0 %v1554, 16
  %v1702 = vpop.permute.xlu0 %1701
  %1703 = vrot.lane.b32.xlu0 %v1555, 16
  %v1704 = vpop.permute.xlu0 %1703
  %1705 = vrot.lane.b32.xlu0 %v1556, 16
  %v1706 = vpop.permute.xlu0 %1705
  %1707 = vrot.lane.b32.xlu0 %v1557, 16
  %v1708 = vpop.permute.xlu0 %1707
  %1709 = vrot.lane.b32.xlu0 %v1558, 16
  %v1710 = vpop.permute.xlu0 %1709
  %1711 = vrot.lane.b32.xlu0 %v1559, 16
  %v1712 = vpop.permute.xlu0 %1711
  %1713 = vrot.lane.b32.xlu0 %v1560, 16
  %v1714 = vpop.permute.xlu0 %1713
  %1715 = vrot.lane.b32.xlu0 %v1561, 16
  %v1716 = vpop.permute.xlu0 %1715
  %1717 = vrot.lane.b32.xlu0 %v1562, 16
  %v1718 = vpop.permute.xlu0 %1717
  %1719 = vrot.lane.b32.xlu0 %v1563, 16
  %v1720 = vpop.permute.xlu0 %1719
  %1721 = vrot.lane.b32.xlu0 %v1564, 16
  %v1722 = vpop.permute.xlu0 %1721
  %1723 = vrot.lane.b32.xlu0 %v1565, 16
  %v1724 = vpop.permute.xlu0 %1723
  %1725 = vrot.lane.b32.xlu0 %v1566, 16
  %v1726 = vpop.permute.xlu0 %1725
  %1727 = vrot.lane.b32.xlu0 %v1567, 16
  %v1728 = vpop.permute.xlu0 %1727
  %1729 = vrot.lane.b32.xlu0 %v1568, 16
  %v1730 = vpop.permute.xlu0 %1729
  %1731 = vrot.lane.b32.xlu0 %v1569, 16
  %v1732 = vpop.permute.xlu0 %1731
  %1733 = vrot.lane.b32.xlu0 %v1570, 16
  %v1734 = vpop.permute.xlu0 %1733
  %1735 = vrot.lane.b32.xlu0 %v1571, 16
  %v1736 = vpop.permute.xlu0 %1735
  %1737 = vrot.lane.b32.xlu0 %v1572, 16
  %v1738 = vpop.permute.xlu0 %1737
  %1739 = vrot.lane.b32.xlu0 %v1573, 16
  %v1740 = vpop.permute.xlu0 %1739
  %1741 = vrot.lane.b32.xlu0 %v1574, 16
  %v1742 = vpop.permute.xlu0 %1741
  %1743 = vrot.lane.b32.xlu0 %v1575, 16
  %v1744 = vpop.permute.xlu0 %1743
  %1745 = vrot.lane.b32.xlu0 %v1576, 16
  %v1746 = vpop.permute.xlu0 %1745
  %1747 = vrot.lane.b32.xlu0 %v1577, 16
  %v1748 = vpop.permute.xlu0 %1747
  %1749 = vrot.lane.b32.xlu0 %v1578, 16
  %v1750 = vpop.permute.xlu0 %1749
  %1751 = vrot.lane.b32.xlu0 %v1579, 16
  %v1752 = vpop.permute.xlu0 %1751
  %1753 = vrot.lane.b32.xlu0 %v1580, 16
  %v1754 = vpop.permute.xlu0 %1753
  %1755 = vrot.lane.b32.xlu0 %v1581, 16
  %v1756 = vpop.permute.xlu0 %1755
  %1757 = vrot.lane.b32.xlu0 %v1582, 16
  %v1758 = vpop.permute.xlu0 %1757
  %1759 = vrot.lane.b32.xlu0 %v1583, 16
  %v1760 = vpop.permute.xlu0 %1759
  %1761 = vrot.lane.b32.xlu0 %v1584, 16
  %v1762 = vpop.permute.xlu0 %1761
  %1763 = vrot.lane.b32.xlu0 %v1585, 16
  %v1764 = vpop.permute.xlu0 %1763
  %1765 = vrot.lane.b32.xlu0 %v1586, 16
  %v1766 = vpop.permute.xlu0 %1765
  %1767 = vrot.lane.b32.xlu0 %v1587, 16
  %v1768 = vpop.permute.xlu0 %1767
  %1769 = vrot.lane.b32.xlu0 %v1588, 16
  %v1770 = vpop.permute.xlu0 %1769
  %1771 = vrot.lane.b32.xlu0 %v1589, 16
  %v1772 = vpop.permute.xlu0 %1771
  %1773 = vrot.lane.b32.xlu0 %v1590, 16
  %v1774 = vpop.permute.xlu0 %1773
  %1775 = vrot.lane.b32.xlu0 %v1591, 16
  %v1776 = vpop.permute.xlu0 %1775
  %1777 = vrot.lane.b32.xlu0 %v1592, 16
  %v1778 = vpop.permute.xlu0 %1777
  %1779 = vrot.lane.b32.xlu0 %v1593, 16
  %v1780 = vpop.permute.xlu0 %1779
  %1781 = vrot.lane.b32.xlu0 %v1594, 16
  %v1782 = vpop.permute.xlu0 %1781
  %1783 = vrot.lane.b32.xlu0 %v1595, 16
  %v1784 = vpop.permute.xlu0 %1783
  %1785 = vrot.lane.b32.xlu0 %v1596, 16
  %v1786 = vpop.permute.xlu0 %1785
  %1787 = vrot.lane.b32.xlu0 %v1597, 16
  %v1788 = vpop.permute.xlu0 %1787
  %1789 = vrot.lane.b32.xlu0 %v1598, 16
  %v1790 = vpop.permute.xlu0 %1789
  %vm1855 = vcmask 162944
  %1856 = vst.msk [vmem:[#allocation4] sm:$0xff] %vm1855, %v1664
  %1857 = vst.msk [vmem:[#allocation4 + $0x8] sm:$0xff] %vm1855, %v1666
  %1858 = vst.msk [vmem:[#allocation4 + $0x10] sm:$0xff] %vm1855, %v1668
  %1859 = vst.msk [vmem:[#allocation4 + $0x18] sm:$0xff] %vm1855, %v1670
  %1860 = vst.msk [vmem:[#allocation4 + $0x20] sm:$0xff] %vm1855, %v1672
  %1861 = vst.msk [vmem:[#allocation4 + $0x28] sm:$0xff] %vm1855, %v1674
  %1862 = vst.msk [vmem:[#allocation4 + $0x30] sm:$0xff] %vm1855, %v1676
  %1863 = vst.msk [vmem:[#allocation4 + $0x38] sm:$0xff] %vm1855, %v1678
  %1864 = vst.msk [vmem:[#allocation4 + $0x40] sm:$0xff] %vm1855, %v1680
  %1865 = vst.msk [vmem:[#allocation4 + $0x48] sm:$0xff] %vm1855, %v1682
  %1866 = vst.msk [vmem:[#allocation4 + $0x50] sm:$0xff] %vm1855, %v1684
  %1867 = vst.msk [vmem:[#allocation4 + $0x58] sm:$0xff] %vm1855, %v1686
  %1868 = vst.msk [vmem:[#allocation4 + $0x60] sm:$0xff] %vm1855, %v1688
  %1869 = vst.msk [vmem:[#allocation4 + $0x68] sm:$0xff] %vm1855, %v1690
  %1870 = vst.msk [vmem:[#allocation4 + $0x70] sm:$0xff] %vm1855, %v1692
  %1871 = vst.msk [vmem:[#allocation4 + $0x78] sm:$0xff] %vm1855, %v1694
  %1872 = vst.msk [vmem:[#allocation4 + $0x80] sm:$0xff] %vm1855, %v1696
  %1873 = vst.msk [vmem:[#allocation4 + $0x88] sm:$0xff] %vm1855, %v1698
  %1874 = vst.msk [vmem:[#allocation4 + $0x90] sm:$0xff] %vm1855, %v1700
  %1875 = vst.msk [vmem:[#allocation4 + $0x98] sm:$0xff] %vm1855, %v1702
  %1876 = vst.msk [vmem:[#allocation4 + $0xa0] sm:$0xff] %vm1855, %v1704
  %1877 = vst.msk [vmem:[#allocation4 + $0xa8] sm:$0xff] %vm1855, %v1706
  %1878 = vst.msk [vmem:[#allocation4 + $0xb0] sm:$0xff] %vm1855, %v1708
  %1879 = vst.msk [vmem:[#allocation4 + $0xb8] sm:$0xff] %vm1855, %v1710
  %1880 = vst.msk [vmem:[#allocation4 + $0xc0] sm:$0xff] %vm1855, %v1712
  %1881 = vst.msk [vmem:[#allocation4 + $0xc8] sm:$0xff] %vm1855, %v1714
  %1882 = vst.msk [vmem:[#allocation4 + $0xd0] sm:$0xff] %vm1855, %v1716
  %1883 = vst.msk [vmem:[#allocation4 + $0xd8] sm:$0xff] %vm1855, %v1718
  %1884 = vst.msk [vmem:[#allocation4 + $0xe0] sm:$0xff] %vm1855, %v1720
  %1885 = vst.msk [vmem:[#allocation4 + $0xe8] sm:$0xff] %vm1855, %v1722
  %1886 = vst.msk [vmem:[#allocation4 + $0xf0] sm:$0xff] %vm1855, %v1724
  %1887 = vst.msk [vmem:[#allocation4 + $0xf8] sm:$0xff] %vm1855, %v1726
  %1888 = vst.msk [vmem:[#allocation4 + $0x100] sm:$0xff] %vm1855, %v1728
  %1889 = vst.msk [vmem:[#allocation4 + $0x108] sm:$0xff] %vm1855, %v1730
  %1890 = vst.msk [vmem:[#allocation4 + $0x110] sm:$0xff] %vm1855, %v1732
  %1891 = vst.msk [vmem:[#allocation4 + $0x118] sm:$0xff] %vm1855, %v1734
  %1892 = vst.msk [vmem:[#allocation4 + $0x120] sm:$0xff] %vm1855, %v1736
  %1893 = vst.msk [vmem:[#allocation4 + $0x128] sm:$0xff] %vm1855, %v1738
  %1894 = vst.msk [vmem:[#allocation4 + $0x130] sm:$0xff] %vm1855, %v1740
  %1895 = vst.msk [vmem:[#allocation4 + $0x138] sm:$0xff] %vm1855, %v1742
  %1896 = vst.msk [vmem:[#allocation4 + $0x140] sm:$0xff] %vm1855, %v1744
  %1897 = vst.msk [vmem:[#allocation4 + $0x148] sm:$0xff] %vm1855, %v1746
  %1898 = vst.msk [vmem:[#allocation4 + $0x150] sm:$0xff] %vm1855, %v1748
  %1899 = vst.msk [vmem:[#allocation4 + $0x158] sm:$0xff] %vm1855, %v1750
  %1900 = vst.msk [vmem:[#allocation4 + $0x160] sm:$0xff] %vm1855, %v1752
  %1901 = vst.msk [vmem:[#allocation4 + $0x168] sm:$0xff] %vm1855, %v1754
  %1902 = vst.msk [vmem:[#allocation4 + $0x170] sm:$0xff] %vm1855, %v1756
  %1903 = vst.msk [vmem:[#allocation4 + $0x178] sm:$0xff] %vm1855, %v1758
  %1904 = vst.msk [vmem:[#allocation4 + $0x180] sm:$0xff] %vm1855, %v1760
  %1905 = vst.msk [vmem:[#allocation4 + $0x188] sm:$0xff] %vm1855, %v1762
  %1906 = vst.msk [vmem:[#allocation4 + $0x190] sm:$0xff] %vm1855, %v1764
  %1907 = vst.msk [vmem:[#allocation4 + $0x198] sm:$0xff] %vm1855, %v1766
  %1908 = vst.msk [vmem:[#allocation4 + $0x1a0] sm:$0xff] %vm1855, %v1768
  %1909 = vst.msk [vmem:[#allocation4 + $0x1a8] sm:$0xff] %vm1855, %v1770
  %1910 = vst.msk [vmem:[#allocation4 + $0x1b0] sm:$0xff] %vm1855, %v1772
  %1911 = vst.msk [vmem:[#allocation4 + $0x1b8] sm:$0xff] %vm1855, %v1774
  %1912 = vst.msk [vmem:[#allocation4 + $0x1c0] sm:$0xff] %vm1855, %v1776
  %1913 = vst.msk [vmem:[#allocation4 + $0x1c8] sm:$0xff] %vm1855, %v1778
  %1914 = vst.msk [vmem:[#allocation4 + $0x1d0] sm:$0xff] %vm1855, %v1780
  %1915 = vst.msk [vmem:[#allocation4 + $0x1d8] sm:$0xff] %vm1855, %v1782
  %1916 = vst.msk [vmem:[#allocation4 + $0x1e0] sm:$0xff] %vm1855, %v1784
  %1917 = vst.msk [vmem:[#allocation4 + $0x1e8] sm:$0xff] %vm1855, %v1786
  %1918 = vst.msk [vmem:[#allocation4 + $0x1f0] sm:$0xff] %vm1855, %v1788
  %1919 = vst.msk [vmem:[#allocation4 + $0x1f8] sm:$0xff] %vm1855, %v1790
  %v1920 = vld [vmem:[%s187 + $0x3] sm:$0xff]
  %v1921 = vld [vmem:[%s187 + $0xb] sm:$0xff]
  %v1922 = vld [vmem:[%s187 + $0x1b] sm:$0xff]
  %v1923 = vld [vmem:[%s187 + $0x23] sm:$0xff]
  %v1924 = vld [vmem:[%s187 + $0x33] sm:$0xff]
  %v1925 = vld [vmem:[%s187 + $0x3b] sm:$0xff]
  %v1926 = vld [vmem:[%s187 + $0x4b] sm:$0xff]
  %v1927 = vld [vmem:[%s187 + $0x53] sm:$0xff]
  %v1928 = vld [vmem:[%s187 + $0x63] sm:$0xff]
  %v1929 = vld [vmem:[%s187 + $0x6b] sm:$0xff]
  %v1930 = vld [vmem:[%s187 + $0x7b] sm:$0xff]
  %v1931 = vld [vmem:[%s187 + $0x83] sm:$0xff]
  %v1932 = vld [vmem:[%s187 + $0x93] sm:$0xff]
  %v1933 = vld [vmem:[%s187 + $0x9b] sm:$0xff]
  %v1934 = vld [vmem:[%s187 + $0xab] sm:$0xff]
  %v1935 = vld [vmem:[%s187 + $0xb3] sm:$0xff]
  %v1936 = vld [vmem:[%s187 + $0xc3] sm:$0xff]
  %v1937 = vld [vmem:[%s187 + $0xcb] sm:$0xff]
  %v1938 = vld [vmem:[%s187 + $0xdb] sm:$0xff]
  %v1939 = vld [vmem:[%s187 + $0xe3] sm:$0xff]
  %v1940 = vld [vmem:[%s187 + $0xf3] sm:$0xff]
  %v1941 = vld [vmem:[%s187 + $0xfb] sm:$0xff]
  %v1942 = vld [vmem:[%s187 + $0x10b] sm:$0xff]
  %v1943 = vld [vmem:[%s187 + $0x113] sm:$0xff]
  %v1944 = vld [vmem:[%s187 + $0x123] sm:$0xff]
  %v1945 = vld [vmem:[%s187 + $0x12b] sm:$0xff]
  %v1946 = vld [vmem:[%s187 + $0x13b] sm:$0xff]
  %v1947 = vld [vmem:[%s187 + $0x143] sm:$0xff]
  %v1948 = vld [vmem:[%s187 + $0x153] sm:$0xff]
  %v1949 = vld [vmem:[%s187 + $0x15b] sm:$0xff]
  %v1950 = vld [vmem:[%s187 + $0x16b] sm:$0xff]
  %v1951 = vld [vmem:[%s187 + $0x173] sm:$0xff]
  %v1952 = vld [vmem:[%s187 + $0x1b3] sm:$0xff]
  %v1953 = vld [vmem:[%s187 + $0x1bb] sm:$0xff]
  %v1954 = vld [vmem:[%s187 + $0x1cb] sm:$0xff]
  %v1955 = vld [vmem:[%s187 + $0x1d3] sm:$0xff]
  %v1956 = vld [vmem:[%s187 + $0x1e3] sm:$0xff]
  %v1957 = vld [vmem:[%s187 + $0x1eb] sm:$0xff]
  %v1958 = vld [vmem:[%s187 + $0x1fb] sm:$0xff]
  %v1959 = vld [vmem:[%s187 + $0x203] sm:$0xff]
  %v1960 = vld [vmem:[%s187 + $0x213] sm:$0xff]
  %v1961 = vld [vmem:[%s187 + $0x21b] sm:$0xff]
  %v1962 = vld [vmem:[%s187 + $0x22b] sm:$0xff]
  %v1963 = vld [vmem:[%s187 + $0x233] sm:$0xff]
  %v1964 = vld [vmem:[%s187 + $0x243] sm:$0xff]
  %v1965 = vld [vmem:[%s187 + $0x24b] sm:$0xff]
  %v1966 = vld [vmem:[%s187 + $0x25b] sm:$0xff]
  %v1967 = vld [vmem:[%s187 + $0x263] sm:$0xff]
  %v1968 = vld [vmem:[%s187 + $0x273] sm:$0xff]
  %v1969 = vld [vmem:[%s187 + $0x27b] sm:$0xff]
  %v1970 = vld [vmem:[%s187 + $0x28b] sm:$0xff]
  %v1971 = vld [vmem:[%s187 + $0x293] sm:$0xff]
  %v1972 = vld [vmem:[%s187 + $0x2a3] sm:$0xff]
  %v1973 = vld [vmem:[%s187 + $0x2ab] sm:$0xff]
  %v1974 = vld [vmem:[%s187 + $0x2bb] sm:$0xff]
  %v1975 = vld [vmem:[%s187 + $0x2c3] sm:$0xff]
  %v1976 = vld [vmem:[%s187 + $0x2d3] sm:$0xff]
  %v1977 = vld [vmem:[%s187 + $0x2db] sm:$0xff]
  %v1978 = vld [vmem:[%s187 + $0x2eb] sm:$0xff]
  %v1979 = vld [vmem:[%s187 + $0x2f3] sm:$0xff]
  %v1980 = vld [vmem:[%s187 + $0x303] sm:$0xff]
  %v1981 = vld [vmem:[%s187 + $0x30b] sm:$0xff]
  %v1982 = vld [vmem:[%s187 + $0x31b] sm:$0xff]
  %v1983 = vld [vmem:[%s187 + $0x323] sm:$0xff]
  %2048 = vrot.lane.b32.xlu0 %v1920, 20
  %v2049 = vpop.permute.xlu0 %2048
  %2050 = vrot.lane.b32.xlu0 %v1921, 20
  %v2051 = vpop.permute.xlu0 %2050
  %2052 = vrot.lane.b32.xlu0 %v1922, 20
  %v2053 = vpop.permute.xlu0 %2052
  %2054 = vrot.lane.b32.xlu0 %v1923, 20
  %v2055 = vpop.permute.xlu0 %2054
  %2056 = vrot.lane.b32.xlu0 %v1924, 20
  %v2057 = vpop.permute.xlu0 %2056
  %2058 = vrot.lane.b32.xlu0 %v1925, 20
  %v2059 = vpop.permute.xlu0 %2058
  %2060 = vrot.lane.b32.xlu0 %v1926, 20
  %v2061 = vpop.permute.xlu0 %2060
  %2062 = vrot.lane.b32.xlu0 %v1927, 20
  %v2063 = vpop.permute.xlu0 %2062
  %2064 = vrot.lane.b32.xlu0 %v1928, 20
  %v2065 = vpop.permute.xlu0 %2064
  %2066 = vrot.lane.b32.xlu0 %v1929, 20
  %v2067 = vpop.permute.xlu0 %2066
  %2068 = vrot.lane.b32.xlu0 %v1930, 20
  %v2069 = vpop.permute.xlu0 %2068
  %2070 = vrot.lane.b32.xlu0 %v1931, 20
  %v2071 = vpop.permute.xlu0 %2070
  %2072 = vrot.lane.b32.xlu0 %v1932, 20
  %v2073 = vpop.permute.xlu0 %2072
  %2074 = vrot.lane.b32.xlu0 %v1933, 20
  %v2075 = vpop.permute.xlu0 %2074
  %2076 = vrot.lane.b32.xlu0 %v1934, 20
  %v2077 = vpop.permute.xlu0 %2076
  %2078 = vrot.lane.b32.xlu0 %v1935, 20
  %v2079 = vpop.permute.xlu0 %2078
  %2080 = vrot.lane.b32.xlu0 %v1936, 20
  %v2081 = vpop.permute.xlu0 %2080
  %2082 = vrot.lane.b32.xlu0 %v1937, 20
  %v2083 = vpop.permute.xlu0 %2082
  %2084 = vrot.lane.b32.xlu0 %v1938, 20
  %v2085 = vpop.permute.xlu0 %2084
  %2086 = vrot.lane.b32.xlu0 %v1939, 20
  %v2087 = vpop.permute.xlu0 %2086
  %2088 = vrot.lane.b32.xlu0 %v1940, 20
  %v2089 = vpop.permute.xlu0 %2088
  %2090 = vrot.lane.b32.xlu0 %v1941, 20
  %v2091 = vpop.permute.xlu0 %2090
  %2092 = vrot.lane.b32.xlu0 %v1942, 20
  %v2093 = vpop.permute.xlu0 %2092
  %2094 = vrot.lane.b32.xlu0 %v1943, 20
  %v2095 = vpop.permute.xlu0 %2094
  %2096 = vrot.lane.b32.xlu0 %v1944, 20
  %v2097 = vpop.permute.xlu0 %2096
  %2098 = vrot.lane.b32.xlu0 %v1945, 20
  %v2099 = vpop.permute.xlu0 %2098
  %2100 = vrot.lane.b32.xlu0 %v1946, 20
  %v2101 = vpop.permute.xlu0 %2100
  %2102 = vrot.lane.b32.xlu0 %v1947, 20
  %v2103 = vpop.permute.xlu0 %2102
  %2104 = vrot.lane.b32.xlu0 %v1948, 20
  %v2105 = vpop.permute.xlu0 %2104
  %2106 = vrot.lane.b32.xlu0 %v1949, 20
  %v2107 = vpop.permute.xlu0 %2106
  %2108 = vrot.lane.b32.xlu0 %v1950, 20
  %v2109 = vpop.permute.xlu0 %2108
  %2110 = vrot.lane.b32.xlu0 %v1951, 20
  %v2111 = vpop.permute.xlu0 %2110
  %2112 = vrot.lane.b32.xlu0 %v1952, 20
  %v2113 = vpop.permute.xlu0 %2112
  %2114 = vrot.lane.b32.xlu0 %v1953, 20
  %v2115 = vpop.permute.xlu0 %2114
  %2116 = vrot.lane.b32.xlu0 %v1954, 20
  %v2117 = vpop.permute.xlu0 %2116
  %2118 = vrot.lane.b32.xlu0 %v1955, 20
  %v2119 = vpop.permute.xlu0 %2118
  %2120 = vrot.lane.b32.xlu0 %v1956, 20
  %v2121 = vpop.permute.xlu0 %2120
  %2122 = vrot.lane.b32.xlu0 %v1957, 20
  %v2123 = vpop.permute.xlu0 %2122
  %2124 = vrot.lane.b32.xlu0 %v1958, 20
  %v2125 = vpop.permute.xlu0 %2124
  %2126 = vrot.lane.b32.xlu0 %v1959, 20
  %v2127 = vpop.permute.xlu0 %2126
  %2128 = vrot.lane.b32.xlu0 %v1960, 20
  %v2129 = vpop.permute.xlu0 %2128
  %2130 = vrot.lane.b32.xlu0 %v1961, 20
  %v2131 = vpop.permute.xlu0 %2130
  %2132 = vrot.lane.b32.xlu0 %v1962, 20
  %v2133 = vpop.permute.xlu0 %2132
  %2134 = vrot.lane.b32.xlu0 %v1963, 20
  %v2135 = vpop.permute.xlu0 %2134
  %2136 = vrot.lane.b32.xlu0 %v1964, 20
  %v2137 = vpop.permute.xlu0 %2136
  %2138 = vrot.lane.b32.xlu0 %v1965, 20
  %v2139 = vpop.permute.xlu0 %2138
  %2140 = vrot.lane.b32.xlu0 %v1966, 20
  %v2141 = vpop.permute.xlu0 %2140
  %2142 = vrot.lane.b32.xlu0 %v1967, 20
  %v2143 = vpop.permute.xlu0 %2142
  %2144 = vrot.lane.b32.xlu0 %v1968, 20
  %v2145 = vpop.permute.xlu0 %2144
  %2146 = vrot.lane.b32.xlu0 %v1969, 20
  %v2147 = vpop.permute.xlu0 %2146
  %2148 = vrot.lane.b32.xlu0 %v1970, 20
  %v2149 = vpop.permute.xlu0 %2148
  %2150 = vrot.lane.b32.xlu0 %v1971, 20
  %v2151 = vpop.permute.xlu0 %2150
  %2152 = vrot.lane.b32.xlu0 %v1972, 20
  %v2153 = vpop.permute.xlu0 %2152
  %2154 = vrot.lane.b32.xlu0 %v1973, 20
  %v2155 = vpop.permute.xlu0 %2154
  %2156 = vrot.lane.b32.xlu0 %v1974, 20
  %v2157 = vpop.permute.xlu0 %2156
  %2158 = vrot.lane.b32.xlu0 %v1975, 20
  %v2159 = vpop.permute.xlu0 %2158
  %2160 = vrot.lane.b32.xlu0 %v1976, 20
  %v2161 = vpop.permute.xlu0 %2160
  %2162 = vrot.lane.b32.xlu0 %v1977, 20
  %v2163 = vpop.permute.xlu0 %2162
  %2164 = vrot.lane.b32.xlu0 %v1978, 20
  %v2165 = vpop.permute.xlu0 %2164
  %2166 = vrot.lane.b32.xlu0 %v1979, 20
  %v2167 = vpop.permute.xlu0 %2166
  %2168 = vrot.lane.b32.xlu0 %v1980, 20
  %v2169 = vpop.permute.xlu0 %2168
  %2170 = vrot.lane.b32.xlu0 %v1981, 20
  %v2171 = vpop.permute.xlu0 %2170
  %2172 = vrot.lane.b32.xlu0 %v1982, 20
  %v2173 = vpop.permute.xlu0 %2172
  %2174 = vrot.lane.b32.xlu0 %v1983, 20
  %v2175 = vpop.permute.xlu0 %2174
  %vm2240 = vcmask 195744
  %2241 = vst.msk [vmem:[#allocation4] sm:$0xff] %vm2240, %v2049
  %2242 = vst.msk [vmem:[#allocation4 + $0x8] sm:$0xff] %vm2240, %v2051
  %2243 = vst.msk [vmem:[#allocation4 + $0x10] sm:$0xff] %vm2240, %v2053
  %2244 = vst.msk [vmem:[#allocation4 + $0x18] sm:$0xff] %vm2240, %v2055
  %2245 = vst.msk [vmem:[#allocation4 + $0x20] sm:$0xff] %vm2240, %v2057
  %2246 = vst.msk [vmem:[#allocation4 + $0x28] sm:$0xff] %vm2240, %v2059
  %2247 = vst.msk [vmem:[#allocation4 + $0x30] sm:$0xff] %vm2240, %v2061
  %2248 = vst.msk [vmem:[#allocation4 + $0x38] sm:$0xff] %vm2240, %v2063
  %2249 = vst.msk [vmem:[#allocation4 + $0x40] sm:$0xff] %vm2240, %v2065
  %2250 = vst.msk [vmem:[#allocation4 + $0x48] sm:$0xff] %vm2240, %v2067
  %2251 = vst.msk [vmem:[#allocation4 + $0x50] sm:$0xff] %vm2240, %v2069
  %2252 = vst.msk [vmem:[#allocation4 + $0x58] sm:$0xff] %vm2240, %v2071
  %2253 = vst.msk [vmem:[#allocation4 + $0x60] sm:$0xff] %vm2240, %v2073
  %2254 = vst.msk [vmem:[#allocation4 + $0x68] sm:$0xff] %vm2240, %v2075
  %2255 = vst.msk [vmem:[#allocation4 + $0x70] sm:$0xff] %vm2240, %v2077
  %2256 = vst.msk [vmem:[#allocation4 + $0x78] sm:$0xff] %vm2240, %v2079
  %2257 = vst.msk [vmem:[#allocation4 + $0x80] sm:$0xff] %vm2240, %v2081
  %2258 = vst.msk [vmem:[#allocation4 + $0x88] sm:$0xff] %vm2240, %v2083
  %2259 = vst.msk [vmem:[#allocation4 + $0x90] sm:$0xff] %vm2240, %v2085
  %2260 = vst.msk [vmem:[#allocation4 + $0x98] sm:$0xff] %vm2240, %v2087
  %2261 = vst.msk [vmem:[#allocation4 + $0xa0] sm:$0xff] %vm2240, %v2089
  %2262 = vst.msk [vmem:[#allocation4 + $0xa8] sm:$0xff] %vm2240, %v2091
  %2263 = vst.msk [vmem:[#allocation4 + $0xb0] sm:$0xff] %vm2240, %v2093
  %2264 = vst.msk [vmem:[#allocation4 + $0xb8] sm:$0xff] %vm2240, %v2095
  %2265 = vst.msk [vmem:[#allocation4 + $0xc0] sm:$0xff] %vm2240, %v2097
  %2266 = vst.msk [vmem:[#allocation4 + $0xc8] sm:$0xff] %vm2240, %v2099
  %2267 = vst.msk [vmem:[#allocation4 + $0xd0] sm:$0xff] %vm2240, %v2101
  %2268 = vst.msk [vmem:[#allocation4 + $0xd8] sm:$0xff] %vm2240, %v2103
  %2269 = vst.msk [vmem:[#allocation4 + $0xe0] sm:$0xff] %vm2240, %v2105
  %2270 = vst.msk [vmem:[#allocation4 + $0xe8] sm:$0xff] %vm2240, %v2107
  %2271 = vst.msk [vmem:[#allocation4 + $0xf0] sm:$0xff] %vm2240, %v2109
  %2272 = vst.msk [vmem:[#allocation4 + $0xf8] sm:$0xff] %vm2240, %v2111
  %2273 = vst.msk [vmem:[#allocation4 + $0x100] sm:$0xff] %vm2240, %v2113
  %2274 = vst.msk [vmem:[#allocation4 + $0x108] sm:$0xff] %vm2240, %v2115
  %2275 = vst.msk [vmem:[#allocation4 + $0x110] sm:$0xff] %vm2240, %v2117
  %2276 = vst.msk [vmem:[#allocation4 + $0x118] sm:$0xff] %vm2240, %v2119
  %2277 = vst.msk [vmem:[#allocation4 + $0x120] sm:$0xff] %vm2240, %v2121
  %2278 = vst.msk [vmem:[#allocation4 + $0x128] sm:$0xff] %vm2240, %v2123
  %2279 = vst.msk [vmem:[#allocation4 + $0x130] sm:$0xff] %vm2240, %v2125
  %2280 = vst.msk [vmem:[#allocation4 + $0x138] sm:$0xff] %vm2240, %v2127
  %2281 = vst.msk [vmem:[#allocation4 + $0x140] sm:$0xff] %vm2240, %v2129
  %2282 = vst.msk [vmem:[#allocation4 + $0x148] sm:$0xff] %vm2240, %v2131
  %2283 = vst.msk [vmem:[#allocation4 + $0x150] sm:$0xff] %vm2240, %v2133
  %2284 = vst.msk [vmem:[#allocation4 + $0x158] sm:$0xff] %vm2240, %v2135
  %2285 = vst.msk [vmem:[#allocation4 + $0x160] sm:$0xff] %vm2240, %v2137
  %2286 = vst.msk [vmem:[#allocation4 + $0x168] sm:$0xff] %vm2240, %v2139
  %2287 = vst.msk [vmem:[#allocation4 + $0x170] sm:$0xff] %vm2240, %v2141
  %2288 = vst.msk [vmem:[#allocation4 + $0x178] sm:$0xff] %vm2240, %v2143
  %2289 = vst.msk [vmem:[#allocation4 + $0x180] sm:$0xff] %vm2240, %v2145
  %2290 = vst.msk [vmem:[#allocation4 + $0x188] sm:$0xff] %vm2240, %v2147
  %2291 = vst.msk [vmem:[#allocation4 + $0x190] sm:$0xff] %vm2240, %v2149
  %2292 = vst.msk [vmem:[#allocation4 + $0x198] sm:$0xff] %vm2240, %v2151
  %2293 = vst.msk [vmem:[#allocation4 + $0x1a0] sm:$0xff] %vm2240, %v2153
  %2294 = vst.msk [vmem:[#allocation4 + $0x1a8] sm:$0xff] %vm2240, %v2155
  %2295 = vst.msk [vmem:[#allocation4 + $0x1b0] sm:$0xff] %vm2240, %v2157
  %2296 = vst.msk [vmem:[#allocation4 + $0x1b8] sm:$0xff] %vm2240, %v2159
  %2297 = vst.msk [vmem:[#allocation4 + $0x1c0] sm:$0xff] %vm2240, %v2161
  %2298 = vst.msk [vmem:[#allocation4 + $0x1c8] sm:$0xff] %vm2240, %v2163
  %2299 = vst.msk [vmem:[#allocation4 + $0x1d0] sm:$0xff] %vm2240, %v2165
  %2300 = vst.msk [vmem:[#allocation4 + $0x1d8] sm:$0xff] %vm2240, %v2167
  %2301 = vst.msk [vmem:[#allocation4 + $0x1e0] sm:$0xff] %vm2240, %v2169
  %2302 = vst.msk [vmem:[#allocation4 + $0x1e8] sm:$0xff] %vm2240, %v2171
  %2303 = vst.msk [vmem:[#allocation4 + $0x1f0] sm:$0xff] %vm2240, %v2173
  %2304 = vst.msk [vmem:[#allocation4 + $0x1f8] sm:$0xff] %vm2240, %v2175
  %s2305 = scalar_lea.vmem [#allocation2], 48
  %v2306 = vld [vmem:[%s2305 + $0x1] sm:$0xff]
  %v2307 = vld [vmem:[%s2305 + $0x9] sm:$0xff]
  %v2308 = vld [vmem:[%s2305 + $0x19] sm:$0xff]
  %v2309 = vld [vmem:[%s2305 + $0x21] sm:$0xff]
  %v2310 = vld [vmem:[%s2305 + $0x31] sm:$0xff]
  %v2311 = vld [vmem:[%s2305 + $0x39] sm:$0xff]
  %v2312 = vld [vmem:[%s2305 + $0x49] sm:$0xff]
  %v2313 = vld [vmem:[%s2305 + $0x51] sm:$0xff]
  %v2314 = vld [vmem:[%s2305 + $0x61] sm:$0xff]
  %v2315 = vld [vmem:[%s2305 + $0x69] sm:$0xff]
  %v2316 = vld [vmem:[%s2305 + $0x79] sm:$0xff]
  %v2317 = vld [vmem:[%s2305 + $0x81] sm:$0xff]
  %v2318 = vld [vmem:[%s2305 + $0x91] sm:$0xff]
  %v2319 = vld [vmem:[%s2305 + $0x99] sm:$0xff]
  %v2320 = vld [vmem:[%s2305 + $0xa9] sm:$0xff]
  %v2321 = vld [vmem:[%s2305 + $0xb1] sm:$0xff]
  %v2322 = vld [vmem:[%s2305 + $0xc1] sm:$0xff]
  %v2323 = vld [vmem:[%s2305 + $0xc9] sm:$0xff]
  %v2324 = vld [vmem:[%s2305 + $0xd9] sm:$0xff]
  %v2325 = vld [vmem:[%s2305 + $0xe1] sm:$0xff]
  %v2326 = vld [vmem:[%s2305 + $0xf1] sm:$0xff]
  %v2327 = vld [vmem:[%s2305 + $0xf9] sm:$0xff]
  %v2328 = vld [vmem:[%s2305 + $0x109] sm:$0xff]
  %v2329 = vld [vmem:[%s2305 + $0x111] sm:$0xff]
  %v2330 = vld [vmem:[%s2305 + $0x121] sm:$0xff]
  %v2331 = vld [vmem:[%s2305 + $0x129] sm:$0xff]
  %v2332 = vld [vmem:[%s2305 + $0x139] sm:$0xff]
  %v2333 = vld [vmem:[%s2305 + $0x141] sm:$0xff]
  %v2334 = vld [vmem:[%s2305 + $0x151] sm:$0xff]
  %v2335 = vld [vmem:[%s2305 + $0x159] sm:$0xff]
  %v2336 = vld [vmem:[%s2305 + $0x169] sm:$0xff]
  %v2337 = vld [vmem:[%s2305 + $0x171] sm:$0xff]
  %v2338 = vld [vmem:[%s2305 + $0x1b1] sm:$0xff]
  %v2339 = vld [vmem:[%s2305 + $0x1b9] sm:$0xff]
  %v2340 = vld [vmem:[%s2305 + $0x1c9] sm:$0xff]
  %v2341 = vld [vmem:[%s2305 + $0x1d1] sm:$0xff]
  %v2342 = vld [vmem:[%s2305 + $0x1e1] sm:$0xff]
  %v2343 = vld [vmem:[%s2305 + $0x1e9] sm:$0xff]
  %v2344 = vld [vmem:[%s2305 + $0x1f9] sm:$0xff]
  %v2345 = vld [vmem:[%s2305 + $0x201] sm:$0xff]
  %v2346 = vld [vmem:[%s2305 + $0x211] sm:$0xff]
  %v2347 = vld [vmem:[%s2305 + $0x219] sm:$0xff]
  %v2348 = vld [vmem:[%s2305 + $0x229] sm:$0xff]
  %v2349 = vld [vmem:[%s2305 + $0x231] sm:$0xff]
  %v2350 = vld [vmem:[%s2305 + $0x241] sm:$0xff]
  %v2351 = vld [vmem:[%s2305 + $0x249] sm:$0xff]
  %v2352 = vld [vmem:[%s2305 + $0x259] sm:$0xff]
  %v2353 = vld [vmem:[%s2305 + $0x261] sm:$0xff]
  %v2354 = vld [vmem:[%s2305 + $0x271] sm:$0xff]
  %v2355 = vld [vmem:[%s2305 + $0x279] sm:$0xff]
  %v2356 = vld [vmem:[%s2305 + $0x289] sm:$0xff]
  %v2357 = vld [vmem:[%s2305 + $0x291] sm:$0xff]
  %v2358 = vld [vmem:[%s2305 + $0x2a1] sm:$0xff]
  %v2359 = vld [vmem:[%s2305 + $0x2a9] sm:$0xff]
  %v2360 = vld [vmem:[%s2305 + $0x2b9] sm:$0xff]
  %v2361 = vld [vmem:[%s2305 + $0x2c1] sm:$0xff]
  %v2362 = vld [vmem:[%s2305 + $0x2d1] sm:$0xff]
  %v2363 = vld [vmem:[%s2305 + $0x2d9] sm:$0xff]
  %v2364 = vld [vmem:[%s2305 + $0x2e9] sm:$0xff]
  %v2365 = vld [vmem:[%s2305 + $0x2f1] sm:$0xff]
  %v2366 = vld [vmem:[%s2305 + $0x301] sm:$0xff]
  %v2367 = vld [vmem:[%s2305 + $0x309] sm:$0xff]
  %v2368 = vld [vmem:[%s2305 + $0x319] sm:$0xff]
  %v2369 = vld [vmem:[%s2305 + $0x321] sm:$0xff]
  %2434 = vrot.lane.b32.xlu0 %v2306, 24
  %v2435 = vpop.permute.xlu0 %2434
  %2436 = vrot.lane.b32.xlu0 %v2307, 24
  %v2437 = vpop.permute.xlu0 %2436
  %2438 = vrot.lane.b32.xlu0 %v2308, 24
  %v2439 = vpop.permute.xlu0 %2438
  %2440 = vrot.lane.b32.xlu0 %v2309, 24
  %v2441 = vpop.permute.xlu0 %2440
  %2442 = vrot.lane.b32.xlu0 %v2310, 24
  %v2443 = vpop.permute.xlu0 %2442
  %2444 = vrot.lane.b32.xlu0 %v2311, 24
  %v2445 = vpop.permute.xlu0 %2444
  %2446 = vrot.lane.b32.xlu0 %v2312, 24
  %v2447 = vpop.permute.xlu0 %2446
  %2448 = vrot.lane.b32.xlu0 %v2313, 24
  %v2449 = vpop.permute.xlu0 %2448
  %2450 = vrot.lane.b32.xlu0 %v2314, 24
  %v2451 = vpop.permute.xlu0 %2450
  %2452 = vrot.lane.b32.xlu0 %v2315, 24
  %v2453 = vpop.permute.xlu0 %2452
  %2454 = vrot.lane.b32.xlu0 %v2316, 24
  %v2455 = vpop.permute.xlu0 %2454
  %2456 = vrot.lane.b32.xlu0 %v2317, 24
  %v2457 = vpop.permute.xlu0 %2456
  %2458 = vrot.lane.b32.xlu0 %v2318, 24
  %v2459 = vpop.permute.xlu0 %2458
  %2460 = vrot.lane.b32.xlu0 %v2319, 24
  %v2461 = vpop.permute.xlu0 %2460
  %2462 = vrot.lane.b32.xlu0 %v2320, 24
  %v2463 = vpop.permute.xlu0 %2462
  %2464 = vrot.lane.b32.xlu0 %v2321, 24
  %v2465 = vpop.permute.xlu0 %2464
  %2466 = vrot.lane.b32.xlu0 %v2322, 24
  %v2467 = vpop.permute.xlu0 %2466
  %2468 = vrot.lane.b32.xlu0 %v2323, 24
  %v2469 = vpop.permute.xlu0 %2468
  %2470 = vrot.lane.b32.xlu0 %v2324, 24
  %v2471 = vpop.permute.xlu0 %2470
  %2472 = vrot.lane.b32.xlu0 %v2325, 24
  %v2473 = vpop.permute.xlu0 %2472
  %2474 = vrot.lane.b32.xlu0 %v2326, 24
  %v2475 = vpop.permute.xlu0 %2474
  %2476 = vrot.lane.b32.xlu0 %v2327, 24
  %v2477 = vpop.permute.xlu0 %2476
  %2478 = vrot.lane.b32.xlu0 %v2328, 24
  %v2479 = vpop.permute.xlu0 %2478
  %2480 = vrot.lane.b32.xlu0 %v2329, 24
  %v2481 = vpop.permute.xlu0 %2480
  %2482 = vrot.lane.b32.xlu0 %v2330, 24
  %v2483 = vpop.permute.xlu0 %2482
  %2484 = vrot.lane.b32.xlu0 %v2331, 24
  %v2485 = vpop.permute.xlu0 %2484
  %2486 = vrot.lane.b32.xlu0 %v2332, 24
  %v2487 = vpop.permute.xlu0 %2486
  %2488 = vrot.lane.b32.xlu0 %v2333, 24
  %v2489 = vpop.permute.xlu0 %2488
  %2490 = vrot.lane.b32.xlu0 %v2334, 24
  %v2491 = vpop.permute.xlu0 %2490
  %2492 = vrot.lane.b32.xlu0 %v2335, 24
  %v2493 = vpop.permute.xlu0 %2492
  %2494 = vrot.lane.b32.xlu0 %v2336, 24
  %v2495 = vpop.permute.xlu0 %2494
  %2496 = vrot.lane.b32.xlu0 %v2337, 24
  %v2497 = vpop.permute.xlu0 %2496
  %2498 = vrot.lane.b32.xlu0 %v2338, 24
  %v2499 = vpop.permute.xlu0 %2498
  %2500 = vrot.lane.b32.xlu0 %v2339, 24
  %v2501 = vpop.permute.xlu0 %2500
  %2502 = vrot.lane.b32.xlu0 %v2340, 24
  %v2503 = vpop.permute.xlu0 %2502
  %2504 = vrot.lane.b32.xlu0 %v2341, 24
  %v2505 = vpop.permute.xlu0 %2504
  %2506 = vrot.lane.b32.xlu0 %v2342, 24
  %v2507 = vpop.permute.xlu0 %2506
  %2508 = vrot.lane.b32.xlu0 %v2343, 24
  %v2509 = vpop.permute.xlu0 %2508
  %2510 = vrot.lane.b32.xlu0 %v2344, 24
  %v2511 = vpop.permute.xlu0 %2510
  %2512 = vrot.lane.b32.xlu0 %v2345, 24
  %v2513 = vpop.permute.xlu0 %2512
  %2514 = vrot.lane.b32.xlu0 %v2346, 24
  %v2515 = vpop.permute.xlu0 %2514
  %2516 = vrot.lane.b32.xlu0 %v2347, 24
  %v2517 = vpop.permute.xlu0 %2516
  %2518 = vrot.lane.b32.xlu0 %v2348, 24
  %v2519 = vpop.permute.xlu0 %2518
  %2520 = vrot.lane.b32.xlu0 %v2349, 24
  %v2521 = vpop.permute.xlu0 %2520
  %2522 = vrot.lane.b32.xlu0 %v2350, 24
  %v2523 = vpop.permute.xlu0 %2522
  %2524 = vrot.lane.b32.xlu0 %v2351, 24
  %v2525 = vpop.permute.xlu0 %2524
  %2526 = vrot.lane.b32.xlu0 %v2352, 24
  %v2527 = vpop.permute.xlu0 %2526
  %2528 = vrot.lane.b32.xlu0 %v2353, 24
  %v2529 = vpop.permute.xlu0 %2528
  %2530 = vrot.lane.b32.xlu0 %v2354, 24
  %v2531 = vpop.permute.xlu0 %2530
  %2532 = vrot.lane.b32.xlu0 %v2355, 24
  %v2533 = vpop.permute.xlu0 %2532
  %2534 = vrot.lane.b32.xlu0 %v2356, 24
  %v2535 = vpop.permute.xlu0 %2534
  %2536 = vrot.lane.b32.xlu0 %v2357, 24
  %v2537 = vpop.permute.xlu0 %2536
  %2538 = vrot.lane.b32.xlu0 %v2358, 24
  %v2539 = vpop.permute.xlu0 %2538
  %2540 = vrot.lane.b32.xlu0 %v2359, 24
  %v2541 = vpop.permute.xlu0 %2540
  %2542 = vrot.lane.b32.xlu0 %v2360, 24
  %v2543 = vpop.permute.xlu0 %2542
  %2544 = vrot.lane.b32.xlu0 %v2361, 24
  %v2545 = vpop.permute.xlu0 %2544
  %2546 = vrot.lane.b32.xlu0 %v2362, 24
  %v2547 = vpop.permute.xlu0 %2546
  %2548 = vrot.lane.b32.xlu0 %v2363, 24
  %v2549 = vpop.permute.xlu0 %2548
  %2550 = vrot.lane.b32.xlu0 %v2364, 24
  %v2551 = vpop.permute.xlu0 %2550
  %2552 = vrot.lane.b32.xlu0 %v2365, 24
  %v2553 = vpop.permute.xlu0 %2552
  %2554 = vrot.lane.b32.xlu0 %v2366, 24
  %v2555 = vpop.permute.xlu0 %2554
  %2556 = vrot.lane.b32.xlu0 %v2367, 24
  %v2557 = vpop.permute.xlu0 %2556
  %2558 = vrot.lane.b32.xlu0 %v2368, 24
  %v2559 = vpop.permute.xlu0 %2558
  %2560 = vrot.lane.b32.xlu0 %v2369, 24
  %v2561 = vpop.permute.xlu0 %2560
  %vm2626 = vcmask 228544
  %2627 = vst.msk [vmem:[#allocation4] sm:$0xff] %vm2626, %v2435
  %2628 = vst.msk [vmem:[#allocation4 + $0x8] sm:$0xff] %vm2626, %v2437
  %2629 = vst.msk [vmem:[#allocation4 + $0x10] sm:$0xff] %vm2626, %v2439
  %2630 = vst.msk [vmem:[#allocation4 + $0x18] sm:$0xff] %vm2626, %v2441
  %2631 = vst.msk [vmem:[#allocation4 + $0x20] sm:$0xff] %vm2626, %v2443
  %2632 = vst.msk [vmem:[#allocation4 + $0x28] sm:$0xff] %vm2626, %v2445
  %2633 = vst.msk [vmem:[#allocation4 + $0x30] sm:$0xff] %vm2626, %v2447
  %2634 = vst.msk [vmem:[#allocation4 + $0x38] sm:$0xff] %vm2626, %v2449
  %2635 = vst.msk [vmem:[#allocation4 + $0x40] sm:$0xff] %vm2626, %v2451
  %2636 = vst.msk [vmem:[#allocation4 + $0x48] sm:$0xff] %vm2626, %v2453
  %2637 = vst.msk [vmem:[#allocation4 + $0x50] sm:$0xff] %vm2626, %v2455
  %2638 = vst.msk [vmem:[#allocation4 + $0x58] sm:$0xff] %vm2626, %v2457
  %2639 = vst.msk [vmem:[#allocation4 + $0x60] sm:$0xff] %vm2626, %v2459
  %2640 = vst.msk [vmem:[#allocation4 + $0x68] sm:$0xff] %vm2626, %v2461
  %2641 = vst.msk [vmem:[#allocation4 + $0x70] sm:$0xff] %vm2626, %v2463
  %2642 = vst.msk [vmem:[#allocation4 + $0x78] sm:$0xff] %vm2626, %v2465
  %2643 = vst.msk [vmem:[#allocation4 + $0x80] sm:$0xff] %vm2626, %v2467
  %2644 = vst.msk [vmem:[#allocation4 + $0x88] sm:$0xff] %vm2626, %v2469
  %2645 = vst.msk [vmem:[#allocation4 + $0x90] sm:$0xff] %vm2626, %v2471
  %2646 = vst.msk [vmem:[#allocation4 + $0x98] sm:$0xff] %vm2626, %v2473
  %2647 = vst.msk [vmem:[#allocation4 + $0xa0] sm:$0xff] %vm2626, %v2475
  %2648 = vst.msk [vmem:[#allocation4 + $0xa8] sm:$0xff] %vm2626, %v2477
  %2649 = vst.msk [vmem:[#allocation4 + $0xb0] sm:$0xff] %vm2626, %v2479
  %2650 = vst.msk [vmem:[#allocation4 + $0xb8] sm:$0xff] %vm2626, %v2481
  %2651 = vst.msk [vmem:[#allocation4 + $0xc0] sm:$0xff] %vm2626, %v2483
  %2652 = vst.msk [vmem:[#allocation4 + $0xc8] sm:$0xff] %vm2626, %v2485
  %2653 = vst.msk [vmem:[#allocation4 + $0xd0] sm:$0xff] %vm2626, %v2487
  %2654 = vst.msk [vmem:[#allocation4 + $0xd8] sm:$0xff] %vm2626, %v2489
  %2655 = vst.msk [vmem:[#allocation4 + $0xe0] sm:$0xff] %vm2626, %v2491
  %2656 = vst.msk [vmem:[#allocation4 + $0xe8] sm:$0xff] %vm2626, %v2493
  %2657 = vst.msk [vmem:[#allocation4 + $0xf0] sm:$0xff] %vm2626, %v2495
  %2658 = vst.msk [vmem:[#allocation4 + $0xf8] sm:$0xff] %vm2626, %v2497
  %2659 = vst.msk [vmem:[#allocation4 + $0x100] sm:$0xff] %vm2626, %v2499
  %2660 = vst.msk [vmem:[#allocation4 + $0x108] sm:$0xff] %vm2626, %v2501
  %2661 = vst.msk [vmem:[#allocation4 + $0x110] sm:$0xff] %vm2626, %v2503
  %2662 = vst.msk [vmem:[#allocation4 + $0x118] sm:$0xff] %vm2626, %v2505
  %2663 = vst.msk [vmem:[#allocation4 + $0x120] sm:$0xff] %vm2626, %v2507
  %2664 = vst.msk [vmem:[#allocation4 + $0x128] sm:$0xff] %vm2626, %v2509
  %2665 = vst.msk [vmem:[#allocation4 + $0x130] sm:$0xff] %vm2626, %v2511
  %2666 = vst.msk [vmem:[#allocation4 + $0x138] sm:$0xff] %vm2626, %v2513
  %2667 = vst.msk [vmem:[#allocation4 + $0x140] sm:$0xff] %vm2626, %v2515
  %2668 = vst.msk [vmem:[#allocation4 + $0x148] sm:$0xff] %vm2626, %v2517
  %2669 = vst.msk [vmem:[#allocation4 + $0x150] sm:$0xff] %vm2626, %v2519
  %2670 = vst.msk [vmem:[#allocation4 + $0x158] sm:$0xff] %vm2626, %v2521
  %2671 = vst.msk [vmem:[#allocation4 + $0x160] sm:$0xff] %vm2626, %v2523
  %2672 = vst.msk [vmem:[#allocation4 + $0x168] sm:$0xff] %vm2626, %v2525
  %2673 = vst.msk [vmem:[#allocation4 + $0x170] sm:$0xff] %vm2626, %v2527
  %2674 = vst.msk [vmem:[#allocation4 + $0x178] sm:$0xff] %vm2626, %v2529
  %2675 = vst.msk [vmem:[#allocation4 + $0x180] sm:$0xff] %vm2626, %v2531
  %2676 = vst.msk [vmem:[#allocation4 + $0x188] sm:$0xff] %vm2626, %v2533
  %2677 = vst.msk [vmem:[#allocation4 + $0x190] sm:$0xff] %vm2626, %v2535
  %2678 = vst.msk [vmem:[#allocation4 + $0x198] sm:$0xff] %vm2626, %v2537
  %2679 = vst.msk [vmem:[#allocation4 + $0x1a0] sm:$0xff] %vm2626, %v2539
  %2680 = vst.msk [vmem:[#allocation4 + $0x1a8] sm:$0xff] %vm2626, %v2541
  %2681 = vst.msk [vmem:[#allocation4 + $0x1b0] sm:$0xff] %vm2626, %v2543
  %2682 = vst.msk [vmem:[#allocation4 + $0x1b8] sm:$0xff] %vm2626, %v2545
  %2683 = vst.msk [vmem:[#allocation4 + $0x1c0] sm:$0xff] %vm2626, %v2547
  %2684 = vst.msk [vmem:[#allocation4 + $0x1c8] sm:$0xff] %vm2626, %v2549
  %2685 = vst.msk [vmem:[#allocation4 + $0x1d0] sm:$0xff] %vm2626, %v2551
  %2686 = vst.msk [vmem:[#allocation4 + $0x1d8] sm:$0xff] %vm2626, %v2553
  %2687 = vst.msk [vmem:[#allocation4 + $0x1e0] sm:$0xff] %vm2626, %v2555
  %2688 = vst.msk [vmem:[#allocation4 + $0x1e8] sm:$0xff] %vm2626, %v2557
  %2689 = vst.msk [vmem:[#allocation4 + $0x1f0] sm:$0xff] %vm2626, %v2559
  %2690 = vst.msk [vmem:[#allocation4 + $0x1f8] sm:$0xff] %vm2626, %v2561
  %v2691 = vld [vmem:[%s2305 + $0x2] sm:$0xff]
  %v2692 = vld [vmem:[%s2305 + $0xa] sm:$0xff]
  %v2693 = vld [vmem:[%s2305 + $0x1a] sm:$0xff]
  %v2694 = vld [vmem:[%s2305 + $0x22] sm:$0xff]
  %v2695 = vld [vmem:[%s2305 + $0x32] sm:$0xff]
  %v2696 = vld [vmem:[%s2305 + $0x3a] sm:$0xff]
  %v2697 = vld [vmem:[%s2305 + $0x4a] sm:$0xff]
  %v2698 = vld [vmem:[%s2305 + $0x52] sm:$0xff]
  %v2699 = vld [vmem:[%s2305 + $0x62] sm:$0xff]
  %v2700 = vld [vmem:[%s2305 + $0x6a] sm:$0xff]
  %v2701 = vld [vmem:[%s2305 + $0x7a] sm:$0xff]
  %v2702 = vld [vmem:[%s2305 + $0x82] sm:$0xff]
  %v2703 = vld [vmem:[%s2305 + $0x92] sm:$0xff]
  %v2704 = vld [vmem:[%s2305 + $0x9a] sm:$0xff]
  %v2705 = vld [vmem:[%s2305 + $0xaa] sm:$0xff]
  %v2706 = vld [vmem:[%s2305 + $0xb2] sm:$0xff]
  %v2707 = vld [vmem:[%s2305 + $0xc2] sm:$0xff]
  %v2708 = vld [vmem:[%s2305 + $0xca] sm:$0xff]
  %v2709 = vld [vmem:[%s2305 + $0xda] sm:$0xff]
  %v2710 = vld [vmem:[%s2305 + $0xe2] sm:$0xff]
  %v2711 = vld [vmem:[%s2305 + $0xf2] sm:$0xff]
  %v2712 = vld [vmem:[%s2305 + $0xfa] sm:$0xff]
  %v2713 = vld [vmem:[%s2305 + $0x10a] sm:$0xff]
  %v2714 = vld [vmem:[%s2305 + $0x112] sm:$0xff]
  %v2715 = vld [vmem:[%s2305 + $0x122] sm:$0xff]
  %v2716 = vld [vmem:[%s2305 + $0x12a] sm:$0xff]
  %v2717 = vld [vmem:[%s2305 + $0x13a] sm:$0xff]
  %v2718 = vld [vmem:[%s2305 + $0x142] sm:$0xff]
  %v2719 = vld [vmem:[%s2305 + $0x152] sm:$0xff]
  %v2720 = vld [vmem:[%s2305 + $0x15a] sm:$0xff]
  %v2721 = vld [vmem:[%s2305 + $0x16a] sm:$0xff]
  %v2722 = vld [vmem:[%s2305 + $0x172] sm:$0xff]
  %v2723 = vld [vmem:[%s2305 + $0x1b2] sm:$0xff]
  %v2724 = vld [vmem:[%s2305 + $0x1ba] sm:$0xff]
  %v2725 = vld [vmem:[%s2305 + $0x1ca] sm:$0xff]
  %v2726 = vld [vmem:[%s2305 + $0x1d2] sm:$0xff]
  %v2727 = vld [vmem:[%s2305 + $0x1e2] sm:$0xff]
  %v2728 = vld [vmem:[%s2305 + $0x1ea] sm:$0xff]
  %v2729 = vld [vmem:[%s2305 + $0x1fa] sm:$0xff]
  %v2730 = vld [vmem:[%s2305 + $0x202] sm:$0xff]
  %v2731 = vld [vmem:[%s2305 + $0x212] sm:$0xff]
  %v2732 = vld [vmem:[%s2305 + $0x21a] sm:$0xff]
  %v2733 = vld [vmem:[%s2305 + $0x22a] sm:$0xff]
  %v2734 = vld [vmem:[%s2305 + $0x232] sm:$0xff]
  %v2735 = vld [vmem:[%s2305 + $0x242] sm:$0xff]
  %v2736 = vld [vmem:[%s2305 + $0x24a] sm:$0xff]
  %v2737 = vld [vmem:[%s2305 + $0x25a] sm:$0xff]
  %v2738 = vld [vmem:[%s2305 + $0x262] sm:$0xff]
  %v2739 = vld [vmem:[%s2305 + $0x272] sm:$0xff]
  %v2740 = vld [vmem:[%s2305 + $0x27a] sm:$0xff]
  %v2741 = vld [vmem:[%s2305 + $0x28a] sm:$0xff]
  %v2742 = vld [vmem:[%s2305 + $0x292] sm:$0xff]
  %v2743 = vld [vmem:[%s2305 + $0x2a2] sm:$0xff]
  %v2744 = vld [vmem:[%s2305 + $0x2aa] sm:$0xff]
  %v2745 = vld [vmem:[%s2305 + $0x2ba] sm:$0xff]
  %v2746 = vld [vmem:[%s2305 + $0x2c2] sm:$0xff]
  %v2747 = vld [vmem:[%s2305 + $0x2d2] sm:$0xff]
  %v2748 = vld [vmem:[%s2305 + $0x2da] sm:$0xff]
  %v2749 = vld [vmem:[%s2305 + $0x2ea] sm:$0xff]
  %v2750 = vld [vmem:[%s2305 + $0x2f2] sm:$0xff]
  %v2751 = vld [vmem:[%s2305 + $0x302] sm:$0xff]
  %v2752 = vld [vmem:[%s2305 + $0x30a] sm:$0xff]
  %v2753 = vld [vmem:[%s2305 + $0x31a] sm:$0xff]
  %v2754 = vld [vmem:[%s2305 + $0x322] sm:$0xff]
  %2819 = vrot.lane.b32.xlu0 %v2691, 28
  %v2820 = vpop.permute.xlu0 %2819
  %2821 = vrot.lane.b32.xlu0 %v2692, 28
  %v2822 = vpop.permute.xlu0 %2821
  %2823 = vrot.lane.b32.xlu0 %v2693, 28
  %v2824 = vpop.permute.xlu0 %2823
  %2825 = vrot.lane.b32.xlu0 %v2694, 28
  %v2826 = vpop.permute.xlu0 %2825
  %2827 = vrot.lane.b32.xlu0 %v2695, 28
  %v2828 = vpop.permute.xlu0 %2827
  %2829 = vrot.lane.b32.xlu0 %v2696, 28
  %v2830 = vpop.permute.xlu0 %2829
  %2831 = vrot.lane.b32.xlu0 %v2697, 28
  %v2832 = vpop.permute.xlu0 %2831
  %2833 = vrot.lane.b32.xlu0 %v2698, 28
  %v2834 = vpop.permute.xlu0 %2833
  %2835 = vrot.lane.b32.xlu0 %v2699, 28
  %v2836 = vpop.permute.xlu0 %2835
  %2837 = vrot.lane.b32.xlu0 %v2700, 28
  %v2838 = vpop.permute.xlu0 %2837
  %2839 = vrot.lane.b32.xlu0 %v2701, 28
  %v2840 = vpop.permute.xlu0 %2839
  %2841 = vrot.lane.b32.xlu0 %v2702, 28
  %v2842 = vpop.permute.xlu0 %2841
  %2843 = vrot.lane.b32.xlu0 %v2703, 28
  %v2844 = vpop.permute.xlu0 %2843
  %2845 = vrot.lane.b32.xlu0 %v2704, 28
  %v2846 = vpop.permute.xlu0 %2845
  %2847 = vrot.lane.b32.xlu0 %v2705, 28
  %v2848 = vpop.permute.xlu0 %2847
  %2849 = vrot.lane.b32.xlu0 %v2706, 28
  %v2850 = vpop.permute.xlu0 %2849
  %2851 = vrot.lane.b32.xlu0 %v2707, 28
  %v2852 = vpop.permute.xlu0 %2851
  %2853 = vrot.lane.b32.xlu0 %v2708, 28
  %v2854 = vpop.permute.xlu0 %2853
  %2855 = vrot.lane.b32.xlu0 %v2709, 28
  %v2856 = vpop.permute.xlu0 %2855
  %2857 = vrot.lane.b32.xlu0 %v2710, 28
  %v2858 = vpop.permute.xlu0 %2857
  %2859 = vrot.lane.b32.xlu0 %v2711, 28
  %v2860 = vpop.permute.xlu0 %2859
  %2861 = vrot.lane.b32.xlu0 %v2712, 28
  %v2862 = vpop.permute.xlu0 %2861
  %2863 = vrot.lane.b32.xlu0 %v2713, 28
  %v2864 = vpop.permute.xlu0 %2863
  %2865 = vrot.lane.b32.xlu0 %v2714, 28
  %v2866 = vpop.permute.xlu0 %2865
  %2867 = vrot.lane.b32.xlu0 %v2715, 28
  %v2868 = vpop.permute.xlu0 %2867
  %2869 = vrot.lane.b32.xlu0 %v2716, 28
  %v2870 = vpop.permute.xlu0 %2869
  %2871 = vrot.lane.b32.xlu0 %v2717, 28
  %v2872 = vpop.permute.xlu0 %2871
  %2873 = vrot.lane.b32.xlu0 %v2718, 28
  %v2874 = vpop.permute.xlu0 %2873
  %2875 = vrot.lane.b32.xlu0 %v2719, 28
  %v2876 = vpop.permute.xlu0 %2875
  %2877 = vrot.lane.b32.xlu0 %v2720, 28
  %v2878 = vpop.permute.xlu0 %2877
  %2879 = vrot.lane.b32.xlu0 %v2721, 28
  %v2880 = vpop.permute.xlu0 %2879
  %2881 = vrot.lane.b32.xlu0 %v2722, 28
  %v2882 = vpop.permute.xlu0 %2881
  %2883 = vrot.lane.b32.xlu0 %v2723, 28
  %v2884 = vpop.permute.xlu0 %2883
  %2885 = vrot.lane.b32.xlu0 %v2724, 28
  %v2886 = vpop.permute.xlu0 %2885
  %2887 = vrot.lane.b32.xlu0 %v2725, 28
  %v2888 = vpop.permute.xlu0 %2887
  %2889 = vrot.lane.b32.xlu0 %v2726, 28
  %v2890 = vpop.permute.xlu0 %2889
  %2891 = vrot.lane.b32.xlu0 %v2727, 28
  %v2892 = vpop.permute.xlu0 %2891
  %2893 = vrot.lane.b32.xlu0 %v2728, 28
  %v2894 = vpop.permute.xlu0 %2893
  %2895 = vrot.lane.b32.xlu0 %v2729, 28
  %v2896 = vpop.permute.xlu0 %2895
  %2897 = vrot.lane.b32.xlu0 %v2730, 28
  %v2898 = vpop.permute.xlu0 %2897
  %2899 = vrot.lane.b32.xlu0 %v2731, 28
  %v2900 = vpop.permute.xlu0 %2899
  %2901 = vrot.lane.b32.xlu0 %v2732, 28
  %v2902 = vpop.permute.xlu0 %2901
  %2903 = vrot.lane.b32.xlu0 %v2733, 28
  %v2904 = vpop.permute.xlu0 %2903
  %2905 = vrot.lane.b32.xlu0 %v2734, 28
  %v2906 = vpop.permute.xlu0 %2905
  %2907 = vrot.lane.b32.xlu0 %v2735, 28
  %v2908 = vpop.permute.xlu0 %2907
  %2909 = vrot.lane.b32.xlu0 %v2736, 28
  %v2910 = vpop.permute.xlu0 %2909
  %2911 = vrot.lane.b32.xlu0 %v2737, 28
  %v2912 = vpop.permute.xlu0 %2911
  %2913 = vrot.lane.b32.xlu0 %v2738, 28
  %v2914 = vpop.permute.xlu0 %2913
  %2915 = vrot.lane.b32.xlu0 %v2739, 28
  %v2916 = vpop.permute.xlu0 %2915
  %2917 = vrot.lane.b32.xlu0 %v2740, 28
  %v2918 = vpop.permute.xlu0 %2917
  %2919 = vrot.lane.b32.xlu0 %v2741, 28
  %v2920 = vpop.permute.xlu0 %2919
  %2921 = vrot.lane.b32.xlu0 %v2742, 28
  %v2922 = vpop.permute.xlu0 %2921
  %2923 = vrot.lane.b32.xlu0 %v2743, 28
  %v2924 = vpop.permute.xlu0 %2923
  %2925 = vrot.lane.b32.xlu0 %v2744, 28
  %v2926 = vpop.permute.xlu0 %2925
  %2927 = vrot.lane.b32.xlu0 %v2745, 28
  %v2928 = vpop.permute.xlu0 %2927
  %2929 = vrot.lane.b32.xlu0 %v2746, 28
  %v2930 = vpop.permute.xlu0 %2929
  %2931 = vrot.lane.b32.xlu0 %v2747, 28
  %v2932 = vpop.permute.xlu0 %2931
  %2933 = vrot.lane.b32.xlu0 %v2748, 28
  %v2934 = vpop.permute.xlu0 %2933
  %2935 = vrot.lane.b32.xlu0 %v2749, 28
  %v2936 = vpop.permute.xlu0 %2935
  %2937 = vrot.lane.b32.xlu0 %v2750, 28
  %v2938 = vpop.permute.xlu0 %2937
  %2939 = vrot.lane.b32.xlu0 %v2751, 28
  %v2940 = vpop.permute.xlu0 %2939
  %2941 = vrot.lane.b32.xlu0 %v2752, 28
  %v2942 = vpop.permute.xlu0 %2941
  %2943 = vrot.lane.b32.xlu0 %v2753, 28
  %v2944 = vpop.permute.xlu0 %2943
  %2945 = vrot.lane.b32.xlu0 %v2754, 28
  %v2946 = vpop.permute.xlu0 %2945
  %vm3011 = vcmask 261344
  %3012 = vst.msk [vmem:[#allocation4] sm:$0xff] %vm3011, %v2820
  %3013 = vst.msk [vmem:[#allocation4 + $0x8] sm:$0xff] %vm3011, %v2822
  %3014 = vst.msk [vmem:[#allocation4 + $0x10] sm:$0xff] %vm3011, %v2824
  %3015 = vst.msk [vmem:[#allocation4 + $0x18] sm:$0xff] %vm3011, %v2826
  %3016 = vst.msk [vmem:[#allocation4 + $0x20] sm:$0xff] %vm3011, %v2828
  %3017 = vst.msk [vmem:[#allocation4 + $0x28] sm:$0xff] %vm3011, %v2830
  %3018 = vst.msk [vmem:[#allocation4 + $0x30] sm:$0xff] %vm3011, %v2832
  %3019 = vst.msk [vmem:[#allocation4 + $0x38] sm:$0xff] %vm3011, %v2834
  %3020 = vst.msk [vmem:[#allocation4 + $0x40] sm:$0xff] %vm3011, %v2836
  %3021 = vst.msk [vmem:[#allocation4 + $0x48] sm:$0xff] %vm3011, %v2838
  %3022 = vst.msk [vmem:[#allocation4 + $0x50] sm:$0xff] %vm3011, %v2840
  %3023 = vst.msk [vmem:[#allocation4 + $0x58] sm:$0xff] %vm3011, %v2842
  %3024 = vst.msk [vmem:[#allocation4 + $0x60] sm:$0xff] %vm3011, %v2844
  %3025 = vst.msk [vmem:[#allocation4 + $0x68] sm:$0xff] %vm3011, %v2846
  %3026 = vst.msk [vmem:[#allocation4 + $0x70] sm:$0xff] %vm3011, %v2848
  %3027 = vst.msk [vmem:[#allocation4 + $0x78] sm:$0xff] %vm3011, %v2850
  %3028 = vst.msk [vmem:[#allocation4 + $0x80] sm:$0xff] %vm3011, %v2852
  %3029 = vst.msk [vmem:[#allocation4 + $0x88] sm:$0xff] %vm3011, %v2854
  %3030 = vst.msk [vmem:[#allocation4 + $0x90] sm:$0xff] %vm3011, %v2856
  %3031 = vst.msk [vmem:[#allocation4 + $0x98] sm:$0xff] %vm3011, %v2858
  %3032 = vst.msk [vmem:[#allocation4 + $0xa0] sm:$0xff] %vm3011, %v2860
  %3033 = vst.msk [vmem:[#allocation4 + $0xa8] sm:$0xff] %vm3011, %v2862
  %3034 = vst.msk [vmem:[#allocation4 + $0xb0] sm:$0xff] %vm3011, %v2864
  %3035 = vst.msk [vmem:[#allocation4 + $0xb8] sm:$0xff] %vm3011, %v2866
  %3036 = vst.msk [vmem:[#allocation4 + $0xc0] sm:$0xff] %vm3011, %v2868
  %3037 = vst.msk [vmem:[#allocation4 + $0xc8] sm:$0xff] %vm3011, %v2870
  %3038 = vst.msk [vmem:[#allocation4 + $0xd0] sm:$0xff] %vm3011, %v2872
  %3039 = vst.msk [vmem:[#allocation4 + $0xd8] sm:$0xff] %vm3011, %v2874
  %3040 = vst.msk [vmem:[#allocation4 + $0xe0] sm:$0xff] %vm3011, %v2876
  %3041 = vst.msk [vmem:[#allocation4 + $0xe8] sm:$0xff] %vm3011, %v2878
  %3042 = vst.msk [vmem:[#allocation4 + $0xf0] sm:$0xff] %vm3011, %v2880
  %3043 = vst.msk [vmem:[#allocation4 + $0xf8] sm:$0xff] %vm3011, %v2882
  %3044 = vst.msk [vmem:[#allocation4 + $0x100] sm:$0xff] %vm3011, %v2884
  %3045 = vst.msk [vmem:[#allocation4 + $0x108] sm:$0xff] %vm3011, %v2886
  %3046 = vst.msk [vmem:[#allocation4 + $0x110] sm:$0xff] %vm3011, %v2888
  %3047 = vst.msk [vmem:[#allocation4 + $0x118] sm:$0xff] %vm3011, %v2890
  %3048 = vst.msk [vmem:[#allocation4 + $0x120] sm:$0xff] %vm3011, %v2892
  %3049 = vst.msk [vmem:[#allocation4 + $0x128] sm:$0xff] %vm3011, %v2894
  %3050 = vst.msk [vmem:[#allocation4 + $0x130] sm:$0xff] %vm3011, %v2896
  %3051 = vst.msk [vmem:[#allocation4 + $0x138] sm:$0xff] %vm3011, %v2898
  %3052 = vst.msk [vmem:[#allocation4 + $0x140] sm:$0xff] %vm3011, %v2900
  %3053 = vst.msk [vmem:[#allocation4 + $0x148] sm:$0xff] %vm3011, %v2902
  %3054 = vst.msk [vmem:[#allocation4 + $0x150] sm:$0xff] %vm3011, %v2904
  %3055 = vst.msk [vmem:[#allocation4 + $0x158] sm:$0xff] %vm3011, %v2906
  %3056 = vst.msk [vmem:[#allocation4 + $0x160] sm:$0xff] %vm3011, %v2908
  %3057 = vst.msk [vmem:[#allocation4 + $0x168] sm:$0xff] %vm3011, %v2910
  %3058 = vst.msk [vmem:[#allocation4 + $0x170] sm:$0xff] %vm3011, %v2912
  %3059 = vst.msk [vmem:[#allocation4 + $0x178] sm:$0xff] %vm3011, %v2914
  %3060 = vst.msk [vmem:[#allocation4 + $0x180] sm:$0xff] %vm3011, %v2916
  %3061 = vst.msk [vmem:[#allocation4 + $0x188] sm:$0xff] %vm3011, %v2918
  %3062 = vst.msk [vmem:[#allocation4 + $0x190] sm:$0xff] %vm3011, %v2920
  %3063 = vst.msk [vmem:[#allocation4 + $0x198] sm:$0xff] %vm3011, %v2922
  %3064 = vst.msk [vmem:[#allocation4 + $0x1a0] sm:$0xff] %vm3011, %v2924
  %3065 = vst.msk [vmem:[#allocation4 + $0x1a8] sm:$0xff] %vm3011, %v2926
  %3066 = vst.msk [vmem:[#allocation4 + $0x1b0] sm:$0xff] %vm3011, %v2928
  %3067 = vst.msk [vmem:[#allocation4 + $0x1b8] sm:$0xff] %vm3011, %v2930
  %3068 = vst.msk [vmem:[#allocation4 + $0x1c0] sm:$0xff] %vm3011, %v2932
  %3069 = vst.msk [vmem:[#allocation4 + $0x1c8] sm:$0xff] %vm3011, %v2934
  %3070 = vst.msk [vmem:[#allocation4 + $0x1d0] sm:$0xff] %vm3011, %v2936
  %3071 = vst.msk [vmem:[#allocation4 + $0x1d8] sm:$0xff] %vm3011, %v2938
  %3072 = vst.msk [vmem:[#allocation4 + $0x1e0] sm:$0xff] %vm3011, %v2940
  %3073 = vst.msk [vmem:[#allocation4 + $0x1e8] sm:$0xff] %vm3011, %v2942
  %3074 = vst.msk [vmem:[#allocation4 + $0x1f0] sm:$0xff] %vm3011, %v2944
  %3075 = vst.msk [vmem:[#allocation4 + $0x1f8] sm:$0xff] %vm3011, %v2946
  %v3076 = vld [vmem:[%s2305 + $0x3] sm:$0xff]
  %v3077 = vld [vmem:[%s2305 + $0xb] sm:$0xff]
  %v3078 = vld [vmem:[%s2305 + $0x1b] sm:$0xff]
  %v3079 = vld [vmem:[%s2305 + $0x23] sm:$0xff]
  %v3080 = vld [vmem:[%s2305 + $0x33] sm:$0xff]
  %v3081 = vld [vmem:[%s2305 + $0x3b] sm:$0xff]
  %v3082 = vld [vmem:[%s2305 + $0x4b] sm:$0xff]
  %v3083 = vld [vmem:[%s2305 + $0x53] sm:$0xff]
  %v3084 = vld [vmem:[%s2305 + $0x63] sm:$0xff]
  %v3085 = vld [vmem:[%s2305 + $0x6b] sm:$0xff]
  %v3086 = vld [vmem:[%s2305 + $0x7b] sm:$0xff]
  %v3087 = vld [vmem:[%s2305 + $0x83] sm:$0xff]
  %v3088 = vld [vmem:[%s2305 + $0x93] sm:$0xff]
  %v3089 = vld [vmem:[%s2305 + $0x9b] sm:$0xff]
  %v3090 = vld [vmem:[%s2305 + $0xab] sm:$0xff]
  %v3091 = vld [vmem:[%s2305 + $0xb3] sm:$0xff]
  %v3092 = vld [vmem:[%s2305 + $0xc3] sm:$0xff]
  %v3093 = vld [vmem:[%s2305 + $0xcb] sm:$0xff]
  %v3094 = vld [vmem:[%s2305 + $0xdb] sm:$0xff]
  %v3095 = vld [vmem:[%s2305 + $0xe3] sm:$0xff]
  %v3096 = vld [vmem:[%s2305 + $0xf3] sm:$0xff]
  %v3097 = vld [vmem:[%s2305 + $0xfb] sm:$0xff]
  %v3098 = vld [vmem:[%s2305 + $0x10b] sm:$0xff]
  %v3099 = vld [vmem:[%s2305 + $0x113] sm:$0xff]
  %v3100 = vld [vmem:[%s2305 + $0x123] sm:$0xff]
  %v3101 = vld [vmem:[%s2305 + $0x12b] sm:$0xff]
  %v3102 = vld [vmem:[%s2305 + $0x13b] sm:$0xff]
  %v3103 = vld [vmem:[%s2305 + $0x143] sm:$0xff]
  %v3104 = vld [vmem:[%s2305 + $0x153] sm:$0xff]
  %v3105 = vld [vmem:[%s2305 + $0x15b] sm:$0xff]
  %v3106 = vld [vmem:[%s2305 + $0x16b] sm:$0xff]
  %v3107 = vld [vmem:[%s2305 + $0x173] sm:$0xff]
  %v3108 = vld [vmem:[%s2305 + $0x1b3] sm:$0xff]
  %v3109 = vld [vmem:[%s2305 + $0x1bb] sm:$0xff]
  %v3110 = vld [vmem:[%s2305 + $0x1cb] sm:$0xff]
  %v3111 = vld [vmem:[%s2305 + $0x1d3] sm:$0xff]
  %v3112 = vld [vmem:[%s2305 + $0x1e3] sm:$0xff]
  %v3113 = vld [vmem:[%s2305 + $0x1eb] sm:$0xff]
  %v3114 = vld [vmem:[%s2305 + $0x1fb] sm:$0xff]
  %v3115 = vld [vmem:[%s2305 + $0x203] sm:$0xff]
  %v3116 = vld [vmem:[%s2305 + $0x213] sm:$0xff]
  %v3117 = vld [vmem:[%s2305 + $0x21b] sm:$0xff]
  %v3118 = vld [vmem:[%s2305 + $0x22b] sm:$0xff]
  %v3119 = vld [vmem:[%s2305 + $0x233] sm:$0xff]
  %v3120 = vld [vmem:[%s2305 + $0x243] sm:$0xff]
  %v3121 = vld [vmem:[%s2305 + $0x24b] sm:$0xff]
  %v3122 = vld [vmem:[%s2305 + $0x25b] sm:$0xff]
  %v3123 = vld [vmem:[%s2305 + $0x263] sm:$0xff]
  %v3124 = vld [vmem:[%s2305 + $0x273] sm:$0xff]
  %v3125 = vld [vmem:[%s2305 + $0x27b] sm:$0xff]
  %v3126 = vld [vmem:[%s2305 + $0x28b] sm:$0xff]
  %v3127 = vld [vmem:[%s2305 + $0x293] sm:$0xff]
  %v3128 = vld [vmem:[%s2305 + $0x2a3] sm:$0xff]
  %v3129 = vld [vmem:[%s2305 + $0x2ab] sm:$0xff]
  %v3130 = vld [vmem:[%s2305 + $0x2bb] sm:$0xff]
  %v3131 = vld [vmem:[%s2305 + $0x2c3] sm:$0xff]
  %v3132 = vld [vmem:[%s2305 + $0x2d3] sm:$0xff]
  %v3133 = vld [vmem:[%s2305 + $0x2db] sm:$0xff]
  %v3134 = vld [vmem:[%s2305 + $0x2eb] sm:$0xff]
  %v3135 = vld [vmem:[%s2305 + $0x2f3] sm:$0xff]
  %v3136 = vld [vmem:[%s2305 + $0x303] sm:$0xff]
  %v3137 = vld [vmem:[%s2305 + $0x30b] sm:$0xff]
  %v3138 = vld [vmem:[%s2305 + $0x31b] sm:$0xff]
  %v3139 = vld [vmem:[%s2305 + $0x323] sm:$0xff]
  %3204 = vrot.lane.b32.xlu0 %v3076, 32
  %v3205 = vpop.permute.xlu0 %3204
  %3206 = vrot.lane.b32.xlu0 %v3077, 32
  %v3207 = vpop.permute.xlu0 %3206
  %3208 = vrot.lane.b32.xlu0 %v3078, 32
  %v3209 = vpop.permute.xlu0 %3208
  %3210 = vrot.lane.b32.xlu0 %v3079, 32
  %v3211 = vpop.permute.xlu0 %3210
  %3212 = vrot.lane.b32.xlu0 %v3080, 32
  %v3213 = vpop.permute.xlu0 %3212
  %3214 = vrot.lane.b32.xlu0 %v3081, 32
  %v3215 = vpop.permute.xlu0 %3214
  %3216 = vrot.lane.b32.xlu0 %v3082, 32
  %v3217 = vpop.permute.xlu0 %3216
  %3218 = vrot.lane.b32.xlu0 %v3083, 32
  %v3219 = vpop.permute.xlu0 %3218
  %3220 = vrot.lane.b32.xlu0 %v3084, 32
  %v3221 = vpop.permute.xlu0 %3220
  %3222 = vrot.lane.b32.xlu0 %v3085, 32
  %v3223 = vpop.permute.xlu0 %3222
  %3224 = vrot.lane.b32.xlu0 %v3086, 32
  %v3225 = vpop.permute.xlu0 %3224
  %3226 = vrot.lane.b32.xlu0 %v3087, 32
  %v3227 = vpop.permute.xlu0 %3226
  %3228 = vrot.lane.b32.xlu0 %v3088, 32
  %v3229 = vpop.permute.xlu0 %3228
  %3230 = vrot.lane.b32.xlu0 %v3089, 32
  %v3231 = vpop.permute.xlu0 %3230
  %3232 = vrot.lane.b32.xlu0 %v3090, 32
  %v3233 = vpop.permute.xlu0 %3232
  %3234 = vrot.lane.b32.xlu0 %v3091, 32
  %v3235 = vpop.permute.xlu0 %3234
  %3236 = vrot.lane.b32.xlu0 %v3092, 32
  %v3237 = vpop.permute.xlu0 %3236
  %3238 = vrot.lane.b32.xlu0 %v3093, 32
  %v3239 = vpop.permute.xlu0 %3238
  %3240 = vrot.lane.b32.xlu0 %v3094, 32
  %v3241 = vpop.permute.xlu0 %3240
  %3242 = vrot.lane.b32.xlu0 %v3095, 32
  %v3243 = vpop.permute.xlu0 %3242
  %3244 = vrot.lane.b32.xlu0 %v3096, 32
  %v3245 = vpop.permute.xlu0 %3244
  %3246 = vrot.lane.b32.xlu0 %v3097, 32
  %v3247 = vpop.permute.xlu0 %3246
  %3248 = vrot.lane.b32.xlu0 %v3098, 32
  %v3249 = vpop.permute.xlu0 %3248
  %3250 = vrot.lane.b32.xlu0 %v3099, 32
  %v3251 = vpop.permute.xlu0 %3250
  %3252 = vrot.lane.b32.xlu0 %v3100, 32
  %v3253 = vpop.permute.xlu0 %3252
  %3254 = vrot.lane.b32.xlu0 %v3101, 32
  %v3255 = vpop.permute.xlu0 %3254
  %3256 = vrot.lane.b32.xlu0 %v3102, 32
  %v3257 = vpop.permute.xlu0 %3256
  %3258 = vrot.lane.b32.xlu0 %v3103, 32
  %v3259 = vpop.permute.xlu0 %3258
  %3260 = vrot.lane.b32.xlu0 %v3104, 32
  %v3261 = vpop.permute.xlu0 %3260
  %3262 = vrot.lane.b32.xlu0 %v3105, 32
  %v3263 = vpop.permute.xlu0 %3262
  %3264 = vrot.lane.b32.xlu0 %v3106, 32
  %v3265 = vpop.permute.xlu0 %3264
  %3266 = vrot.lane.b32.xlu0 %v3107, 32
  %v3267 = vpop.permute.xlu0 %3266
  %3268 = vrot.lane.b32.xlu0 %v3108, 32
  %v3269 = vpop.permute.xlu0 %3268
  %3270 = vrot.lane.b32.xlu0 %v3109, 32
  %v3271 = vpop.permute.xlu0 %3270
  %3272 = vrot.lane.b32.xlu0 %v3110, 32
  %v3273 = vpop.permute.xlu0 %3272
  %3274 = vrot.lane.b32.xlu0 %v3111, 32
  %v3275 = vpop.permute.xlu0 %3274
  %3276 = vrot.lane.b32.xlu0 %v3112, 32
  %v3277 = vpop.permute.xlu0 %3276
  %3278 = vrot.lane.b32.xlu0 %v3113, 32
  %v3279 = vpop.permute.xlu0 %3278
  %3280 = vrot.lane.b32.xlu0 %v3114, 32
  %v3281 = vpop.permute.xlu0 %3280
  %3282 = vrot.lane.b32.xlu0 %v3115, 32
  %v3283 = vpop.permute.xlu0 %3282
  %3284 = vrot.lane.b32.xlu0 %v3116, 32
  %v3285 = vpop.permute.xlu0 %3284
  %3286 = vrot.lane.b32.xlu0 %v3117, 32
  %v3287 = vpop.permute.xlu0 %3286
  %3288 = vrot.lane.b32.xlu0 %v3118, 32
  %v3289 = vpop.permute.xlu0 %3288
  %3290 = vrot.lane.b32.xlu0 %v3119, 32
  %v3291 = vpop.permute.xlu0 %3290
  %3292 = vrot.lane.b32.xlu0 %v3120, 32
  %v3293 = vpop.permute.xlu0 %3292
  %3294 = vrot.lane.b32.xlu0 %v3121, 32
  %v3295 = vpop.permute.xlu0 %3294
  %3296 = vrot.lane.b32.xlu0 %v3122, 32
  %v3297 = vpop.permute.xlu0 %3296
  %3298 = vrot.lane.b32.xlu0 %v3123, 32
  %v3299 = vpop.permute.xlu0 %3298
  %3300 = vrot.lane.b32.xlu0 %v3124, 32
  %v3301 = vpop.permute.xlu0 %3300
  %3302 = vrot.lane.b32.xlu0 %v3125, 32
  %v3303 = vpop.permute.xlu0 %3302
  %3304 = vrot.lane.b32.xlu0 %v3126, 32
  %v3305 = vpop.permute.xlu0 %3304
  %3306 = vrot.lane.b32.xlu0 %v3127, 32
  %v3307 = vpop.permute.xlu0 %3306
  %3308 = vrot.lane.b32.xlu0 %v3128, 32
  %v3309 = vpop.permute.xlu0 %3308
  %3310 = vrot.lane.b32.xlu0 %v3129, 32
  %v3311 = vpop.permute.xlu0 %3310
  %3312 = vrot.lane.b32.xlu0 %v3130, 32
  %v3313 = vpop.permute.xlu0 %3312
  %3314 = vrot.lane.b32.xlu0 %v3131, 32
  %v3315 = vpop.permute.xlu0 %3314
  %3316 = vrot.lane.b32.xlu0 %v3132, 32
  %v3317 = vpop.permute.xlu0 %3316
  %3318 = vrot.lane.b32.xlu0 %v3133, 32
  %v3319 = vpop.permute.xlu0 %3318
  %3320 = vrot.lane.b32.xlu0 %v3134, 32
  %v3321 = vpop.permute.xlu0 %3320
  %3322 = vrot.lane.b32.xlu0 %v3135, 32
  %v3323 = vpop.permute.xlu0 %3322
  %3324 = vrot.lane.b32.xlu0 %v3136, 32
  %v3325 = vpop.permute.xlu0 %3324
  %3326 = vrot.lane.b32.xlu0 %v3137, 32
  %v3327 = vpop.permute.xlu0 %3326
  %3328 = vrot.lane.b32.xlu0 %v3138, 32
  %v3329 = vpop.permute.xlu0 %3328
  %3330 = vrot.lane.b32.xlu0 %v3139, 32
  %v3331 = vpop.permute.xlu0 %3330
  %vm3396 = vcmask 294144
  %3397 = vst.msk [vmem:[#allocation4] sm:$0xff] %vm3396, %v3205
  %3398 = vst.msk [vmem:[#allocation4 + $0x8] sm:$0xff] %vm3396, %v3207
  %3399 = vst.msk [vmem:[#allocation4 + $0x10] sm:$0xff] %vm3396, %v3209
  %3400 = vst.msk [vmem:[#allocation4 + $0x18] sm:$0xff] %vm3396, %v3211
  %3401 = vst.msk [vmem:[#allocation4 + $0x20] sm:$0xff] %vm3396, %v3213
  %3402 = vst.msk [vmem:[#allocation4 + $0x28] sm:$0xff] %vm3396, %v3215
  %3403 = vst.msk [vmem:[#allocation4 + $0x30] sm:$0xff] %vm3396, %v3217
  %3404 = vst.msk [vmem:[#allocation4 + $0x38] sm:$0xff] %vm3396, %v3219
  %3405 = vst.msk [vmem:[#allocation4 + $0x40] sm:$0xff] %vm3396, %v3221
  %3406 = vst.msk [vmem:[#allocation4 + $0x48] sm:$0xff] %vm3396, %v3223
  %3407 = vst.msk [vmem:[#allocation4 + $0x50] sm:$0xff] %vm3396, %v3225
  %3408 = vst.msk [vmem:[#allocation4 + $0x58] sm:$0xff] %vm3396, %v3227
  %3409 = vst.msk [vmem:[#allocation4 + $0x60] sm:$0xff] %vm3396, %v3229
  %3410 = vst.msk [vmem:[#allocation4 + $0x68] sm:$0xff] %vm3396, %v3231
  %3411 = vst.msk [vmem:[#allocation4 + $0x70] sm:$0xff] %vm3396, %v3233
  %3412 = vst.msk [vmem:[#allocation4 + $0x78] sm:$0xff] %vm3396, %v3235
  %3413 = vst.msk [vmem:[#allocation4 + $0x80] sm:$0xff] %vm3396, %v3237
  %3414 = vst.msk [vmem:[#allocation4 + $0x88] sm:$0xff] %vm3396, %v3239
  %3415 = vst.msk [vmem:[#allocation4 + $0x90] sm:$0xff] %vm3396, %v3241
  %3416 = vst.msk [vmem:[#allocation4 + $0x98] sm:$0xff] %vm3396, %v3243
  %3417 = vst.msk [vmem:[#allocation4 + $0xa0] sm:$0xff] %vm3396, %v3245
  %3418 = vst.msk [vmem:[#allocation4 + $0xa8] sm:$0xff] %vm3396, %v3247
  %3419 = vst.msk [vmem:[#allocation4 + $0xb0] sm:$0xff] %vm3396, %v3249
  %3420 = vst.msk [vmem:[#allocation4 + $0xb8] sm:$0xff] %vm3396, %v3251
  %3421 = vst.msk [vmem:[#allocation4 + $0xc0] sm:$0xff] %vm3396, %v3253
  %3422 = vst.msk [vmem:[#allocation4 + $0xc8] sm:$0xff] %vm3396, %v3255
  %3423 = vst.msk [vmem:[#allocation4 + $0xd0] sm:$0xff] %vm3396, %v3257
  %3424 = vst.msk [vmem:[#allocation4 + $0xd8] sm:$0xff] %vm3396, %v3259
  %3425 = vst.msk [vmem:[#allocation4 + $0xe0] sm:$0xff] %vm3396, %v3261
  %3426 = vst.msk [vmem:[#allocation4 + $0xe8] sm:$0xff] %vm3396, %v3263
  %3427 = vst.msk [vmem:[#allocation4 + $0xf0] sm:$0xff] %vm3396, %v3265
  %3428 = vst.msk [vmem:[#allocation4 + $0xf8] sm:$0xff] %vm3396, %v3267
  %3429 = vst.msk [vmem:[#allocation4 + $0x100] sm:$0xff] %vm3396, %v3269
  %3430 = vst.msk [vmem:[#allocation4 + $0x108] sm:$0xff] %vm3396, %v3271
  %3431 = vst.msk [vmem:[#allocation4 + $0x110] sm:$0xff] %vm3396, %v3273
  %3432 = vst.msk [vmem:[#allocation4 + $0x118] sm:$0xff] %vm3396, %v3275
  %3433 = vst.msk [vmem:[#allocation4 + $0x120] sm:$0xff] %vm3396, %v3277
  %3434 = vst.msk [vmem:[#allocation4 + $0x128] sm:$0xff] %vm3396, %v3279
  %3435 = vst.msk [vmem:[#allocation4 + $0x130] sm:$0xff] %vm3396, %v3281
  %3436 = vst.msk [vmem:[#allocation4 + $0x138] sm:$0xff] %vm3396, %v3283
  %3437 = vst.msk [vmem:[#allocation4 + $0x140] sm:$0xff] %vm3396, %v3285
  %3438 = vst.msk [vmem:[#allocation4 + $0x148] sm:$0xff] %vm3396, %v3287
  %3439 = vst.msk [vmem:[#allocation4 + $0x150] sm:$0xff] %vm3396, %v3289
  %3440 = vst.msk [vmem:[#allocation4 + $0x158] sm:$0xff] %vm3396, %v3291
  %3441 = vst.msk [vmem:[#allocation4 + $0x160] sm:$0xff] %vm3396, %v3293
  %3442 = vst.msk [vmem:[#allocation4 + $0x168] sm:$0xff] %vm3396, %v3295
  %3443 = vst.msk [vmem:[#allocation4 + $0x170] sm:$0xff] %vm3396, %v3297
  %3444 = vst.msk [vmem:[#allocation4 + $0x178] sm:$0xff] %vm3396, %v3299
  %3445 = vst.msk [vmem:[#allocation4 + $0x180] sm:$0xff] %vm3396, %v3301
  %3446 = vst.msk [vmem:[#allocation4 + $0x188] sm:$0xff] %vm3396, %v3303
  %3447 = vst.msk [vmem:[#allocation4 + $0x190] sm:$0xff] %vm3396, %v3305
  %3448 = vst.msk [vmem:[#allocation4 + $0x198] sm:$0xff] %vm3396, %v3307
  %3449 = vst.msk [vmem:[#allocation4 + $0x1a0] sm:$0xff] %vm3396, %v3309
  %3450 = vst.msk [vmem:[#allocation4 + $0x1a8] sm:$0xff] %vm3396, %v3311
  %3451 = vst.msk [vmem:[#allocation4 + $0x1b0] sm:$0xff] %vm3396, %v3313
  %3452 = vst.msk [vmem:[#allocation4 + $0x1b8] sm:$0xff] %vm3396, %v3315
  %3453 = vst.msk [vmem:[#allocation4 + $0x1c0] sm:$0xff] %vm3396, %v3317
  %3454 = vst.msk [vmem:[#allocation4 + $0x1c8] sm:$0xff] %vm3396, %v3319
  %3455 = vst.msk [vmem:[#allocation4 + $0x1d0] sm:$0xff] %vm3396, %v3321
  %3456 = vst.msk [vmem:[#allocation4 + $0x1d8] sm:$0xff] %vm3396, %v3323
  %3457 = vst.msk [vmem:[#allocation4 + $0x1e0] sm:$0xff] %vm3396, %v3325
  %3458 = vst.msk [vmem:[#allocation4 + $0x1e8] sm:$0xff] %vm3396, %v3327
  %3459 = vst.msk [vmem:[#allocation4 + $0x1f0] sm:$0xff] %vm3396, %v3329
  %3460 = vst.msk [vmem:[#allocation4 + $0x1f8] sm:$0xff] %vm3396, %v3331
  %v3461 = vld [vmem:[#allocation4] sm:$0xff]
  %v3462 = vld [vmem:[#allocation4 + $0x8] sm:$0xff]
  %v3463 = vld [vmem:[#allocation4 + $0x10] sm:$0xff]
  %v3464 = vld [vmem:[#allocation4 + $0x18] sm:$0xff]
  %v3465 = vld [vmem:[#allocation4 + $0x20] sm:$0xff]
  %v3466 = vld [vmem:[#allocation4 + $0x28] sm:$0xff]
  %v3467 = vld [vmem:[#allocation4 + $0x30] sm:$0xff]
  %v3468 = vld [vmem:[#allocation4 + $0x38] sm:$0xff]
  %v3469 = vld [vmem:[#allocation4 + $0x40] sm:$0xff]
  %v3470 = vld [vmem:[#allocation4 + $0x48] sm:$0xff]
  %v3471 = vld [vmem:[#allocation4 + $0x50] sm:$0xff]
  %v3472 = vld [vmem:[#allocation4 + $0x58] sm:$0xff]
  %v3473 = vld [vmem:[#allocation4 + $0x60] sm:$0xff]
  %v3474 = vld [vmem:[#allocation4 + $0x68] sm:$0xff]
  %v3475 = vld [vmem:[#allocation4 + $0x70] sm:$0xff]
  %v3476 = vld [vmem:[#allocation4 + $0x78] sm:$0xff]
  %v3477 = vld [vmem:[#allocation4 + $0x80] sm:$0xff]
  %v3478 = vld [vmem:[#allocation4 + $0x88] sm:$0xff]
  %v3479 = vld [vmem:[#allocation4 + $0x90] sm:$0xff]
  %v3480 = vld [vmem:[#allocation4 + $0x98] sm:$0xff]
  %v3481 = vld [vmem:[#allocation4 + $0xa0] sm:$0xff]
  %v3482 = vld [vmem:[#allocation4 + $0xa8] sm:$0xff]
  %v3483 = vld [vmem:[#allocation4 + $0xb0] sm:$0xff]
  %v3484 = vld [vmem:[#allocation4 + $0xb8] sm:$0xff]
  %v3485 = vld [vmem:[#allocation4 + $0xc0] sm:$0xff]
  %v3486 = vld [vmem:[#allocation4 + $0xc8] sm:$0xff]
  %v3487 = vld [vmem:[#allocation4 + $0xd0] sm:$0xff]
  %v3488 = vld [vmem:[#allocation4 + $0xd8] sm:$0xff]
  %v3489 = vld [vmem:[#allocation4 + $0xe0] sm:$0xff]
  %v3490 = vld [vmem:[#allocation4 + $0xe8] sm:$0xff]
  %v3491 = vld [vmem:[#allocation4 + $0xf0] sm:$0xff]
  %v3492 = vld [vmem:[#allocation4 + $0xf8] sm:$0xff]
  %v3493 = vld [vmem:[#allocation4 + $0x100] sm:$0xff]
  %v3494 = vld [vmem:[#allocation4 + $0x108] sm:$0xff]
  %v3495 = vld [vmem:[#allocation4 + $0x110] sm:$0xff]
  %v3496 = vld [vmem:[#allocation4 + $0x118] sm:$0xff]
  %v3497 = vld [vmem:[#allocation4 + $0x120] sm:$0xff]
  %v3498 = vld [vmem:[#allocation4 + $0x128] sm:$0xff]
  %v3499 = vld [vmem:[#allocation4 + $0x130] sm:$0xff]
  %v3500 = vld [vmem:[#allocation4 + $0x138] sm:$0xff]
  %v3501 = vld [vmem:[#allocation4 + $0x140] sm:$0xff]
  %v3502 = vld [vmem:[#allocation4 + $0x148] sm:$0xff]
  %v3503 = vld [vmem:[#allocation4 + $0x150] sm:$0xff]
  %v3504 = vld [vmem:[#allocation4 + $0x158] sm:$0xff]
  %v3505 = vld [vmem:[#allocation4 + $0x160] sm:$0xff]
  %v3506 = vld [vmem:[#allocation4 + $0x168] sm:$0xff]
  %v3507 = vld [vmem:[#allocation4 + $0x170] sm:$0xff]
  %v3508 = vld [vmem:[#allocation4 + $0x178] sm:$0xff]
  %v3509 = vld [vmem:[#allocation4 + $0x180] sm:$0xff]
  %v3510 = vld [vmem:[#allocation4 + $0x188] sm:$0xff]
  %v3511 = vld [vmem:[#allocation4 + $0x190] sm:$0xff]
  %v3512 = vld [vmem:[#allocation4 + $0x198] sm:$0xff]
  %v3513 = vld [vmem:[#allocation4 + $0x1a0] sm:$0xff]
  %v3514 = vld [vmem:[#allocation4 + $0x1a8] sm:$0xff]
  %v3515 = vld [vmem:[#allocation4 + $0x1b0] sm:$0xff]
  %v3516 = vld [vmem:[#allocation4 + $0x1b8] sm:$0xff]
  %v3517 = vld [vmem:[#allocation4 + $0x1c0] sm:$0xff]
  %v3518 = vld [vmem:[#allocation4 + $0x1c8] sm:$0xff]
  %v3519 = vld [vmem:[#allocation4 + $0x1d0] sm:$0xff]
  %v3520 = vld [vmem:[#allocation4 + $0x1d8] sm:$0xff]
  %v3521 = vld [vmem:[#allocation4 + $0x1e0] sm:$0xff]
  %v3522 = vld [vmem:[#allocation4 + $0x1e8] sm:$0xff]
  %v3523 = vld [vmem:[#allocation4 + $0x1f0] sm:$0xff]
  %v3524 = vld [vmem:[#allocation4 + $0x1f8] sm:$0xff]
  %v3525 = vld [vmem:[%s1] sm:$0xff]
  %v3526 = vld [vmem:[%s1 + $0x8] sm:$0xff]
  %v3527 = vld [vmem:[%s1 + $0x10] sm:$0xff]
  %v3528 = vld [vmem:[%s1 + $0x18] sm:$0xff]
  %v3529 = vld [vmem:[%s1 + $0x20] sm:$0xf]
  %vm3530 = vcmask 293888
  %v3532 = vsel %vm3530, %v3461, 0
  %v3535 = vsel %vm3530, %v3462, 0
  %v3538 = vsel %vm3530, %v3463, 0
  %v3541 = vsel %vm3530, %v3464, 0
  %v3544 = vsel %vm3530, %v3465, 0
  %v3547 = vsel %vm3530, %v3466, 0
  %v3550 = vsel %vm3530, %v3467, 0
  %v3553 = vsel %vm3530, %v3468, 0
  %v3556 = vsel %vm3530, %v3469, 0
  %v3559 = vsel %vm3530, %v3470, 0
  %v3562 = vsel %vm3530, %v3471, 0
  %v3565 = vsel %vm3530, %v3472, 0
  %v3568 = vsel %vm3530, %v3473, 0
  %v3571 = vsel %vm3530, %v3474, 0
  %v3574 = vsel %vm3530, %v3475, 0
  %v3577 = vsel %vm3530, %v3476, 0
  %v3580 = vsel %vm3530, %v3477, 0
  %v3583 = vsel %vm3530, %v3478, 0
  %v3586 = vsel %vm3530, %v3479, 0
  %v3589 = vsel %vm3530, %v3480, 0
  %v3592 = vsel %vm3530, %v3481, 0
  %v3595 = vsel %vm3530, %v3482, 0
  %v3598 = vsel %vm3530, %v3483, 0
  %v3601 = vsel %vm3530, %v3484, 0
  %v3604 = vsel %vm3530, %v3485, 0
  %v3607 = vsel %vm3530, %v3486, 0
  %v3610 = vsel %vm3530, %v3487, 0
  %v3613 = vsel %vm3530, %v3488, 0
  %v3616 = vsel %vm3530, %v3489, 0
  %v3619 = vsel %vm3530, %v3490, 0
  %v3622 = vsel %vm3530, %v3491, 0
  %v3625 = vsel %vm3530, %v3492, 0
  %v3628 = vsel %vm3530, %v3493, 0
  %v3631 = vsel %vm3530, %v3494, 0
  %v3634 = vsel %vm3530, %v3495, 0
  %v3637 = vsel %vm3530, %v3496, 0
  %v3640 = vsel %vm3530, %v3497, 0
  %v3643 = vsel %vm3530, %v3498, 0
  %v3646 = vsel %vm3530, %v3499, 0
  %v3649 = vsel %vm3530, %v3500, 0
  %v3652 = vsel %vm3530, %v3501, 0
  %v3655 = vsel %vm3530, %v3502, 0
  %v3658 = vsel %vm3530, %v3503, 0
  %v3661 = vsel %vm3530, %v3504, 0
  %v3664 = vsel %vm3530, %v3505, 0
  %v3667 = vsel %vm3530, %v3506, 0
  %v3670 = vsel %vm3530, %v3507, 0
  %v3673 = vsel %vm3530, %v3508, 0
  %v3676 = vsel %vm3530, %v3509, 0
  %v3679 = vsel %vm3530, %v3510, 0
  %v3682 = vsel %vm3530, %v3511, 0
  %v3685 = vsel %vm3530, %v3512, 0
  %v3688 = vsel %vm3530, %v3513, 0
  %v3691 = vsel %vm3530, %v3514, 0
  %v3694 = vsel %vm3530, %v3515, 0
  %v3697 = vsel %vm3530, %v3516, 0
  %v3700 = vsel %vm3530, %v3517, 0
  %v3703 = vsel %vm3530, %v3518, 0
  %v3706 = vsel %vm3530, %v3519, 0
  %v3709 = vsel %vm3530, %v3520, 0
  %v3712 = vsel %vm3530, %v3521, 0
  %v3715 = vsel %vm3530, %v3522, 0
  %v3718 = vsel %vm3530, %v3523, 0
  %v3721 = vsel %vm3530, %v3524, 0
  %vm3723 = vcmask 1043456
  %v3725 = vsel %vm3723, %v3529, 0
  %3727 = vmatprep.subr.mxu0 0.0
  %3728 = vmatpush1.msra.mxu0 0.0
  %3729 = vmatprep.subr.mxu0 0.0
  %3730 = vmatpush1.msra.mxu0 0.0
  %3731 = vmatprep.subr.mxu0 0.0
  %3732 = vmatpush1.msra.mxu0 0.0
  %3733 = vmatprep.subr.mxu0 0.0
  %3734 = vmatpush1.msra.mxu0 0.0
  %3735 = vmatprep.subr.mxu0 0.0
  %3736 = vmatpush1.msra.mxu0 0.0
  %3737 = vmatprep.subr.mxu0 0.0
  %3738 = vmatpush1.msra.mxu0 0.0
  %3739 = vmatprep.subr.mxu0 0.0
  %3740 = vmatpush1.msra.mxu0 0.0
  %3741 = vmatprep.subr.mxu0 0.0
  %3742 = vmatpush1.msra.mxu0 0.0
  %3743 = vmatprep.subr.mxu0 0.0
  %3744 = vmatpush1.msra.mxu0 0.0
  %3745 = vmatprep.subr.mxu0 0.0
  %3746 = vmatpush1.msra.mxu0 0.0
  %3747 = vmatprep.subr.mxu0 0.0
  %3748 = vmatpush1.msra.mxu0 0.0
  %3749 = vmatprep.subr.mxu0 0.0
  %3750 = vmatpush1.msra.mxu0 %v3725
  %3751 = vmatprep.subr.mxu0 0.0
  %3752 = vmatpush1.msra.mxu0 %v3528
  %3753 = vmatprep.subr.mxu0 0.0
  %3754 = vmatpush1.msra.mxu0 %v3527
  %3755 = vmatprep.subr.mxu0 0.0
  %3756 = vmatpush1.msra.mxu0 %v3526
  %3757 = vmatprep.subr.mxu0 0.0
  %3758 = vmatpush1.msra.mxu0 %v3525
  %3759 = vmatprep.subr.mxu0 0.0
  %3760 = vmatpush2.msra.mxu0 0.0
  %3761 = vmatprep.subr.mxu0 0.0
  %3762 = vmatpush2.msra.mxu0 0.0
  %3763 = vmatprep.subr.mxu0 0.0
  %3764 = vmatpush2.msra.mxu0 0.0
  %3765 = vmatprep.subr.mxu0 0.0
  %3766 = vmatpush2.msra.mxu0 0.0
  %3767 = vmatprep.subr.mxu0 0.0
  %3768 = vmatpush2.msra.mxu0 0.0
  %3769 = vmatprep.subr.mxu0 0.0
  %3770 = vmatpush2.msra.mxu0 0.0
  %3771 = vmatprep.subr.mxu0 0.0
  %3772 = vmatpush2.msra.mxu0 0.0
  %3773 = vmatprep.subr.mxu0 0.0
  %3774 = vmatpush2.msra.mxu0 0.0
  %3775 = vmatprep.subr.mxu0 0.0
  %3776 = vmatpush2.msra.mxu0 0.0
  %3777 = vmatprep.subr.mxu0 0.0
  %3778 = vmatpush2.msra.mxu0 0.0
  %3779 = vmatprep.subr.mxu0 0.0
  %3780 = vmatpush2.msra.mxu0 0.0
  %3781 = vmatprep.subr.mxu0 0.0
  %3782 = vmatpush2.msra.mxu0 0.0
  %3783 = vmatprep.subr.mxu0 0.0
  %3784 = vmatpush2.msra.mxu0 0.0
  %3785 = vmatprep.subr.mxu0 0.0
  %3786 = vmatpush2.msra.mxu0 0.0
  %3787 = vmatprep.subr.mxu0 0.0
  %3788 = vmatpush2.msra.mxu0 0.0
  %3789 = vmatprep.subr.mxu0 0.0
  %3790 = vmatpush2.msra.mxu0 0.0
  %3791 = vmatprep.mubr.f32.mxu0 0.0
  %3792 = vmatmul.mubr.f32.gmra.mxu0 %v3532
  %v3793 = vpop.f32.mrf.mxu0
  %v3794 = vadd.f32 0.0, %v3793
  %v3795 = vpop.f32.mrf.mxu0
  %3796 = vmatprep.mubr.f32.mxu0 0.0
  %3797 = vmatmul.mubr.f32.gmra.mxu0 %v3535
  %v3798 = vpop.f32.mrf.mxu0
  %v3799 = vadd.f32 0.0, %v3798
  %v3800 = vpop.f32.mrf.mxu0
  %3801 = vmatprep.mubr.f32.mxu0 0.0
  %3802 = vmatmul.mubr.f32.gmra.mxu0 %v3538
  %v3803 = vpop.f32.mrf.mxu0
  %v3804 = vadd.f32 0.0, %v3803
  %v3805 = vpop.f32.mrf.mxu0
  %3806 = vmatprep.mubr.f32.mxu0 0.0
  %3807 = vmatmul.mubr.f32.gmra.mxu0 %v3541
  %v3808 = vpop.f32.mrf.mxu0
  %v3809 = vadd.f32 0.0, %v3808
  %v3810 = vpop.f32.mrf.mxu0
  %3811 = vmatprep.mubr.f32.mxu0 0.0
  %3812 = vmatmul.mubr.f32.gmra.mxu0 %v3544
  %v3813 = vpop.f32.mrf.mxu0
  %v3814 = vadd.f32 0.0, %v3813
  %v3815 = vpop.f32.mrf.mxu0
  %3816 = vmatprep.mubr.f32.mxu0 0.0
  %3817 = vmatmul.mubr.f32.gmra.mxu0 %v3547
  %v3818 = vpop.f32.mrf.mxu0
  %v3819 = vadd.f32 0.0, %v3818
  %v3820 = vpop.f32.mrf.mxu0
  %3821 = vmatprep.mubr.f32.mxu0 0.0
  %3822 = vmatmul.mubr.f32.gmra.mxu0 %v3550
  %v3823 = vpop.f32.mrf.mxu0
  %v3824 = vadd.f32 0.0, %v3823
  %v3825 = vpop.f32.mrf.mxu0
  %3826 = vmatprep.mubr.f32.mxu0 0.0
  %3827 = vmatmul.mubr.f32.gmra.mxu0 %v3553
  %v3828 = vpop.f32.mrf.mxu0
  %v3829 = vadd.f32 0.0, %v3828
  %v3830 = vpop.f32.mrf.mxu0
  %3831 = vmatprep.mubr.f32.mxu0 0.0
  %3832 = vmatmul.mubr.f32.gmra.mxu0 %v3556
  %v3833 = vpop.f32.mrf.mxu0
  %v3834 = vadd.f32 0.0, %v3833
  %v3835 = vpop.f32.mrf.mxu0
  %3836 = vmatprep.mubr.f32.mxu0 0.0
  %3837 = vmatmul.mubr.f32.gmra.mxu0 %v3559
  %v3838 = vpop.f32.mrf.mxu0
  %v3839 = vadd.f32 0.0, %v3838
  %v3840 = vpop.f32.mrf.mxu0
  %3841 = vmatprep.mubr.f32.mxu0 0.0
  %3842 = vmatmul.mubr.f32.gmra.mxu0 %v3562
  %v3843 = vpop.f32.mrf.mxu0
  %v3844 = vadd.f32 0.0, %v3843
  %v3845 = vpop.f32.mrf.mxu0
  %3846 = vmatprep.mubr.f32.mxu0 0.0
  %3847 = vmatmul.mubr.f32.gmra.mxu0 %v3565
  %v3848 = vpop.f32.mrf.mxu0
  %v3849 = vadd.f32 0.0, %v3848
  %v3850 = vpop.f32.mrf.mxu0
  %3851 = vmatprep.mubr.f32.mxu0 0.0
  %3852 = vmatmul.mubr.f32.gmra.mxu0 %v3568
  %v3853 = vpop.f32.mrf.mxu0
  %v3854 = vadd.f32 0.0, %v3853
  %v3855 = vpop.f32.mrf.mxu0
  %3856 = vmatprep.mubr.f32.mxu0 0.0
  %3857 = vmatmul.mubr.f32.gmra.mxu0 %v3571
  %v3858 = vpop.f32.mrf.mxu0
  %v3859 = vadd.f32 0.0, %v3858
  %v3860 = vpop.f32.mrf.mxu0
  %3861 = vmatprep.mubr.f32.mxu0 0.0
  %3862 = vmatmul.mubr.f32.gmra.mxu0 %v3574
  %v3863 = vpop.f32.mrf.mxu0
  %v3864 = vadd.f32 0.0, %v3863
  %v3865 = vpop.f32.mrf.mxu0
  %3866 = vmatprep.mubr.f32.mxu0 0.0
  %3867 = vmatmul.mubr.f32.gmra.mxu0 %v3577
  %v3868 = vpop.f32.mrf.mxu0
  %v3869 = vadd.f32 0.0, %v3868
  %v3870 = vpop.f32.mrf.mxu0
  %3871 = vmatprep.mubr.f32.mxu0 0.0
  %3872 = vmatmul.mubr.f32.gmra.mxu0 %v3580
  %v3873 = vpop.f32.mrf.mxu0
  %v3874 = vadd.f32 0.0, %v3873
  %v3875 = vpop.f32.mrf.mxu0
  %3876 = vmatprep.mubr.f32.mxu0 0.0
  %3877 = vmatmul.mubr.f32.gmra.mxu0 %v3583
  %v3878 = vpop.f32.mrf.mxu0
  %v3879 = vadd.f32 0.0, %v3878
  %v3880 = vpop.f32.mrf.mxu0
  %3881 = vmatprep.mubr.f32.mxu0 0.0
  %3882 = vmatmul.mubr.f32.gmra.mxu0 %v3586
  %v3883 = vpop.f32.mrf.mxu0
  %v3884 = vadd.f32 0.0, %v3883
  %v3885 = vpop.f32.mrf.mxu0
  %3886 = vmatprep.mubr.f32.mxu0 0.0
  %3887 = vmatmul.mubr.f32.gmra.mxu0 %v3589
  %v3888 = vpop.f32.mrf.mxu0
  %v3889 = vadd.f32 0.0, %v3888
  %v3890 = vpop.f32.mrf.mxu0
  %3891 = vmatprep.mubr.f32.mxu0 0.0
  %3892 = vmatmul.mubr.f32.gmra.mxu0 %v3592
  %v3893 = vpop.f32.mrf.mxu0
  %v3894 = vadd.f32 0.0, %v3893
  %v3895 = vpop.f32.mrf.mxu0
  %3896 = vmatprep.mubr.f32.mxu0 0.0
  %3897 = vmatmul.mubr.f32.gmra.mxu0 %v3595
  %v3898 = vpop.f32.mrf.mxu0
  %v3899 = vadd.f32 0.0, %v3898
  %v3900 = vpop.f32.mrf.mxu0
  %3901 = vmatprep.mubr.f32.mxu0 0.0
  %3902 = vmatmul.mubr.f32.gmra.mxu0 %v3598
  %v3903 = vpop.f32.mrf.mxu0
  %v3904 = vadd.f32 0.0, %v3903
  %v3905 = vpop.f32.mrf.mxu0
  %3906 = vmatprep.mubr.f32.mxu0 0.0
  %3907 = vmatmul.mubr.f32.gmra.mxu0 %v3601
  %v3908 = vpop.f32.mrf.mxu0
  %v3909 = vadd.f32 0.0, %v3908
  %v3910 = vpop.f32.mrf.mxu0
  %3911 = vmatprep.mubr.f32.mxu0 0.0
  %3912 = vmatmul.mubr.f32.gmra.mxu0 %v3604
  %v3913 = vpop.f32.mrf.mxu0
  %v3914 = vadd.f32 0.0, %v3913
  %v3915 = vpop.f32.mrf.mxu0
  %3916 = vmatprep.mubr.f32.mxu0 0.0
  %3917 = vmatmul.mubr.f32.gmra.mxu0 %v3607
  %v3918 = vpop.f32.mrf.mxu0
  %v3919 = vadd.f32 0.0, %v3918
  %v3920 = vpop.f32.mrf.mxu0
  %3921 = vmatprep.mubr.f32.mxu0 0.0
  %3922 = vmatmul.mubr.f32.gmra.mxu0 %v3610
  %v3923 = vpop.f32.mrf.mxu0
  %v3924 = vadd.f32 0.0, %v3923
  %v3925 = vpop.f32.mrf.mxu0
  %3926 = vmatprep.mubr.f32.mxu0 0.0
  %3927 = vmatmul.mubr.f32.gmra.mxu0 %v3613
  %v3928 = vpop.f32.mrf.mxu0
  %v3929 = vadd.f32 0.0, %v3928
  %v3930 = vpop.f32.mrf.mxu0
  %3931 = vmatprep.mubr.f32.mxu0 0.0
  %3932 = vmatmul.mubr.f32.gmra.mxu0 %v3616
  %v3933 = vpop.f32.mrf.mxu0
  %v3934 = vadd.f32 0.0, %v3933
  %v3935 = vpop.f32.mrf.mxu0
  %3936 = vmatprep.mubr.f32.mxu0 0.0
  %3937 = vmatmul.mubr.f32.gmra.mxu0 %v3619
  %v3938 = vpop.f32.mrf.mxu0
  %v3939 = vadd.f32 0.0, %v3938
  %v3940 = vpop.f32.mrf.mxu0
  %3941 = vmatprep.mubr.f32.mxu0 0.0
  %3942 = vmatmul.mubr.f32.gmra.mxu0 %v3622
  %v3943 = vpop.f32.mrf.mxu0
  %v3944 = vadd.f32 0.0, %v3943
  %v3945 = vpop.f32.mrf.mxu0
  %3946 = vmatprep.mubr.f32.mxu0 0.0
  %3947 = vmatmul.mubr.f32.gmra.mxu0 %v3625
  %v3948 = vpop.f32.mrf.mxu0
  %v3949 = vadd.f32 0.0, %v3948
  %v3950 = vpop.f32.mrf.mxu0
  %3951 = vmatprep.mubr.f32.mxu0 0.0
  %3952 = vmatmul.mubr.f32.gmra.mxu0 %v3628
  %v3953 = vpop.f32.mrf.mxu0
  %v3954 = vadd.f32 0.0, %v3953
  %v3955 = vpop.f32.mrf.mxu0
  %3956 = vmatprep.mubr.f32.mxu0 0.0
  %3957 = vmatmul.mubr.f32.gmra.mxu0 %v3631
  %v3958 = vpop.f32.mrf.mxu0
  %v3959 = vadd.f32 0.0, %v3958
  %v3960 = vpop.f32.mrf.mxu0
  %3961 = vmatprep.mubr.f32.mxu0 0.0
  %3962 = vmatmul.mubr.f32.gmra.mxu0 %v3634
  %v3963 = vpop.f32.mrf.mxu0
  %v3964 = vadd.f32 0.0, %v3963
  %v3965 = vpop.f32.mrf.mxu0
  %3966 = vmatprep.mubr.f32.mxu0 0.0
  %3967 = vmatmul.mubr.f32.gmra.mxu0 %v3637
  %v3968 = vpop.f32.mrf.mxu0
  %v3969 = vadd.f32 0.0, %v3968
  %v3970 = vpop.f32.mrf.mxu0
  %3971 = vmatprep.mubr.f32.mxu0 0.0
  %3972 = vmatmul.mubr.f32.gmra.mxu0 %v3640
  %v3973 = vpop.f32.mrf.mxu0
  %v3974 = vadd.f32 0.0, %v3973
  %v3975 = vpop.f32.mrf.mxu0
  %3976 = vmatprep.mubr.f32.mxu0 0.0
  %3977 = vmatmul.mubr.f32.gmra.mxu0 %v3643
  %v3978 = vpop.f32.mrf.mxu0
  %v3979 = vadd.f32 0.0, %v3978
  %v3980 = vpop.f32.mrf.mxu0
  %3981 = vmatprep.mubr.f32.mxu0 0.0
  %3982 = vmatmul.mubr.f32.gmra.mxu0 %v3646
  %v3983 = vpop.f32.mrf.mxu0
  %v3984 = vadd.f32 0.0, %v3983
  %v3985 = vpop.f32.mrf.mxu0
  %3986 = vmatprep.mubr.f32.mxu0 0.0
  %3987 = vmatmul.mubr.f32.gmra.mxu0 %v3649
  %v3988 = vpop.f32.mrf.mxu0
  %v3989 = vadd.f32 0.0, %v3988
  %v3990 = vpop.f32.mrf.mxu0
  %3991 = vmatprep.mubr.f32.mxu0 0.0
  %3992 = vmatmul.mubr.f32.gmra.mxu0 %v3652
  %v3993 = vpop.f32.mrf.mxu0
  %v3994 = vadd.f32 0.0, %v3993
  %v3995 = vpop.f32.mrf.mxu0
  %3996 = vmatprep.mubr.f32.mxu0 0.0
  %3997 = vmatmul.mubr.f32.gmra.mxu0 %v3655
  %v3998 = vpop.f32.mrf.mxu0
  %v3999 = vadd.f32 0.0, %v3998
  %v4000 = vpop.f32.mrf.mxu0
  %4001 = vmatprep.mubr.f32.mxu0 0.0
  %4002 = vmatmul.mubr.f32.gmra.mxu0 %v3658
  %v4003 = vpop.f32.mrf.mxu0
  %v4004 = vadd.f32 0.0, %v4003
  %v4005 = vpop.f32.mrf.mxu0
  %4006 = vmatprep.mubr.f32.mxu0 0.0
  %4007 = vmatmul.mubr.f32.gmra.mxu0 %v3661
  %v4008 = vpop.f32.mrf.mxu0
  %v4009 = vadd.f32 0.0, %v4008
  %v4010 = vpop.f32.mrf.mxu0
  %4011 = vmatprep.mubr.f32.mxu0 0.0
  %4012 = vmatmul.mubr.f32.gmra.mxu0 %v3664
  %v4013 = vpop.f32.mrf.mxu0
  %v4014 = vadd.f32 0.0, %v4013
  %v4015 = vpop.f32.mrf.mxu0
  %4016 = vmatprep.mubr.f32.mxu0 0.0
  %4017 = vmatmul.mubr.f32.gmra.mxu0 %v3667
  %v4018 = vpop.f32.mrf.mxu0
  %v4019 = vadd.f32 0.0, %v4018
  %v4020 = vpop.f32.mrf.mxu0
  %4021 = vmatprep.mubr.f32.mxu0 0.0
  %4022 = vmatmul.mubr.f32.gmra.mxu0 %v3670
  %v4023 = vpop.f32.mrf.mxu0
  %v4024 = vadd.f32 0.0, %v4023
  %v4025 = vpop.f32.mrf.mxu0
  %4026 = vmatprep.mubr.f32.mxu0 0.0
  %4027 = vmatmul.mubr.f32.gmra.mxu0 %v3673
  %v4028 = vpop.f32.mrf.mxu0
  %v4029 = vadd.f32 0.0, %v4028
  %v4030 = vpop.f32.mrf.mxu0
  %4031 = vmatprep.mubr.f32.mxu0 0.0
  %4032 = vmatmul.mubr.f32.gmra.mxu0 %v3676
  %v4033 = vpop.f32.mrf.mxu0
  %v4034 = vadd.f32 0.0, %v4033
  %v4035 = vpop.f32.mrf.mxu0
  %4036 = vmatprep.mubr.f32.mxu0 0.0
  %4037 = vmatmul.mubr.f32.gmra.mxu0 %v3679
  %v4038 = vpop.f32.mrf.mxu0
  %v4039 = vadd.f32 0.0, %v4038
  %v4040 = vpop.f32.mrf.mxu0
  %4041 = vmatprep.mubr.f32.mxu0 0.0
  %4042 = vmatmul.mubr.f32.gmra.mxu0 %v3682
  %v4043 = vpop.f32.mrf.mxu0
  %v4044 = vadd.f32 0.0, %v4043
  %v4045 = vpop.f32.mrf.mxu0
  %4046 = vmatprep.mubr.f32.mxu0 0.0
  %4047 = vmatmul.mubr.f32.gmra.mxu0 %v3685
  %v4048 = vpop.f32.mrf.mxu0
  %v4049 = vadd.f32 0.0, %v4048
  %v4050 = vpop.f32.mrf.mxu0
  %4051 = vmatprep.mubr.f32.mxu0 0.0
  %4052 = vmatmul.mubr.f32.gmra.mxu0 %v3688
  %v4053 = vpop.f32.mrf.mxu0
  %v4054 = vadd.f32 0.0, %v4053
  %v4055 = vpop.f32.mrf.mxu0
  %4056 = vmatprep.mubr.f32.mxu0 0.0
  %4057 = vmatmul.mubr.f32.gmra.mxu0 %v3691
  %v4058 = vpop.f32.mrf.mxu0
  %v4059 = vadd.f32 0.0, %v4058
  %v4060 = vpop.f32.mrf.mxu0
  %4061 = vmatprep.mubr.f32.mxu0 0.0
  %4062 = vmatmul.mubr.f32.gmra.mxu0 %v3694
  %v4063 = vpop.f32.mrf.mxu0
  %v4064 = vadd.f32 0.0, %v4063
  %v4065 = vpop.f32.mrf.mxu0
  %4066 = vmatprep.mubr.f32.mxu0 0.0
  %4067 = vmatmul.mubr.f32.gmra.mxu0 %v3697
  %v4068 = vpop.f32.mrf.mxu0
  %v4069 = vadd.f32 0.0, %v4068
  %v4070 = vpop.f32.mrf.mxu0
  %4071 = vmatprep.mubr.f32.mxu0 0.0
  %4072 = vmatmul.mubr.f32.gmra.mxu0 %v3700
  %v4073 = vpop.f32.mrf.mxu0
  %v4074 = vadd.f32 0.0, %v4073
  %v4075 = vpop.f32.mrf.mxu0
  %4076 = vmatprep.mubr.f32.mxu0 0.0
  %4077 = vmatmul.mubr.f32.gmra.mxu0 %v3703
  %v4078 = vpop.f32.mrf.mxu0
  %v4079 = vadd.f32 0.0, %v4078
  %v4080 = vpop.f32.mrf.mxu0
  %4081 = vmatprep.mubr.f32.mxu0 0.0
  %4082 = vmatmul.mubr.f32.gmra.mxu0 %v3706
  %v4083 = vpop.f32.mrf.mxu0
  %v4084 = vadd.f32 0.0, %v4083
  %v4085 = vpop.f32.mrf.mxu0
  %4086 = vmatprep.mubr.f32.mxu0 0.0
  %4087 = vmatmul.mubr.f32.gmra.mxu0 %v3709
  %v4088 = vpop.f32.mrf.mxu0
  %v4089 = vadd.f32 0.0, %v4088
  %v4090 = vpop.f32.mrf.mxu0
  %4091 = vmatprep.mubr.f32.mxu0 0.0
  %4092 = vmatmul.mubr.f32.gmra.mxu0 %v3712
  %v4093 = vpop.f32.mrf.mxu0
  %v4094 = vadd.f32 0.0, %v4093
  %v4095 = vpop.f32.mrf.mxu0
  %4096 = vmatprep.mubr.f32.mxu0 0.0
  %4097 = vmatmul.mubr.f32.gmra.mxu0 %v3715
  %v4098 = vpop.f32.mrf.mxu0
  %v4099 = vadd.f32 0.0, %v4098
  %v4100 = vpop.f32.mrf.mxu0
  %4101 = vmatprep.mubr.f32.mxu0 0.0
  %4102 = vmatmul.mubr.f32.gmra.mxu0 %v3718
  %v4103 = vpop.f32.mrf.mxu0
  %v4104 = vadd.f32 0.0, %v4103
  %v4105 = vpop.f32.mrf.mxu0
  %4106 = vmatprep.mubr.f32.mxu0 0.0
  %4107 = vmatmul.mubr.f32.gmra.mxu0 %v3721
  %v4108 = vpop.f32.mrf.mxu0
  %v4109 = vadd.f32 0.0, %v4108
  %v4110 = vpop.f32.mrf.mxu0
  %4111 = vdwg.mxu0
  %v4112 = vld [vmem:[%s2] sm:$0x1]
  %v4113 = vld [vmem:[%s3] sm:$0x1]
  %vm4114 = vcmask 64512
  %v4115 = vsel %vm4114, %v3794, 0.0
  %v4116 = vsel %vm4114, %v3799, 0.0
  %v4117 = vadd.f32 %v4115, %v4116
  %v4118 = vsel %vm4114, %v3804, 0.0
  %v4119 = vadd.f32 %v4117, %v4118
  %v4120 = vsel %vm4114, %v3809, 0.0
  %v4121 = vadd.f32 %v4119, %v4120
  %v4122 = vsel %vm4114, %v3814, 0.0
  %v4123 = vadd.f32 %v4121, %v4122
  %v4124 = vsel %vm4114, %v3819, 0.0
  %v4125 = vadd.f32 %v4123, %v4124
  %v4126 = vsel %vm4114, %v3824, 0.0
  %v4127 = vadd.f32 %v4125, %v4126
  %v4128 = vsel %vm4114, %v3829, 0.0
  %v4129 = vadd.f32 %v4127, %v4128
  %v4130 = vsel %vm4114, %v3834, 0.0
  %v4131 = vadd.f32 %v4129, %v4130
  %v4132 = vsel %vm4114, %v3839, 0.0
  %v4133 = vadd.f32 %v4131, %v4132
  %v4134 = vsel %vm4114, %v3844, 0.0
  %v4135 = vadd.f32 %v4133, %v4134
  %v4136 = vsel %vm4114, %v3849, 0.0
  %v4137 = vadd.f32 %v4135, %v4136
  %v4138 = vsel %vm4114, %v3854, 0.0
  %v4139 = vadd.f32 %v4137, %v4138
  %v4140 = vsel %vm4114, %v3859, 0.0
  %v4141 = vadd.f32 %v4139, %v4140
  %v4142 = vsel %vm4114, %v3864, 0.0
  %v4143 = vadd.f32 %v4141, %v4142
  %v4144 = vsel %vm4114, %v3869, 0.0
  %v4145 = vadd.f32 %v4143, %v4144
  %v4146 = vsel %vm4114, %v3874, 0.0
  %v4147 = vadd.f32 %v4145, %v4146
  %v4148 = vsel %vm4114, %v3879, 0.0
  %v4149 = vadd.f32 %v4147, %v4148
  %v4150 = vsel %vm4114, %v3884, 0.0
  %v4151 = vadd.f32 %v4149, %v4150
  %v4152 = vsel %vm4114, %v3889, 0.0
  %v4153 = vadd.f32 %v4151, %v4152
  %v4154 = vsel %vm4114, %v3894, 0.0
  %v4155 = vadd.f32 %v4153, %v4154
  %v4156 = vsel %vm4114, %v3899, 0.0
  %v4157 = vadd.f32 %v4155, %v4156
  %v4158 = vsel %vm4114, %v3904, 0.0
  %v4159 = vadd.f32 %v4157, %v4158
  %v4160 = vsel %vm4114, %v3909, 0.0
  %v4161 = vadd.f32 %v4159, %v4160
  %v4162 = vsel %vm4114, %v3914, 0.0
  %v4163 = vadd.f32 %v4161, %v4162
  %v4164 = vsel %vm4114, %v3919, 0.0
  %v4165 = vadd.f32 %v4163, %v4164
  %v4166 = vsel %vm4114, %v3924, 0.0
  %v4167 = vadd.f32 %v4165, %v4166
  %v4168 = vsel %vm4114, %v3929, 0.0
  %v4169 = vadd.f32 %v4167, %v4168
  %v4170 = vsel %vm4114, %v3934, 0.0
  %v4171 = vadd.f32 %v4169, %v4170
  %v4172 = vsel %vm4114, %v3939, 0.0
  %v4173 = vadd.f32 %v4171, %v4172
  %v4174 = vsel %vm4114, %v3944, 0.0
  %v4175 = vadd.f32 %v4173, %v4174
  %v4176 = vsel %vm4114, %v3949, 0.0
  %v4177 = vadd.f32 %v4175, %v4176
  %v4178 = vsel %vm4114, %v3954, 0.0
  %v4179 = vadd.f32 %v4177, %v4178
  %v4180 = vsel %vm4114, %v3959, 0.0
  %v4181 = vadd.f32 %v4179, %v4180
  %v4182 = vsel %vm4114, %v3964, 0.0
  %v4183 = vadd.f32 %v4181, %v4182
  %v4184 = vsel %vm4114, %v3969, 0.0
  %v4185 = vadd.f32 %v4183, %v4184
  %v4186 = vsel %vm4114, %v3974, 0.0
  %v4187 = vadd.f32 %v4185, %v4186
  %v4188 = vsel %vm4114, %v3979, 0.0
  %v4189 = vadd.f32 %v4187, %v4188
  %v4190 = vsel %vm4114, %v3984, 0.0
  %v4191 = vadd.f32 %v4189, %v4190
  %v4192 = vsel %vm4114, %v3989, 0.0
  %v4193 = vadd.f32 %v4191, %v4192
  %v4194 = vsel %vm4114, %v3994, 0.0
  %v4195 = vadd.f32 %v4193, %v4194
  %v4196 = vsel %vm4114, %v3999, 0.0
  %v4197 = vadd.f32 %v4195, %v4196
  %v4198 = vsel %vm4114, %v4004, 0.0
  %v4199 = vadd.f32 %v4197, %v4198
  %v4200 = vsel %vm4114, %v4009, 0.0
  %v4201 = vadd.f32 %v4199, %v4200
  %v4202 = vsel %vm4114, %v4014, 0.0
  %v4203 = vadd.f32 %v4201, %v4202
  %v4204 = vsel %vm4114, %v4019, 0.0
  %v4205 = vadd.f32 %v4203, %v4204
  %v4206 = vsel %vm4114, %v4024, 0.0
  %v4207 = vadd.f32 %v4205, %v4206
  %v4208 = vsel %vm4114, %v4029, 0.0
  %v4209 = vadd.f32 %v4207, %v4208
  %v4210 = vsel %vm4114, %v4034, 0.0
  %v4211 = vadd.f32 %v4209, %v4210
  %v4212 = vsel %vm4114, %v4039, 0.0
  %v4213 = vadd.f32 %v4211, %v4212
  %v4214 = vsel %vm4114, %v4044, 0.0
  %v4215 = vadd.f32 %v4213, %v4214
  %v4216 = vsel %vm4114, %v4049, 0.0
  %v4217 = vadd.f32 %v4215, %v4216
  %v4218 = vsel %vm4114, %v4054, 0.0
  %v4219 = vadd.f32 %v4217, %v4218
  %v4220 = vsel %vm4114, %v4059, 0.0
  %v4221 = vadd.f32 %v4219, %v4220
  %v4222 = vsel %vm4114, %v4064, 0.0
  %v4223 = vadd.f32 %v4221, %v4222
  %v4224 = vsel %vm4114, %v4069, 0.0
  %v4225 = vadd.f32 %v4223, %v4224
  %v4226 = vsel %vm4114, %v4074, 0.0
  %v4227 = vadd.f32 %v4225, %v4226
  %v4228 = vsel %vm4114, %v4079, 0.0
  %v4229 = vadd.f32 %v4227, %v4228
  %v4230 = vsel %vm4114, %v4084, 0.0
  %v4231 = vadd.f32 %v4229, %v4230
  %v4232 = vsel %vm4114, %v4089, 0.0
  %v4233 = vadd.f32 %v4231, %v4232
  %v4234 = vsel %vm4114, %v4094, 0.0
  %v4235 = vadd.f32 %v4233, %v4234
  %v4236 = vsel %vm4114, %v4099, 0.0
  %v4237 = vadd.f32 %v4235, %v4236
  %v4238 = vsel %vm4114, %v4104, 0.0
  %v4239 = vadd.f32 %v4237, %v4238
  %v4240 = vsel %vm4114, %v4109, 0.0
  %v4241 = vadd.f32 %v4239, %v4240
  %v4242 = vrot.slane %v4241, 4
  %v4243 = vadd.f32 %v4241, %v4242
  %v4244 = vrot.slane %v4243, 2
  %v4245 = vadd.f32 %v4243, %v4244
  %v4246 = vrot.slane %v4245, 1
  %v4247 = vadd.f32 %v4245, %v4246
  %v4248 = vrcp.pop 512.0
  %v4249 = vmul.f32 %v4247, %v4248
  %v4250 = vsub.f32 %v3794, %v4249
  %v4251 = vsub.f32 %v3799, %v4249
  %v4252 = vsub.f32 %v3804, %v4249
  %v4253 = vsub.f32 %v3809, %v4249
  %v4254 = vsub.f32 %v3814, %v4249
  %v4255 = vsub.f32 %v3819, %v4249
  %v4256 = vsub.f32 %v3824, %v4249
  %v4257 = vsub.f32 %v3829, %v4249
  %v4258 = vsub.f32 %v3834, %v4249
  %v4259 = vsub.f32 %v3839, %v4249
  %v4260 = vsub.f32 %v3844, %v4249
  %v4261 = vsub.f32 %v3849, %v4249
  %v4262 = vsub.f32 %v3854, %v4249
  %v4263 = vsub.f32 %v3859, %v4249
  %v4264 = vsub.f32 %v3864, %v4249
  %v4265 = vsub.f32 %v3869, %v4249
  %v4266 = vsub.f32 %v3874, %v4249
  %v4267 = vsub.f32 %v3879, %v4249
  %v4268 = vsub.f32 %v3884, %v4249
  %v4269 = vsub.f32 %v3889, %v4249
  %v4270 = vsub.f32 %v3894, %v4249
  %v4271 = vsub.f32 %v3899, %v4249
  %v4272 = vsub.f32 %v3904, %v4249
  %v4273 = vsub.f32 %v3909, %v4249
  %v4274 = vsub.f32 %v3914, %v4249
  %v4275 = vsub.f32 %v3919, %v4249
  %v4276 = vsub.f32 %v3924, %v4249
  %v4277 = vsub.f32 %v3929, %v4249
  %v4278 = vsub.f32 %v3934, %v4249
  %v4279 = vsub.f32 %v3939, %v4249
  %v4280 = vsub.f32 %v3944, %v4249
  %v4281 = vsub.f32 %v3949, %v4249
  %v4282 = vsub.f32 %v3954, %v4249
  %v4283 = vsub.f32 %v3959, %v4249
  %v4284 = vsub.f32 %v3964, %v4249
  %v4285 = vsub.f32 %v3969, %v4249
  %v4286 = vsub.f32 %v3974, %v4249
  %v4287 = vsub.f32 %v3979, %v4249
  %v4288 = vsub.f32 %v3984, %v4249
  %v4289 = vsub.f32 %v3989, %v4249
  %v4290 = vsub.f32 %v3994, %v4249
  %v4291 = vsub.f32 %v3999, %v4249
  %v4292 = vsub.f32 %v4004, %v4249
  %v4293 = vsub.f32 %v4009, %v4249
  %v4294 = vsub.f32 %v4014, %v4249
  %v4295 = vsub.f32 %v4019, %v4249
  %v4296 = vsub.f32 %v4024, %v4249
  %v4297 = vsub.f32 %v4029, %v4249
  %v4298 = vsub.f32 %v4034, %v4249
  %v4299 = vsub.f32 %v4039, %v4249
  %v4300 = vsub.f32 %v4044, %v4249
  %v4301 = vsub.f32 %v4049, %v4249
  %v4302 = vsub.f32 %v4054, %v4249
  %v4303 = vsub.f32 %v4059, %v4249
  %v4304 = vsub.f32 %v4064, %v4249
  %v4305 = vsub.f32 %v4069, %v4249
  %v4306 = vsub.f32 %v4074, %v4249
  %v4307 = vsub.f32 %v4079, %v4249
  %v4308 = vsub.f32 %v4084, %v4249
  %v4309 = vsub.f32 %v4089, %v4249
  %v4310 = vsub.f32 %v4094, %v4249
  %v4311 = vsub.f32 %v4099, %v4249
  %v4312 = vsub.f32 %v4104, %v4249
  %v4313 = vsub.f32 %v4109, %v4249
  %v4314 = vmul.f32 %v4250, %v4250
  %v4315 = vmul.f32 %v4251, %v4251
  %v4316 = vmul.f32 %v4252, %v4252
  %v4317 = vmul.f32 %v4253, %v4253
  %v4318 = vmul.f32 %v4254, %v4254
  %v4319 = vmul.f32 %v4255, %v4255
  %v4320 = vmul.f32 %v4256, %v4256
  %v4321 = vmul.f32 %v4257, %v4257
  %v4322 = vmul.f32 %v4258, %v4258
  %v4323 = vmul.f32 %v4259, %v4259
  %v4324 = vmul.f32 %v4260, %v4260
  %v4325 = vmul.f32 %v4261, %v4261
  %v4326 = vmul.f32 %v4262, %v4262
  %v4327 = vmul.f32 %v4263, %v4263
  %v4328 = vmul.f32 %v4264, %v4264
  %v4329 = vmul.f32 %v4265, %v4265
  %v4330 = vmul.f32 %v4266, %v4266
  %v4331 = vmul.f32 %v4267, %v4267
  %v4332 = vmul.f32 %v4268, %v4268
  %v4333 = vmul.f32 %v4269, %v4269
  %v4334 = vmul.f32 %v4270, %v4270
  %v4335 = vmul.f32 %v4271, %v4271
  %v4336 = vmul.f32 %v4272, %v4272
  %v4337 = vmul.f32 %v4273, %v4273
  %v4338 = vmul.f32 %v4274, %v4274
  %v4339 = vmul.f32 %v4275, %v4275
  %v4340 = vmul.f32 %v4276, %v4276
  %v4341 = vmul.f32 %v4277, %v4277
  %v4342 = vmul.f32 %v4278, %v4278
  %v4343 = vmul.f32 %v4279, %v4279
  %v4344 = vmul.f32 %v4280, %v4280
  %v4345 = vmul.f32 %v4281, %v4281
  %v4346 = vmul.f32 %v4282, %v4282
  %v4347 = vmul.f32 %v4283, %v4283
  %v4348 = vmul.f32 %v4284, %v4284
  %v4349 = vmul.f32 %v4285, %v4285
  %v4350 = vmul.f32 %v4286, %v4286
  %v4351 = vmul.f32 %v4287, %v4287
  %v4352 = vmul.f32 %v4288, %v4288
  %v4353 = vmul.f32 %v4289, %v4289
  %v4354 = vmul.f32 %v4290, %v4290
  %v4355 = vmul.f32 %v4291, %v4291
  %v4356 = vmul.f32 %v4292, %v4292
  %v4357 = vmul.f32 %v4293, %v4293
  %v4358 = vmul.f32 %v4294, %v4294
  %v4359 = vmul.f32 %v4295, %v4295
  %v4360 = vmul.f32 %v4296, %v4296
  %v4361 = vmul.f32 %v4297, %v4297
  %v4362 = vmul.f32 %v4298, %v4298
  %v4363 = vmul.f32 %v4299, %v4299
  %v4364 = vmul.f32 %v4300, %v4300
  %v4365 = vmul.f32 %v4301, %v4301
  %v4366 = vmul.f32 %v4302, %v4302
  %v4367 = vmul.f32 %v4303, %v4303
  %v4368 = vmul.f32 %v4304, %v4304
  %v4369 = vmul.f32 %v4305, %v4305
  %v4370 = vmul.f32 %v4306, %v4306
  %v4371 = vmul.f32 %v4307, %v4307
  %v4372 = vmul.f32 %v4308, %v4308
  %v4373 = vmul.f32 %v4309, %v4309
  %v4374 = vmul.f32 %v4310, %v4310
  %v4375 = vmul.f32 %v4311, %v4311
  %v4376 = vmul.f32 %v4312, %v4312
  %v4377 = vmul.f32 %v4313, %v4313
  %v4378 = vsel %vm4114, %v4314, 0.0
  %v4379 = vsel %vm4114, %v4315, 0.0
  %v4380 = vadd.f32 %v4378, %v4379
  %v4381 = vsel %vm4114, %v4316, 0.0
  %v4382 = vadd.f32 %v4380, %v4381
  %v4383 = vsel %vm4114, %v4317, 0.0
  %v4384 = vadd.f32 %v4382, %v4383
  %v4385 = vsel %vm4114, %v4318, 0.0
  %v4386 = vadd.f32 %v4384, %v4385
  %v4387 = vsel %vm4114, %v4319, 0.0
  %v4388 = vadd.f32 %v4386, %v4387
  %v4389 = vsel %vm4114, %v4320, 0.0
  %v4390 = vadd.f32 %v4388, %v4389
  %v4391 = vsel %vm4114, %v4321, 0.0
  %v4392 = vadd.f32 %v4390, %v4391
  %v4393 = vsel %vm4114, %v4322, 0.0
  %v4394 = vadd.f32 %v4392, %v4393
  %v4395 = vsel %vm4114, %v4323, 0.0
  %v4396 = vadd.f32 %v4394, %v4395
  %v4397 = vsel %vm4114, %v4324, 0.0
  %v4398 = vadd.f32 %v4396, %v4397
  %v4399 = vsel %vm4114, %v4325, 0.0
  %v4400 = vadd.f32 %v4398, %v4399
  %v4401 = vsel %vm4114, %v4326, 0.0
  %v4402 = vadd.f32 %v4400, %v4401
  %v4403 = vsel %vm4114, %v4327, 0.0
  %v4404 = vadd.f32 %v4402, %v4403
  %v4405 = vsel %vm4114, %v4328, 0.0
  %v4406 = vadd.f32 %v4404, %v4405
  %v4407 = vsel %vm4114, %v4329, 0.0
  %v4408 = vadd.f32 %v4406, %v4407
  %v4409 = vsel %vm4114, %v4330, 0.0
  %v4410 = vadd.f32 %v4408, %v4409
  %v4411 = vsel %vm4114, %v4331, 0.0
  %v4412 = vadd.f32 %v4410, %v4411
  %v4413 = vsel %vm4114, %v4332, 0.0
  %v4414 = vadd.f32 %v4412, %v4413
  %v4415 = vsel %vm4114, %v4333, 0.0
  %v4416 = vadd.f32 %v4414, %v4415
  %v4417 = vsel %vm4114, %v4334, 0.0
  %v4418 = vadd.f32 %v4416, %v4417
  %v4419 = vsel %vm4114, %v4335, 0.0
  %v4420 = vadd.f32 %v4418, %v4419
  %v4421 = vsel %vm4114, %v4336, 0.0
  %v4422 = vadd.f32 %v4420, %v4421
  %v4423 = vsel %vm4114, %v4337, 0.0
  %v4424 = vadd.f32 %v4422, %v4423
  %v4425 = vsel %vm4114, %v4338, 0.0
  %v4426 = vadd.f32 %v4424, %v4425
  %v4427 = vsel %vm4114, %v4339, 0.0
  %v4428 = vadd.f32 %v4426, %v4427
  %v4429 = vsel %vm4114, %v4340, 0.0
  %v4430 = vadd.f32 %v4428, %v4429
  %v4431 = vsel %vm4114, %v4341, 0.0
  %v4432 = vadd.f32 %v4430, %v4431
  %v4433 = vsel %vm4114, %v4342, 0.0
  %v4434 = vadd.f32 %v4432, %v4433
  %v4435 = vsel %vm4114, %v4343, 0.0
  %v4436 = vadd.f32 %v4434, %v4435
  %v4437 = vsel %vm4114, %v4344, 0.0
  %v4438 = vadd.f32 %v4436, %v4437
  %v4439 = vsel %vm4114, %v4345, 0.0
  %v4440 = vadd.f32 %v4438, %v4439
  %v4441 = vsel %vm4114, %v4346, 0.0
  %v4442 = vadd.f32 %v4440, %v4441
  %v4443 = vsel %vm4114, %v4347, 0.0
  %v4444 = vadd.f32 %v4442, %v4443
  %v4445 = vsel %vm4114, %v4348, 0.0
  %v4446 = vadd.f32 %v4444, %v4445
  %v4447 = vsel %vm4114, %v4349, 0.0
  %v4448 = vadd.f32 %v4446, %v4447
  %v4449 = vsel %vm4114, %v4350, 0.0
  %v4450 = vadd.f32 %v4448, %v4449
  %v4451 = vsel %vm4114, %v4351, 0.0
  %v4452 = vadd.f32 %v4450, %v4451
  %v4453 = vsel %vm4114, %v4352, 0.0
  %v4454 = vadd.f32 %v4452, %v4453
  %v4455 = vsel %vm4114, %v4353, 0.0
  %v4456 = vadd.f32 %v4454, %v4455
  %v4457 = vsel %vm4114, %v4354, 0.0
  %v4458 = vadd.f32 %v4456, %v4457
  %v4459 = vsel %vm4114, %v4355, 0.0
  %v4460 = vadd.f32 %v4458, %v4459
  %v4461 = vsel %vm4114, %v4356, 0.0
  %v4462 = vadd.f32 %v4460, %v4461
  %v4463 = vsel %vm4114, %v4357, 0.0
  %v4464 = vadd.f32 %v4462, %v4463
  %v4465 = vsel %vm4114, %v4358, 0.0
  %v4466 = vadd.f32 %v4464, %v4465
  %v4467 = vsel %vm4114, %v4359, 0.0
  %v4468 = vadd.f32 %v4466, %v4467
  %v4469 = vsel %vm4114, %v4360, 0.0
  %v4470 = vadd.f32 %v4468, %v4469
  %v4471 = vsel %vm4114, %v4361, 0.0
  %v4472 = vadd.f32 %v4470, %v4471
  %v4473 = vsel %vm4114, %v4362, 0.0
  %v4474 = vadd.f32 %v4472, %v4473
  %v4475 = vsel %vm4114, %v4363, 0.0
  %v4476 = vadd.f32 %v4474, %v4475
  %v4477 = vsel %vm4114, %v4364, 0.0
  %v4478 = vadd.f32 %v4476, %v4477
  %v4479 = vsel %vm4114, %v4365, 0.0
  %v4480 = vadd.f32 %v4478, %v4479
  %v4481 = vsel %vm4114, %v4366, 0.0
  %v4482 = vadd.f32 %v4480, %v4481
  %v4483 = vsel %vm4114, %v4367, 0.0
  %v4484 = vadd.f32 %v4482, %v4483
  %v4485 = vsel %vm4114, %v4368, 0.0
  %v4486 = vadd.f32 %v4484, %v4485
  %v4487 = vsel %vm4114, %v4369, 0.0
  %v4488 = vadd.f32 %v4486, %v4487
  %v4489 = vsel %vm4114, %v4370, 0.0
  %v4490 = vadd.f32 %v4488, %v4489
  %v4491 = vsel %vm4114, %v4371, 0.0
  %v4492 = vadd.f32 %v4490, %v4491
  %v4493 = vsel %vm4114, %v4372, 0.0
  %v4494 = vadd.f32 %v4492, %v4493
  %v4495 = vsel %vm4114, %v4373, 0.0
  %v4496 = vadd.f32 %v4494, %v4495
  %v4497 = vsel %vm4114, %v4374, 0.0
  %v4498 = vadd.f32 %v4496, %v4497
  %v4499 = vsel %vm4114, %v4375, 0.0
  %v4500 = vadd.f32 %v4498, %v4499
  %v4501 = vsel %vm4114, %v4376, 0.0
  %v4502 = vadd.f32 %v4500, %v4501
  %v4503 = vsel %vm4114, %v4377, 0.0
  %v4504 = vadd.f32 %v4502, %v4503
  %v4505 = vrot.slane %v4504, 4
  %v4506 = vadd.f32 %v4504, %v4505
  %v4507 = vrot.slane %v4506, 2
  %v4508 = vadd.f32 %v4506, %v4507
  %v4509 = vrot.slane %v4508, 1
  %v4510 = vadd.f32 %v4508, %v4509
  %v4511 = vmul.f32 %v4510, %v4248
  %v4512 = vadd.f32 %v4511, 1e-05
  %v4513 = vrsqrt.pop %v4512
  %v4514 = vmul.f32 %v4250, %v4513
  %v4515 = vmul.f32 %v4251, %v4513
  %v4516 = vmul.f32 %v4252, %v4513
  %v4517 = vmul.f32 %v4253, %v4513
  %v4518 = vmul.f32 %v4254, %v4513
  %v4519 = vmul.f32 %v4255, %v4513
  %v4520 = vmul.f32 %v4256, %v4513
  %v4521 = vmul.f32 %v4257, %v4513
  %v4522 = vmul.f32 %v4258, %v4513
  %v4523 = vmul.f32 %v4259, %v4513
  %v4524 = vmul.f32 %v4260, %v4513
  %v4525 = vmul.f32 %v4261, %v4513
  %v4526 = vmul.f32 %v4262, %v4513
  %v4527 = vmul.f32 %v4263, %v4513
  %v4528 = vmul.f32 %v4264, %v4513
  %v4529 = vmul.f32 %v4265, %v4513
  %v4530 = vmul.f32 %v4266, %v4513
  %v4531 = vmul.f32 %v4267, %v4513
  %v4532 = vmul.f32 %v4268, %v4513
  %v4533 = vmul.f32 %v4269, %v4513
  %v4534 = vmul.f32 %v4270, %v4513
  %v4535 = vmul.f32 %v4271, %v4513
  %v4536 = vmul.f32 %v4272, %v4513
  %v4537 = vmul.f32 %v4273, %v4513
  %v4538 = vmul.f32 %v4274, %v4513
  %v4539 = vmul.f32 %v4275, %v4513
  %v4540 = vmul.f32 %v4276, %v4513
  %v4541 = vmul.f32 %v4277, %v4513
  %v4542 = vmul.f32 %v4278, %v4513
  %v4543 = vmul.f32 %v4279, %v4513
  %v4544 = vmul.f32 %v4280, %v4513
  %v4545 = vmul.f32 %v4281, %v4513
  %v4546 = vmul.f32 %v4282, %v4513
  %v4547 = vmul.f32 %v4283, %v4513
  %v4548 = vmul.f32 %v4284, %v4513
  %v4549 = vmul.f32 %v4285, %v4513
  %v4550 = vmul.f32 %v4286, %v4513
  %v4551 = vmul.f32 %v4287, %v4513
  %v4552 = vmul.f32 %v4288, %v4513
  %v4553 = vmul.f32 %v4289, %v4513
  %v4554 = vmul.f32 %v4290, %v4513
  %v4555 = vmul.f32 %v4291, %v4513
  %v4556 = vmul.f32 %v4292, %v4513
  %v4557 = vmul.f32 %v4293, %v4513
  %v4558 = vmul.f32 %v4294, %v4513
  %v4559 = vmul.f32 %v4295, %v4513
  %v4560 = vmul.f32 %v4296, %v4513
  %v4561 = vmul.f32 %v4297, %v4513
  %v4562 = vmul.f32 %v4298, %v4513
  %v4563 = vmul.f32 %v4299, %v4513
  %v4564 = vmul.f32 %v4300, %v4513
  %v4565 = vmul.f32 %v4301, %v4513
  %v4566 = vmul.f32 %v4302, %v4513
  %v4567 = vmul.f32 %v4303, %v4513
  %v4568 = vmul.f32 %v4304, %v4513
  %v4569 = vmul.f32 %v4305, %v4513
  %v4570 = vmul.f32 %v4306, %v4513
  %v4571 = vmul.f32 %v4307, %v4513
  %v4572 = vmul.f32 %v4308, %v4513
  %v4573 = vmul.f32 %v4309, %v4513
  %v4574 = vmul.f32 %v4310, %v4513
  %v4575 = vmul.f32 %v4311, %v4513
  %v4576 = vmul.f32 %v4312, %v4513
  %v4577 = vmul.f32 %v4313, %v4513
  %v4579 = vlaneseq
  %v4580 = vshrl.u32 %v4579, 7
  %v4581 = vsub.s32 0, %v4580
  %v4582 = vrot.slane %v4112, %v4581
  %v4584 = vmul.f32 %v4514, %v4582
  %v4585 = vmul.f32 %v4515, %v4582
  %v4586 = vmul.f32 %v4516, %v4582
  %v4587 = vmul.f32 %v4517, %v4582
  %v4588 = vmul.f32 %v4518, %v4582
  %v4589 = vmul.f32 %v4519, %v4582
  %v4590 = vmul.f32 %v4520, %v4582
  %v4591 = vmul.f32 %v4521, %v4582
  %v4592 = vmul.f32 %v4522, %v4582
  %v4593 = vmul.f32 %v4523, %v4582
  %v4594 = vmul.f32 %v4524, %v4582
  %v4595 = vmul.f32 %v4525, %v4582
  %v4596 = vmul.f32 %v4526, %v4582
  %v4597 = vmul.f32 %v4527, %v4582
  %v4598 = vmul.f32 %v4528, %v4582
  %v4599 = vmul.f32 %v4529, %v4582
  %v4600 = vmul.f32 %v4530, %v4582
  %v4601 = vmul.f32 %v4531, %v4582
  %v4602 = vmul.f32 %v4532, %v4582
  %v4603 = vmul.f32 %v4533, %v4582
  %v4604 = vmul.f32 %v4534, %v4582
  %v4605 = vmul.f32 %v4535, %v4582
  %v4606 = vmul.f32 %v4536, %v4582
  %v4607 = vmul.f32 %v4537, %v4582
  %v4608 = vmul.f32 %v4538, %v4582
  %v4609 = vmul.f32 %v4539, %v4582
  %v4610 = vmul.f32 %v4540, %v4582
  %v4611 = vmul.f32 %v4541, %v4582
  %v4612 = vmul.f32 %v4542, %v4582
  %v4613 = vmul.f32 %v4543, %v4582
  %v4614 = vmul.f32 %v4544, %v4582
  %v4615 = vmul.f32 %v4545, %v4582
  %v4616 = vmul.f32 %v4546, %v4582
  %v4617 = vmul.f32 %v4547, %v4582
  %v4618 = vmul.f32 %v4548, %v4582
  %v4619 = vmul.f32 %v4549, %v4582
  %v4620 = vmul.f32 %v4550, %v4582
  %v4621 = vmul.f32 %v4551, %v4582
  %v4622 = vmul.f32 %v4552, %v4582
  %v4623 = vmul.f32 %v4553, %v4582
  %v4624 = vmul.f32 %v4554, %v4582
  %v4625 = vmul.f32 %v4555, %v4582
  %v4626 = vmul.f32 %v4556, %v4582
  %v4627 = vmul.f32 %v4557, %v4582
  %v4628 = vmul.f32 %v4558, %v4582
  %v4629 = vmul.f32 %v4559, %v4582
  %v4630 = vmul.f32 %v4560, %v4582
  %v4631 = vmul.f32 %v4561, %v4582
  %v4632 = vmul.f32 %v4562, %v4582
  %v4633 = vmul.f32 %v4563, %v4582
  %v4634 = vmul.f32 %v4564, %v4582
  %v4635 = vmul.f32 %v4565, %v4582
  %v4636 = vmul.f32 %v4566, %v4582
  %v4637 = vmul.f32 %v4567, %v4582
  %v4638 = vmul.f32 %v4568, %v4582
  %v4639 = vmul.f32 %v4569, %v4582
  %v4640 = vmul.f32 %v4570, %v4582
  %v4641 = vmul.f32 %v4571, %v4582
  %v4642 = vmul.f32 %v4572, %v4582
  %v4643 = vmul.f32 %v4573, %v4582
  %v4644 = vmul.f32 %v4574, %v4582
  %v4645 = vmul.f32 %v4575, %v4582
  %v4646 = vmul.f32 %v4576, %v4582
  %v4647 = vmul.f32 %v4577, %v4582
  %v4649 = vlaneseq
  %v4650 = vshrl.u32 %v4649, 7
  %v4651 = vsub.s32 0, %v4650
  %v4652 = vrot.slane %v4113, %v4651
  %v4654 = vadd.f32 %v4584, %v4652
  %v4655 = vadd.f32 %v4585, %v4652
  %v4656 = vadd.f32 %v4586, %v4652
  %v4657 = vadd.f32 %v4587, %v4652
  %v4658 = vadd.f32 %v4588, %v4652
  %v4659 = vadd.f32 %v4589, %v4652
  %v4660 = vadd.f32 %v4590, %v4652
  %v4661 = vadd.f32 %v4591, %v4652
  %v4662 = vadd.f32 %v4592, %v4652
  %v4663 = vadd.f32 %v4593, %v4652
  %v4664 = vadd.f32 %v4594, %v4652
  %v4665 = vadd.f32 %v4595, %v4652
  %v4666 = vadd.f32 %v4596, %v4652
  %v4667 = vadd.f32 %v4597, %v4652
  %v4668 = vadd.f32 %v4598, %v4652
  %v4669 = vadd.f32 %v4599, %v4652
  %v4670 = vadd.f32 %v4600, %v4652
  %v4671 = vadd.f32 %v4601, %v4652
  %v4672 = vadd.f32 %v4602, %v4652
  %v4673 = vadd.f32 %v4603, %v4652
  %v4674 = vadd.f32 %v4604, %v4652
  %v4675 = vadd.f32 %v4605, %v4652
  %v4676 = vadd.f32 %v4606, %v4652
  %v4677 = vadd.f32 %v4607, %v4652
  %v4678 = vadd.f32 %v4608, %v4652
  %v4679 = vadd.f32 %v4609, %v4652
  %v4680 = vadd.f32 %v4610, %v4652
  %v4681 = vadd.f32 %v4611, %v4652
  %v4682 = vadd.f32 %v4612, %v4652
  %v4683 = vadd.f32 %v4613, %v4652
  %v4684 = vadd.f32 %v4614, %v4652
  %v4685 = vadd.f32 %v4615, %v4652
  %v4686 = vadd.f32 %v4616, %v4652
  %v4687 = vadd.f32 %v4617, %v4652
  %v4688 = vadd.f32 %v4618, %v4652
  %v4689 = vadd.f32 %v4619, %v4652
  %v4690 = vadd.f32 %v4620, %v4652
  %v4691 = vadd.f32 %v4621, %v4652
  %v4692 = vadd.f32 %v4622, %v4652
  %v4693 = vadd.f32 %v4623, %v4652
  %v4694 = vadd.f32 %v4624, %v4652
  %v4695 = vadd.f32 %v4625, %v4652
  %v4696 = vadd.f32 %v4626, %v4652
  %v4697 = vadd.f32 %v4627, %v4652
  %v4698 = vadd.f32 %v4628, %v4652
  %v4699 = vadd.f32 %v4629, %v4652
  %v4700 = vadd.f32 %v4630, %v4652
  %v4701 = vadd.f32 %v4631, %v4652
  %v4702 = vadd.f32 %v4632, %v4652
  %v4703 = vadd.f32 %v4633, %v4652
  %v4704 = vadd.f32 %v4634, %v4652
  %v4705 = vadd.f32 %v4635, %v4652
  %v4706 = vadd.f32 %v4636, %v4652
  %v4707 = vadd.f32 %v4637, %v4652
  %v4708 = vadd.f32 %v4638, %v4652
  %v4709 = vadd.f32 %v4639, %v4652
  %v4710 = vadd.f32 %v4640, %v4652
  %v4711 = vadd.f32 %v4641, %v4652
  %v4712 = vadd.f32 %v4642, %v4652
  %v4713 = vadd.f32 %v4643, %v4652
  %v4714 = vadd.f32 %v4644, %v4652
  %v4715 = vadd.f32 %v4645, %v4652
  %v4716 = vadd.f32 %v4646, %v4652
  %v4717 = vadd.f32 %v4647, %v4652
  %v4718 = vmax.f32 %v4654, 0.0
  %v4719 = vmax.f32 %v4655, 0.0
  %v4720 = vmax.f32 %v4656, 0.0
  %v4721 = vmax.f32 %v4657, 0.0
  %v4722 = vmax.f32 %v4658, 0.0
  %v4723 = vmax.f32 %v4659, 0.0
  %v4724 = vmax.f32 %v4660, 0.0
  %v4725 = vmax.f32 %v4661, 0.0
  %v4726 = vmax.f32 %v4662, 0.0
  %v4727 = vmax.f32 %v4663, 0.0
  %v4728 = vmax.f32 %v4664, 0.0
  %v4729 = vmax.f32 %v4665, 0.0
  %v4730 = vmax.f32 %v4666, 0.0
  %v4731 = vmax.f32 %v4667, 0.0
  %v4732 = vmax.f32 %v4668, 0.0
  %v4733 = vmax.f32 %v4669, 0.0
  %v4734 = vmax.f32 %v4670, 0.0
  %v4735 = vmax.f32 %v4671, 0.0
  %v4736 = vmax.f32 %v4672, 0.0
  %v4737 = vmax.f32 %v4673, 0.0
  %v4738 = vmax.f32 %v4674, 0.0
  %v4739 = vmax.f32 %v4675, 0.0
  %v4740 = vmax.f32 %v4676, 0.0
  %v4741 = vmax.f32 %v4677, 0.0
  %v4742 = vmax.f32 %v4678, 0.0
  %v4743 = vmax.f32 %v4679, 0.0
  %v4744 = vmax.f32 %v4680, 0.0
  %v4745 = vmax.f32 %v4681, 0.0
  %v4746 = vmax.f32 %v4682, 0.0
  %v4747 = vmax.f32 %v4683, 0.0
  %v4748 = vmax.f32 %v4684, 0.0
  %v4749 = vmax.f32 %v4685, 0.0
  %v4750 = vmax.f32 %v4686, 0.0
  %v4751 = vmax.f32 %v4687, 0.0
  %v4752 = vmax.f32 %v4688, 0.0
  %v4753 = vmax.f32 %v4689, 0.0
  %v4754 = vmax.f32 %v4690, 0.0
  %v4755 = vmax.f32 %v4691, 0.0
  %v4756 = vmax.f32 %v4692, 0.0
  %v4757 = vmax.f32 %v4693, 0.0
  %v4758 = vmax.f32 %v4694, 0.0
  %v4759 = vmax.f32 %v4695, 0.0
  %v4760 = vmax.f32 %v4696, 0.0
  %v4761 = vmax.f32 %v4697, 0.0
  %v4762 = vmax.f32 %v4698, 0.0
  %v4763 = vmax.f32 %v4699, 0.0
  %v4764 = vmax.f32 %v4700, 0.0
  %v4765 = vmax.f32 %v4701, 0.0
  %v4766 = vmax.f32 %v4702, 0.0
  %v4767 = vmax.f32 %v4703, 0.0
  %v4768 = vmax.f32 %v4704, 0.0
  %v4769 = vmax.f32 %v4705, 0.0
  %v4770 = vmax.f32 %v4706, 0.0
  %v4771 = vmax.f32 %v4707, 0.0
  %v4772 = vmax.f32 %v4708, 0.0
  %v4773 = vmax.f32 %v4709, 0.0
  %v4774 = vmax.f32 %v4710, 0.0
  %v4775 = vmax.f32 %v4711, 0.0
  %v4776 = vmax.f32 %v4712, 0.0
  %v4777 = vmax.f32 %v4713, 0.0
  %v4778 = vmax.f32 %v4714, 0.0
  %v4779 = vmax.f32 %v4715, 0.0
  %v4780 = vmax.f32 %v4716, 0.0
  %v4781 = vmax.f32 %v4717, 0.0
  %4782 = vst.msk [vmem:[#allocation3] sm:$0xff] %vm4114, 0.0
  %4783 = vst.msk [vmem:[#allocation3 + $0x8] sm:$0xff] %vm4114, 0.0
  %vm4784 = vcmask 60416
  %4785 = vst.msk [vmem:[#allocation3 + $0x10] sm:$0xf] %vm4784, 0.0
  %4786 = vst.msk [vmem:[#allocation3 + $0x1b0] sm:$0xff] %vm4114, 0.0
  %4787 = vst.msk [vmem:[#allocation3 + $0x1b8] sm:$0xff] %vm4114, 0.0
  %4788 = vst.msk [vmem:[#allocation3 + $0x1c0] sm:$0xf] %vm4784, 0.0
  %s4789 = scalar_lea.vmem [#allocation3], 408
  %4790 = vst.msk [vmem:[%s4789] sm:$0xff] %vm4114, 0.0
  %4791 = vst.msk [vmem:[%s4789 + $0x8] sm:$0xff] %vm4114, 0.0
  %4792 = vst.msk [vmem:[%s4789 + $0x10] sm:$0xf] %vm4784, 0.0
  %4793 = vst.msk [vmem:[%s4789 + $0x1b0] sm:$0xff] %vm4114, 0.0
  %4794 = vst.msk [vmem:[%s4789 + $0x1b8] sm:$0xff] %vm4114, 0.0
  %4795 = vst.msk [vmem:[%s4789 + $0x1c0] sm:$0xf] %vm4784, 0.0
  %vm4796 = vcmask 58368
  %4797 = vst.msk [vmem:[#allocation3] sm:$0x3] %vm4796, 0.0
  %4798 = vst.msk [vmem:[#allocation3 + $0x18] sm:$0x3] %vm4796, 0.0
  %4799 = vst.msk [vmem:[#allocation3 + $0x30] sm:$0x3] %vm4796, 0.0
  %4800 = vst.msk [vmem:[#allocation3 + $0x48] sm:$0x3] %vm4796, 0.0
  %4801 = vst.msk [vmem:[#allocation3 + $0x60] sm:$0x3] %vm4796, 0.0
  %4802 = vst.msk [vmem:[#allocation3 + $0x78] sm:$0x3] %vm4796, 0.0
  %4803 = vst.msk [vmem:[#allocation3 + $0x90] sm:$0x3] %vm4796, 0.0
  %4804 = vst.msk [vmem:[#allocation3 + $0xa8] sm:$0x3] %vm4796, 0.0
  %4805 = vst.msk [vmem:[#allocation3 + $0xc0] sm:$0x3] %vm4796, 0.0
  %4806 = vst.msk [vmem:[#allocation3 + $0xd8] sm:$0x3] %vm4796, 0.0
  %4807 = vst.msk [vmem:[#allocation3 + $0xf0] sm:$0x3] %vm4796, 0.0
  %4808 = vst.msk [vmem:[#allocation3 + $0x108] sm:$0x3] %vm4796, 0.0
  %4809 = vst.msk [vmem:[#allocation3 + $0x120] sm:$0x3] %vm4796, 0.0
  %4810 = vst.msk [vmem:[#allocation3 + $0x138] sm:$0x3] %vm4796, 0.0
  %4811 = vst.msk [vmem:[#allocation3 + $0x150] sm:$0x3] %vm4796, 0.0
  %4812 = vst.msk [vmem:[#allocation3 + $0x168] sm:$0x3] %vm4796, 0.0
  %4813 = vst.msk [vmem:[#allocation3 + $0x180] sm:$0x3] %vm4796, 0.0
  %4814 = vst.msk [vmem:[#allocation3 + $0x198] sm:$0x3] %vm4796, 0.0
  %4815 = vst.msk [vmem:[#allocation3 + $0x1b0] sm:$0x3] %vm4796, 0.0
  %4816 = vst.msk [vmem:[#allocation3 + $0x1c8] sm:$0x3] %vm4796, 0.0
  %4817 = vst.msk [vmem:[#allocation3 + $0x1e0] sm:$0x3] %vm4796, 0.0
  %4818 = vst.msk [vmem:[#allocation3 + $0x1f8] sm:$0x3] %vm4796, 0.0
  %4819 = vst.msk [vmem:[#allocation3 + $0x210] sm:$0x3] %vm4796, 0.0
  %4820 = vst.msk [vmem:[#allocation3 + $0x228] sm:$0x3] %vm4796, 0.0
  %4821 = vst.msk [vmem:[#allocation3 + $0x240] sm:$0x3] %vm4796, 0.0
  %4822 = vst.msk [vmem:[#allocation3 + $0x258] sm:$0x3] %vm4796, 0.0
  %4823 = vst.msk [vmem:[#allocation3 + $0x270] sm:$0x3] %vm4796, 0.0
  %4824 = vst.msk [vmem:[#allocation3 + $0x288] sm:$0x3] %vm4796, 0.0
  %4825 = vst.msk [vmem:[#allocation3 + $0x2a0] sm:$0x3] %vm4796, 0.0
  %4826 = vst.msk [vmem:[#allocation3 + $0x2b8] sm:$0x3] %vm4796, 0.0
  %4827 = vst.msk [vmem:[#allocation3 + $0x2d0] sm:$0x3] %vm4796, 0.0
  %4828 = vst.msk [vmem:[#allocation3 + $0x2e8] sm:$0x3] %vm4796, 0.0
  %4829 = vst.msk [vmem:[#allocation3 + $0x300] sm:$0x3] %vm4796, 0.0
  %4830 = vst.msk [vmem:[#allocation3 + $0x318] sm:$0x3] %vm4796, 0.0
  %4831 = vst.msk [vmem:[#allocation3 + $0x330] sm:$0x3] %vm4796, 0.0
  %4832 = vst.msk [vmem:[#allocation3 + $0x348] sm:$0x3] %vm4796, 0.0
  %4833 = vst.msk [vmem:[#allocation3 + $0x12] sm:$0x3] %vm4796, 0.0
  %4834 = vst.msk [vmem:[#allocation3 + $0x2a] sm:$0x3] %vm4796, 0.0
  %4835 = vst.msk [vmem:[#allocation3 + $0x42] sm:$0x3] %vm4796, 0.0
  %4836 = vst.msk [vmem:[#allocation3 + $0x5a] sm:$0x3] %vm4796, 0.0
  %4837 = vst.msk [vmem:[#allocation3 + $0x72] sm:$0x3] %vm4796, 0.0
  %4838 = vst.msk [vmem:[#allocation3 + $0x8a] sm:$0x3] %vm4796, 0.0
  %4839 = vst.msk [vmem:[#allocation3 + $0xa2] sm:$0x3] %vm4796, 0.0
  %4840 = vst.msk [vmem:[#allocation3 + $0xba] sm:$0x3] %vm4796, 0.0
  %4841 = vst.msk [vmem:[#allocation3 + $0xd2] sm:$0x3] %vm4796, 0.0
  %4842 = vst.msk [vmem:[#allocation3 + $0xea] sm:$0x3] %vm4796, 0.0
  %4843 = vst.msk [vmem:[#allocation3 + $0x102] sm:$0x3] %vm4796, 0.0
  %4844 = vst.msk [vmem:[#allocation3 + $0x11a] sm:$0x3] %vm4796, 0.0
  %4845 = vst.msk [vmem:[#allocation3 + $0x132] sm:$0x3] %vm4796, 0.0
  %4846 = vst.msk [vmem:[#allocation3 + $0x14a] sm:$0x3] %vm4796, 0.0
  %4847 = vst.msk [vmem:[#allocation3 + $0x162] sm:$0x3] %vm4796, 0.0
  %4848 = vst.msk [vmem:[#allocation3 + $0x17a] sm:$0x3] %vm4796, 0.0
  %4849 = vst.msk [vmem:[#allocation3 + $0x192] sm:$0x3] %vm4796, 0.0
  %4850 = vst.msk [vmem:[#allocation3 + $0x1aa] sm:$0x3] %vm4796, 0.0
  %4851 = vst.msk [vmem:[#allocation3 + $0x1c2] sm:$0x3] %vm4796, 0.0
  %4852 = vst.msk [vmem:[#allocation3 + $0x1da] sm:$0x3] %vm4796, 0.0
  %4853 = vst.msk [vmem:[#allocation3 + $0x1f2] sm:$0x3] %vm4796, 0.0
  %4854 = vst.msk [vmem:[#allocation3 + $0x20a] sm:$0x3] %vm4796, 0.0
  %4855 = vst.msk [vmem:[#allocation3 + $0x222] sm:$0x3] %vm4796, 0.0
  %4856 = vst.msk [vmem:[#allocation3 + $0x23a] sm:$0x3] %vm4796, 0.0
  %4857 = vst.msk [vmem:[#allocation3 + $0x252] sm:$0x3] %vm4796, 0.0
  %4858 = vst.msk [vmem:[#allocation3 + $0x26a] sm:$0x3] %vm4796, 0.0
  %4859 = vst.msk [vmem:[#allocation3 + $0x282] sm:$0x3] %vm4796, 0.0
  %4860 = vst.msk [vmem:[#allocation3 + $0x29a] sm:$0x3] %vm4796, 0.0
  %4861 = vst.msk [vmem:[#allocation3 + $0x2b2] sm:$0x3] %vm4796, 0.0
  %4862 = vst.msk [vmem:[#allocation3 + $0x2ca] sm:$0x3] %vm4796, 0.0
  %4863 = vst.msk [vmem:[#allocation3 + $0x2e2] sm:$0x3] %vm4796, 0.0
  %4864 = vst.msk [vmem:[#allocation3 + $0x2fa] sm:$0x3] %vm4796, 0.0
  %4865 = vst.msk [vmem:[#allocation3 + $0x312] sm:$0x3] %vm4796, 0.0
  %4866 = vst.msk [vmem:[#allocation3 + $0x32a] sm:$0x3] %vm4796, 0.0
  %4867 = vst.msk [vmem:[#allocation3 + $0x342] sm:$0x3] %vm4796, 0.0
  %4868 = vst.msk [vmem:[#allocation3 + $0x35a] sm:$0x3] %vm4796, 0.0
  %s4869 = scalar_lea.vmem [#allocation3], 24
  %4870 = vst.msk [vmem:[%s4869 + $0x2] sm:$0xff] %vm4114, %v4718
  %4871 = vst.msk [vmem:[%s4869 + $0xa] sm:$0xff] %vm4114, %v4719
  %4872 = vst.msk [vmem:[%s4869 + $0x1a] sm:$0xff] %vm4114, %v4720
  %4873 = vst.msk [vmem:[%s4869 + $0x22] sm:$0xff] %vm4114, %v4721
  %4874 = vst.msk [vmem:[%s4869 + $0x32] sm:$0xff] %vm4114, %v4722
  %4875 = vst.msk [vmem:[%s4869 + $0x3a] sm:$0xff] %vm4114, %v4723
  %4876 = vst.msk [vmem:[%s4869 + $0x4a] sm:$0xff] %vm4114, %v4724
  %4877 = vst.msk [vmem:[%s4869 + $0x52] sm:$0xff] %vm4114, %v4725
  %4878 = vst.msk [vmem:[%s4869 + $0x62] sm:$0xff] %vm4114, %v4726
  %4879 = vst.msk [vmem:[%s4869 + $0x6a] sm:$0xff] %vm4114, %v4727
  %4880 = vst.msk [vmem:[%s4869 + $0x7a] sm:$0xff] %vm4114, %v4728
  %4881 = vst.msk [vmem:[%s4869 + $0x82] sm:$0xff] %vm4114, %v4729
  %4882 = vst.msk [vmem:[%s4869 + $0x92] sm:$0xff] %vm4114, %v4730
  %4883 = vst.msk [vmem:[%s4869 + $0x9a] sm:$0xff] %vm4114, %v4731
  %4884 = vst.msk [vmem:[%s4869 + $0xaa] sm:$0xff] %vm4114, %v4732
  %4885 = vst.msk [vmem:[%s4869 + $0xb2] sm:$0xff] %vm4114, %v4733
  %4886 = vst.msk [vmem:[%s4869 + $0xc2] sm:$0xff] %vm4114, %v4734
  %4887 = vst.msk [vmem:[%s4869 + $0xca] sm:$0xff] %vm4114, %v4735
  %4888 = vst.msk [vmem:[%s4869 + $0xda] sm:$0xff] %vm4114, %v4736
  %4889 = vst.msk [vmem:[%s4869 + $0xe2] sm:$0xff] %vm4114, %v4737
  %4890 = vst.msk [vmem:[%s4869 + $0xf2] sm:$0xff] %vm4114, %v4738
  %4891 = vst.msk [vmem:[%s4869 + $0xfa] sm:$0xff] %vm4114, %v4739
  %4892 = vst.msk [vmem:[%s4869 + $0x10a] sm:$0xff] %vm4114, %v4740
  %4893 = vst.msk [vmem:[%s4869 + $0x112] sm:$0xff] %vm4114, %v4741
  %4894 = vst.msk [vmem:[%s4869 + $0x122] sm:$0xff] %vm4114, %v4742
  %4895 = vst.msk [vmem:[%s4869 + $0x12a] sm:$0xff] %vm4114, %v4743
  %4896 = vst.msk [vmem:[%s4869 + $0x13a] sm:$0xff] %vm4114, %v4744
  %4897 = vst.msk [vmem:[%s4869 + $0x142] sm:$0xff] %vm4114, %v4745
  %4898 = vst.msk [vmem:[%s4869 + $0x152] sm:$0xff] %vm4114, %v4746
  %4899 = vst.msk [vmem:[%s4869 + $0x15a] sm:$0xff] %vm4114, %v4747
  %4900 = vst.msk [vmem:[%s4869 + $0x16a] sm:$0xff] %vm4114, %v4748
  %4901 = vst.msk [vmem:[%s4869 + $0x172] sm:$0xff] %vm4114, %v4749
  %4902 = vst.msk [vmem:[%s4869 + $0x1b2] sm:$0xff] %vm4114, %v4750
  %4903 = vst.msk [vmem:[%s4869 + $0x1ba] sm:$0xff] %vm4114, %v4751
  %4904 = vst.msk [vmem:[%s4869 + $0x1ca] sm:$0xff] %vm4114, %v4752
  %4905 = vst.msk [vmem:[%s4869 + $0x1d2] sm:$0xff] %vm4114, %v4753
  %4906 = vst.msk [vmem:[%s4869 + $0x1e2] sm:$0xff] %vm4114, %v4754
  %4907 = vst.msk [vmem:[%s4869 + $0x1ea] sm:$0xff] %vm4114, %v4755
  %4908 = vst.msk [vmem:[%s4869 + $0x1fa] sm:$0xff] %vm4114, %v4756
  %4909 = vst.msk [vmem:[%s4869 + $0x202] sm:$0xff] %vm4114, %v4757
  %4910 = vst.msk [vmem:[%s4869 + $0x212] sm:$0xff] %vm4114, %v4758
  %4911 = vst.msk [vmem:[%s4869 + $0x21a] sm:$0xff] %vm4114, %v4759
  %4912 = vst.msk [vmem:[%s4869 + $0x22a] sm:$0xff] %vm4114, %v4760
  %4913 = vst.msk [vmem:[%s4869 + $0x232] sm:$0xff] %vm4114, %v4761
  %4914 = vst.msk [vmem:[%s4869 + $0x242] sm:$0xff] %vm4114, %v4762
  %4915 = vst.msk [vmem:[%s4869 + $0x24a] sm:$0xff] %vm4114, %v4763
  %4916 = vst.msk [vmem:[%s4869 + $0x25a] sm:$0xff] %vm4114, %v4764
  %4917 = vst.msk [vmem:[%s4869 + $0x262] sm:$0xff] %vm4114, %v4765
  %4918 = vst.msk [vmem:[%s4869 + $0x272] sm:$0xff] %vm4114, %v4766
  %4919 = vst.msk [vmem:[%s4869 + $0x27a] sm:$0xff] %vm4114, %v4767
  %4920 = vst.msk [vmem:[%s4869 + $0x28a] sm:$0xff] %vm4114, %v4768
  %4921 = vst.msk [vmem:[%s4869 + $0x292] sm:$0xff] %vm4114, %v4769
  %4922 = vst.msk [vmem:[%s4869 + $0x2a2] sm:$0xff] %vm4114, %v4770
  %4923 = vst.msk [vmem:[%s4869 + $0x2aa] sm:$0xff] %vm4114, %v4771
  %4924 = vst.msk [vmem:[%s4869 + $0x2ba] sm:$0xff] %vm4114, %v4772
  %4925 = vst.msk [vmem:[%s4869 + $0x2c2] sm:$0xff] %vm4114, %v4773
  %4926 = vst.msk [vmem:[%s4869 + $0x2d2] sm:$0xff] %vm4114, %v4774
  %4927 = vst.msk [vmem:[%s4869 + $0x2da] sm:$0xff] %vm4114, %v4775
  %4928 = vst.msk [vmem:[%s4869 + $0x2ea] sm:$0xff] %vm4114, %v4776
  %4929 = vst.msk [vmem:[%s4869 + $0x2f2] sm:$0xff] %vm4114, %v4777
  %4930 = vst.msk [vmem:[%s4869 + $0x302] sm:$0xff] %vm4114, %v4778
  %4931 = vst.msk [vmem:[%s4869 + $0x30a] sm:$0xff] %vm4114, %v4779
  %4932 = vst.msk [vmem:[%s4869 + $0x31a] sm:$0xff] %vm4114, %v4780
  %4933 = vst.msk [vmem:[%s4869 + $0x322] sm:$0xff] %vm4114, %v4781
  %v4934 = vld [vmem:[#allocation3 + $0x1] sm:$0xff]
  %v4935 = vld [vmem:[#allocation3 + $0x9] sm:$0xff]
  %v4936 = vld [vmem:[#allocation3 + $0x19] sm:$0xff]
  %v4937 = vld [vmem:[#allocation3 + $0x21] sm:$0xff]
  %v4938 = vld [vmem:[#allocation3 + $0x31] sm:$0xff]
  %v4939 = vld [vmem:[#allocation3 + $0x39] sm:$0xff]
  %v4940 = vld [vmem:[#allocation3 + $0x49] sm:$0xff]
  %v4941 = vld [vmem:[#allocation3 + $0x51] sm:$0xff]
  %v4942 = vld [vmem:[#allocation3 + $0x61] sm:$0xff]
  %v4943 = vld [vmem:[#allocation3 + $0x69] sm:$0xff]
  %v4944 = vld [vmem:[#allocation3 + $0x79] sm:$0xff]
  %v4945 = vld [vmem:[#allocation3 + $0x81] sm:$0xff]
  %v4946 = vld [vmem:[#allocation3 + $0x91] sm:$0xff]
  %v4947 = vld [vmem:[#allocation3 + $0x99] sm:$0xff]
  %v4948 = vld [vmem:[#allocation3 + $0xa9] sm:$0xff]
  %v4949 = vld [vmem:[#allocation3 + $0xb1] sm:$0xff]
  %v4950 = vld [vmem:[#allocation3 + $0xc1] sm:$0xff]
  %v4951 = vld [vmem:[#allocation3 + $0xc9] sm:$0xff]
  %v4952 = vld [vmem:[#allocation3 + $0xd9] sm:$0xff]
  %v4953 = vld [vmem:[#allocation3 + $0xe1] sm:$0xff]
  %v4954 = vld [vmem:[#allocation3 + $0xf1] sm:$0xff]
  %v4955 = vld [vmem:[#allocation3 + $0xf9] sm:$0xff]
  %v4956 = vld [vmem:[#allocation3 + $0x109] sm:$0xff]
  %v4957 = vld [vmem:[#allocation3 + $0x111] sm:$0xff]
  %v4958 = vld [vmem:[#allocation3 + $0x121] sm:$0xff]
  %v4959 = vld [vmem:[#allocation3 + $0x129] sm:$0xff]
  %v4960 = vld [vmem:[#allocation3 + $0x139] sm:$0xff]
  %v4961 = vld [vmem:[#allocation3 + $0x141] sm:$0xff]
  %v4962 = vld [vmem:[#allocation3 + $0x151] sm:$0xff]
  %v4963 = vld [vmem:[#allocation3 + $0x159] sm:$0xff]
  %v4964 = vld [vmem:[#allocation3 + $0x169] sm:$0xff]
  %v4965 = vld [vmem:[#allocation3 + $0x171] sm:$0xff]
  %v4966 = vld [vmem:[#allocation3 + $0x1b1] sm:$0xff]
  %v4967 = vld [vmem:[#allocation3 + $0x1b9] sm:$0xff]
  %v4968 = vld [vmem:[#allocation3 + $0x1c9] sm:$0xff]
  %v4969 = vld [vmem:[#allocation3 + $0x1d1] sm:$0xff]
  %v4970 = vld [vmem:[#allocation3 + $0x1e1] sm:$0xff]
  %v4971 = vld [vmem:[#allocation3 + $0x1e9] sm:$0xff]
  %v4972 = vld [vmem:[#allocation3 + $0x1f9] sm:$0xff]
  %v4973 = vld [vmem:[#allocation3 + $0x201] sm:$0xff]
  %v4974 = vld [vmem:[#allocation3 + $0x211] sm:$0xff]
  %v4975 = vld [vmem:[#allocation3 + $0x219] sm:$0xff]
  %v4976 = vld [vmem:[#allocation3 + $0x229] sm:$0xff]
  %v4977 = vld [vmem:[#allocation3 + $0x231] sm:$0xff]
  %v4978 = vld [vmem:[#allocation3 + $0x241] sm:$0xff]
  %v4979 = vld [vmem:[#allocation3 + $0x249] sm:$0xff]
  %v4980 = vld [vmem:[#allocation3 + $0x259] sm:$0xff]
  %v4981 = vld [vmem:[#allocation3 + $0x261] sm:$0xff]
  %v4982 = vld [vmem:[#allocation3 + $0x271] sm:$0xff]
  %v4983 = vld [vmem:[#allocation3 + $0x279] sm:$0xff]
  %v4984 = vld [vmem:[#allocation3 + $0x289] sm:$0xff]
  %v4985 = vld [vmem:[#allocation3 + $0x291] sm:$0xff]
  %v4986 = vld [vmem:[#allocation3 + $0x2a1] sm:$0xff]
  %v4987 = vld [vmem:[#allocation3 + $0x2a9] sm:$0xff]
  %v4988 = vld [vmem:[#allocation3 + $0x2b9] sm:$0xff]
  %v4989 = vld [vmem:[#allocation3 + $0x2c1] sm:$0xff]
  %v4990 = vld [vmem:[#allocation3 + $0x2d1] sm:$0xff]
  %v4991 = vld [vmem:[#allocation3 + $0x2d9] sm:$0xff]
  %v4992 = vld [vmem:[#allocation3 + $0x2e9] sm:$0xff]
  %v4993 = vld [vmem:[#allocation3 + $0x2f1] sm:$0xff]
  %v4994 = vld [vmem:[#allocation3 + $0x301] sm:$0xff]
  %v4995 = vld [vmem:[#allocation3 + $0x309] sm:$0xff]
  %v4996 = vld [vmem:[#allocation3 + $0x319] sm:$0xff]
  %v4997 = vld [vmem:[#allocation3 + $0x321] sm:$0xff]
  %4998 = vst.msk [vmem:[#allocation5] sm:$0xff] %vm4114, %v4934
  %4999 = vst.msk [vmem:[#allocation5 + $0x8] sm:$0xff] %vm4114, %v4935
  %5000 = vst.msk [vmem:[#allocation5 + $0x10] sm:$0xff] %vm4114, %v4936
  %5001 = vst.msk [vmem:[#allocation5 + $0x18] sm:$0xff] %vm4114, %v4937
  %5002 = vst.msk [vmem:[#allocation5 + $0x20] sm:$0xff] %vm4114, %v4938
  %5003 = vst.msk [vmem:[#allocation5 + $0x28] sm:$0xff] %vm4114, %v4939
  %5004 = vst.msk [vmem:[#allocation5 + $0x30] sm:$0xff] %vm4114, %v4940
  %5005 = vst.msk [vmem:[#allocation5 + $0x38] sm:$0xff] %vm4114, %v4941
  %5006 = vst.msk [vmem:[#allocation5 + $0x40] sm:$0xff] %vm4114, %v4942
  %5007 = vst.msk [vmem:[#allocation5 + $0x48] sm:$0xff] %vm4114, %v4943
  %5008 = vst.msk [vmem:[#allocation5 + $0x50] sm:$0xff] %vm4114, %v4944
  %5009 = vst.msk [vmem:[#allocation5 + $0x58] sm:$0xff] %vm4114, %v4945
  %5010 = vst.msk [vmem:[#allocation5 + $0x60] sm:$0xff] %vm4114, %v4946
  %5011 = vst.msk [vmem:[#allocation5 + $0x68] sm:$0xff] %vm4114, %v4947
  %5012 = vst.msk [vmem:[#allocation5 + $0x70] sm:$0xff] %vm4114, %v4948
  %5013 = vst.msk [vmem:[#allocation5 + $0x78] sm:$0xff] %vm4114, %v4949
  %5014 = vst.msk [vmem:[#allocation5 + $0x80] sm:$0xff] %vm4114, %v4950
  %5015 = vst.msk [vmem:[#allocation5 + $0x88] sm:$0xff] %vm4114, %v4951
  %5016 = vst.msk [vmem:[#allocation5 + $0x90] sm:$0xff] %vm4114, %v4952
  %5017 = vst.msk [vmem:[#allocation5 + $0x98] sm:$0xff] %vm4114, %v4953
  %5018 = vst.msk [vmem:[#allocation5 + $0xa0] sm:$0xff] %vm4114, %v4954
  %5019 = vst.msk [vmem:[#allocation5 + $0xa8] sm:$0xff] %vm4114, %v4955
  %5020 = vst.msk [vmem:[#allocation5 + $0xb0] sm:$0xff] %vm4114, %v4956
  %5021 = vst.msk [vmem:[#allocation5 + $0xb8] sm:$0xff] %vm4114, %v4957
  %5022 = vst.msk [vmem:[#allocation5 + $0xc0] sm:$0xff] %vm4114, %v4958
  %5023 = vst.msk [vmem:[#allocation5 + $0xc8] sm:$0xff] %vm4114, %v4959
  %5024 = vst.msk [vmem:[#allocation5 + $0xd0] sm:$0xff] %vm4114, %v4960
  %5025 = vst.msk [vmem:[#allocation5 + $0xd8] sm:$0xff] %vm4114, %v4961
  %5026 = vst.msk [vmem:[#allocation5 + $0xe0] sm:$0xff] %vm4114, %v4962
  %5027 = vst.msk [vmem:[#allocation5 + $0xe8] sm:$0xff] %vm4114, %v4963
  %5028 = vst.msk [vmem:[#allocation5 + $0xf0] sm:$0xff] %vm4114, %v4964
  %5029 = vst.msk [vmem:[#allocation5 + $0xf8] sm:$0xff] %vm4114, %v4965
  %5030 = vst.msk [vmem:[#allocation5 + $0x100] sm:$0xff] %vm4114, %v4966
  %5031 = vst.msk [vmem:[#allocation5 + $0x108] sm:$0xff] %vm4114, %v4967
  %5032 = vst.msk [vmem:[#allocation5 + $0x110] sm:$0xff] %vm4114, %v4968
  %5033 = vst.msk [vmem:[#allocation5 + $0x118] sm:$0xff] %vm4114, %v4969
  %5034 = vst.msk [vmem:[#allocation5 + $0x120] sm:$0xff] %vm4114, %v4970
  %5035 = vst.msk [vmem:[#allocation5 + $0x128] sm:$0xff] %vm4114, %v4971
  %5036 = vst.msk [vmem:[#allocation5 + $0x130] sm:$0xff] %vm4114, %v4972
  %5037 = vst.msk [vmem:[#allocation5 + $0x138] sm:$0xff] %vm4114, %v4973
  %5038 = vst.msk [vmem:[#allocation5 + $0x140] sm:$0xff] %vm4114, %v4974
  %5039 = vst.msk [vmem:[#allocation5 + $0x148] sm:$0xff] %vm4114, %v4975
  %5040 = vst.msk [vmem:[#allocation5 + $0x150] sm:$0xff] %vm4114, %v4976
  %5041 = vst.msk [vmem:[#allocation5 + $0x158] sm:$0xff] %vm4114, %v4977
  %5042 = vst.msk [vmem:[#allocation5 + $0x160] sm:$0xff] %vm4114, %v4978
  %5043 = vst.msk [vmem:[#allocation5 + $0x168] sm:$0xff] %vm4114, %v4979
  %5044 = vst.msk [vmem:[#allocation5 + $0x170] sm:$0xff] %vm4114, %v4980
  %5045 = vst.msk [vmem:[#allocation5 + $0x178] sm:$0xff] %vm4114, %v4981
  %5046 = vst.msk [vmem:[#allocation5 + $0x180] sm:$0xff] %vm4114, %v4982
  %5047 = vst.msk [vmem:[#allocation5 + $0x188] sm:$0xff] %vm4114, %v4983
  %5048 = vst.msk [vmem:[#allocation5 + $0x190] sm:$0xff] %vm4114, %v4984
  %5049 = vst.msk [vmem:[#allocation5 + $0x198] sm:$0xff] %vm4114, %v4985
  %5050 = vst.msk [vmem:[#allocation5 + $0x1a0] sm:$0xff] %vm4114, %v4986
  %5051 = vst.msk [vmem:[#allocation5 + $0x1a8] sm:$0xff] %vm4114, %v4987
  %5052 = vst.msk [vmem:[#allocation5 + $0x1b0] sm:$0xff] %vm4114, %v4988
  %5053 = vst.msk [vmem:[#allocation5 + $0x1b8] sm:$0xff] %vm4114, %v4989
  %5054 = vst.msk [vmem:[#allocation5 + $0x1c0] sm:$0xff] %vm4114, %v4990
  %5055 = vst.msk [vmem:[#allocation5 + $0x1c8] sm:$0xff] %vm4114, %v4991
  %5056 = vst.msk [vmem:[#allocation5 + $0x1d0] sm:$0xff] %vm4114, %v4992
  %5057 = vst.msk [vmem:[#allocation5 + $0x1d8] sm:$0xff] %vm4114, %v4993
  %5058 = vst.msk [vmem:[#allocation5 + $0x1e0] sm:$0xff] %vm4114, %v4994
  %5059 = vst.msk [vmem:[#allocation5 + $0x1e8] sm:$0xff] %vm4114, %v4995
  %5060 = vst.msk [vmem:[#allocation5 + $0x1f0] sm:$0xff] %vm4114, %v4996
  %5061 = vst.msk [vmem:[#allocation5 + $0x1f8] sm:$0xff] %vm4114, %v4997
  %v5062 = vld [vmem:[#allocation3 + $0x2] sm:$0xff]
  %v5063 = vld [vmem:[#allocation3 + $0xa] sm:$0xff]
  %v5064 = vld [vmem:[#allocation3 + $0x1a] sm:$0xff]
  %v5065 = vld [vmem:[#allocation3 + $0x22] sm:$0xff]
  %v5066 = vld [vmem:[#allocation3 + $0x32] sm:$0xff]
  %v5067 = vld [vmem:[#allocation3 + $0x3a] sm:$0xff]
  %v5068 = vld [vmem:[#allocation3 + $0x4a] sm:$0xff]
  %v5069 = vld [vmem:[#allocation3 + $0x52] sm:$0xff]
  %v5070 = vld [vmem:[#allocation3 + $0x62] sm:$0xff]
  %v5071 = vld [vmem:[#allocation3 + $0x6a] sm:$0xff]
  %v5072 = vld [vmem:[#allocation3 + $0x7a] sm:$0xff]
  %v5073 = vld [vmem:[#allocation3 + $0x82] sm:$0xff]
  %v5074 = vld [vmem:[#allocation3 + $0x92] sm:$0xff]
  %v5075 = vld [vmem:[#allocation3 + $0x9a] sm:$0xff]
  %v5076 = vld [vmem:[#allocation3 + $0xaa] sm:$0xff]
  %v5077 = vld [vmem:[#allocation3 + $0xb2] sm:$0xff]
  %v5078 = vld [vmem:[#allocation3 + $0xc2] sm:$0xff]
  %v5079 = vld [vmem:[#allocation3 + $0xca] sm:$0xff]
  %v5080 = vld [vmem:[#allocation3 + $0xda] sm:$0xff]
  %v5081 = vld [vmem:[#allocation3 + $0xe2] sm:$0xff]
  %v5082 = vld [vmem:[#allocation3 + $0xf2] sm:$0xff]
  %v5083 = vld [vmem:[#allocation3 + $0xfa] sm:$0xff]
  %v5084 = vld [vmem:[#allocation3 + $0x10a] sm:$0xff]
  %v5085 = vld [vmem:[#allocation3 + $0x112] sm:$0xff]
  %v5086 = vld [vmem:[#allocation3 + $0x122] sm:$0xff]
  %v5087 = vld [vmem:[#allocation3 + $0x12a] sm:$0xff]
  %v5088 = vld [vmem:[#allocation3 + $0x13a] sm:$0xff]
  %v5089 = vld [vmem:[#allocation3 + $0x142] sm:$0xff]
  %v5090 = vld [vmem:[#allocation3 + $0x152] sm:$0xff]
  %v5091 = vld [vmem:[#allocation3 + $0x15a] sm:$0xff]
  %v5092 = vld [vmem:[#allocation3 + $0x16a] sm:$0xff]
  %v5093 = vld [vmem:[#allocation3 + $0x172] sm:$0xff]
  %v5094 = vld [vmem:[#allocation3 + $0x1b2] sm:$0xff]
  %v5095 = vld [vmem:[#allocation3 + $0x1ba] sm:$0xff]
  %v5096 = vld [vmem:[#allocation3 + $0x1ca] sm:$0xff]
  %v5097 = vld [vmem:[#allocation3 + $0x1d2] sm:$0xff]
  %v5098 = vld [vmem:[#allocation3 + $0x1e2] sm:$0xff]
  %v5099 = vld [vmem:[#allocation3 + $0x1ea] sm:$0xff]
  %v5100 = vld [vmem:[#allocation3 + $0x1fa] sm:$0xff]
  %v5101 = vld [vmem:[#allocation3 + $0x202] sm:$0xff]
  %v5102 = vld [vmem:[#allocation3 + $0x212] sm:$0xff]
  %v5103 = vld [vmem:[#allocation3 + $0x21a] sm:$0xff]
  %v5104 = vld [vmem:[#allocation3 + $0x22a] sm:$0xff]
  %v5105 = vld [vmem:[#allocation3 + $0x232] sm:$0xff]
  %v5106 = vld [vmem:[#allocation3 + $0x242] sm:$0xff]
  %v5107 = vld [vmem:[#allocation3 + $0x24a] sm:$0xff]
  %v5108 = vld [vmem:[#allocation3 + $0x25a] sm:$0xff]
  %v5109 = vld [vmem:[#allocation3 + $0x262] sm:$0xff]
  %v5110 = vld [vmem:[#allocation3 + $0x272] sm:$0xff]
  %v5111 = vld [vmem:[#allocation3 + $0x27a] sm:$0xff]
  %v5112 = vld [vmem:[#allocation3 + $0x28a] sm:$0xff]
  %v5113 = vld [vmem:[#allocation3 + $0x292] sm:$0xff]
  %v5114 = vld [vmem:[#allocation3 + $0x2a2] sm:$0xff]
  %v5115 = vld [vmem:[#allocation3 + $0x2aa] sm:$0xff]
  %v5116 = vld [vmem:[#allocation3 + $0x2ba] sm:$0xff]
  %v5117 = vld [vmem:[#allocation3 + $0x2c2] sm:$0xff]
  %v5118 = vld [vmem:[#allocation3 + $0x2d2] sm:$0xff]
  %v5119 = vld [vmem:[#allocation3 + $0x2da] sm:$0xff]
  %v5120 = vld [vmem:[#allocation3 + $0x2ea] sm:$0xff]
  %v5121 = vld [vmem:[#allocation3 + $0x2f2] sm:$0xff]
  %v5122 = vld [vmem:[#allocation3 + $0x302] sm:$0xff]
  %v5123 = vld [vmem:[#allocation3 + $0x30a] sm:$0xff]
  %v5124 = vld [vmem:[#allocation3 + $0x31a] sm:$0xff]
  %v5125 = vld [vmem:[#allocation3 + $0x322] sm:$0xff]
  %5190 = vrot.lane.b32.xlu0 %v5062, 8
  %v5191 = vpop.permute.xlu0 %5190
  %5192 = vrot.lane.b32.xlu0 %v5063, 8
  %v5193 = vpop.permute.xlu0 %5192
  %5194 = vrot.lane.b32.xlu0 %v5064, 8
  %v5195 = vpop.permute.xlu0 %5194
  %5196 = vrot.lane.b32.xlu0 %v5065, 8
  %v5197 = vpop.permute.xlu0 %5196
  %5198 = vrot.lane.b32.xlu0 %v5066, 8
  %v5199 = vpop.permute.xlu0 %5198
  %5200 = vrot.lane.b32.xlu0 %v5067, 8
  %v5201 = vpop.permute.xlu0 %5200
  %5202 = vrot.lane.b32.xlu0 %v5068, 8
  %v5203 = vpop.permute.xlu0 %5202
  %5204 = vrot.lane.b32.xlu0 %v5069, 8
  %v5205 = vpop.permute.xlu0 %5204
  %5206 = vrot.lane.b32.xlu0 %v5070, 8
  %v5207 = vpop.permute.xlu0 %5206
  %5208 = vrot.lane.b32.xlu0 %v5071, 8
  %v5209 = vpop.permute.xlu0 %5208
  %5210 = vrot.lane.b32.xlu0 %v5072, 8
  %v5211 = vpop.permute.xlu0 %5210
  %5212 = vrot.lane.b32.xlu0 %v5073, 8
  %v5213 = vpop.permute.xlu0 %5212
  %5214 = vrot.lane.b32.xlu0 %v5074, 8
  %v5215 = vpop.permute.xlu0 %5214
  %5216 = vrot.lane.b32.xlu0 %v5075, 8
  %v5217 = vpop.permute.xlu0 %5216
  %5218 = vrot.lane.b32.xlu0 %v5076, 8
  %v5219 = vpop.permute.xlu0 %5218
  %5220 = vrot.lane.b32.xlu0 %v5077, 8
  %v5221 = vpop.permute.xlu0 %5220
  %5222 = vrot.lane.b32.xlu0 %v5078, 8
  %v5223 = vpop.permute.xlu0 %5222
  %5224 = vrot.lane.b32.xlu0 %v5079, 8
  %v5225 = vpop.permute.xlu0 %5224
  %5226 = vrot.lane.b32.xlu0 %v5080, 8
  %v5227 = vpop.permute.xlu0 %5226
  %5228 = vrot.lane.b32.xlu0 %v5081, 8
  %v5229 = vpop.permute.xlu0 %5228
  %5230 = vrot.lane.b32.xlu0 %v5082, 8
  %v5231 = vpop.permute.xlu0 %5230
  %5232 = vrot.lane.b32.xlu0 %v5083, 8
  %v5233 = vpop.permute.xlu0 %5232
  %5234 = vrot.lane.b32.xlu0 %v5084, 8
  %v5235 = vpop.permute.xlu0 %5234
  %5236 = vrot.lane.b32.xlu0 %v5085, 8
  %v5237 = vpop.permute.xlu0 %5236
  %5238 = vrot.lane.b32.xlu0 %v5086, 8
  %v5239 = vpop.permute.xlu0 %5238
  %5240 = vrot.lane.b32.xlu0 %v5087, 8
  %v5241 = vpop.permute.xlu0 %5240
  %5242 = vrot.lane.b32.xlu0 %v5088, 8
  %v5243 = vpop.permute.xlu0 %5242
  %5244 = vrot.lane.b32.xlu0 %v5089, 8
  %v5245 = vpop.permute.xlu0 %5244
  %5246 = vrot.lane.b32.xlu0 %v5090, 8
  %v5247 = vpop.permute.xlu0 %5246
  %5248 = vrot.lane.b32.xlu0 %v5091, 8
  %v5249 = vpop.permute.xlu0 %5248
  %5250 = vrot.lane.b32.xlu0 %v5092, 8
  %v5251 = vpop.permute.xlu0 %5250
  %5252 = vrot.lane.b32.xlu0 %v5093, 8
  %v5253 = vpop.permute.xlu0 %5252
  %5254 = vrot.lane.b32.xlu0 %v5094, 8
  %v5255 = vpop.permute.xlu0 %5254
  %5256 = vrot.lane.b32.xlu0 %v5095, 8
  %v5257 = vpop.permute.xlu0 %5256
  %5258 = vrot.lane.b32.xlu0 %v5096, 8
  %v5259 = vpop.permute.xlu0 %5258
  %5260 = vrot.lane.b32.xlu0 %v5097, 8
  %v5261 = vpop.permute.xlu0 %5260
  %5262 = vrot.lane.b32.xlu0 %v5098, 8
  %v5263 = vpop.permute.xlu0 %5262
  %5264 = vrot.lane.b32.xlu0 %v5099, 8
  %v5265 = vpop.permute.xlu0 %5264
  %5266 = vrot.lane.b32.xlu0 %v5100, 8
  %v5267 = vpop.permute.xlu0 %5266
  %5268 = vrot.lane.b32.xlu0 %v5101, 8
  %v5269 = vpop.permute.xlu0 %5268
  %5270 = vrot.lane.b32.xlu0 %v5102, 8
  %v5271 = vpop.permute.xlu0 %5270
  %5272 = vrot.lane.b32.xlu0 %v5103, 8
  %v5273 = vpop.permute.xlu0 %5272
  %5274 = vrot.lane.b32.xlu0 %v5104, 8
  %v5275 = vpop.permute.xlu0 %5274
  %5276 = vrot.lane.b32.xlu0 %v5105, 8
  %v5277 = vpop.permute.xlu0 %5276
  %5278 = vrot.lane.b32.xlu0 %v5106, 8
  %v5279 = vpop.permute.xlu0 %5278
  %5280 = vrot.lane.b32.xlu0 %v5107, 8
  %v5281 = vpop.permute.xlu0 %5280
  %5282 = vrot.lane.b32.xlu0 %v5108, 8
  %v5283 = vpop.permute.xlu0 %5282
  %5284 = vrot.lane.b32.xlu0 %v5109, 8
  %v5285 = vpop.permute.xlu0 %5284
  %5286 = vrot.lane.b32.xlu0 %v5110, 8
  %v5287 = vpop.permute.xlu0 %5286
  %5288 = vrot.lane.b32.xlu0 %v5111, 8
  %v5289 = vpop.permute.xlu0 %5288
  %5290 = vrot.lane.b32.xlu0 %v5112, 8
  %v5291 = vpop.permute.xlu0 %5290
  %5292 = vrot.lane.b32.xlu0 %v5113, 8
  %v5293 = vpop.permute.xlu0 %5292
  %5294 = vrot.lane.b32.xlu0 %v5114, 8
  %v5295 = vpop.permute.xlu0 %5294
  %5296 = vrot.lane.b32.xlu0 %v5115, 8
  %v5297 = vpop.permute.xlu0 %5296
  %5298 = vrot.lane.b32.xlu0 %v5116, 8
  %v5299 = vpop.permute.xlu0 %5298
  %5300 = vrot.lane.b32.xlu0 %v5117, 8
  %v5301 = vpop.permute.xlu0 %5300
  %5302 = vrot.lane.b32.xlu0 %v5118, 8
  %v5303 = vpop.permute.xlu0 %5302
  %5304 = vrot.lane.b32.xlu0 %v5119, 8
  %v5305 = vpop.permute.xlu0 %5304
  %5306 = vrot.lane.b32.xlu0 %v5120, 8
  %v5307 = vpop.permute.xlu0 %5306
  %5308 = vrot.lane.b32.xlu0 %v5121, 8
  %v5309 = vpop.permute.xlu0 %5308
  %5310 = vrot.lane.b32.xlu0 %v5122, 8
  %v5311 = vpop.permute.xlu0 %5310
  %5312 = vrot.lane.b32.xlu0 %v5123, 8
  %v5313 = vpop.permute.xlu0 %5312
  %5314 = vrot.lane.b32.xlu0 %v5124, 8
  %v5315 = vpop.permute.xlu0 %5314
  %5316 = vrot.lane.b32.xlu0 %v5125, 8
  %v5317 = vpop.permute.xlu0 %5316
  %vm5382 = vcmask 130112
  %5383 = vst.msk [vmem:[#allocation5] sm:$0xff] %vm5382, %v5191
  %5384 = vst.msk [vmem:[#allocation5 + $0x8] sm:$0xff] %vm5382, %v5193
  %5385 = vst.msk [vmem:[#allocation5 + $0x10] sm:$0xff] %vm5382, %v5195
  %5386 = vst.msk [vmem:[#allocation5 + $0x18] sm:$0xff] %vm5382, %v5197
  %5387 = vst.msk [vmem:[#allocation5 + $0x20] sm:$0xff] %vm5382, %v5199
  %5388 = vst.msk [vmem:[#allocation5 + $0x28] sm:$0xff] %vm5382, %v5201
  %5389 = vst.msk [vmem:[#allocation5 + $0x30] sm:$0xff] %vm5382, %v5203
  %5390 = vst.msk [vmem:[#allocation5 + $0x38] sm:$0xff] %vm5382, %v5205
  %5391 = vst.msk [vmem:[#allocation5 + $0x40] sm:$0xff] %vm5382, %v5207
  %5392 = vst.msk [vmem:[#allocation5 + $0x48] sm:$0xff] %vm5382, %v5209
  %5393 = vst.msk [vmem:[#allocation5 + $0x50] sm:$0xff] %vm5382, %v5211
  %5394 = vst.msk [vmem:[#allocation5 + $0x58] sm:$0xff] %vm5382, %v5213
  %5395 = vst.msk [vmem:[#allocation5 + $0x60] sm:$0xff] %vm5382, %v5215
  %5396 = vst.msk [vmem:[#allocation5 + $0x68] sm:$0xff] %vm5382, %v5217
  %5397 = vst.msk [vmem:[#allocation5 + $0x70] sm:$0xff] %vm5382, %v5219
  %5398 = vst.msk [vmem:[#allocation5 + $0x78] sm:$0xff] %vm5382, %v5221
  %5399 = vst.msk [vmem:[#allocation5 + $0x80] sm:$0xff] %vm5382, %v5223
  %5400 = vst.msk [vmem:[#allocation5 + $0x88] sm:$0xff] %vm5382, %v5225
  %5401 = vst.msk [vmem:[#allocation5 + $0x90] sm:$0xff] %vm5382, %v5227
  %5402 = vst.msk [vmem:[#allocation5 + $0x98] sm:$0xff] %vm5382, %v5229
  %5403 = vst.msk [vmem:[#allocation5 + $0xa0] sm:$0xff] %vm5382, %v5231
  %5404 = vst.msk [vmem:[#allocation5 + $0xa8] sm:$0xff] %vm5382, %v5233
  %5405 = vst.msk [vmem:[#allocation5 + $0xb0] sm:$0xff] %vm5382, %v5235
  %5406 = vst.msk [vmem:[#allocation5 + $0xb8] sm:$0xff] %vm5382, %v5237
  %5407 = vst.msk [vmem:[#allocation5 + $0xc0] sm:$0xff] %vm5382, %v5239
  %5408 = vst.msk [vmem:[#allocation5 + $0xc8] sm:$0xff] %vm5382, %v5241
  %5409 = vst.msk [vmem:[#allocation5 + $0xd0] sm:$0xff] %vm5382, %v5243
  %5410 = vst.msk [vmem:[#allocation5 + $0xd8] sm:$0xff] %vm5382, %v5245
  %5411 = vst.msk [vmem:[#allocation5 + $0xe0] sm:$0xff] %vm5382, %v5247
  %5412 = vst.msk [vmem:[#allocation5 + $0xe8] sm:$0xff] %vm5382, %v5249
  %5413 = vst.msk [vmem:[#allocation5 + $0xf0] sm:$0xff] %vm5382, %v5251
  %5414 = vst.msk [vmem:[#allocation5 + $0xf8] sm:$0xff] %vm5382, %v5253
  %5415 = vst.msk [vmem:[#allocation5 + $0x100] sm:$0xff] %vm5382, %v5255
  %5416 = vst.msk [vmem:[#allocation5 + $0x108] sm:$0xff] %vm5382, %v5257
  %5417 = vst.msk [vmem:[#allocation5 + $0x110] sm:$0xff] %vm5382, %v5259
  %5418 = vst.msk [vmem:[#allocation5 + $0x118] sm:$0xff] %vm5382, %v5261
  %5419 = vst.msk [vmem:[#allocation5 + $0x120] sm:$0xff] %vm5382, %v5263
  %5420 = vst.msk [vmem:[#allocation5 + $0x128] sm:$0xff] %vm5382, %v5265
  %5421 = vst.msk [vmem:[#allocation5 + $0x130] sm:$0xff] %vm5382, %v5267
  %5422 = vst.msk [vmem:[#allocation5 + $0x138] sm:$0xff] %vm5382, %v5269
  %5423 = vst.msk [vmem:[#allocation5 + $0x140] sm:$0xff] %vm5382, %v5271
  %5424 = vst.msk [vmem:[#allocation5 + $0x148] sm:$0xff] %vm5382, %v5273
  %5425 = vst.msk [vmem:[#allocation5 + $0x150] sm:$0xff] %vm5382, %v5275
  %5426 = vst.msk [vmem:[#allocation5 + $0x158] sm:$0xff] %vm5382, %v5277
  %5427 = vst.msk [vmem:[#allocation5 + $0x160] sm:$0xff] %vm5382, %v5279
  %5428 = vst.msk [vmem:[#allocation5 + $0x168] sm:$0xff] %vm5382, %v5281
  %5429 = vst.msk [vmem:[#allocation5 + $0x170] sm:$0xff] %vm5382, %v5283
  %5430 = vst.msk [vmem:[#allocation5 + $0x178] sm:$0xff] %vm5382, %v5285
  %5431 = vst.msk [vmem:[#allocation5 + $0x180] sm:$0xff] %vm5382, %v5287
  %5432 = vst.msk [vmem:[#allocation5 + $0x188] sm:$0xff] %vm5382, %v5289
  %5433 = vst.msk [vmem:[#allocation5 + $0x190] sm:$0xff] %vm5382, %v5291
  %5434 = vst.msk [vmem:[#allocation5 + $0x198] sm:$0xff] %vm5382, %v5293
  %5435 = vst.msk [vmem:[#allocation5 + $0x1a0] sm:$0xff] %vm5382, %v5295
  %5436 = vst.msk [vmem:[#allocation5 + $0x1a8] sm:$0xff] %vm5382, %v5297
  %5437 = vst.msk [vmem:[#allocation5 + $0x1b0] sm:$0xff] %vm5382, %v5299
  %5438 = vst.msk [vmem:[#allocation5 + $0x1b8] sm:$0xff] %vm5382, %v5301
  %5439 = vst.msk [vmem:[#allocation5 + $0x1c0] sm:$0xff] %vm5382, %v5303
  %5440 = vst.msk [vmem:[#allocation5 + $0x1c8] sm:$0xff] %vm5382, %v5305
  %5441 = vst.msk [vmem:[#allocation5 + $0x1d0] sm:$0xff] %vm5382, %v5307
  %5442 = vst.msk [vmem:[#allocation5 + $0x1d8] sm:$0xff] %vm5382, %v5309
  %5443 = vst.msk [vmem:[#allocation5 + $0x1e0] sm:$0xff] %vm5382, %v5311
  %5444 = vst.msk [vmem:[#allocation5 + $0x1e8] sm:$0xff] %vm5382, %v5313
  %5445 = vst.msk [vmem:[#allocation5 + $0x1f0] sm:$0xff] %vm5382, %v5315
  %5446 = vst.msk [vmem:[#allocation5 + $0x1f8] sm:$0xff] %vm5382, %v5317
  %v5447 = vld [vmem:[#allocation3 + $0x3] sm:$0xff]
  %v5448 = vld [vmem:[#allocation3 + $0xb] sm:$0xff]
  %v5449 = vld [vmem:[#allocation3 + $0x1b] sm:$0xff]
  %v5450 = vld [vmem:[#allocation3 + $0x23] sm:$0xff]
  %v5451 = vld [vmem:[#allocation3 + $0x33] sm:$0xff]
  %v5452 = vld [vmem:[#allocation3 + $0x3b] sm:$0xff]
  %v5453 = vld [vmem:[#allocation3 + $0x4b] sm:$0xff]
  %v5454 = vld [vmem:[#allocation3 + $0x53] sm:$0xff]
  %v5455 = vld [vmem:[#allocation3 + $0x63] sm:$0xff]
  %v5456 = vld [vmem:[#allocation3 + $0x6b] sm:$0xff]
  %v5457 = vld [vmem:[#allocation3 + $0x7b] sm:$0xff]
  %v5458 = vld [vmem:[#allocation3 + $0x83] sm:$0xff]
  %v5459 = vld [vmem:[#allocation3 + $0x93] sm:$0xff]
  %v5460 = vld [vmem:[#allocation3 + $0x9b] sm:$0xff]
  %v5461 = vld [vmem:[#allocation3 + $0xab] sm:$0xff]
  %v5462 = vld [vmem:[#allocation3 + $0xb3] sm:$0xff]
  %v5463 = vld [vmem:[#allocation3 + $0xc3] sm:$0xff]
  %v5464 = vld [vmem:[#allocation3 + $0xcb] sm:$0xff]
  %v5465 = vld [vmem:[#allocation3 + $0xdb] sm:$0xff]
  %v5466 = vld [vmem:[#allocation3 + $0xe3] sm:$0xff]
  %v5467 = vld [vmem:[#allocation3 + $0xf3] sm:$0xff]
  %v5468 = vld [vmem:[#allocation3 + $0xfb] sm:$0xff]
  %v5469 = vld [vmem:[#allocation3 + $0x10b] sm:$0xff]
  %v5470 = vld [vmem:[#allocation3 + $0x113] sm:$0xff]
  %v5471 = vld [vmem:[#allocation3 + $0x123] sm:$0xff]
  %v5472 = vld [vmem:[#allocation3 + $0x12b] sm:$0xff]
  %v5473 = vld [vmem:[#allocation3 + $0x13b] sm:$0xff]
  %v5474 = vld [vmem:[#allocation3 + $0x143] sm:$0xff]
  %v5475 = vld [vmem:[#allocation3 + $0x153] sm:$0xff]
  %v5476 = vld [vmem:[#allocation3 + $0x15b] sm:$0xff]
  %v5477 = vld [vmem:[#allocation3 + $0x16b] sm:$0xff]
  %v5478 = vld [vmem:[#allocation3 + $0x173] sm:$0xff]
  %v5479 = vld [vmem:[#allocation3 + $0x1b3] sm:$0xff]
  %v5480 = vld [vmem:[#allocation3 + $0x1bb] sm:$0xff]
  %v5481 = vld [vmem:[#allocation3 + $0x1cb] sm:$0xff]
  %v5482 = vld [vmem:[#allocation3 + $0x1d3] sm:$0xff]
  %v5483 = vld [vmem:[#allocation3 + $0x1e3] sm:$0xff]
  %v5484 = vld [vmem:[#allocation3 + $0x1eb] sm:$0xff]
  %v5485 = vld [vmem:[#allocation3 + $0x1fb] sm:$0xff]
  %v5486 = vld [vmem:[#allocation3 + $0x203] sm:$0xff]
  %v5487 = vld [vmem:[#allocation3 + $0x213] sm:$0xff]
  %v5488 = vld [vmem:[#allocation3 + $0x21b] sm:$0xff]
  %v5489 = vld [vmem:[#allocation3 + $0x22b] sm:$0xff]
  %v5490 = vld [vmem:[#allocation3 + $0x233] sm:$0xff]
  %v5491 = vld [vmem:[#allocation3 + $0x243] sm:$0xff]
  %v5492 = vld [vmem:[#allocation3 + $0x24b] sm:$0xff]
  %v5493 = vld [vmem:[#allocation3 + $0x25b] sm:$0xff]
  %v5494 = vld [vmem:[#allocation3 + $0x263] sm:$0xff]
  %v5495 = vld [vmem:[#allocation3 + $0x273] sm:$0xff]
  %v5496 = vld [vmem:[#allocation3 + $0x27b] sm:$0xff]
  %v5497 = vld [vmem:[#allocation3 + $0x28b] sm:$0xff]
  %v5498 = vld [vmem:[#allocation3 + $0x293] sm:$0xff]
  %v5499 = vld [vmem:[#allocation3 + $0x2a3] sm:$0xff]
  %v5500 = vld [vmem:[#allocation3 + $0x2ab] sm:$0xff]
  %v5501 = vld [vmem:[#allocation3 + $0x2bb] sm:$0xff]
  %v5502 = vld [vmem:[#allocation3 + $0x2c3] sm:$0xff]
  %v5503 = vld [vmem:[#allocation3 + $0x2d3] sm:$0xff]
  %v5504 = vld [vmem:[#allocation3 + $0x2db] sm:$0xff]
  %v5505 = vld [vmem:[#allocation3 + $0x2eb] sm:$0xff]
  %v5506 = vld [vmem:[#allocation3 + $0x2f3] sm:$0xff]
  %v5507 = vld [vmem:[#allocation3 + $0x303] sm:$0xff]
  %v5508 = vld [vmem:[#allocation3 + $0x30b] sm:$0xff]
  %v5509 = vld [vmem:[#allocation3 + $0x31b] sm:$0xff]
  %v5510 = vld [vmem:[#allocation3 + $0x323] sm:$0xff]
  %5575 = vrot.lane.b32.xlu0 %v5447, 16
  %v5576 = vpop.permute.xlu0 %5575
  %5577 = vrot.lane.b32.xlu0 %v5448, 16
  %v5578 = vpop.permute.xlu0 %5577
  %5579 = vrot.lane.b32.xlu0 %v5449, 16
  %v5580 = vpop.permute.xlu0 %5579
  %5581 = vrot.lane.b32.xlu0 %v5450, 16
  %v5582 = vpop.permute.xlu0 %5581
  %5583 = vrot.lane.b32.xlu0 %v5451, 16
  %v5584 = vpop.permute.xlu0 %5583
  %5585 = vrot.lane.b32.xlu0 %v5452, 16
  %v5586 = vpop.permute.xlu0 %5585
  %5587 = vrot.lane.b32.xlu0 %v5453, 16
  %v5588 = vpop.permute.xlu0 %5587
  %5589 = vrot.lane.b32.xlu0 %v5454, 16
  %v5590 = vpop.permute.xlu0 %5589
  %5591 = vrot.lane.b32.xlu0 %v5455, 16
  %v5592 = vpop.permute.xlu0 %5591
  %5593 = vrot.lane.b32.xlu0 %v5456, 16
  %v5594 = vpop.permute.xlu0 %5593
  %5595 = vrot.lane.b32.xlu0 %v5457, 16
  %v5596 = vpop.permute.xlu0 %5595
  %5597 = vrot.lane.b32.xlu0 %v5458, 16
  %v5598 = vpop.permute.xlu0 %5597
  %5599 = vrot.lane.b32.xlu0 %v5459, 16
  %v5600 = vpop.permute.xlu0 %5599
  %5601 = vrot.lane.b32.xlu0 %v5460, 16
  %v5602 = vpop.permute.xlu0 %5601
  %5603 = vrot.lane.b32.xlu0 %v5461, 16
  %v5604 = vpop.permute.xlu0 %5603
  %5605 = vrot.lane.b32.xlu0 %v5462, 16
  %v5606 = vpop.permute.xlu0 %5605
  %5607 = vrot.lane.b32.xlu0 %v5463, 16
  %v5608 = vpop.permute.xlu0 %5607
  %5609 = vrot.lane.b32.xlu0 %v5464, 16
  %v5610 = vpop.permute.xlu0 %5609
  %5611 = vrot.lane.b32.xlu0 %v5465, 16
  %v5612 = vpop.permute.xlu0 %5611
  %5613 = vrot.lane.b32.xlu0 %v5466, 16
  %v5614 = vpop.permute.xlu0 %5613
  %5615 = vrot.lane.b32.xlu0 %v5467, 16
  %v5616 = vpop.permute.xlu0 %5615
  %5617 = vrot.lane.b32.xlu0 %v5468, 16
  %v5618 = vpop.permute.xlu0 %5617
  %5619 = vrot.lane.b32.xlu0 %v5469, 16
  %v5620 = vpop.permute.xlu0 %5619
  %5621 = vrot.lane.b32.xlu0 %v5470, 16
  %v5622 = vpop.permute.xlu0 %5621
  %5623 = vrot.lane.b32.xlu0 %v5471, 16
  %v5624 = vpop.permute.xlu0 %5623
  %5625 = vrot.lane.b32.xlu0 %v5472, 16
  %v5626 = vpop.permute.xlu0 %5625
  %5627 = vrot.lane.b32.xlu0 %v5473, 16
  %v5628 = vpop.permute.xlu0 %5627
  %5629 = vrot.lane.b32.xlu0 %v5474, 16
  %v5630 = vpop.permute.xlu0 %5629
  %5631 = vrot.lane.b32.xlu0 %v5475, 16
  %v5632 = vpop.permute.xlu0 %5631
  %5633 = vrot.lane.b32.xlu0 %v5476, 16
  %v5634 = vpop.permute.xlu0 %5633
  %5635 = vrot.lane.b32.xlu0 %v5477, 16
  %v5636 = vpop.permute.xlu0 %5635
  %5637 = vrot.lane.b32.xlu0 %v5478, 16
  %v5638 = vpop.permute.xlu0 %5637
  %5639 = vrot.lane.b32.xlu0 %v5479, 16
  %v5640 = vpop.permute.xlu0 %5639
  %5641 = vrot.lane.b32.xlu0 %v5480, 16
  %v5642 = vpop.permute.xlu0 %5641
  %5643 = vrot.lane.b32.xlu0 %v5481, 16
  %v5644 = vpop.permute.xlu0 %5643
  %5645 = vrot.lane.b32.xlu0 %v5482, 16
  %v5646 = vpop.permute.xlu0 %5645
  %5647 = vrot.lane.b32.xlu0 %v5483, 16
  %v5648 = vpop.permute.xlu0 %5647
  %5649 = vrot.lane.b32.xlu0 %v5484, 16
  %v5650 = vpop.permute.xlu0 %5649
  %5651 = vrot.lane.b32.xlu0 %v5485, 16
  %v5652 = vpop.permute.xlu0 %5651
  %5653 = vrot.lane.b32.xlu0 %v5486, 16
  %v5654 = vpop.permute.xlu0 %5653
  %5655 = vrot.lane.b32.xlu0 %v5487, 16
  %v5656 = vpop.permute.xlu0 %5655
  %5657 = vrot.lane.b32.xlu0 %v5488, 16
  %v5658 = vpop.permute.xlu0 %5657
  %5659 = vrot.lane.b32.xlu0 %v5489, 16
  %v5660 = vpop.permute.xlu0 %5659
  %5661 = vrot.lane.b32.xlu0 %v5490, 16
  %v5662 = vpop.permute.xlu0 %5661
  %5663 = vrot.lane.b32.xlu0 %v5491, 16
  %v5664 = vpop.permute.xlu0 %5663
  %5665 = vrot.lane.b32.xlu0 %v5492, 16
  %v5666 = vpop.permute.xlu0 %5665
  %5667 = vrot.lane.b32.xlu0 %v5493, 16
  %v5668 = vpop.permute.xlu0 %5667
  %5669 = vrot.lane.b32.xlu0 %v5494, 16
  %v5670 = vpop.permute.xlu0 %5669
  %5671 = vrot.lane.b32.xlu0 %v5495, 16
  %v5672 = vpop.permute.xlu0 %5671
  %5673 = vrot.lane.b32.xlu0 %v5496, 16
  %v5674 = vpop.permute.xlu0 %5673
  %5675 = vrot.lane.b32.xlu0 %v5497, 16
  %v5676 = vpop.permute.xlu0 %5675
  %5677 = vrot.lane.b32.xlu0 %v5498, 16
  %v5678 = vpop.permute.xlu0 %5677
  %5679 = vrot.lane.b32.xlu0 %v5499, 16
  %v5680 = vpop.permute.xlu0 %5679
  %5681 = vrot.lane.b32.xlu0 %v5500, 16
  %v5682 = vpop.permute.xlu0 %5681
  %5683 = vrot.lane.b32.xlu0 %v5501, 16
  %v5684 = vpop.permute.xlu0 %5683
  %5685 = vrot.lane.b32.xlu0 %v5502, 16
  %v5686 = vpop.permute.xlu0 %5685
  %5687 = vrot.lane.b32.xlu0 %v5503, 16
  %v5688 = vpop.permute.xlu0 %5687
  %5689 = vrot.lane.b32.xlu0 %v5504, 16
  %v5690 = vpop.permute.xlu0 %5689
  %5691 = vrot.lane.b32.xlu0 %v5505, 16
  %v5692 = vpop.permute.xlu0 %5691
  %5693 = vrot.lane.b32.xlu0 %v5506, 16
  %v5694 = vpop.permute.xlu0 %5693
  %5695 = vrot.lane.b32.xlu0 %v5507, 16
  %v5696 = vpop.permute.xlu0 %5695
  %5697 = vrot.lane.b32.xlu0 %v5508, 16
  %v5698 = vpop.permute.xlu0 %5697
  %5699 = vrot.lane.b32.xlu0 %v5509, 16
  %v5700 = vpop.permute.xlu0 %5699
  %5701 = vrot.lane.b32.xlu0 %v5510, 16
  %v5702 = vpop.permute.xlu0 %5701
  %vm5767 = vcmask 195712
  %5768 = vst.msk [vmem:[#allocation5] sm:$0xff] %vm5767, %v5576
  %5769 = vst.msk [vmem:[#allocation5 + $0x8] sm:$0xff] %vm5767, %v5578
  %5770 = vst.msk [vmem:[#allocation5 + $0x10] sm:$0xff] %vm5767, %v5580
  %5771 = vst.msk [vmem:[#allocation5 + $0x18] sm:$0xff] %vm5767, %v5582
  %5772 = vst.msk [vmem:[#allocation5 + $0x20] sm:$0xff] %vm5767, %v5584
  %5773 = vst.msk [vmem:[#allocation5 + $0x28] sm:$0xff] %vm5767, %v5586
  %5774 = vst.msk [vmem:[#allocation5 + $0x30] sm:$0xff] %vm5767, %v5588
  %5775 = vst.msk [vmem:[#allocation5 + $0x38] sm:$0xff] %vm5767, %v5590
  %5776 = vst.msk [vmem:[#allocation5 + $0x40] sm:$0xff] %vm5767, %v5592
  %5777 = vst.msk [vmem:[#allocation5 + $0x48] sm:$0xff] %vm5767, %v5594
  %5778 = vst.msk [vmem:[#allocation5 + $0x50] sm:$0xff] %vm5767, %v5596
  %5779 = vst.msk [vmem:[#allocation5 + $0x58] sm:$0xff] %vm5767, %v5598
  %5780 = vst.msk [vmem:[#allocation5 + $0x60] sm:$0xff] %vm5767, %v5600
  %5781 = vst.msk [vmem:[#allocation5 + $0x68] sm:$0xff] %vm5767, %v5602
  %5782 = vst.msk [vmem:[#allocation5 + $0x70] sm:$0xff] %vm5767, %v5604
  %5783 = vst.msk [vmem:[#allocation5 + $0x78] sm:$0xff] %vm5767, %v5606
  %5784 = vst.msk [vmem:[#allocation5 + $0x80] sm:$0xff] %vm5767, %v5608
  %5785 = vst.msk [vmem:[#allocation5 + $0x88] sm:$0xff] %vm5767, %v5610
  %5786 = vst.msk [vmem:[#allocation5 + $0x90] sm:$0xff] %vm5767, %v5612
  %5787 = vst.msk [vmem:[#allocation5 + $0x98] sm:$0xff] %vm5767, %v5614
  %5788 = vst.msk [vmem:[#allocation5 + $0xa0] sm:$0xff] %vm5767, %v5616
  %5789 = vst.msk [vmem:[#allocation5 + $0xa8] sm:$0xff] %vm5767, %v5618
  %5790 = vst.msk [vmem:[#allocation5 + $0xb0] sm:$0xff] %vm5767, %v5620
  %5791 = vst.msk [vmem:[#allocation5 + $0xb8] sm:$0xff] %vm5767, %v5622
  %5792 = vst.msk [vmem:[#allocation5 + $0xc0] sm:$0xff] %vm5767, %v5624
  %5793 = vst.msk [vmem:[#allocation5 + $0xc8] sm:$0xff] %vm5767, %v5626
  %5794 = vst.msk [vmem:[#allocation5 + $0xd0] sm:$0xff] %vm5767, %v5628
  %5795 = vst.msk [vmem:[#allocation5 + $0xd8] sm:$0xff] %vm5767, %v5630
  %5796 = vst.msk [vmem:[#allocation5 + $0xe0] sm:$0xff] %vm5767, %v5632
  %5797 = vst.msk [vmem:[#allocation5 + $0xe8] sm:$0xff] %vm5767, %v5634
  %5798 = vst.msk [vmem:[#allocation5 + $0xf0] sm:$0xff] %vm5767, %v5636
  %5799 = vst.msk [vmem:[#allocation5 + $0xf8] sm:$0xff] %vm5767, %v5638
  %5800 = vst.msk [vmem:[#allocation5 + $0x100] sm:$0xff] %vm5767, %v5640
  %5801 = vst.msk [vmem:[#allocation5 + $0x108] sm:$0xff] %vm5767, %v5642
  %5802 = vst.msk [vmem:[#allocation5 + $0x110] sm:$0xff] %vm5767, %v5644
  %5803 = vst.msk [vmem:[#allocation5 + $0x118] sm:$0xff] %vm5767, %v5646
  %5804 = vst.msk [vmem:[#allocation5 + $0x120] sm:$0xff] %vm5767, %v5648
  %5805 = vst.msk [vmem:[#allocation5 + $0x128] sm:$0xff] %vm5767, %v5650
  %5806 = vst.msk [vmem:[#allocation5 + $0x130] sm:$0xff] %vm5767, %v5652
  %5807 = vst.msk [vmem:[#allocation5 + $0x138] sm:$0xff] %vm5767, %v5654
  %5808 = vst.msk [vmem:[#allocation5 + $0x140] sm:$0xff] %vm5767, %v5656
  %5809 = vst.msk [vmem:[#allocation5 + $0x148] sm:$0xff] %vm5767, %v5658
  %5810 = vst.msk [vmem:[#allocation5 + $0x150] sm:$0xff] %vm5767, %v5660
  %5811 = vst.msk [vmem:[#allocation5 + $0x158] sm:$0xff] %vm5767, %v5662
  %5812 = vst.msk [vmem:[#allocation5 + $0x160] sm:$0xff] %vm5767, %v5664
  %5813 = vst.msk [vmem:[#allocation5 + $0x168] sm:$0xff] %vm5767, %v5666
  %5814 = vst.msk [vmem:[#allocation5 + $0x170] sm:$0xff] %vm5767, %v5668
  %5815 = vst.msk [vmem:[#allocation5 + $0x178] sm:$0xff] %vm5767, %v5670
  %5816 = vst.msk [vmem:[#allocation5 + $0x180] sm:$0xff] %vm5767, %v5672
  %5817 = vst.msk [vmem:[#allocation5 + $0x188] sm:$0xff] %vm5767, %v5674
  %5818 = vst.msk [vmem:[#allocation5 + $0x190] sm:$0xff] %vm5767, %v5676
  %5819 = vst.msk [vmem:[#allocation5 + $0x198] sm:$0xff] %vm5767, %v5678
  %5820 = vst.msk [vmem:[#allocation5 + $0x1a0] sm:$0xff] %vm5767, %v5680
  %5821 = vst.msk [vmem:[#allocation5 + $0x1a8] sm:$0xff] %vm5767, %v5682
  %5822 = vst.msk [vmem:[#allocation5 + $0x1b0] sm:$0xff] %vm5767, %v5684
  %5823 = vst.msk [vmem:[#allocation5 + $0x1b8] sm:$0xff] %vm5767, %v5686
  %5824 = vst.msk [vmem:[#allocation5 + $0x1c0] sm:$0xff] %vm5767, %v5688
  %5825 = vst.msk [vmem:[#allocation5 + $0x1c8] sm:$0xff] %vm5767, %v5690
  %5826 = vst.msk [vmem:[#allocation5 + $0x1d0] sm:$0xff] %vm5767, %v5692
  %5827 = vst.msk [vmem:[#allocation5 + $0x1d8] sm:$0xff] %vm5767, %v5694
  %5828 = vst.msk [vmem:[#allocation5 + $0x1e0] sm:$0xff] %vm5767, %v5696
  %5829 = vst.msk [vmem:[#allocation5 + $0x1e8] sm:$0xff] %vm5767, %v5698
  %5830 = vst.msk [vmem:[#allocation5 + $0x1f0] sm:$0xff] %vm5767, %v5700
  %5831 = vst.msk [vmem:[#allocation5 + $0x1f8] sm:$0xff] %vm5767, %v5702
  %v5832 = vld [vmem:[%s4869 + $0x1] sm:$0xff]
  %v5833 = vld [vmem:[%s4869 + $0x9] sm:$0xff]
  %v5834 = vld [vmem:[%s4869 + $0x19] sm:$0xff]
  %v5835 = vld [vmem:[%s4869 + $0x21] sm:$0xff]
  %v5836 = vld [vmem:[%s4869 + $0x31] sm:$0xff]
  %v5837 = vld [vmem:[%s4869 + $0x39] sm:$0xff]
  %v5838 = vld [vmem:[%s4869 + $0x49] sm:$0xff]
  %v5839 = vld [vmem:[%s4869 + $0x51] sm:$0xff]
  %v5840 = vld [vmem:[%s4869 + $0x61] sm:$0xff]
  %v5841 = vld [vmem:[%s4869 + $0x69] sm:$0xff]
  %v5842 = vld [vmem:[%s4869 + $0x79] sm:$0xff]
  %v5843 = vld [vmem:[%s4869 + $0x81] sm:$0xff]
  %v5844 = vld [vmem:[%s4869 + $0x91] sm:$0xff]
  %v5845 = vld [vmem:[%s4869 + $0x99] sm:$0xff]
  %v5846 = vld [vmem:[%s4869 + $0xa9] sm:$0xff]
  %v5847 = vld [vmem:[%s4869 + $0xb1] sm:$0xff]
  %v5848 = vld [vmem:[%s4869 + $0xc1] sm:$0xff]
  %v5849 = vld [vmem:[%s4869 + $0xc9] sm:$0xff]
  %v5850 = vld [vmem:[%s4869 + $0xd9] sm:$0xff]
  %v5851 = vld [vmem:[%s4869 + $0xe1] sm:$0xff]
  %v5852 = vld [vmem:[%s4869 + $0xf1] sm:$0xff]
  %v5853 = vld [vmem:[%s4869 + $0xf9] sm:$0xff]
  %v5854 = vld [vmem:[%s4869 + $0x109] sm:$0xff]
  %v5855 = vld [vmem:[%s4869 + $0x111] sm:$0xff]
  %v5856 = vld [vmem:[%s4869 + $0x121] sm:$0xff]
  %v5857 = vld [vmem:[%s4869 + $0x129] sm:$0xff]
  %v5858 = vld [vmem:[%s4869 + $0x139] sm:$0xff]
  %v5859 = vld [vmem:[%s4869 + $0x141] sm:$0xff]
  %v5860 = vld [vmem:[%s4869 + $0x151] sm:$0xff]
  %v5861 = vld [vmem:[%s4869 + $0x159] sm:$0xff]
  %v5862 = vld [vmem:[%s4869 + $0x169] sm:$0xff]
  %v5863 = vld [vmem:[%s4869 + $0x171] sm:$0xff]
  %v5864 = vld [vmem:[%s4869 + $0x1b1] sm:$0xff]
  %v5865 = vld [vmem:[%s4869 + $0x1b9] sm:$0xff]
  %v5866 = vld [vmem:[%s4869 + $0x1c9] sm:$0xff]
  %v5867 = vld [vmem:[%s4869 + $0x1d1] sm:$0xff]
  %v5868 = vld [vmem:[%s4869 + $0x1e1] sm:$0xff]
  %v5869 = vld [vmem:[%s4869 + $0x1e9] sm:$0xff]
  %v5870 = vld [vmem:[%s4869 + $0x1f9] sm:$0xff]
  %v5871 = vld [vmem:[%s4869 + $0x201] sm:$0xff]
  %v5872 = vld [vmem:[%s4869 + $0x211] sm:$0xff]
  %v5873 = vld [vmem:[%s4869 + $0x219] sm:$0xff]
  %v5874 = vld [vmem:[%s4869 + $0x229] sm:$0xff]
  %v5875 = vld [vmem:[%s4869 + $0x231] sm:$0xff]
  %v5876 = vld [vmem:[%s4869 + $0x241] sm:$0xff]
  %v5877 = vld [vmem:[%s4869 + $0x249] sm:$0xff]
  %v5878 = vld [vmem:[%s4869 + $0x259] sm:$0xff]
  %v5879 = vld [vmem:[%s4869 + $0x261] sm:$0xff]
  %v5880 = vld [vmem:[%s4869 + $0x271] sm:$0xff]
  %v5881 = vld [vmem:[%s4869 + $0x279] sm:$0xff]
  %v5882 = vld [vmem:[%s4869 + $0x289] sm:$0xff]
  %v5883 = vld [vmem:[%s4869 + $0x291] sm:$0xff]
  %v5884 = vld [vmem:[%s4869 + $0x2a1] sm:$0xff]
  %v5885 = vld [vmem:[%s4869 + $0x2a9] sm:$0xff]
  %v5886 = vld [vmem:[%s4869 + $0x2b9] sm:$0xff]
  %v5887 = vld [vmem:[%s4869 + $0x2c1] sm:$0xff]
  %v5888 = vld [vmem:[%s4869 + $0x2d1] sm:$0xff]
  %v5889 = vld [vmem:[%s4869 + $0x2d9] sm:$0xff]
  %v5890 = vld [vmem:[%s4869 + $0x2e9] sm:$0xff]
  %v5891 = vld [vmem:[%s4869 + $0x2f1] sm:$0xff]
  %v5892 = vld [vmem:[%s4869 + $0x301] sm:$0xff]
  %v5893 = vld [vmem:[%s4869 + $0x309] sm:$0xff]
  %v5894 = vld [vmem:[%s4869 + $0x319] sm:$0xff]
  %v5895 = vld [vmem:[%s4869 + $0x321] sm:$0xff]
  %5960 = vrot.lane.b32.xlu0 %v5832, 24
  %v5961 = vpop.permute.xlu0 %5960
  %5962 = vrot.lane.b32.xlu0 %v5833, 24
  %v5963 = vpop.permute.xlu0 %5962
  %5964 = vrot.lane.b32.xlu0 %v5834, 24
  %v5965 = vpop.permute.xlu0 %5964
  %5966 = vrot.lane.b32.xlu0 %v5835, 24
  %v5967 = vpop.permute.xlu0 %5966
  %5968 = vrot.lane.b32.xlu0 %v5836, 24
  %v5969 = vpop.permute.xlu0 %5968
  %5970 = vrot.lane.b32.xlu0 %v5837, 24
  %v5971 = vpop.permute.xlu0 %5970
  %5972 = vrot.lane.b32.xlu0 %v5838, 24
  %v5973 = vpop.permute.xlu0 %5972
  %5974 = vrot.lane.b32.xlu0 %v5839, 24
  %v5975 = vpop.permute.xlu0 %5974
  %5976 = vrot.lane.b32.xlu0 %v5840, 24
  %v5977 = vpop.permute.xlu0 %5976
  %5978 = vrot.lane.b32.xlu0 %v5841, 24
  %v5979 = vpop.permute.xlu0 %5978
  %5980 = vrot.lane.b32.xlu0 %v5842, 24
  %v5981 = vpop.permute.xlu0 %5980
  %5982 = vrot.lane.b32.xlu0 %v5843, 24
  %v5983 = vpop.permute.xlu0 %5982
  %5984 = vrot.lane.b32.xlu0 %v5844, 24
  %v5985 = vpop.permute.xlu0 %5984
  %5986 = vrot.lane.b32.xlu0 %v5845, 24
  %v5987 = vpop.permute.xlu0 %5986
  %5988 = vrot.lane.b32.xlu0 %v5846, 24
  %v5989 = vpop.permute.xlu0 %5988
  %5990 = vrot.lane.b32.xlu0 %v5847, 24
  %v5991 = vpop.permute.xlu0 %5990
  %5992 = vrot.lane.b32.xlu0 %v5848, 24
  %v5993 = vpop.permute.xlu0 %5992
  %5994 = vrot.lane.b32.xlu0 %v5849, 24
  %v5995 = vpop.permute.xlu0 %5994
  %5996 = vrot.lane.b32.xlu0 %v5850, 24
  %v5997 = vpop.permute.xlu0 %5996
  %5998 = vrot.lane.b32.xlu0 %v5851, 24
  %v5999 = vpop.permute.xlu0 %5998
  %6000 = vrot.lane.b32.xlu0 %v5852, 24
  %v6001 = vpop.permute.xlu0 %6000
  %6002 = vrot.lane.b32.xlu0 %v5853, 24
  %v6003 = vpop.permute.xlu0 %6002
  %6004 = vrot.lane.b32.xlu0 %v5854, 24
  %v6005 = vpop.permute.xlu0 %6004
  %6006 = vrot.lane.b32.xlu0 %v5855, 24
  %v6007 = vpop.permute.xlu0 %6006
  %6008 = vrot.lane.b32.xlu0 %v5856, 24
  %v6009 = vpop.permute.xlu0 %6008
  %6010 = vrot.lane.b32.xlu0 %v5857, 24
  %v6011 = vpop.permute.xlu0 %6010
  %6012 = vrot.lane.b32.xlu0 %v5858, 24
  %v6013 = vpop.permute.xlu0 %6012
  %6014 = vrot.lane.b32.xlu0 %v5859, 24
  %v6015 = vpop.permute.xlu0 %6014
  %6016 = vrot.lane.b32.xlu0 %v5860, 24
  %v6017 = vpop.permute.xlu0 %6016
  %6018 = vrot.lane.b32.xlu0 %v5861, 24
  %v6019 = vpop.permute.xlu0 %6018
  %6020 = vrot.lane.b32.xlu0 %v5862, 24
  %v6021 = vpop.permute.xlu0 %6020
  %6022 = vrot.lane.b32.xlu0 %v5863, 24
  %v6023 = vpop.permute.xlu0 %6022
  %6024 = vrot.lane.b32.xlu0 %v5864, 24
  %v6025 = vpop.permute.xlu0 %6024
  %6026 = vrot.lane.b32.xlu0 %v5865, 24
  %v6027 = vpop.permute.xlu0 %6026
  %6028 = vrot.lane.b32.xlu0 %v5866, 24
  %v6029 = vpop.permute.xlu0 %6028
  %6030 = vrot.lane.b32.xlu0 %v5867, 24
  %v6031 = vpop.permute.xlu0 %6030
  %6032 = vrot.lane.b32.xlu0 %v5868, 24
  %v6033 = vpop.permute.xlu0 %6032
  %6034 = vrot.lane.b32.xlu0 %v5869, 24
  %v6035 = vpop.permute.xlu0 %6034
  %6036 = vrot.lane.b32.xlu0 %v5870, 24
  %v6037 = vpop.permute.xlu0 %6036
  %6038 = vrot.lane.b32.xlu0 %v5871, 24
  %v6039 = vpop.permute.xlu0 %6038
  %6040 = vrot.lane.b32.xlu0 %v5872, 24
  %v6041 = vpop.permute.xlu0 %6040
  %6042 = vrot.lane.b32.xlu0 %v5873, 24
  %v6043 = vpop.permute.xlu0 %6042
  %6044 = vrot.lane.b32.xlu0 %v5874, 24
  %v6045 = vpop.permute.xlu0 %6044
  %6046 = vrot.lane.b32.xlu0 %v5875, 24
  %v6047 = vpop.permute.xlu0 %6046
  %6048 = vrot.lane.b32.xlu0 %v5876, 24
  %v6049 = vpop.permute.xlu0 %6048
  %6050 = vrot.lane.b32.xlu0 %v5877, 24
  %v6051 = vpop.permute.xlu0 %6050
  %6052 = vrot.lane.b32.xlu0 %v5878, 24
  %v6053 = vpop.permute.xlu0 %6052
  %6054 = vrot.lane.b32.xlu0 %v5879, 24
  %v6055 = vpop.permute.xlu0 %6054
  %6056 = vrot.lane.b32.xlu0 %v5880, 24
  %v6057 = vpop.permute.xlu0 %6056
  %6058 = vrot.lane.b32.xlu0 %v5881, 24
  %v6059 = vpop.permute.xlu0 %6058
  %6060 = vrot.lane.b32.xlu0 %v5882, 24
  %v6061 = vpop.permute.xlu0 %6060
  %6062 = vrot.lane.b32.xlu0 %v5883, 24
  %v6063 = vpop.permute.xlu0 %6062
  %6064 = vrot.lane.b32.xlu0 %v5884, 24
  %v6065 = vpop.permute.xlu0 %6064
  %6066 = vrot.lane.b32.xlu0 %v5885, 24
  %v6067 = vpop.permute.xlu0 %6066
  %6068 = vrot.lane.b32.xlu0 %v5886, 24
  %v6069 = vpop.permute.xlu0 %6068
  %6070 = vrot.lane.b32.xlu0 %v5887, 24
  %v6071 = vpop.permute.xlu0 %6070
  %6072 = vrot.lane.b32.xlu0 %v5888, 24
  %v6073 = vpop.permute.xlu0 %6072
  %6074 = vrot.lane.b32.xlu0 %v5889, 24
  %v6075 = vpop.permute.xlu0 %6074
  %6076 = vrot.lane.b32.xlu0 %v5890, 24
  %v6077 = vpop.permute.xlu0 %6076
  %6078 = vrot.lane.b32.xlu0 %v5891, 24
  %v6079 = vpop.permute.xlu0 %6078
  %6080 = vrot.lane.b32.xlu0 %v5892, 24
  %v6081 = vpop.permute.xlu0 %6080
  %6082 = vrot.lane.b32.xlu0 %v5893, 24
  %v6083 = vpop.permute.xlu0 %6082
  %6084 = vrot.lane.b32.xlu0 %v5894, 24
  %v6085 = vpop.permute.xlu0 %6084
  %6086 = vrot.lane.b32.xlu0 %v5895, 24
  %v6087 = vpop.permute.xlu0 %6086
  %vm6152 = vcmask 261312
  %6153 = vst.msk [vmem:[#allocation5] sm:$0xff] %vm6152, %v5961
  %6154 = vst.msk [vmem:[#allocation5 + $0x8] sm:$0xff] %vm6152, %v5963
  %6155 = vst.msk [vmem:[#allocation5 + $0x10] sm:$0xff] %vm6152, %v5965
  %6156 = vst.msk [vmem:[#allocation5 + $0x18] sm:$0xff] %vm6152, %v5967
  %6157 = vst.msk [vmem:[#allocation5 + $0x20] sm:$0xff] %vm6152, %v5969
  %6158 = vst.msk [vmem:[#allocation5 + $0x28] sm:$0xff] %vm6152, %v5971
  %6159 = vst.msk [vmem:[#allocation5 + $0x30] sm:$0xff] %vm6152, %v5973
  %6160 = vst.msk [vmem:[#allocation5 + $0x38] sm:$0xff] %vm6152, %v5975
  %6161 = vst.msk [vmem:[#allocation5 + $0x40] sm:$0xff] %vm6152, %v5977
  %6162 = vst.msk [vmem:[#allocation5 + $0x48] sm:$0xff] %vm6152, %v5979
  %6163 = vst.msk [vmem:[#allocation5 + $0x50] sm:$0xff] %vm6152, %v5981
  %6164 = vst.msk [vmem:[#allocation5 + $0x58] sm:$0xff] %vm6152, %v5983
  %6165 = vst.msk [vmem:[#allocation5 + $0x60] sm:$0xff] %vm6152, %v5985
  %6166 = vst.msk [vmem:[#allocation5 + $0x68] sm:$0xff] %vm6152, %v5987
  %6167 = vst.msk [vmem:[#allocation5 + $0x70] sm:$0xff] %vm6152, %v5989
  %6168 = vst.msk [vmem:[#allocation5 + $0x78] sm:$0xff] %vm6152, %v5991
  %6169 = vst.msk [vmem:[#allocation5 + $0x80] sm:$0xff] %vm6152, %v5993
  %6170 = vst.msk [vmem:[#allocation5 + $0x88] sm:$0xff] %vm6152, %v5995
  %6171 = vst.msk [vmem:[#allocation5 + $0x90] sm:$0xff] %vm6152, %v5997
  %6172 = vst.msk [vmem:[#allocation5 + $0x98] sm:$0xff] %vm6152, %v5999
  %6173 = vst.msk [vmem:[#allocation5 + $0xa0] sm:$0xff] %vm6152, %v6001
  %6174 = vst.msk [vmem:[#allocation5 + $0xa8] sm:$0xff] %vm6152, %v6003
  %6175 = vst.msk [vmem:[#allocation5 + $0xb0] sm:$0xff] %vm6152, %v6005
  %6176 = vst.msk [vmem:[#allocation5 + $0xb8] sm:$0xff] %vm6152, %v6007
  %6177 = vst.msk [vmem:[#allocation5 + $0xc0] sm:$0xff] %vm6152, %v6009
  %6178 = vst.msk [vmem:[#allocation5 + $0xc8] sm:$0xff] %vm6152, %v6011
  %6179 = vst.msk [vmem:[#allocation5 + $0xd0] sm:$0xff] %vm6152, %v6013
  %6180 = vst.msk [vmem:[#allocation5 + $0xd8] sm:$0xff] %vm6152, %v6015
  %6181 = vst.msk [vmem:[#allocation5 + $0xe0] sm:$0xff] %vm6152, %v6017
  %6182 = vst.msk [vmem:[#allocation5 + $0xe8] sm:$0xff] %vm6152, %v6019
  %6183 = vst.msk [vmem:[#allocation5 + $0xf0] sm:$0xff] %vm6152, %v6021
  %6184 = vst.msk [vmem:[#allocation5 + $0xf8] sm:$0xff] %vm6152, %v6023
  %6185 = vst.msk [vmem:[#allocation5 + $0x100] sm:$0xff] %vm6152, %v6025
  %6186 = vst.msk [vmem:[#allocation5 + $0x108] sm:$0xff] %vm6152, %v6027
  %6187 = vst.msk [vmem:[#allocation5 + $0x110] sm:$0xff] %vm6152, %v6029
  %6188 = vst.msk [vmem:[#allocation5 + $0x118] sm:$0xff] %vm6152, %v6031
  %6189 = vst.msk [vmem:[#allocation5 + $0x120] sm:$0xff] %vm6152, %v6033
  %6190 = vst.msk [vmem:[#allocation5 + $0x128] sm:$0xff] %vm6152, %v6035
  %6191 = vst.msk [vmem:[#allocation5 + $0x130] sm:$0xff] %vm6152, %v6037
  %6192 = vst.msk [vmem:[#allocation5 + $0x138] sm:$0xff] %vm6152, %v6039
  %6193 = vst.msk [vmem:[#allocation5 + $0x140] sm:$0xff] %vm6152, %v6041
  %6194 = vst.msk [vmem:[#allocation5 + $0x148] sm:$0xff] %vm6152, %v6043
  %6195 = vst.msk [vmem:[#allocation5 + $0x150] sm:$0xff] %vm6152, %v6045
  %6196 = vst.msk [vmem:[#allocation5 + $0x158] sm:$0xff] %vm6152, %v6047
  %6197 = vst.msk [vmem:[#allocation5 + $0x160] sm:$0xff] %vm6152, %v6049
  %6198 = vst.msk [vmem:[#allocation5 + $0x168] sm:$0xff] %vm6152, %v6051
  %6199 = vst.msk [vmem:[#allocation5 + $0x170] sm:$0xff] %vm6152, %v6053
  %6200 = vst.msk [vmem:[#allocation5 + $0x178] sm:$0xff] %vm6152, %v6055
  %6201 = vst.msk [vmem:[#allocation5 + $0x180] sm:$0xff] %vm6152, %v6057
  %6202 = vst.msk [vmem:[#allocation5 + $0x188] sm:$0xff] %vm6152, %v6059
  %6203 = vst.msk [vmem:[#allocation5 + $0x190] sm:$0xff] %vm6152, %v6061
  %6204 = vst.msk [vmem:[#allocation5 + $0x198] sm:$0xff] %vm6152, %v6063
  %6205 = vst.msk [vmem:[#allocation5 + $0x1a0] sm:$0xff] %vm6152, %v6065
  %6206 = vst.msk [vmem:[#allocation5 + $0x1a8] sm:$0xff] %vm6152, %v6067
  %6207 = vst.msk [vmem:[#allocation5 + $0x1b0] sm:$0xff] %vm6152, %v6069
  %6208 = vst.msk [vmem:[#allocation5 + $0x1b8] sm:$0xff] %vm6152, %v6071
  %6209 = vst.msk [vmem:[#allocation5 + $0x1c0] sm:$0xff] %vm6152, %v6073
  %6210 = vst.msk [vmem:[#allocation5 + $0x1c8] sm:$0xff] %vm6152, %v6075
  %6211 = vst.msk [vmem:[#allocation5 + $0x1d0] sm:$0xff] %vm6152, %v6077
  %6212 = vst.msk [vmem:[#allocation5 + $0x1d8] sm:$0xff] %vm6152, %v6079
  %6213 = vst.msk [vmem:[#allocation5 + $0x1e0] sm:$0xff] %vm6152, %v6081
  %6214 = vst.msk [vmem:[#allocation5 + $0x1e8] sm:$0xff] %vm6152, %v6083
  %6215 = vst.msk [vmem:[#allocation5 + $0x1f0] sm:$0xff] %vm6152, %v6085
  %6216 = vst.msk [vmem:[#allocation5 + $0x1f8] sm:$0xff] %vm6152, %v6087
  %v6217 = vld [vmem:[%s4869 + $0x2] sm:$0xff]
  %v6218 = vld [vmem:[%s4869 + $0xa] sm:$0xff]
  %v6219 = vld [vmem:[%s4869 + $0x1a] sm:$0xff]
  %v6220 = vld [vmem:[%s4869 + $0x22] sm:$0xff]
  %v6221 = vld [vmem:[%s4869 + $0x32] sm:$0xff]
  %v6222 = vld [vmem:[%s4869 + $0x3a] sm:$0xff]
  %v6223 = vld [vmem:[%s4869 + $0x4a] sm:$0xff]
  %v6224 = vld [vmem:[%s4869 + $0x52] sm:$0xff]
  %v6225 = vld [vmem:[%s4869 + $0x62] sm:$0xff]
  %v6226 = vld [vmem:[%s4869 + $0x6a] sm:$0xff]
  %v6227 = vld [vmem:[%s4869 + $0x7a] sm:$0xff]
  %v6228 = vld [vmem:[%s4869 + $0x82] sm:$0xff]
  %v6229 = vld [vmem:[%s4869 + $0x92] sm:$0xff]
  %v6230 = vld [vmem:[%s4869 + $0x9a] sm:$0xff]
  %v6231 = vld [vmem:[%s4869 + $0xaa] sm:$0xff]
  %v6232 = vld [vmem:[%s4869 + $0xb2] sm:$0xff]
  %v6233 = vld [vmem:[%s4869 + $0xc2] sm:$0xff]
  %v6234 = vld [vmem:[%s4869 + $0xca] sm:$0xff]
  %v6235 = vld [vmem:[%s4869 + $0xda] sm:$0xff]
  %v6236 = vld [vmem:[%s4869 + $0xe2] sm:$0xff]
  %v6237 = vld [vmem:[%s4869 + $0xf2] sm:$0xff]
  %v6238 = vld [vmem:[%s4869 + $0xfa] sm:$0xff]
  %v6239 = vld [vmem:[%s4869 + $0x10a] sm:$0xff]
  %v6240 = vld [vmem:[%s4869 + $0x112] sm:$0xff]
  %v6241 = vld [vmem:[%s4869 + $0x122] sm:$0xff]
  %v6242 = vld [vmem:[%s4869 + $0x12a] sm:$0xff]
  %v6243 = vld [vmem:[%s4869 + $0x13a] sm:$0xff]
  %v6244 = vld [vmem:[%s4869 + $0x142] sm:$0xff]
  %v6245 = vld [vmem:[%s4869 + $0x152] sm:$0xff]
  %v6246 = vld [vmem:[%s4869 + $0x15a] sm:$0xff]
  %v6247 = vld [vmem:[%s4869 + $0x16a] sm:$0xff]
  %v6248 = vld [vmem:[%s4869 + $0x172] sm:$0xff]
  %v6249 = vld [vmem:[%s4869 + $0x1b2] sm:$0xff]
  %v6250 = vld [vmem:[%s4869 + $0x1ba] sm:$0xff]
  %v6251 = vld [vmem:[%s4869 + $0x1ca] sm:$0xff]
  %v6252 = vld [vmem:[%s4869 + $0x1d2] sm:$0xff]
  %v6253 = vld [vmem:[%s4869 + $0x1e2] sm:$0xff]
  %v6254 = vld [vmem:[%s4869 + $0x1ea] sm:$0xff]
  %v6255 = vld [vmem:[%s4869 + $0x1fa] sm:$0xff]
  %v6256 = vld [vmem:[%s4869 + $0x202] sm:$0xff]
  %v6257 = vld [vmem:[%s4869 + $0x212] sm:$0xff]
  %v6258 = vld [vmem:[%s4869 + $0x21a] sm:$0xff]
  %v6259 = vld [vmem:[%s4869 + $0x22a] sm:$0xff]
  %v6260 = vld [vmem:[%s4869 + $0x232] sm:$0xff]
  %v6261 = vld [vmem:[%s4869 + $0x242] sm:$0xff]
  %v6262 = vld [vmem:[%s4869 + $0x24a] sm:$0xff]
  %v6263 = vld [vmem:[%s4869 + $0x25a] sm:$0xff]
  %v6264 = vld [vmem:[%s4869 + $0x262] sm:$0xff]
  %v6265 = vld [vmem:[%s4869 + $0x272] sm:$0xff]
  %v6266 = vld [vmem:[%s4869 + $0x27a] sm:$0xff]
  %v6267 = vld [vmem:[%s4869 + $0x28a] sm:$0xff]
  %v6268 = vld [vmem:[%s4869 + $0x292] sm:$0xff]
  %v6269 = vld [vmem:[%s4869 + $0x2a2] sm:$0xff]
  %v6270 = vld [vmem:[%s4869 + $0x2aa] sm:$0xff]
  %v6271 = vld [vmem:[%s4869 + $0x2ba] sm:$0xff]
  %v6272 = vld [vmem:[%s4869 + $0x2c2] sm:$0xff]
  %v6273 = vld [vmem:[%s4869 + $0x2d2] sm:$0xff]
  %v6274 = vld [vmem:[%s4869 + $0x2da] sm:$0xff]
  %v6275 = vld [vmem:[%s4869 + $0x2ea] sm:$0xff]
  %v6276 = vld [vmem:[%s4869 + $0x2f2] sm:$0xff]
  %v6277 = vld [vmem:[%s4869 + $0x302] sm:$0xff]
  %v6278 = vld [vmem:[%s4869 + $0x30a] sm:$0xff]
  %v6279 = vld [vmem:[%s4869 + $0x31a] sm:$0xff]
  %v6280 = vld [vmem:[%s4869 + $0x322] sm:$0xff]
  %6345 = vrot.lane.b32.xlu0 %v6217, 32
  %v6346 = vpop.permute.xlu0 %6345
  %6347 = vrot.lane.b32.xlu0 %v6218, 32
  %v6348 = vpop.permute.xlu0 %6347
  %6349 = vrot.lane.b32.xlu0 %v6219, 32
  %v6350 = vpop.permute.xlu0 %6349
  %6351 = vrot.lane.b32.xlu0 %v6220, 32
  %v6352 = vpop.permute.xlu0 %6351
  %6353 = vrot.lane.b32.xlu0 %v6221, 32
  %v6354 = vpop.permute.xlu0 %6353
  %6355 = vrot.lane.b32.xlu0 %v6222, 32
  %v6356 = vpop.permute.xlu0 %6355
  %6357 = vrot.lane.b32.xlu0 %v6223, 32
  %v6358 = vpop.permute.xlu0 %6357
  %6359 = vrot.lane.b32.xlu0 %v6224, 32
  %v6360 = vpop.permute.xlu0 %6359
  %6361 = vrot.lane.b32.xlu0 %v6225, 32
  %v6362 = vpop.permute.xlu0 %6361
  %6363 = vrot.lane.b32.xlu0 %v6226, 32
  %v6364 = vpop.permute.xlu0 %6363
  %6365 = vrot.lane.b32.xlu0 %v6227, 32
  %v6366 = vpop.permute.xlu0 %6365
  %6367 = vrot.lane.b32.xlu0 %v6228, 32
  %v6368 = vpop.permute.xlu0 %6367
  %6369 = vrot.lane.b32.xlu0 %v6229, 32
  %v6370 = vpop.permute.xlu0 %6369
  %6371 = vrot.lane.b32.xlu0 %v6230, 32
  %v6372 = vpop.permute.xlu0 %6371
  %6373 = vrot.lane.b32.xlu0 %v6231, 32
  %v6374 = vpop.permute.xlu0 %6373
  %6375 = vrot.lane.b32.xlu0 %v6232, 32
  %v6376 = vpop.permute.xlu0 %6375
  %6377 = vrot.lane.b32.xlu0 %v6233, 32
  %v6378 = vpop.permute.xlu0 %6377
  %6379 = vrot.lane.b32.xlu0 %v6234, 32
  %v6380 = vpop.permute.xlu0 %6379
  %6381 = vrot.lane.b32.xlu0 %v6235, 32
  %v6382 = vpop.permute.xlu0 %6381
  %6383 = vrot.lane.b32.xlu0 %v6236, 32
  %v6384 = vpop.permute.xlu0 %6383
  %6385 = vrot.lane.b32.xlu0 %v6237, 32
  %v6386 = vpop.permute.xlu0 %6385
  %6387 = vrot.lane.b32.xlu0 %v6238, 32
  %v6388 = vpop.permute.xlu0 %6387
  %6389 = vrot.lane.b32.xlu0 %v6239, 32
  %v6390 = vpop.permute.xlu0 %6389
  %6391 = vrot.lane.b32.xlu0 %v6240, 32
  %v6392 = vpop.permute.xlu0 %6391
  %6393 = vrot.lane.b32.xlu0 %v6241, 32
  %v6394 = vpop.permute.xlu0 %6393
  %6395 = vrot.lane.b32.xlu0 %v6242, 32
  %v6396 = vpop.permute.xlu0 %6395
  %6397 = vrot.lane.b32.xlu0 %v6243, 32
  %v6398 = vpop.permute.xlu0 %6397
  %6399 = vrot.lane.b32.xlu0 %v6244, 32
  %v6400 = vpop.permute.xlu0 %6399
  %6401 = vrot.lane.b32.xlu0 %v6245, 32
  %v6402 = vpop.permute.xlu0 %6401
  %6403 = vrot.lane.b32.xlu0 %v6246, 32
  %v6404 = vpop.permute.xlu0 %6403
  %6405 = vrot.lane.b32.xlu0 %v6247, 32
  %v6406 = vpop.permute.xlu0 %6405
  %6407 = vrot.lane.b32.xlu0 %v6248, 32
  %v6408 = vpop.permute.xlu0 %6407
  %6409 = vrot.lane.b32.xlu0 %v6249, 32
  %v6410 = vpop.permute.xlu0 %6409
  %6411 = vrot.lane.b32.xlu0 %v6250, 32
  %v6412 = vpop.permute.xlu0 %6411
  %6413 = vrot.lane.b32.xlu0 %v6251, 32
  %v6414 = vpop.permute.xlu0 %6413
  %6415 = vrot.lane.b32.xlu0 %v6252, 32
  %v6416 = vpop.permute.xlu0 %6415
  %6417 = vrot.lane.b32.xlu0 %v6253, 32
  %v6418 = vpop.permute.xlu0 %6417
  %6419 = vrot.lane.b32.xlu0 %v6254, 32
  %v6420 = vpop.permute.xlu0 %6419
  %6421 = vrot.lane.b32.xlu0 %v6255, 32
  %v6422 = vpop.permute.xlu0 %6421
  %6423 = vrot.lane.b32.xlu0 %v6256, 32
  %v6424 = vpop.permute.xlu0 %6423
  %6425 = vrot.lane.b32.xlu0 %v6257, 32
  %v6426 = vpop.permute.xlu0 %6425
  %6427 = vrot.lane.b32.xlu0 %v6258, 32
  %v6428 = vpop.permute.xlu0 %6427
  %6429 = vrot.lane.b32.xlu0 %v6259, 32
  %v6430 = vpop.permute.xlu0 %6429
  %6431 = vrot.lane.b32.xlu0 %v6260, 32
  %v6432 = vpop.permute.xlu0 %6431
  %6433 = vrot.lane.b32.xlu0 %v6261, 32
  %v6434 = vpop.permute.xlu0 %6433
  %6435 = vrot.lane.b32.xlu0 %v6262, 32
  %v6436 = vpop.permute.xlu0 %6435
  %6437 = vrot.lane.b32.xlu0 %v6263, 32
  %v6438 = vpop.permute.xlu0 %6437
  %6439 = vrot.lane.b32.xlu0 %v6264, 32
  %v6440 = vpop.permute.xlu0 %6439
  %6441 = vrot.lane.b32.xlu0 %v6265, 32
  %v6442 = vpop.permute.xlu0 %6441
  %6443 = vrot.lane.b32.xlu0 %v6266, 32
  %v6444 = vpop.permute.xlu0 %6443
  %6445 = vrot.lane.b32.xlu0 %v6267, 32
  %v6446 = vpop.permute.xlu0 %6445
  %6447 = vrot.lane.b32.xlu0 %v6268, 32
  %v6448 = vpop.permute.xlu0 %6447
  %6449 = vrot.lane.b32.xlu0 %v6269, 32
  %v6450 = vpop.permute.xlu0 %6449
  %6451 = vrot.lane.b32.xlu0 %v6270, 32
  %v6452 = vpop.permute.xlu0 %6451
  %6453 = vrot.lane.b32.xlu0 %v6271, 32
  %v6454 = vpop.permute.xlu0 %6453
  %6455 = vrot.lane.b32.xlu0 %v6272, 32
  %v6456 = vpop.permute.xlu0 %6455
  %6457 = vrot.lane.b32.xlu0 %v6273, 32
  %v6458 = vpop.permute.xlu0 %6457
  %6459 = vrot.lane.b32.xlu0 %v6274, 32
  %v6460 = vpop.permute.xlu0 %6459
  %6461 = vrot.lane.b32.xlu0 %v6275, 32
  %v6462 = vpop.permute.xlu0 %6461
  %6463 = vrot.lane.b32.xlu0 %v6276, 32
  %v6464 = vpop.permute.xlu0 %6463
  %6465 = vrot.lane.b32.xlu0 %v6277, 32
  %v6466 = vpop.permute.xlu0 %6465
  %6467 = vrot.lane.b32.xlu0 %v6278, 32
  %v6468 = vpop.permute.xlu0 %6467
  %6469 = vrot.lane.b32.xlu0 %v6279, 32
  %v6470 = vpop.permute.xlu0 %6469
  %6471 = vrot.lane.b32.xlu0 %v6280, 32
  %v6472 = vpop.permute.xlu0 %6471
  %vm6537 = vcmask 326912
  %6538 = vst.msk [vmem:[#allocation5] sm:$0xff] %vm6537, %v6346
  %6539 = vst.msk [vmem:[#allocation5 + $0x8] sm:$0xff] %vm6537, %v6348
  %6540 = vst.msk [vmem:[#allocation5 + $0x10] sm:$0xff] %vm6537, %v6350
  %6541 = vst.msk [vmem:[#allocation5 + $0x18] sm:$0xff] %vm6537, %v6352
  %6542 = vst.msk [vmem:[#allocation5 + $0x20] sm:$0xff] %vm6537, %v6354
  %6543 = vst.msk [vmem:[#allocation5 + $0x28] sm:$0xff] %vm6537, %v6356
  %6544 = vst.msk [vmem:[#allocation5 + $0x30] sm:$0xff] %vm6537, %v6358
  %6545 = vst.msk [vmem:[#allocation5 + $0x38] sm:$0xff] %vm6537, %v6360
  %6546 = vst.msk [vmem:[#allocation5 + $0x40] sm:$0xff] %vm6537, %v6362
  %6547 = vst.msk [vmem:[#allocation5 + $0x48] sm:$0xff] %vm6537, %v6364
  %6548 = vst.msk [vmem:[#allocation5 + $0x50] sm:$0xff] %vm6537, %v6366
  %6549 = vst.msk [vmem:[#allocation5 + $0x58] sm:$0xff] %vm6537, %v6368
  %6550 = vst.msk [vmem:[#allocation5 + $0x60] sm:$0xff] %vm6537, %v6370
  %6551 = vst.msk [vmem:[#allocation5 + $0x68] sm:$0xff] %vm6537, %v6372
  %6552 = vst.msk [vmem:[#allocation5 + $0x70] sm:$0xff] %vm6537, %v6374
  %6553 = vst.msk [vmem:[#allocation5 + $0x78] sm:$0xff] %vm6537, %v6376
  %6554 = vst.msk [vmem:[#allocation5 + $0x80] sm:$0xff] %vm6537, %v6378
  %6555 = vst.msk [vmem:[#allocation5 + $0x88] sm:$0xff] %vm6537, %v6380
  %6556 = vst.msk [vmem:[#allocation5 + $0x90] sm:$0xff] %vm6537, %v6382
  %6557 = vst.msk [vmem:[#allocation5 + $0x98] sm:$0xff] %vm6537, %v6384
  %6558 = vst.msk [vmem:[#allocation5 + $0xa0] sm:$0xff] %vm6537, %v6386
  %6559 = vst.msk [vmem:[#allocation5 + $0xa8] sm:$0xff] %vm6537, %v6388
  %6560 = vst.msk [vmem:[#allocation5 + $0xb0] sm:$0xff] %vm6537, %v6390
  %6561 = vst.msk [vmem:[#allocation5 + $0xb8] sm:$0xff] %vm6537, %v6392
  %6562 = vst.msk [vmem:[#allocation5 + $0xc0] sm:$0xff] %vm6537, %v6394
  %6563 = vst.msk [vmem:[#allocation5 + $0xc8] sm:$0xff] %vm6537, %v6396
  %6564 = vst.msk [vmem:[#allocation5 + $0xd0] sm:$0xff] %vm6537, %v6398
  %6565 = vst.msk [vmem:[#allocation5 + $0xd8] sm:$0xff] %vm6537, %v6400
  %6566 = vst.msk [vmem:[#allocation5 + $0xe0] sm:$0xff] %vm6537, %v6402
  %6567 = vst.msk [vmem:[#allocation5 + $0xe8] sm:$0xff] %vm6537, %v6404
  %6568 = vst.msk [vmem:[#allocation5 + $0xf0] sm:$0xff] %vm6537, %v6406
  %6569 = vst.msk [vmem:[#allocation5 + $0xf8] sm:$0xff] %vm6537, %v6408
  %6570 = vst.msk [vmem:[#allocation5 + $0x100] sm:$0xff] %vm6537, %v6410
  %6571 = vst.msk [vmem:[#allocation5 + $0x108] sm:$0xff] %vm6537, %v6412
  %6572 = vst.msk [vmem:[#allocation5 + $0x110] sm:$0xff] %vm6537, %v6414
  %6573 = vst.msk [vmem:[#allocation5 + $0x118] sm:$0xff] %vm6537, %v6416
  %6574 = vst.msk [vmem:[#allocation5 + $0x120] sm:$0xff] %vm6537, %v6418
  %6575 = vst.msk [vmem:[#allocation5 + $0x128] sm:$0xff] %vm6537, %v6420
  %6576 = vst.msk [vmem:[#allocation5 + $0x130] sm:$0xff] %vm6537, %v6422
  %6577 = vst.msk [vmem:[#allocation5 + $0x138] sm:$0xff] %vm6537, %v6424
  %6578 = vst.msk [vmem:[#allocation5 + $0x140] sm:$0xff] %vm6537, %v6426
  %6579 = vst.msk [vmem:[#allocation5 + $0x148] sm:$0xff] %vm6537, %v6428
  %6580 = vst.msk [vmem:[#allocation5 + $0x150] sm:$0xff] %vm6537, %v6430
  %6581 = vst.msk [vmem:[#allocation5 + $0x158] sm:$0xff] %vm6537, %v6432
  %6582 = vst.msk [vmem:[#allocation5 + $0x160] sm:$0xff] %vm6537, %v6434
  %6583 = vst.msk [vmem:[#allocation5 + $0x168] sm:$0xff] %vm6537, %v6436
  %6584 = vst.msk [vmem:[#allocation5 + $0x170] sm:$0xff] %vm6537, %v6438
  %6585 = vst.msk [vmem:[#allocation5 + $0x178] sm:$0xff] %vm6537, %v6440
  %6586 = vst.msk [vmem:[#allocation5 + $0x180] sm:$0xff] %vm6537, %v6442
  %6587 = vst.msk [vmem:[#allocation5 + $0x188] sm:$0xff] %vm6537, %v6444
  %6588 = vst.msk [vmem:[#allocation5 + $0x190] sm:$0xff] %vm6537, %v6446
  %6589 = vst.msk [vmem:[#allocation5 + $0x198] sm:$0xff] %vm6537, %v6448
  %6590 = vst.msk [vmem:[#allocation5 + $0x1a0] sm:$0xff] %vm6537, %v6450
  %6591 = vst.msk [vmem:[#allocation5 + $0x1a8] sm:$0xff] %vm6537, %v6452
  %6592 = vst.msk [vmem:[#allocation5 + $0x1b0] sm:$0xff] %vm6537, %v6454
  %6593 = vst.msk [vmem:[#allocation5 + $0x1b8] sm:$0xff] %vm6537, %v6456
  %6594 = vst.msk [vmem:[#allocation5 + $0x1c0] sm:$0xff] %vm6537, %v6458
  %6595 = vst.msk [vmem:[#allocation5 + $0x1c8] sm:$0xff] %vm6537, %v6460
  %6596 = vst.msk [vmem:[#allocation5 + $0x1d0] sm:$0xff] %vm6537, %v6462
  %6597 = vst.msk [vmem:[#allocation5 + $0x1d8] sm:$0xff] %vm6537, %v6464
  %6598 = vst.msk [vmem:[#allocation5 + $0x1e0] sm:$0xff] %vm6537, %v6466
  %6599 = vst.msk [vmem:[#allocation5 + $0x1e8] sm:$0xff] %vm6537, %v6468
  %6600 = vst.msk [vmem:[#allocation5 + $0x1f0] sm:$0xff] %vm6537, %v6470
  %6601 = vst.msk [vmem:[#allocation5 + $0x1f8] sm:$0xff] %vm6537, %v6472
  %v6602 = vld [vmem:[%s4869 + $0x3] sm:$0xff]
  %v6603 = vld [vmem:[%s4869 + $0xb] sm:$0xff]
  %v6604 = vld [vmem:[%s4869 + $0x1b] sm:$0xff]
  %v6605 = vld [vmem:[%s4869 + $0x23] sm:$0xff]
  %v6606 = vld [vmem:[%s4869 + $0x33] sm:$0xff]
  %v6607 = vld [vmem:[%s4869 + $0x3b] sm:$0xff]
  %v6608 = vld [vmem:[%s4869 + $0x4b] sm:$0xff]
  %v6609 = vld [vmem:[%s4869 + $0x53] sm:$0xff]
  %v6610 = vld [vmem:[%s4869 + $0x63] sm:$0xff]
  %v6611 = vld [vmem:[%s4869 + $0x6b] sm:$0xff]
  %v6612 = vld [vmem:[%s4869 + $0x7b] sm:$0xff]
  %v6613 = vld [vmem:[%s4869 + $0x83] sm:$0xff]
  %v6614 = vld [vmem:[%s4869 + $0x93] sm:$0xff]
  %v6615 = vld [vmem:[%s4869 + $0x9b] sm:$0xff]
  %v6616 = vld [vmem:[%s4869 + $0xab] sm:$0xff]
  %v6617 = vld [vmem:[%s4869 + $0xb3] sm:$0xff]
  %v6618 = vld [vmem:[%s4869 + $0xc3] sm:$0xff]
  %v6619 = vld [vmem:[%s4869 + $0xcb] sm:$0xff]
  %v6620 = vld [vmem:[%s4869 + $0xdb] sm:$0xff]
  %v6621 = vld [vmem:[%s4869 + $0xe3] sm:$0xff]
  %v6622 = vld [vmem:[%s4869 + $0xf3] sm:$0xff]
  %v6623 = vld [vmem:[%s4869 + $0xfb] sm:$0xff]
  %v6624 = vld [vmem:[%s4869 + $0x10b] sm:$0xff]
  %v6625 = vld [vmem:[%s4869 + $0x113] sm:$0xff]
  %v6626 = vld [vmem:[%s4869 + $0x123] sm:$0xff]
  %v6627 = vld [vmem:[%s4869 + $0x12b] sm:$0xff]
  %v6628 = vld [vmem:[%s4869 + $0x13b] sm:$0xff]
  %v6629 = vld [vmem:[%s4869 + $0x143] sm:$0xff]
  %v6630 = vld [vmem:[%s4869 + $0x153] sm:$0xff]
  %v6631 = vld [vmem:[%s4869 + $0x15b] sm:$0xff]
  %v6632 = vld [vmem:[%s4869 + $0x16b] sm:$0xff]
  %v6633 = vld [vmem:[%s4869 + $0x173] sm:$0xff]
  %v6634 = vld [vmem:[%s4869 + $0x1b3] sm:$0xff]
  %v6635 = vld [vmem:[%s4869 + $0x1bb] sm:$0xff]
  %v6636 = vld [vmem:[%s4869 + $0x1cb] sm:$0xff]
  %v6637 = vld [vmem:[%s4869 + $0x1d3] sm:$0xff]
  %v6638 = vld [vmem:[%s4869 + $0x1e3] sm:$0xff]
  %v6639 = vld [vmem:[%s4869 + $0x1eb] sm:$0xff]
  %v6640 = vld [vmem:[%s4869 + $0x1fb] sm:$0xff]
  %v6641 = vld [vmem:[%s4869 + $0x203] sm:$0xff]
  %v6642 = vld [vmem:[%s4869 + $0x213] sm:$0xff]
  %v6643 = vld [vmem:[%s4869 + $0x21b] sm:$0xff]
  %v6644 = vld [vmem:[%s4869 + $0x22b] sm:$0xff]
  %v6645 = vld [vmem:[%s4869 + $0x233] sm:$0xff]
  %v6646 = vld [vmem:[%s4869 + $0x243] sm:$0xff]
  %v6647 = vld [vmem:[%s4869 + $0x24b] sm:$0xff]
  %v6648 = vld [vmem:[%s4869 + $0x25b] sm:$0xff]
  %v6649 = vld [vmem:[%s4869 + $0x263] sm:$0xff]
  %v6650 = vld [vmem:[%s4869 + $0x273] sm:$0xff]
  %v6651 = vld [vmem:[%s4869 + $0x27b] sm:$0xff]
  %v6652 = vld [vmem:[%s4869 + $0x28b] sm:$0xff]
  %v6653 = vld [vmem:[%s4869 + $0x293] sm:$0xff]
  %v6654 = vld [vmem:[%s4869 + $0x2a3] sm:$0xff]
  %v6655 = vld [vmem:[%s4869 + $0x2ab] sm:$0xff]
  %v6656 = vld [vmem:[%s4869 + $0x2bb] sm:$0xff]
  %v6657 = vld [vmem:[%s4869 + $0x2c3] sm:$0xff]
  %v6658 = vld [vmem:[%s4869 + $0x2d3] sm:$0xff]
  %v6659 = vld [vmem:[%s4869 + $0x2db] sm:$0xff]
  %v6660 = vld [vmem:[%s4869 + $0x2eb] sm:$0xff]
  %v6661 = vld [vmem:[%s4869 + $0x2f3] sm:$0xff]
  %v6662 = vld [vmem:[%s4869 + $0x303] sm:$0xff]
  %v6663 = vld [vmem:[%s4869 + $0x30b] sm:$0xff]
  %v6664 = vld [vmem:[%s4869 + $0x31b] sm:$0xff]
  %v6665 = vld [vmem:[%s4869 + $0x323] sm:$0xff]
  %6730 = vrot.lane.b32.xlu0 %v6602, 40
  %v6731 = vpop.permute.xlu0 %6730
  %6732 = vrot.lane.b32.xlu0 %v6603, 40
  %v6733 = vpop.permute.xlu0 %6732
  %6734 = vrot.lane.b32.xlu0 %v6604, 40
  %v6735 = vpop.permute.xlu0 %6734
  %6736 = vrot.lane.b32.xlu0 %v6605, 40
  %v6737 = vpop.permute.xlu0 %6736
  %6738 = vrot.lane.b32.xlu0 %v6606, 40
  %v6739 = vpop.permute.xlu0 %6738
  %6740 = vrot.lane.b32.xlu0 %v6607, 40
  %v6741 = vpop.permute.xlu0 %6740
  %6742 = vrot.lane.b32.xlu0 %v6608, 40
  %v6743 = vpop.permute.xlu0 %6742
  %6744 = vrot.lane.b32.xlu0 %v6609, 40
  %v6745 = vpop.permute.xlu0 %6744
  %6746 = vrot.lane.b32.xlu0 %v6610, 40
  %v6747 = vpop.permute.xlu0 %6746
  %6748 = vrot.lane.b32.xlu0 %v6611, 40
  %v6749 = vpop.permute.xlu0 %6748
  %6750 = vrot.lane.b32.xlu0 %v6612, 40
  %v6751 = vpop.permute.xlu0 %6750
  %6752 = vrot.lane.b32.xlu0 %v6613, 40
  %v6753 = vpop.permute.xlu0 %6752
  %6754 = vrot.lane.b32.xlu0 %v6614, 40
  %v6755 = vpop.permute.xlu0 %6754
  %6756 = vrot.lane.b32.xlu0 %v6615, 40
  %v6757 = vpop.permute.xlu0 %6756
  %6758 = vrot.lane.b32.xlu0 %v6616, 40
  %v6759 = vpop.permute.xlu0 %6758
  %6760 = vrot.lane.b32.xlu0 %v6617, 40
  %v6761 = vpop.permute.xlu0 %6760
  %6762 = vrot.lane.b32.xlu0 %v6618, 40
  %v6763 = vpop.permute.xlu0 %6762
  %6764 = vrot.lane.b32.xlu0 %v6619, 40
  %v6765 = vpop.permute.xlu0 %6764
  %6766 = vrot.lane.b32.xlu0 %v6620, 40
  %v6767 = vpop.permute.xlu0 %6766
  %6768 = vrot.lane.b32.xlu0 %v6621, 40
  %v6769 = vpop.permute.xlu0 %6768
  %6770 = vrot.lane.b32.xlu0 %v6622, 40
  %v6771 = vpop.permute.xlu0 %6770
  %6772 = vrot.lane.b32.xlu0 %v6623, 40
  %v6773 = vpop.permute.xlu0 %6772
  %6774 = vrot.lane.b32.xlu0 %v6624, 40
  %v6775 = vpop.permute.xlu0 %6774
  %6776 = vrot.lane.b32.xlu0 %v6625, 40
  %v6777 = vpop.permute.xlu0 %6776
  %6778 = vrot.lane.b32.xlu0 %v6626, 40
  %v6779 = vpop.permute.xlu0 %6778
  %6780 = vrot.lane.b32.xlu0 %v6627, 40
  %v6781 = vpop.permute.xlu0 %6780
  %6782 = vrot.lane.b32.xlu0 %v6628, 40
  %v6783 = vpop.permute.xlu0 %6782
  %6784 = vrot.lane.b32.xlu0 %v6629, 40
  %v6785 = vpop.permute.xlu0 %6784
  %6786 = vrot.lane.b32.xlu0 %v6630, 40
  %v6787 = vpop.permute.xlu0 %6786
  %6788 = vrot.lane.b32.xlu0 %v6631, 40
  %v6789 = vpop.permute.xlu0 %6788
  %6790 = vrot.lane.b32.xlu0 %v6632, 40
  %v6791 = vpop.permute.xlu0 %6790
  %6792 = vrot.lane.b32.xlu0 %v6633, 40
  %v6793 = vpop.permute.xlu0 %6792
  %6794 = vrot.lane.b32.xlu0 %v6634, 40
  %v6795 = vpop.permute.xlu0 %6794
  %6796 = vrot.lane.b32.xlu0 %v6635, 40
  %v6797 = vpop.permute.xlu0 %6796
  %6798 = vrot.lane.b32.xlu0 %v6636, 40
  %v6799 = vpop.permute.xlu0 %6798
  %6800 = vrot.lane.b32.xlu0 %v6637, 40
  %v6801 = vpop.permute.xlu0 %6800
  %6802 = vrot.lane.b32.xlu0 %v6638, 40
  %v6803 = vpop.permute.xlu0 %6802
  %6804 = vrot.lane.b32.xlu0 %v6639, 40
  %v6805 = vpop.permute.xlu0 %6804
  %6806 = vrot.lane.b32.xlu0 %v6640, 40
  %v6807 = vpop.permute.xlu0 %6806
  %6808 = vrot.lane.b32.xlu0 %v6641, 40
  %v6809 = vpop.permute.xlu0 %6808
  %6810 = vrot.lane.b32.xlu0 %v6642, 40
  %v6811 = vpop.permute.xlu0 %6810
  %6812 = vrot.lane.b32.xlu0 %v6643, 40
  %v6813 = vpop.permute.xlu0 %6812
  %6814 = vrot.lane.b32.xlu0 %v6644, 40
  %v6815 = vpop.permute.xlu0 %6814
  %6816 = vrot.lane.b32.xlu0 %v6645, 40
  %v6817 = vpop.permute.xlu0 %6816
  %6818 = vrot.lane.b32.xlu0 %v6646, 40
  %v6819 = vpop.permute.xlu0 %6818
  %6820 = vrot.lane.b32.xlu0 %v6647, 40
  %v6821 = vpop.permute.xlu0 %6820
  %6822 = vrot.lane.b32.xlu0 %v6648, 40
  %v6823 = vpop.permute.xlu0 %6822
  %6824 = vrot.lane.b32.xlu0 %v6649, 40
  %v6825 = vpop.permute.xlu0 %6824
  %6826 = vrot.lane.b32.xlu0 %v6650, 40
  %v6827 = vpop.permute.xlu0 %6826
  %6828 = vrot.lane.b32.xlu0 %v6651, 40
  %v6829 = vpop.permute.xlu0 %6828
  %6830 = vrot.lane.b32.xlu0 %v6652, 40
  %v6831 = vpop.permute.xlu0 %6830
  %6832 = vrot.lane.b32.xlu0 %v6653, 40
  %v6833 = vpop.permute.xlu0 %6832
  %6834 = vrot.lane.b32.xlu0 %v6654, 40
  %v6835 = vpop.permute.xlu0 %6834
  %6836 = vrot.lane.b32.xlu0 %v6655, 40
  %v6837 = vpop.permute.xlu0 %6836
  %6838 = vrot.lane.b32.xlu0 %v6656, 40
  %v6839 = vpop.permute.xlu0 %6838
  %6840 = vrot.lane.b32.xlu0 %v6657, 40
  %v6841 = vpop.permute.xlu0 %6840
  %6842 = vrot.lane.b32.xlu0 %v6658, 40
  %v6843 = vpop.permute.xlu0 %6842
  %6844 = vrot.lane.b32.xlu0 %v6659, 40
  %v6845 = vpop.permute.xlu0 %6844
  %6846 = vrot.lane.b32.xlu0 %v6660, 40
  %v6847 = vpop.permute.xlu0 %6846
  %6848 = vrot.lane.b32.xlu0 %v6661, 40
  %v6849 = vpop.permute.xlu0 %6848
  %6850 = vrot.lane.b32.xlu0 %v6662, 40
  %v6851 = vpop.permute.xlu0 %6850
  %6852 = vrot.lane.b32.xlu0 %v6663, 40
  %v6853 = vpop.permute.xlu0 %6852
  %6854 = vrot.lane.b32.xlu0 %v6664, 40
  %v6855 = vpop.permute.xlu0 %6854
  %6856 = vrot.lane.b32.xlu0 %v6665, 40
  %v6857 = vpop.permute.xlu0 %6856
  %vm6922 = vcmask 392512
  %6923 = vst.msk [vmem:[#allocation5] sm:$0xff] %vm6922, %v6731
  %6924 = vst.msk [vmem:[#allocation5 + $0x8] sm:$0xff] %vm6922, %v6733
  %6925 = vst.msk [vmem:[#allocation5 + $0x10] sm:$0xff] %vm6922, %v6735
  %6926 = vst.msk [vmem:[#allocation5 + $0x18] sm:$0xff] %vm6922, %v6737
  %6927 = vst.msk [vmem:[#allocation5 + $0x20] sm:$0xff] %vm6922, %v6739
  %6928 = vst.msk [vmem:[#allocation5 + $0x28] sm:$0xff] %vm6922, %v6741
  %6929 = vst.msk [vmem:[#allocation5 + $0x30] sm:$0xff] %vm6922, %v6743
  %6930 = vst.msk [vmem:[#allocation5 + $0x38] sm:$0xff] %vm6922, %v6745
  %6931 = vst.msk [vmem:[#allocation5 + $0x40] sm:$0xff] %vm6922, %v6747
  %6932 = vst.msk [vmem:[#allocation5 + $0x48] sm:$0xff] %vm6922, %v6749
  %6933 = vst.msk [vmem:[#allocation5 + $0x50] sm:$0xff] %vm6922, %v6751
  %6934 = vst.msk [vmem:[#allocation5 + $0x58] sm:$0xff] %vm6922, %v6753
  %6935 = vst.msk [vmem:[#allocation5 + $0x60] sm:$0xff] %vm6922, %v6755
  %6936 = vst.msk [vmem:[#allocation5 + $0x68] sm:$0xff] %vm6922, %v6757
  %6937 = vst.msk [vmem:[#allocation5 + $0x70] sm:$0xff] %vm6922, %v6759
  %6938 = vst.msk [vmem:[#allocation5 + $0x78] sm:$0xff] %vm6922, %v6761
  %6939 = vst.msk [vmem:[#allocation5 + $0x80] sm:$0xff] %vm6922, %v6763
  %6940 = vst.msk [vmem:[#allocation5 + $0x88] sm:$0xff] %vm6922, %v6765
  %6941 = vst.msk [vmem:[#allocation5 + $0x90] sm:$0xff] %vm6922, %v6767
  %6942 = vst.msk [vmem:[#allocation5 + $0x98] sm:$0xff] %vm6922, %v6769
  %6943 = vst.msk [vmem:[#allocation5 + $0xa0] sm:$0xff] %vm6922, %v6771
  %6944 = vst.msk [vmem:[#allocation5 + $0xa8] sm:$0xff] %vm6922, %v6773
  %6945 = vst.msk [vmem:[#allocation5 + $0xb0] sm:$0xff] %vm6922, %v6775
  %6946 = vst.msk [vmem:[#allocation5 + $0xb8] sm:$0xff] %vm6922, %v6777
  %6947 = vst.msk [vmem:[#allocation5 + $0xc0] sm:$0xff] %vm6922, %v6779
  %6948 = vst.msk [vmem:[#allocation5 + $0xc8] sm:$0xff] %vm6922, %v6781
  %6949 = vst.msk [vmem:[#allocation5 + $0xd0] sm:$0xff] %vm6922, %v6783
  %6950 = vst.msk [vmem:[#allocation5 + $0xd8] sm:$0xff] %vm6922, %v6785
  %6951 = vst.msk [vmem:[#allocation5 + $0xe0] sm:$0xff] %vm6922, %v6787
  %6952 = vst.msk [vmem:[#allocation5 + $0xe8] sm:$0xff] %vm6922, %v6789
  %6953 = vst.msk [vmem:[#allocation5 + $0xf0] sm:$0xff] %vm6922, %v6791
  %6954 = vst.msk [vmem:[#allocation5 + $0xf8] sm:$0xff] %vm6922, %v6793
  %6955 = vst.msk [vmem:[#allocation5 + $0x100] sm:$0xff] %vm6922, %v6795
  %6956 = vst.msk [vmem:[#allocation5 + $0x108] sm:$0xff] %vm6922, %v6797
  %6957 = vst.msk [vmem:[#allocation5 + $0x110] sm:$0xff] %vm6922, %v6799
  %6958 = vst.msk [vmem:[#allocation5 + $0x118] sm:$0xff] %vm6922, %v6801
  %6959 = vst.msk [vmem:[#allocation5 + $0x120] sm:$0xff] %vm6922, %v6803
  %6960 = vst.msk [vmem:[#allocation5 + $0x128] sm:$0xff] %vm6922, %v6805
  %6961 = vst.msk [vmem:[#allocation5 + $0x130] sm:$0xff] %vm6922, %v6807
  %6962 = vst.msk [vmem:[#allocation5 + $0x138] sm:$0xff] %vm6922, %v6809
  %6963 = vst.msk [vmem:[#allocation5 + $0x140] sm:$0xff] %vm6922, %v6811
  %6964 = vst.msk [vmem:[#allocation5 + $0x148] sm:$0xff] %vm6922, %v6813
  %6965 = vst.msk [vmem:[#allocation5 + $0x150] sm:$0xff] %vm6922, %v6815
  %6966 = vst.msk [vmem:[#allocation5 + $0x158] sm:$0xff] %vm6922, %v6817
  %6967 = vst.msk [vmem:[#allocation5 + $0x160] sm:$0xff] %vm6922, %v6819
  %6968 = vst.msk [vmem:[#allocation5 + $0x168] sm:$0xff] %vm6922, %v6821
  %6969 = vst.msk [vmem:[#allocation5 + $0x170] sm:$0xff] %vm6922, %v6823
  %6970 = vst.msk [vmem:[#allocation5 + $0x178] sm:$0xff] %vm6922, %v6825
  %6971 = vst.msk [vmem:[#allocation5 + $0x180] sm:$0xff] %vm6922, %v6827
  %6972 = vst.msk [vmem:[#allocation5 + $0x188] sm:$0xff] %vm6922, %v6829
  %6973 = vst.msk [vmem:[#allocation5 + $0x190] sm:$0xff] %vm6922, %v6831
  %6974 = vst.msk [vmem:[#allocation5 + $0x198] sm:$0xff] %vm6922, %v6833
  %6975 = vst.msk [vmem:[#allocation5 + $0x1a0] sm:$0xff] %vm6922, %v6835
  %6976 = vst.msk [vmem:[#allocation5 + $0x1a8] sm:$0xff] %vm6922, %v6837
  %6977 = vst.msk [vmem:[#allocation5 + $0x1b0] sm:$0xff] %vm6922, %v6839
  %6978 = vst.msk [vmem:[#allocation5 + $0x1b8] sm:$0xff] %vm6922, %v6841
  %6979 = vst.msk [vmem:[#allocation5 + $0x1c0] sm:$0xff] %vm6922, %v6843
  %6980 = vst.msk [vmem:[#allocation5 + $0x1c8] sm:$0xff] %vm6922, %v6845
  %6981 = vst.msk [vmem:[#allocation5 + $0x1d0] sm:$0xff] %vm6922, %v6847
  %6982 = vst.msk [vmem:[#allocation5 + $0x1d8] sm:$0xff] %vm6922, %v6849
  %6983 = vst.msk [vmem:[#allocation5 + $0x1e0] sm:$0xff] %vm6922, %v6851
  %6984 = vst.msk [vmem:[#allocation5 + $0x1e8] sm:$0xff] %vm6922, %v6853
  %6985 = vst.msk [vmem:[#allocation5 + $0x1f0] sm:$0xff] %vm6922, %v6855
  %6986 = vst.msk [vmem:[#allocation5 + $0x1f8] sm:$0xff] %vm6922, %v6857
  %s6987 = scalar_lea.vmem [#allocation3], 48
  %v6988 = vld [vmem:[%s6987 + $0x1] sm:$0xff]
  %v6989 = vld [vmem:[%s6987 + $0x9] sm:$0xff]
  %v6990 = vld [vmem:[%s6987 + $0x19] sm:$0xff]
  %v6991 = vld [vmem:[%s6987 + $0x21] sm:$0xff]
  %v6992 = vld [vmem:[%s6987 + $0x31] sm:$0xff]
  %v6993 = vld [vmem:[%s6987 + $0x39] sm:$0xff]
  %v6994 = vld [vmem:[%s6987 + $0x49] sm:$0xff]
  %v6995 = vld [vmem:[%s6987 + $0x51] sm:$0xff]
  %v6996 = vld [vmem:[%s6987 + $0x61] sm:$0xff]
  %v6997 = vld [vmem:[%s6987 + $0x69] sm:$0xff]
  %v6998 = vld [vmem:[%s6987 + $0x79] sm:$0xff]
  %v6999 = vld [vmem:[%s6987 + $0x81] sm:$0xff]
  %v7000 = vld [vmem:[%s6987 + $0x91] sm:$0xff]
  %v7001 = vld [vmem:[%s6987 + $0x99] sm:$0xff]
  %v7002 = vld [vmem:[%s6987 + $0xa9] sm:$0xff]
  %v7003 = vld [vmem:[%s6987 + $0xb1] sm:$0xff]
  %v7004 = vld [vmem:[%s6987 + $0xc1] sm:$0xff]
  %v7005 = vld [vmem:[%s6987 + $0xc9] sm:$0xff]
  %v7006 = vld [vmem:[%s6987 + $0xd9] sm:$0xff]
  %v7007 = vld [vmem:[%s6987 + $0xe1] sm:$0xff]
  %v7008 = vld [vmem:[%s6987 + $0xf1] sm:$0xff]
  %v7009 = vld [vmem:[%s6987 + $0xf9] sm:$0xff]
  %v7010 = vld [vmem:[%s6987 + $0x109] sm:$0xff]
  %v7011 = vld [vmem:[%s6987 + $0x111] sm:$0xff]
  %v7012 = vld [vmem:[%s6987 + $0x121] sm:$0xff]
  %v7013 = vld [vmem:[%s6987 + $0x129] sm:$0xff]
  %v7014 = vld [vmem:[%s6987 + $0x139] sm:$0xff]
  %v7015 = vld [vmem:[%s6987 + $0x141] sm:$0xff]
  %v7016 = vld [vmem:[%s6987 + $0x151] sm:$0xff]
  %v7017 = vld [vmem:[%s6987 + $0x159] sm:$0xff]
  %v7018 = vld [vmem:[%s6987 + $0x169] sm:$0xff]
  %v7019 = vld [vmem:[%s6987 + $0x171] sm:$0xff]
  %v7020 = vld [vmem:[%s6987 + $0x1b1] sm:$0xff]
  %v7021 = vld [vmem:[%s6987 + $0x1b9] sm:$0xff]
  %v7022 = vld [vmem:[%s6987 + $0x1c9] sm:$0xff]
  %v7023 = vld [vmem:[%s6987 + $0x1d1] sm:$0xff]
  %v7024 = vld [vmem:[%s6987 + $0x1e1] sm:$0xff]
  %v7025 = vld [vmem:[%s6987 + $0x1e9] sm:$0xff]
  %v7026 = vld [vmem:[%s6987 + $0x1f9] sm:$0xff]
  %v7027 = vld [vmem:[%s6987 + $0x201] sm:$0xff]
  %v7028 = vld [vmem:[%s6987 + $0x211] sm:$0xff]
  %v7029 = vld [vmem:[%s6987 + $0x219] sm:$0xff]
  %v7030 = vld [vmem:[%s6987 + $0x229] sm:$0xff]
  %v7031 = vld [vmem:[%s6987 + $0x231] sm:$0xff]
  %v7032 = vld [vmem:[%s6987 + $0x241] sm:$0xff]
  %v7033 = vld [vmem:[%s6987 + $0x249] sm:$0xff]
  %v7034 = vld [vmem:[%s6987 + $0x259] sm:$0xff]
  %v7035 = vld [vmem:[%s6987 + $0x261] sm:$0xff]
  %v7036 = vld [vmem:[%s6987 + $0x271] sm:$0xff]
  %v7037 = vld [vmem:[%s6987 + $0x279] sm:$0xff]
  %v7038 = vld [vmem:[%s6987 + $0x289] sm:$0xff]
  %v7039 = vld [vmem:[%s6987 + $0x291] sm:$0xff]
  %v7040 = vld [vmem:[%s6987 + $0x2a1] sm:$0xff]
  %v7041 = vld [vmem:[%s6987 + $0x2a9] sm:$0xff]
  %v7042 = vld [vmem:[%s6987 + $0x2b9] sm:$0xff]
  %v7043 = vld [vmem:[%s6987 + $0x2c1] sm:$0xff]
  %v7044 = vld [vmem:[%s6987 + $0x2d1] sm:$0xff]
  %v7045 = vld [vmem:[%s6987 + $0x2d9] sm:$0xff]
  %v7046 = vld [vmem:[%s6987 + $0x2e9] sm:$0xff]
  %v7047 = vld [vmem:[%s6987 + $0x2f1] sm:$0xff]
  %v7048 = vld [vmem:[%s6987 + $0x301] sm:$0xff]
  %v7049 = vld [vmem:[%s6987 + $0x309] sm:$0xff]
  %v7050 = vld [vmem:[%s6987 + $0x319] sm:$0xff]
  %v7051 = vld [vmem:[%s6987 + $0x321] sm:$0xff]
  %7116 = vrot.lane.b32.xlu0 %v6988, 48
  %v7117 = vpop.permute.xlu0 %7116
  %7118 = vrot.lane.b32.xlu0 %v6989, 48
  %v7119 = vpop.permute.xlu0 %7118
  %7120 = vrot.lane.b32.xlu0 %v6990, 48
  %v7121 = vpop.permute.xlu0 %7120
  %7122 = vrot.lane.b32.xlu0 %v6991, 48
  %v7123 = vpop.permute.xlu0 %7122
  %7124 = vrot.lane.b32.xlu0 %v6992, 48
  %v7125 = vpop.permute.xlu0 %7124
  %7126 = vrot.lane.b32.xlu0 %v6993, 48
  %v7127 = vpop.permute.xlu0 %7126
  %7128 = vrot.lane.b32.xlu0 %v6994, 48
  %v7129 = vpop.permute.xlu0 %7128
  %7130 = vrot.lane.b32.xlu0 %v6995, 48
  %v7131 = vpop.permute.xlu0 %7130
  %7132 = vrot.lane.b32.xlu0 %v6996, 48
  %v7133 = vpop.permute.xlu0 %7132
  %7134 = vrot.lane.b32.xlu0 %v6997, 48
  %v7135 = vpop.permute.xlu0 %7134
  %7136 = vrot.lane.b32.xlu0 %v6998, 48
  %v7137 = vpop.permute.xlu0 %7136
  %7138 = vrot.lane.b32.xlu0 %v6999, 48
  %v7139 = vpop.permute.xlu0 %7138
  %7140 = vrot.lane.b32.xlu0 %v7000, 48
  %v7141 = vpop.permute.xlu0 %7140
  %7142 = vrot.lane.b32.xlu0 %v7001, 48
  %v7143 = vpop.permute.xlu0 %7142
  %7144 = vrot.lane.b32.xlu0 %v7002, 48
  %v7145 = vpop.permute.xlu0 %7144
  %7146 = vrot.lane.b32.xlu0 %v7003, 48
  %v7147 = vpop.permute.xlu0 %7146
  %7148 = vrot.lane.b32.xlu0 %v7004, 48
  %v7149 = vpop.permute.xlu0 %7148
  %7150 = vrot.lane.b32.xlu0 %v7005, 48
  %v7151 = vpop.permute.xlu0 %7150
  %7152 = vrot.lane.b32.xlu0 %v7006, 48
  %v7153 = vpop.permute.xlu0 %7152
  %7154 = vrot.lane.b32.xlu0 %v7007, 48
  %v7155 = vpop.permute.xlu0 %7154
  %7156 = vrot.lane.b32.xlu0 %v7008, 48
  %v7157 = vpop.permute.xlu0 %7156
  %7158 = vrot.lane.b32.xlu0 %v7009, 48
  %v7159 = vpop.permute.xlu0 %7158
  %7160 = vrot.lane.b32.xlu0 %v7010, 48
  %v7161 = vpop.permute.xlu0 %7160
  %7162 = vrot.lane.b32.xlu0 %v7011, 48
  %v7163 = vpop.permute.xlu0 %7162
  %7164 = vrot.lane.b32.xlu0 %v7012, 48
  %v7165 = vpop.permute.xlu0 %7164
  %7166 = vrot.lane.b32.xlu0 %v7013, 48
  %v7167 = vpop.permute.xlu0 %7166
  %7168 = vrot.lane.b32.xlu0 %v7014, 48
  %v7169 = vpop.permute.xlu0 %7168
  %7170 = vrot.lane.b32.xlu0 %v7015, 48
  %v7171 = vpop.permute.xlu0 %7170
  %7172 = vrot.lane.b32.xlu0 %v7016, 48
  %v7173 = vpop.permute.xlu0 %7172
  %7174 = vrot.lane.b32.xlu0 %v7017, 48
  %v7175 = vpop.permute.xlu0 %7174
  %7176 = vrot.lane.b32.xlu0 %v7018, 48
  %v7177 = vpop.permute.xlu0 %7176
  %7178 = vrot.lane.b32.xlu0 %v7019, 48
  %v7179 = vpop.permute.xlu0 %7178
  %7180 = vrot.lane.b32.xlu0 %v7020, 48
  %v7181 = vpop.permute.xlu0 %7180
  %7182 = vrot.lane.b32.xlu0 %v7021, 48
  %v7183 = vpop.permute.xlu0 %7182
  %7184 = vrot.lane.b32.xlu0 %v7022, 48
  %v7185 = vpop.permute.xlu0 %7184
  %7186 = vrot.lane.b32.xlu0 %v7023, 48
  %v7187 = vpop.permute.xlu0 %7186
  %7188 = vrot.lane.b32.xlu0 %v7024, 48
  %v7189 = vpop.permute.xlu0 %7188
  %7190 = vrot.lane.b32.xlu0 %v7025, 48
  %v7191 = vpop.permute.xlu0 %7190
  %7192 = vrot.lane.b32.xlu0 %v7026, 48
  %v7193 = vpop.permute.xlu0 %7192
  %7194 = vrot.lane.b32.xlu0 %v7027, 48
  %v7195 = vpop.permute.xlu0 %7194
  %7196 = vrot.lane.b32.xlu0 %v7028, 48
  %v7197 = vpop.permute.xlu0 %7196
  %7198 = vrot.lane.b32.xlu0 %v7029, 48
  %v7199 = vpop.permute.xlu0 %7198
  %7200 = vrot.lane.b32.xlu0 %v7030, 48
  %v7201 = vpop.permute.xlu0 %7200
  %7202 = vrot.lane.b32.xlu0 %v7031, 48
  %v7203 = vpop.permute.xlu0 %7202
  %7204 = vrot.lane.b32.xlu0 %v7032, 48
  %v7205 = vpop.permute.xlu0 %7204
  %7206 = vrot.lane.b32.xlu0 %v7033, 48
  %v7207 = vpop.permute.xlu0 %7206
  %7208 = vrot.lane.b32.xlu0 %v7034, 48
  %v7209 = vpop.permute.xlu0 %7208
  %7210 = vrot.lane.b32.xlu0 %v7035, 48
  %v7211 = vpop.permute.xlu0 %7210
  %7212 = vrot.lane.b32.xlu0 %v7036, 48
  %v7213 = vpop.permute.xlu0 %7212
  %7214 = vrot.lane.b32.xlu0 %v7037, 48
  %v7215 = vpop.permute.xlu0 %7214
  %7216 = vrot.lane.b32.xlu0 %v7038, 48
  %v7217 = vpop.permute.xlu0 %7216
  %7218 = vrot.lane.b32.xlu0 %v7039, 48
  %v7219 = vpop.permute.xlu0 %7218
  %7220 = vrot.lane.b32.xlu0 %v7040, 48
  %v7221 = vpop.permute.xlu0 %7220
  %7222 = vrot.lane.b32.xlu0 %v7041, 48
  %v7223 = vpop.permute.xlu0 %7222
  %7224 = vrot.lane.b32.xlu0 %v7042, 48
  %v7225 = vpop.permute.xlu0 %7224
  %7226 = vrot.lane.b32.xlu0 %v7043, 48
  %v7227 = vpop.permute.xlu0 %7226
  %7228 = vrot.lane.b32.xlu0 %v7044, 48
  %v7229 = vpop.permute.xlu0 %7228
  %7230 = vrot.lane.b32.xlu0 %v7045, 48
  %v7231 = vpop.permute.xlu0 %7230
  %7232 = vrot.lane.b32.xlu0 %v7046, 48
  %v7233 = vpop.permute.xlu0 %7232
  %7234 = vrot.lane.b32.xlu0 %v7047, 48
  %v7235 = vpop.permute.xlu0 %7234
  %7236 = vrot.lane.b32.xlu0 %v7048, 48
  %v7237 = vpop.permute.xlu0 %7236
  %7238 = vrot.lane.b32.xlu0 %v7049, 48
  %v7239 = vpop.permute.xlu0 %7238
  %7240 = vrot.lane.b32.xlu0 %v7050, 48
  %v7241 = vpop.permute.xlu0 %7240
  %7242 = vrot.lane.b32.xlu0 %v7051, 48
  %v7243 = vpop.permute.xlu0 %7242
  %vm7308 = vcmask 458112
  %7309 = vst.msk [vmem:[#allocation5] sm:$0xff] %vm7308, %v7117
  %7310 = vst.msk [vmem:[#allocation5 + $0x8] sm:$0xff] %vm7308, %v7119
  %7311 = vst.msk [vmem:[#allocation5 + $0x10] sm:$0xff] %vm7308, %v7121
  %7312 = vst.msk [vmem:[#allocation5 + $0x18] sm:$0xff] %vm7308, %v7123
  %7313 = vst.msk [vmem:[#allocation5 + $0x20] sm:$0xff] %vm7308, %v7125
  %7314 = vst.msk [vmem:[#allocation5 + $0x28] sm:$0xff] %vm7308, %v7127
  %7315 = vst.msk [vmem:[#allocation5 + $0x30] sm:$0xff] %vm7308, %v7129
  %7316 = vst.msk [vmem:[#allocation5 + $0x38] sm:$0xff] %vm7308, %v7131
  %7317 = vst.msk [vmem:[#allocation5 + $0x40] sm:$0xff] %vm7308, %v7133
  %7318 = vst.msk [vmem:[#allocation5 + $0x48] sm:$0xff] %vm7308, %v7135
  %7319 = vst.msk [vmem:[#allocation5 + $0x50] sm:$0xff] %vm7308, %v7137
  %7320 = vst.msk [vmem:[#allocation5 + $0x58] sm:$0xff] %vm7308, %v7139
  %7321 = vst.msk [vmem:[#allocation5 + $0x60] sm:$0xff] %vm7308, %v7141
  %7322 = vst.msk [vmem:[#allocation5 + $0x68] sm:$0xff] %vm7308, %v7143
  %7323 = vst.msk [vmem:[#allocation5 + $0x70] sm:$0xff] %vm7308, %v7145
  %7324 = vst.msk [vmem:[#allocation5 + $0x78] sm:$0xff] %vm7308, %v7147
  %7325 = vst.msk [vmem:[#allocation5 + $0x80] sm:$0xff] %vm7308, %v7149
  %7326 = vst.msk [vmem:[#allocation5 + $0x88] sm:$0xff] %vm7308, %v7151
  %7327 = vst.msk [vmem:[#allocation5 + $0x90] sm:$0xff] %vm7308, %v7153
  %7328 = vst.msk [vmem:[#allocation5 + $0x98] sm:$0xff] %vm7308, %v7155
  %7329 = vst.msk [vmem:[#allocation5 + $0xa0] sm:$0xff] %vm7308, %v7157
  %7330 = vst.msk [vmem:[#allocation5 + $0xa8] sm:$0xff] %vm7308, %v7159
  %7331 = vst.msk [vmem:[#allocation5 + $0xb0] sm:$0xff] %vm7308, %v7161
  %7332 = vst.msk [vmem:[#allocation5 + $0xb8] sm:$0xff] %vm7308, %v7163
  %7333 = vst.msk [vmem:[#allocation5 + $0xc0] sm:$0xff] %vm7308, %v7165
  %7334 = vst.msk [vmem:[#allocation5 + $0xc8] sm:$0xff] %vm7308, %v7167
  %7335 = vst.msk [vmem:[#allocation5 + $0xd0] sm:$0xff] %vm7308, %v7169
  %7336 = vst.msk [vmem:[#allocation5 + $0xd8] sm:$0xff] %vm7308, %v7171
  %7337 = vst.msk [vmem:[#allocation5 + $0xe0] sm:$0xff] %vm7308, %v7173
  %7338 = vst.msk [vmem:[#allocation5 + $0xe8] sm:$0xff] %vm7308, %v7175
  %7339 = vst.msk [vmem:[#allocation5 + $0xf0] sm:$0xff] %vm7308, %v7177
  %7340 = vst.msk [vmem:[#allocation5 + $0xf8] sm:$0xff] %vm7308, %v7179
  %7341 = vst.msk [vmem:[#allocation5 + $0x100] sm:$0xff] %vm7308, %v7181
  %7342 = vst.msk [vmem:[#allocation5 + $0x108] sm:$0xff] %vm7308, %v7183
  %7343 = vst.msk [vmem:[#allocation5 + $0x110] sm:$0xff] %vm7308, %v7185
  %7344 = vst.msk [vmem:[#allocation5 + $0x118] sm:$0xff] %vm7308, %v7187
  %7345 = vst.msk [vmem:[#allocation5 + $0x120] sm:$0xff] %vm7308, %v7189
  %7346 = vst.msk [vmem:[#allocation5 + $0x128] sm:$0xff] %vm7308, %v7191
  %7347 = vst.msk [vmem:[#allocation5 + $0x130] sm:$0xff] %vm7308, %v7193
  %7348 = vst.msk [vmem:[#allocation5 + $0x138] sm:$0xff] %vm7308, %v7195
  %7349 = vst.msk [vmem:[#allocation5 + $0x140] sm:$0xff] %vm7308, %v7197
  %7350 = vst.msk [vmem:[#allocation5 + $0x148] sm:$0xff] %vm7308, %v7199
  %7351 = vst.msk [vmem:[#allocation5 + $0x150] sm:$0xff] %vm7308, %v7201
  %7352 = vst.msk [vmem:[#allocation5 + $0x158] sm:$0xff] %vm7308, %v7203
  %7353 = vst.msk [vmem:[#allocation5 + $0x160] sm:$0xff] %vm7308, %v7205
  %7354 = vst.msk [vmem:[#allocation5 + $0x168] sm:$0xff] %vm7308, %v7207
  %7355 = vst.msk [vmem:[#allocation5 + $0x170] sm:$0xff] %vm7308, %v7209
  %7356 = vst.msk [vmem:[#allocation5 + $0x178] sm:$0xff] %vm7308, %v7211
  %7357 = vst.msk [vmem:[#allocation5 + $0x180] sm:$0xff] %vm7308, %v7213
  %7358 = vst.msk [vmem:[#allocation5 + $0x188] sm:$0xff] %vm7308, %v7215
  %7359 = vst.msk [vmem:[#allocation5 + $0x190] sm:$0xff] %vm7308, %v7217
  %7360 = vst.msk [vmem:[#allocation5 + $0x198] sm:$0xff] %vm7308, %v7219
  %7361 = vst.msk [vmem:[#allocation5 + $0x1a0] sm:$0xff] %vm7308, %v7221
  %7362 = vst.msk [vmem:[#allocation5 + $0x1a8] sm:$0xff] %vm7308, %v7223
  %7363 = vst.msk [vmem:[#allocation5 + $0x1b0] sm:$0xff] %vm7308, %v7225
  %7364 = vst.msk [vmem:[#allocation5 + $0x1b8] sm:$0xff] %vm7308, %v7227
  %7365 = vst.msk [vmem:[#allocation5 + $0x1c0] sm:$0xff] %vm7308, %v7229
  %7366 = vst.msk [vmem:[#allocation5 + $0x1c8] sm:$0xff] %vm7308, %v7231
  %7367 = vst.msk [vmem:[#allocation5 + $0x1d0] sm:$0xff] %vm7308, %v7233
  %7368 = vst.msk [vmem:[#allocation5 + $0x1d8] sm:$0xff] %vm7308, %v7235
  %7369 = vst.msk [vmem:[#allocation5 + $0x1e0] sm:$0xff] %vm7308, %v7237
  %7370 = vst.msk [vmem:[#allocation5 + $0x1e8] sm:$0xff] %vm7308, %v7239
  %7371 = vst.msk [vmem:[#allocation5 + $0x1f0] sm:$0xff] %vm7308, %v7241
  %7372 = vst.msk [vmem:[#allocation5 + $0x1f8] sm:$0xff] %vm7308, %v7243
  %v7373 = vld [vmem:[%s6987 + $0x2] sm:$0xff]
  %v7374 = vld [vmem:[%s6987 + $0xa] sm:$0xff]
  %v7375 = vld [vmem:[%s6987 + $0x1a] sm:$0xff]
  %v7376 = vld [vmem:[%s6987 + $0x22] sm:$0xff]
  %v7377 = vld [vmem:[%s6987 + $0x32] sm:$0xff]
  %v7378 = vld [vmem:[%s6987 + $0x3a] sm:$0xff]
  %v7379 = vld [vmem:[%s6987 + $0x4a] sm:$0xff]
  %v7380 = vld [vmem:[%s6987 + $0x52] sm:$0xff]
  %v7381 = vld [vmem:[%s6987 + $0x62] sm:$0xff]
  %v7382 = vld [vmem:[%s6987 + $0x6a] sm:$0xff]
  %v7383 = vld [vmem:[%s6987 + $0x7a] sm:$0xff]
  %v7384 = vld [vmem:[%s6987 + $0x82] sm:$0xff]
  %v7385 = vld [vmem:[%s6987 + $0x92] sm:$0xff]
  %v7386 = vld [vmem:[%s6987 + $0x9a] sm:$0xff]
  %v7387 = vld [vmem:[%s6987 + $0xaa] sm:$0xff]
  %v7388 = vld [vmem:[%s6987 + $0xb2] sm:$0xff]
  %v7389 = vld [vmem:[%s6987 + $0xc2] sm:$0xff]
  %v7390 = vld [vmem:[%s6987 + $0xca] sm:$0xff]
  %v7391 = vld [vmem:[%s6987 + $0xda] sm:$0xff]
  %v7392 = vld [vmem:[%s6987 + $0xe2] sm:$0xff]
  %v7393 = vld [vmem:[%s6987 + $0xf2] sm:$0xff]
  %v7394 = vld [vmem:[%s6987 + $0xfa] sm:$0xff]
  %v7395 = vld [vmem:[%s6987 + $0x10a] sm:$0xff]
  %v7396 = vld [vmem:[%s6987 + $0x112] sm:$0xff]
  %v7397 = vld [vmem:[%s6987 + $0x122] sm:$0xff]
  %v7398 = vld [vmem:[%s6987 + $0x12a] sm:$0xff]
  %v7399 = vld [vmem:[%s6987 + $0x13a] sm:$0xff]
  %v7400 = vld [vmem:[%s6987 + $0x142] sm:$0xff]
  %v7401 = vld [vmem:[%s6987 + $0x152] sm:$0xff]
  %v7402 = vld [vmem:[%s6987 + $0x15a] sm:$0xff]
  %v7403 = vld [vmem:[%s6987 + $0x16a] sm:$0xff]
  %v7404 = vld [vmem:[%s6987 + $0x172] sm:$0xff]
  %v7405 = vld [vmem:[%s6987 + $0x1b2] sm:$0xff]
  %v7406 = vld [vmem:[%s6987 + $0x1ba] sm:$0xff]
  %v7407 = vld [vmem:[%s6987 + $0x1ca] sm:$0xff]
  %v7408 = vld [vmem:[%s6987 + $0x1d2] sm:$0xff]
  %v7409 = vld [vmem:[%s6987 + $0x1e2] sm:$0xff]
  %v7410 = vld [vmem:[%s6987 + $0x1ea] sm:$0xff]
  %v7411 = vld [vmem:[%s6987 + $0x1fa] sm:$0xff]
  %v7412 = vld [vmem:[%s6987 + $0x202] sm:$0xff]
  %v7413 = vld [vmem:[%s6987 + $0x212] sm:$0xff]
  %v7414 = vld [vmem:[%s6987 + $0x21a] sm:$0xff]
  %v7415 = vld [vmem:[%s6987 + $0x22a] sm:$0xff]
  %v7416 = vld [vmem:[%s6987 + $0x232] sm:$0xff]
  %v7417 = vld [vmem:[%s6987 + $0x242] sm:$0xff]
  %v7418 = vld [vmem:[%s6987 + $0x24a] sm:$0xff]
  %v7419 = vld [vmem:[%s6987 + $0x25a] sm:$0xff]
  %v7420 = vld [vmem:[%s6987 + $0x262] sm:$0xff]
  %v7421 = vld [vmem:[%s6987 + $0x272] sm:$0xff]
  %v7422 = vld [vmem:[%s6987 + $0x27a] sm:$0xff]
  %v7423 = vld [vmem:[%s6987 + $0x28a] sm:$0xff]
  %v7424 = vld [vmem:[%s6987 + $0x292] sm:$0xff]
  %v7425 = vld [vmem:[%s6987 + $0x2a2] sm:$0xff]
  %v7426 = vld [vmem:[%s6987 + $0x2aa] sm:$0xff]
  %v7427 = vld [vmem:[%s6987 + $0x2ba] sm:$0xff]
  %v7428 = vld [vmem:[%s6987 + $0x2c2] sm:$0xff]
  %v7429 = vld [vmem:[%s6987 + $0x2d2] sm:$0xff]
  %v7430 = vld [vmem:[%s6987 + $0x2da] sm:$0xff]
  %v7431 = vld [vmem:[%s6987 + $0x2ea] sm:$0xff]
  %v7432 = vld [vmem:[%s6987 + $0x2f2] sm:$0xff]
  %v7433 = vld [vmem:[%s6987 + $0x302] sm:$0xff]
  %v7434 = vld [vmem:[%s6987 + $0x30a] sm:$0xff]
  %v7435 = vld [vmem:[%s6987 + $0x31a] sm:$0xff]
  %v7436 = vld [vmem:[%s6987 + $0x322] sm:$0xff]
  %7501 = vrot.lane.b32.xlu0 %v7373, 56
  %v7502 = vpop.permute.xlu0 %7501
  %7503 = vrot.lane.b32.xlu0 %v7374, 56
  %v7504 = vpop.permute.xlu0 %7503
  %7505 = vrot.lane.b32.xlu0 %v7375, 56
  %v7506 = vpop.permute.xlu0 %7505
  %7507 = vrot.lane.b32.xlu0 %v7376, 56
  %v7508 = vpop.permute.xlu0 %7507
  %7509 = vrot.lane.b32.xlu0 %v7377, 56
  %v7510 = vpop.permute.xlu0 %7509
  %7511 = vrot.lane.b32.xlu0 %v7378, 56
  %v7512 = vpop.permute.xlu0 %7511
  %7513 = vrot.lane.b32.xlu0 %v7379, 56
  %v7514 = vpop.permute.xlu0 %7513
  %7515 = vrot.lane.b32.xlu0 %v7380, 56
  %v7516 = vpop.permute.xlu0 %7515
  %7517 = vrot.lane.b32.xlu0 %v7381, 56
  %v7518 = vpop.permute.xlu0 %7517
  %7519 = vrot.lane.b32.xlu0 %v7382, 56
  %v7520 = vpop.permute.xlu0 %7519
  %7521 = vrot.lane.b32.xlu0 %v7383, 56
  %v7522 = vpop.permute.xlu0 %7521
  %7523 = vrot.lane.b32.xlu0 %v7384, 56
  %v7524 = vpop.permute.xlu0 %7523
  %7525 = vrot.lane.b32.xlu0 %v7385, 56
  %v7526 = vpop.permute.xlu0 %7525
  %7527 = vrot.lane.b32.xlu0 %v7386, 56
  %v7528 = vpop.permute.xlu0 %7527
  %7529 = vrot.lane.b32.xlu0 %v7387, 56
  %v7530 = vpop.permute.xlu0 %7529
  %7531 = vrot.lane.b32.xlu0 %v7388, 56
  %v7532 = vpop.permute.xlu0 %7531
  %7533 = vrot.lane.b32.xlu0 %v7389, 56
  %v7534 = vpop.permute.xlu0 %7533
  %7535 = vrot.lane.b32.xlu0 %v7390, 56
  %v7536 = vpop.permute.xlu0 %7535
  %7537 = vrot.lane.b32.xlu0 %v7391, 56
  %v7538 = vpop.permute.xlu0 %7537
  %7539 = vrot.lane.b32.xlu0 %v7392, 56
  %v7540 = vpop.permute.xlu0 %7539
  %7541 = vrot.lane.b32.xlu0 %v7393, 56
  %v7542 = vpop.permute.xlu0 %7541
  %7543 = vrot.lane.b32.xlu0 %v7394, 56
  %v7544 = vpop.permute.xlu0 %7543
  %7545 = vrot.lane.b32.xlu0 %v7395, 56
  %v7546 = vpop.permute.xlu0 %7545
  %7547 = vrot.lane.b32.xlu0 %v7396, 56
  %v7548 = vpop.permute.xlu0 %7547
  %7549 = vrot.lane.b32.xlu0 %v7397, 56
  %v7550 = vpop.permute.xlu0 %7549
  %7551 = vrot.lane.b32.xlu0 %v7398, 56
  %v7552 = vpop.permute.xlu0 %7551
  %7553 = vrot.lane.b32.xlu0 %v7399, 56
  %v7554 = vpop.permute.xlu0 %7553
  %7555 = vrot.lane.b32.xlu0 %v7400, 56
  %v7556 = vpop.permute.xlu0 %7555
  %7557 = vrot.lane.b32.xlu0 %v7401, 56
  %v7558 = vpop.permute.xlu0 %7557
  %7559 = vrot.lane.b32.xlu0 %v7402, 56
  %v7560 = vpop.permute.xlu0 %7559
  %7561 = vrot.lane.b32.xlu0 %v7403, 56
  %v7562 = vpop.permute.xlu0 %7561
  %7563 = vrot.lane.b32.xlu0 %v7404, 56
  %v7564 = vpop.permute.xlu0 %7563
  %7565 = vrot.lane.b32.xlu0 %v7405, 56
  %v7566 = vpop.permute.xlu0 %7565
  %7567 = vrot.lane.b32.xlu0 %v7406, 56
  %v7568 = vpop.permute.xlu0 %7567
  %7569 = vrot.lane.b32.xlu0 %v7407, 56
  %v7570 = vpop.permute.xlu0 %7569
  %7571 = vrot.lane.b32.xlu0 %v7408, 56
  %v7572 = vpop.permute.xlu0 %7571
  %7573 = vrot.lane.b32.xlu0 %v7409, 56
  %v7574 = vpop.permute.xlu0 %7573
  %7575 = vrot.lane.b32.xlu0 %v7410, 56
  %v7576 = vpop.permute.xlu0 %7575
  %7577 = vrot.lane.b32.xlu0 %v7411, 56
  %v7578 = vpop.permute.xlu0 %7577
  %7579 = vrot.lane.b32.xlu0 %v7412, 56
  %v7580 = vpop.permute.xlu0 %7579
  %7581 = vrot.lane.b32.xlu0 %v7413, 56
  %v7582 = vpop.permute.xlu0 %7581
  %7583 = vrot.lane.b32.xlu0 %v7414, 56
  %v7584 = vpop.permute.xlu0 %7583
  %7585 = vrot.lane.b32.xlu0 %v7415, 56
  %v7586 = vpop.permute.xlu0 %7585
  %7587 = vrot.lane.b32.xlu0 %v7416, 56
  %v7588 = vpop.permute.xlu0 %7587
  %7589 = vrot.lane.b32.xlu0 %v7417, 56
  %v7590 = vpop.permute.xlu0 %7589
  %7591 = vrot.lane.b32.xlu0 %v7418, 56
  %v7592 = vpop.permute.xlu0 %7591
  %7593 = vrot.lane.b32.xlu0 %v7419, 56
  %v7594 = vpop.permute.xlu0 %7593
  %7595 = vrot.lane.b32.xlu0 %v7420, 56
  %v7596 = vpop.permute.xlu0 %7595
  %7597 = vrot.lane.b32.xlu0 %v7421, 56
  %v7598 = vpop.permute.xlu0 %7597
  %7599 = vrot.lane.b32.xlu0 %v7422, 56
  %v7600 = vpop.permute.xlu0 %7599
  %7601 = vrot.lane.b32.xlu0 %v7423, 56
  %v7602 = vpop.permute.xlu0 %7601
  %7603 = vrot.lane.b32.xlu0 %v7424, 56
  %v7604 = vpop.permute.xlu0 %7603
  %7605 = vrot.lane.b32.xlu0 %v7425, 56
  %v7606 = vpop.permute.xlu0 %7605
  %7607 = vrot.lane.b32.xlu0 %v7426, 56
  %v7608 = vpop.permute.xlu0 %7607
  %7609 = vrot.lane.b32.xlu0 %v7427, 56
  %v7610 = vpop.permute.xlu0 %7609
  %7611 = vrot.lane.b32.xlu0 %v7428, 56
  %v7612 = vpop.permute.xlu0 %7611
  %7613 = vrot.lane.b32.xlu0 %v7429, 56
  %v7614 = vpop.permute.xlu0 %7613
  %7615 = vrot.lane.b32.xlu0 %v7430, 56
  %v7616 = vpop.permute.xlu0 %7615
  %7617 = vrot.lane.b32.xlu0 %v7431, 56
  %v7618 = vpop.permute.xlu0 %7617
  %7619 = vrot.lane.b32.xlu0 %v7432, 56
  %v7620 = vpop.permute.xlu0 %7619
  %7621 = vrot.lane.b32.xlu0 %v7433, 56
  %v7622 = vpop.permute.xlu0 %7621
  %7623 = vrot.lane.b32.xlu0 %v7434, 56
  %v7624 = vpop.permute.xlu0 %7623
  %7625 = vrot.lane.b32.xlu0 %v7435, 56
  %v7626 = vpop.permute.xlu0 %7625
  %7627 = vrot.lane.b32.xlu0 %v7436, 56
  %v7628 = vpop.permute.xlu0 %7627
  %vm7693 = vcmask 523712
  %7694 = vst.msk [vmem:[#allocation5] sm:$0xff] %vm7693, %v7502
  %7695 = vst.msk [vmem:[#allocation5 + $0x8] sm:$0xff] %vm7693, %v7504
  %7696 = vst.msk [vmem:[#allocation5 + $0x10] sm:$0xff] %vm7693, %v7506
  %7697 = vst.msk [vmem:[#allocation5 + $0x18] sm:$0xff] %vm7693, %v7508
  %7698 = vst.msk [vmem:[#allocation5 + $0x20] sm:$0xff] %vm7693, %v7510
  %7699 = vst.msk [vmem:[#allocation5 + $0x28] sm:$0xff] %vm7693, %v7512
  %7700 = vst.msk [vmem:[#allocation5 + $0x30] sm:$0xff] %vm7693, %v7514
  %7701 = vst.msk [vmem:[#allocation5 + $0x38] sm:$0xff] %vm7693, %v7516
  %7702 = vst.msk [vmem:[#allocation5 + $0x40] sm:$0xff] %vm7693, %v7518
  %7703 = vst.msk [vmem:[#allocation5 + $0x48] sm:$0xff] %vm7693, %v7520
  %7704 = vst.msk [vmem:[#allocation5 + $0x50] sm:$0xff] %vm7693, %v7522
  %7705 = vst.msk [vmem:[#allocation5 + $0x58] sm:$0xff] %vm7693, %v7524
  %7706 = vst.msk [vmem:[#allocation5 + $0x60] sm:$0xff] %vm7693, %v7526
  %7707 = vst.msk [vmem:[#allocation5 + $0x68] sm:$0xff] %vm7693, %v7528
  %7708 = vst.msk [vmem:[#allocation5 + $0x70] sm:$0xff] %vm7693, %v7530
  %7709 = vst.msk [vmem:[#allocation5 + $0x78] sm:$0xff] %vm7693, %v7532
  %7710 = vst.msk [vmem:[#allocation5 + $0x80] sm:$0xff] %vm7693, %v7534
  %7711 = vst.msk [vmem:[#allocation5 + $0x88] sm:$0xff] %vm7693, %v7536
  %7712 = vst.msk [vmem:[#allocation5 + $0x90] sm:$0xff] %vm7693, %v7538
  %7713 = vst.msk [vmem:[#allocation5 + $0x98] sm:$0xff] %vm7693, %v7540
  %7714 = vst.msk [vmem:[#allocation5 + $0xa0] sm:$0xff] %vm7693, %v7542
  %7715 = vst.msk [vmem:[#allocation5 + $0xa8] sm:$0xff] %vm7693, %v7544
  %7716 = vst.msk [vmem:[#allocation5 + $0xb0] sm:$0xff] %vm7693, %v7546
  %7717 = vst.msk [vmem:[#allocation5 + $0xb8] sm:$0xff] %vm7693, %v7548
  %7718 = vst.msk [vmem:[#allocation5 + $0xc0] sm:$0xff] %vm7693, %v7550
  %7719 = vst.msk [vmem:[#allocation5 + $0xc8] sm:$0xff] %vm7693, %v7552
  %7720 = vst.msk [vmem:[#allocation5 + $0xd0] sm:$0xff] %vm7693, %v7554
  %7721 = vst.msk [vmem:[#allocation5 + $0xd8] sm:$0xff] %vm7693, %v7556
  %7722 = vst.msk [vmem:[#allocation5 + $0xe0] sm:$0xff] %vm7693, %v7558
  %7723 = vst.msk [vmem:[#allocation5 + $0xe8] sm:$0xff] %vm7693, %v7560
  %7724 = vst.msk [vmem:[#allocation5 + $0xf0] sm:$0xff] %vm7693, %v7562
  %7725 = vst.msk [vmem:[#allocation5 + $0xf8] sm:$0xff] %vm7693, %v7564
  %7726 = vst.msk [vmem:[#allocation5 + $0x100] sm:$0xff] %vm7693, %v7566
  %7727 = vst.msk [vmem:[#allocation5 + $0x108] sm:$0xff] %vm7693, %v7568
  %7728 = vst.msk [vmem:[#allocation5 + $0x110] sm:$0xff] %vm7693, %v7570
  %7729 = vst.msk [vmem:[#allocation5 + $0x118] sm:$0xff] %vm7693, %v7572
  %7730 = vst.msk [vmem:[#allocation5 + $0x120] sm:$0xff] %vm7693, %v7574
  %7731 = vst.msk [vmem:[#allocation5 + $0x128] sm:$0xff] %vm7693, %v7576
  %7732 = vst.msk [vmem:[#allocation5 + $0x130] sm:$0xff] %vm7693, %v7578
  %7733 = vst.msk [vmem:[#allocation5 + $0x138] sm:$0xff] %vm7693, %v7580
  %7734 = vst.msk [vmem:[#allocation5 + $0x140] sm:$0xff] %vm7693, %v7582
  %7735 = vst.msk [vmem:[#allocation5 + $0x148] sm:$0xff] %vm7693, %v7584
  %7736 = vst.msk [vmem:[#allocation5 + $0x150] sm:$0xff] %vm7693, %v7586
  %7737 = vst.msk [vmem:[#allocation5 + $0x158] sm:$0xff] %vm7693, %v7588
  %7738 = vst.msk [vmem:[#allocation5 + $0x160] sm:$0xff] %vm7693, %v7590
  %7739 = vst.msk [vmem:[#allocation5 + $0x168] sm:$0xff] %vm7693, %v7592
  %7740 = vst.msk [vmem:[#allocation5 + $0x170] sm:$0xff] %vm7693, %v7594
  %7741 = vst.msk [vmem:[#allocation5 + $0x178] sm:$0xff] %vm7693, %v7596
  %7742 = vst.msk [vmem:[#allocation5 + $0x180] sm:$0xff] %vm7693, %v7598
  %7743 = vst.msk [vmem:[#allocation5 + $0x188] sm:$0xff] %vm7693, %v7600
  %7744 = vst.msk [vmem:[#allocation5 + $0x190] sm:$0xff] %vm7693, %v7602
  %7745 = vst.msk [vmem:[#allocation5 + $0x198] sm:$0xff] %vm7693, %v7604
  %7746 = vst.msk [vmem:[#allocation5 + $0x1a0] sm:$0xff] %vm7693, %v7606
  %7747 = vst.msk [vmem:[#allocation5 + $0x1a8] sm:$0xff] %vm7693, %v7608
  %7748 = vst.msk [vmem:[#allocation5 + $0x1b0] sm:$0xff] %vm7693, %v7610
  %7749 = vst.msk [vmem:[#allocation5 + $0x1b8] sm:$0xff] %vm7693, %v7612
  %7750 = vst.msk [vmem:[#allocation5 + $0x1c0] sm:$0xff] %vm7693, %v7614
  %7751 = vst.msk [vmem:[#allocation5 + $0x1c8] sm:$0xff] %vm7693, %v7616
  %7752 = vst.msk [vmem:[#allocation5 + $0x1d0] sm:$0xff] %vm7693, %v7618
  %7753 = vst.msk [vmem:[#allocation5 + $0x1d8] sm:$0xff] %vm7693, %v7620
  %7754 = vst.msk [vmem:[#allocation5 + $0x1e0] sm:$0xff] %vm7693, %v7622
  %7755 = vst.msk [vmem:[#allocation5 + $0x1e8] sm:$0xff] %vm7693, %v7624
  %7756 = vst.msk [vmem:[#allocation5 + $0x1f0] sm:$0xff] %vm7693, %v7626
  %7757 = vst.msk [vmem:[#allocation5 + $0x1f8] sm:$0xff] %vm7693, %v7628
  %v7758 = vld [vmem:[%s6987 + $0x3] sm:$0xff]
  %v7759 = vld [vmem:[%s6987 + $0xb] sm:$0xff]
  %v7760 = vld [vmem:[%s6987 + $0x1b] sm:$0xff]
  %v7761 = vld [vmem:[%s6987 + $0x23] sm:$0xff]
  %v7762 = vld [vmem:[%s6987 + $0x33] sm:$0xff]
  %v7763 = vld [vmem:[%s6987 + $0x3b] sm:$0xff]
  %v7764 = vld [vmem:[%s6987 + $0x4b] sm:$0xff]
  %v7765 = vld [vmem:[%s6987 + $0x53] sm:$0xff]
  %v7766 = vld [vmem:[%s6987 + $0x63] sm:$0xff]
  %v7767 = vld [vmem:[%s6987 + $0x6b] sm:$0xff]
  %v7768 = vld [vmem:[%s6987 + $0x7b] sm:$0xff]
  %v7769 = vld [vmem:[%s6987 + $0x83] sm:$0xff]
  %v7770 = vld [vmem:[%s6987 + $0x93] sm:$0xff]
  %v7771 = vld [vmem:[%s6987 + $0x9b] sm:$0xff]
  %v7772 = vld [vmem:[%s6987 + $0xab] sm:$0xff]
  %v7773 = vld [vmem:[%s6987 + $0xb3] sm:$0xff]
  %v7774 = vld [vmem:[%s6987 + $0xc3] sm:$0xff]
  %v7775 = vld [vmem:[%s6987 + $0xcb] sm:$0xff]
  %v7776 = vld [vmem:[%s6987 + $0xdb] sm:$0xff]
  %v7777 = vld [vmem:[%s6987 + $0xe3] sm:$0xff]
  %v7778 = vld [vmem:[%s6987 + $0xf3] sm:$0xff]
  %v7779 = vld [vmem:[%s6987 + $0xfb] sm:$0xff]
  %v7780 = vld [vmem:[%s6987 + $0x10b] sm:$0xff]
  %v7781 = vld [vmem:[%s6987 + $0x113] sm:$0xff]
  %v7782 = vld [vmem:[%s6987 + $0x123] sm:$0xff]
  %v7783 = vld [vmem:[%s6987 + $0x12b] sm:$0xff]
  %v7784 = vld [vmem:[%s6987 + $0x13b] sm:$0xff]
  %v7785 = vld [vmem:[%s6987 + $0x143] sm:$0xff]
  %v7786 = vld [vmem:[%s6987 + $0x153] sm:$0xff]
  %v7787 = vld [vmem:[%s6987 + $0x15b] sm:$0xff]
  %v7788 = vld [vmem:[%s6987 + $0x16b] sm:$0xff]
  %v7789 = vld [vmem:[%s6987 + $0x173] sm:$0xff]
  %v7790 = vld [vmem:[%s6987 + $0x1b3] sm:$0xff]
  %v7791 = vld [vmem:[%s6987 + $0x1bb] sm:$0xff]
  %v7792 = vld [vmem:[%s6987 + $0x1cb] sm:$0xff]
  %v7793 = vld [vmem:[%s6987 + $0x1d3] sm:$0xff]
  %v7794 = vld [vmem:[%s6987 + $0x1e3] sm:$0xff]
  %v7795 = vld [vmem:[%s6987 + $0x1eb] sm:$0xff]
  %v7796 = vld [vmem:[%s6987 + $0x1fb] sm:$0xff]
  %v7797 = vld [vmem:[%s6987 + $0x203] sm:$0xff]
  %v7798 = vld [vmem:[%s6987 + $0x213] sm:$0xff]
  %v7799 = vld [vmem:[%s6987 + $0x21b] sm:$0xff]
  %v7800 = vld [vmem:[%s6987 + $0x22b] sm:$0xff]
  %v7801 = vld [vmem:[%s6987 + $0x233] sm:$0xff]
  %v7802 = vld [vmem:[%s6987 + $0x243] sm:$0xff]
  %v7803 = vld [vmem:[%s6987 + $0x24b] sm:$0xff]
  %v7804 = vld [vmem:[%s6987 + $0x25b] sm:$0xff]
  %v7805 = vld [vmem:[%s6987 + $0x263] sm:$0xff]
  %v7806 = vld [vmem:[%s6987 + $0x273] sm:$0xff]
  %v7807 = vld [vmem:[%s6987 + $0x27b] sm:$0xff]
  %v7808 = vld [vmem:[%s6987 + $0x28b] sm:$0xff]
  %v7809 = vld [vmem:[%s6987 + $0x293] sm:$0xff]
  %v7810 = vld [vmem:[%s6987 + $0x2a3] sm:$0xff]
  %v7811 = vld [vmem:[%s6987 + $0x2ab] sm:$0xff]
  %v7812 = vld [vmem:[%s6987 + $0x2bb] sm:$0xff]
  %v7813 = vld [vmem:[%s6987 + $0x2c3] sm:$0xff]
  %v7814 = vld [vmem:[%s6987 + $0x2d3] sm:$0xff]
  %v7815 = vld [vmem:[%s6987 + $0x2db] sm:$0xff]
  %v7816 = vld [vmem:[%s6987 + $0x2eb] sm:$0xff]
  %v7817 = vld [vmem:[%s6987 + $0x2f3] sm:$0xff]
  %v7818 = vld [vmem:[%s6987 + $0x303] sm:$0xff]
  %v7819 = vld [vmem:[%s6987 + $0x30b] sm:$0xff]
  %v7820 = vld [vmem:[%s6987 + $0x31b] sm:$0xff]
  %v7821 = vld [vmem:[%s6987 + $0x323] sm:$0xff]
  %7886 = vrot.lane.b32.xlu0 %v7758, 64
  %v7887 = vpop.permute.xlu0 %7886
  %7888 = vrot.lane.b32.xlu0 %v7759, 64
  %v7889 = vpop.permute.xlu0 %7888
  %7890 = vrot.lane.b32.xlu0 %v7760, 64
  %v7891 = vpop.permute.xlu0 %7890
  %7892 = vrot.lane.b32.xlu0 %v7761, 64
  %v7893 = vpop.permute.xlu0 %7892
  %7894 = vrot.lane.b32.xlu0 %v7762, 64
  %v7895 = vpop.permute.xlu0 %7894
  %7896 = vrot.lane.b32.xlu0 %v7763, 64
  %v7897 = vpop.permute.xlu0 %7896
  %7898 = vrot.lane.b32.xlu0 %v7764, 64
  %v7899 = vpop.permute.xlu0 %7898
  %7900 = vrot.lane.b32.xlu0 %v7765, 64
  %v7901 = vpop.permute.xlu0 %7900
  %7902 = vrot.lane.b32.xlu0 %v7766, 64
  %v7903 = vpop.permute.xlu0 %7902
  %7904 = vrot.lane.b32.xlu0 %v7767, 64
  %v7905 = vpop.permute.xlu0 %7904
  %7906 = vrot.lane.b32.xlu0 %v7768, 64
  %v7907 = vpop.permute.xlu0 %7906
  %7908 = vrot.lane.b32.xlu0 %v7769, 64
  %v7909 = vpop.permute.xlu0 %7908
  %7910 = vrot.lane.b32.xlu0 %v7770, 64
  %v7911 = vpop.permute.xlu0 %7910
  %7912 = vrot.lane.b32.xlu0 %v7771, 64
  %v7913 = vpop.permute.xlu0 %7912
  %7914 = vrot.lane.b32.xlu0 %v7772, 64
  %v7915 = vpop.permute.xlu0 %7914
  %7916 = vrot.lane.b32.xlu0 %v7773, 64
  %v7917 = vpop.permute.xlu0 %7916
  %7918 = vrot.lane.b32.xlu0 %v7774, 64
  %v7919 = vpop.permute.xlu0 %7918
  %7920 = vrot.lane.b32.xlu0 %v7775, 64
  %v7921 = vpop.permute.xlu0 %7920
  %7922 = vrot.lane.b32.xlu0 %v7776, 64
  %v7923 = vpop.permute.xlu0 %7922
  %7924 = vrot.lane.b32.xlu0 %v7777, 64
  %v7925 = vpop.permute.xlu0 %7924
  %7926 = vrot.lane.b32.xlu0 %v7778, 64
  %v7927 = vpop.permute.xlu0 %7926
  %7928 = vrot.lane.b32.xlu0 %v7779, 64
  %v7929 = vpop.permute.xlu0 %7928
  %7930 = vrot.lane.b32.xlu0 %v7780, 64
  %v7931 = vpop.permute.xlu0 %7930
  %7932 = vrot.lane.b32.xlu0 %v7781, 64
  %v7933 = vpop.permute.xlu0 %7932
  %7934 = vrot.lane.b32.xlu0 %v7782, 64
  %v7935 = vpop.permute.xlu0 %7934
  %7936 = vrot.lane.b32.xlu0 %v7783, 64
  %v7937 = vpop.permute.xlu0 %7936
  %7938 = vrot.lane.b32.xlu0 %v7784, 64
  %v7939 = vpop.permute.xlu0 %7938
  %7940 = vrot.lane.b32.xlu0 %v7785, 64
  %v7941 = vpop.permute.xlu0 %7940
  %7942 = vrot.lane.b32.xlu0 %v7786, 64
  %v7943 = vpop.permute.xlu0 %7942
  %7944 = vrot.lane.b32.xlu0 %v7787, 64
  %v7945 = vpop.permute.xlu0 %7944
  %7946 = vrot.lane.b32.xlu0 %v7788, 64
  %v7947 = vpop.permute.xlu0 %7946
  %7948 = vrot.lane.b32.xlu0 %v7789, 64
  %v7949 = vpop.permute.xlu0 %7948
  %7950 = vrot.lane.b32.xlu0 %v7790, 64
  %v7951 = vpop.permute.xlu0 %7950
  %7952 = vrot.lane.b32.xlu0 %v7791, 64
  %v7953 = vpop.permute.xlu0 %7952
  %7954 = vrot.lane.b32.xlu0 %v7792, 64
  %v7955 = vpop.permute.xlu0 %7954
  %7956 = vrot.lane.b32.xlu0 %v7793, 64
  %v7957 = vpop.permute.xlu0 %7956
  %7958 = vrot.lane.b32.xlu0 %v7794, 64
  %v7959 = vpop.permute.xlu0 %7958
  %7960 = vrot.lane.b32.xlu0 %v7795, 64
  %v7961 = vpop.permute.xlu0 %7960
  %7962 = vrot.lane.b32.xlu0 %v7796, 64
  %v7963 = vpop.permute.xlu0 %7962
  %7964 = vrot.lane.b32.xlu0 %v7797, 64
  %v7965 = vpop.permute.xlu0 %7964
  %7966 = vrot.lane.b32.xlu0 %v7798, 64
  %v7967 = vpop.permute.xlu0 %7966
  %7968 = vrot.lane.b32.xlu0 %v7799, 64
  %v7969 = vpop.permute.xlu0 %7968
  %7970 = vrot.lane.b32.xlu0 %v7800, 64
  %v7971 = vpop.permute.xlu0 %7970
  %7972 = vrot.lane.b32.xlu0 %v7801, 64
  %v7973 = vpop.permute.xlu0 %7972
  %7974 = vrot.lane.b32.xlu0 %v7802, 64
  %v7975 = vpop.permute.xlu0 %7974
  %7976 = vrot.lane.b32.xlu0 %v7803, 64
  %v7977 = vpop.permute.xlu0 %7976
  %7978 = vrot.lane.b32.xlu0 %v7804, 64
  %v7979 = vpop.permute.xlu0 %7978
  %7980 = vrot.lane.b32.xlu0 %v7805, 64
  %v7981 = vpop.permute.xlu0 %7980
  %7982 = vrot.lane.b32.xlu0 %v7806, 64
  %v7983 = vpop.permute.xlu0 %7982
  %7984 = vrot.lane.b32.xlu0 %v7807, 64
  %v7985 = vpop.permute.xlu0 %7984
  %7986 = vrot.lane.b32.xlu0 %v7808, 64
  %v7987 = vpop.permute.xlu0 %7986
  %7988 = vrot.lane.b32.xlu0 %v7809, 64
  %v7989 = vpop.permute.xlu0 %7988
  %7990 = vrot.lane.b32.xlu0 %v7810, 64
  %v7991 = vpop.permute.xlu0 %7990
  %7992 = vrot.lane.b32.xlu0 %v7811, 64
  %v7993 = vpop.permute.xlu0 %7992
  %7994 = vrot.lane.b32.xlu0 %v7812, 64
  %v7995 = vpop.permute.xlu0 %7994
  %7996 = vrot.lane.b32.xlu0 %v7813, 64
  %v7997 = vpop.permute.xlu0 %7996
  %7998 = vrot.lane.b32.xlu0 %v7814, 64
  %v7999 = vpop.permute.xlu0 %7998
  %8000 = vrot.lane.b32.xlu0 %v7815, 64
  %v8001 = vpop.permute.xlu0 %8000
  %8002 = vrot.lane.b32.xlu0 %v7816, 64
  %v8003 = vpop.permute.xlu0 %8002
  %8004 = vrot.lane.b32.xlu0 %v7817, 64
  %v8005 = vpop.permute.xlu0 %8004
  %8006 = vrot.lane.b32.xlu0 %v7818, 64
  %v8007 = vpop.permute.xlu0 %8006
  %8008 = vrot.lane.b32.xlu0 %v7819, 64
  %v8009 = vpop.permute.xlu0 %8008
  %8010 = vrot.lane.b32.xlu0 %v7820, 64
  %v8011 = vpop.permute.xlu0 %8010
  %8012 = vrot.lane.b32.xlu0 %v7821, 64
  %v8013 = vpop.permute.xlu0 %8012
  %vm8078 = vcmask 589312
  %8079 = vst.msk [vmem:[#allocation5] sm:$0xff] %vm8078, %v7887
  %8080 = vst.msk [vmem:[#allocation5 + $0x8] sm:$0xff] %vm8078, %v7889
  %8081 = vst.msk [vmem:[#allocation5 + $0x10] sm:$0xff] %vm8078, %v7891
  %8082 = vst.msk [vmem:[#allocation5 + $0x18] sm:$0xff] %vm8078, %v7893
  %8083 = vst.msk [vmem:[#allocation5 + $0x20] sm:$0xff] %vm8078, %v7895
  %8084 = vst.msk [vmem:[#allocation5 + $0x28] sm:$0xff] %vm8078, %v7897
  %8085 = vst.msk [vmem:[#allocation5 + $0x30] sm:$0xff] %vm8078, %v7899
  %8086 = vst.msk [vmem:[#allocation5 + $0x38] sm:$0xff] %vm8078, %v7901
  %8087 = vst.msk [vmem:[#allocation5 + $0x40] sm:$0xff] %vm8078, %v7903
  %8088 = vst.msk [vmem:[#allocation5 + $0x48] sm:$0xff] %vm8078, %v7905
  %8089 = vst.msk [vmem:[#allocation5 + $0x50] sm:$0xff] %vm8078, %v7907
  %8090 = vst.msk [vmem:[#allocation5 + $0x58] sm:$0xff] %vm8078, %v7909
  %8091 = vst.msk [vmem:[#allocation5 + $0x60] sm:$0xff] %vm8078, %v7911
  %8092 = vst.msk [vmem:[#allocation5 + $0x68] sm:$0xff] %vm8078, %v7913
  %8093 = vst.msk [vmem:[#allocation5 + $0x70] sm:$0xff] %vm8078, %v7915
  %8094 = vst.msk [vmem:[#allocation5 + $0x78] sm:$0xff] %vm8078, %v7917
  %8095 = vst.msk [vmem:[#allocation5 + $0x80] sm:$0xff] %vm8078, %v7919
  %8096 = vst.msk [vmem:[#allocation5 + $0x88] sm:$0xff] %vm8078, %v7921
  %8097 = vst.msk [vmem:[#allocation5 + $0x90] sm:$0xff] %vm8078, %v7923
  %8098 = vst.msk [vmem:[#allocation5 + $0x98] sm:$0xff] %vm8078, %v7925
  %8099 = vst.msk [vmem:[#allocation5 + $0xa0] sm:$0xff] %vm8078, %v7927
  %8100 = vst.msk [vmem:[#allocation5 + $0xa8] sm:$0xff] %vm8078, %v7929
  %8101 = vst.msk [vmem:[#allocation5 + $0xb0] sm:$0xff] %vm8078, %v7931
  %8102 = vst.msk [vmem:[#allocation5 + $0xb8] sm:$0xff] %vm8078, %v7933
  %8103 = vst.msk [vmem:[#allocation5 + $0xc0] sm:$0xff] %vm8078, %v7935
  %8104 = vst.msk [vmem:[#allocation5 + $0xc8] sm:$0xff] %vm8078, %v7937
  %8105 = vst.msk [vmem:[#allocation5 + $0xd0] sm:$0xff] %vm8078, %v7939
  %8106 = vst.msk [vmem:[#allocation5 + $0xd8] sm:$0xff] %vm8078, %v7941
  %8107 = vst.msk [vmem:[#allocation5 + $0xe0] sm:$0xff] %vm8078, %v7943
  %8108 = vst.msk [vmem:[#allocation5 + $0xe8] sm:$0xff] %vm8078, %v7945
  %8109 = vst.msk [vmem:[#allocation5 + $0xf0] sm:$0xff] %vm8078, %v7947
  %8110 = vst.msk [vmem:[#allocation5 + $0xf8] sm:$0xff] %vm8078, %v7949
  %8111 = vst.msk [vmem:[#allocation5 + $0x100] sm:$0xff] %vm8078, %v7951
  %8112 = vst.msk [vmem:[#allocation5 + $0x108] sm:$0xff] %vm8078, %v7953
  %8113 = vst.msk [vmem:[#allocation5 + $0x110] sm:$0xff] %vm8078, %v7955
  %8114 = vst.msk [vmem:[#allocation5 + $0x118] sm:$0xff] %vm8078, %v7957
  %8115 = vst.msk [vmem:[#allocation5 + $0x120] sm:$0xff] %vm8078, %v7959
  %8116 = vst.msk [vmem:[#allocation5 + $0x128] sm:$0xff] %vm8078, %v7961
  %8117 = vst.msk [vmem:[#allocation5 + $0x130] sm:$0xff] %vm8078, %v7963
  %8118 = vst.msk [vmem:[#allocation5 + $0x138] sm:$0xff] %vm8078, %v7965
  %8119 = vst.msk [vmem:[#allocation5 + $0x140] sm:$0xff] %vm8078, %v7967
  %8120 = vst.msk [vmem:[#allocation5 + $0x148] sm:$0xff] %vm8078, %v7969
  %8121 = vst.msk [vmem:[#allocation5 + $0x150] sm:$0xff] %vm8078, %v7971
  %8122 = vst.msk [vmem:[#allocation5 + $0x158] sm:$0xff] %vm8078, %v7973
  %8123 = vst.msk [vmem:[#allocation5 + $0x160] sm:$0xff] %vm8078, %v7975
  %8124 = vst.msk [vmem:[#allocation5 + $0x168] sm:$0xff] %vm8078, %v7977
  %8125 = vst.msk [vmem:[#allocation5 + $0x170] sm:$0xff] %vm8078, %v7979
  %8126 = vst.msk [vmem:[#allocation5 + $0x178] sm:$0xff] %vm8078, %v7981
  %8127 = vst.msk [vmem:[#allocation5 + $0x180] sm:$0xff] %vm8078, %v7983
  %8128 = vst.msk [vmem:[#allocation5 + $0x188] sm:$0xff] %vm8078, %v7985
  %8129 = vst.msk [vmem:[#allocation5 + $0x190] sm:$0xff] %vm8078, %v7987
  %8130 = vst.msk [vmem:[#allocation5 + $0x198] sm:$0xff] %vm8078, %v7989
  %8131 = vst.msk [vmem:[#allocation5 + $0x1a0] sm:$0xff] %vm8078, %v7991
  %8132 = vst.msk [vmem:[#allocation5 + $0x1a8] sm:$0xff] %vm8078, %v7993
  %8133 = vst.msk [vmem:[#allocation5 + $0x1b0] sm:$0xff] %vm8078, %v7995
  %8134 = vst.msk [vmem:[#allocation5 + $0x1b8] sm:$0xff] %vm8078, %v7997
  %8135 = vst.msk [vmem:[#allocation5 + $0x1c0] sm:$0xff] %vm8078, %v7999
  %8136 = vst.msk [vmem:[#allocation5 + $0x1c8] sm:$0xff] %vm8078, %v8001
  %8137 = vst.msk [vmem:[#allocation5 + $0x1d0] sm:$0xff] %vm8078, %v8003
  %8138 = vst.msk [vmem:[#allocation5 + $0x1d8] sm:$0xff] %vm8078, %v8005
  %8139 = vst.msk [vmem:[#allocation5 + $0x1e0] sm:$0xff] %vm8078, %v8007
  %8140 = vst.msk [vmem:[#allocation5 + $0x1e8] sm:$0xff] %vm8078, %v8009
  %8141 = vst.msk [vmem:[#allocation5 + $0x1f0] sm:$0xff] %vm8078, %v8011
  %8142 = vst.msk [vmem:[#allocation5 + $0x1f8] sm:$0xff] %vm8078, %v8013
  %v8143 = vld [vmem:[#allocation5] sm:$0xff]
  %v8144 = vld [vmem:[#allocation5 + $0x8] sm:$0xff]
  %v8145 = vld [vmem:[#allocation5 + $0x10] sm:$0xff]
  %v8146 = vld [vmem:[#allocation5 + $0x18] sm:$0xff]
  %v8147 = vld [vmem:[#allocation5 + $0x20] sm:$0xff]
  %v8148 = vld [vmem:[#allocation5 + $0x28] sm:$0xff]
  %v8149 = vld [vmem:[#allocation5 + $0x30] sm:$0xff]
  %v8150 = vld [vmem:[#allocation5 + $0x38] sm:$0xff]
  %v8151 = vld [vmem:[#allocation5 + $0x40] sm:$0xff]
  %v8152 = vld [vmem:[#allocation5 + $0x48] sm:$0xff]
  %v8153 = vld [vmem:[#allocation5 + $0x50] sm:$0xff]
  %v8154 = vld [vmem:[#allocation5 + $0x58] sm:$0xff]
  %v8155 = vld [vmem:[#allocation5 + $0x60] sm:$0xff]
  %v8156 = vld [vmem:[#allocation5 + $0x68] sm:$0xff]
  %v8157 = vld [vmem:[#allocation5 + $0x70] sm:$0xff]
  %v8158 = vld [vmem:[#allocation5 + $0x78] sm:$0xff]
  %v8159 = vld [vmem:[#allocation5 + $0x80] sm:$0xff]
  %v8160 = vld [vmem:[#allocation5 + $0x88] sm:$0xff]
  %v8161 = vld [vmem:[#allocation5 + $0x90] sm:$0xff]
  %v8162 = vld [vmem:[#allocation5 + $0x98] sm:$0xff]
  %v8163 = vld [vmem:[#allocation5 + $0xa0] sm:$0xff]
  %v8164 = vld [vmem:[#allocation5 + $0xa8] sm:$0xff]
  %v8165 = vld [vmem:[#allocation5 + $0xb0] sm:$0xff]
  %v8166 = vld [vmem:[#allocation5 + $0xb8] sm:$0xff]
  %v8167 = vld [vmem:[#allocation5 + $0xc0] sm:$0xff]
  %v8168 = vld [vmem:[#allocation5 + $0xc8] sm:$0xff]
  %v8169 = vld [vmem:[#allocation5 + $0xd0] sm:$0xff]
  %v8170 = vld [vmem:[#allocation5 + $0xd8] sm:$0xff]
  %v8171 = vld [vmem:[#allocation5 + $0xe0] sm:$0xff]
  %v8172 = vld [vmem:[#allocation5 + $0xe8] sm:$0xff]
  %v8173 = vld [vmem:[#allocation5 + $0xf0] sm:$0xff]
  %v8174 = vld [vmem:[#allocation5 + $0xf8] sm:$0xff]
  %v8175 = vld [vmem:[#allocation5 + $0x100] sm:$0xff]
  %v8176 = vld [vmem:[#allocation5 + $0x108] sm:$0xff]
  %v8177 = vld [vmem:[#allocation5 + $0x110] sm:$0xff]
  %v8178 = vld [vmem:[#allocation5 + $0x118] sm:$0xff]
  %v8179 = vld [vmem:[#allocation5 + $0x120] sm:$0xff]
  %v8180 = vld [vmem:[#allocation5 + $0x128] sm:$0xff]
  %v8181 = vld [vmem:[#allocation5 + $0x130] sm:$0xff]
  %v8182 = vld [vmem:[#allocation5 + $0x138] sm:$0xff]
  %v8183 = vld [vmem:[#allocation5 + $0x140] sm:$0xff]
  %v8184 = vld [vmem:[#allocation5 + $0x148] sm:$0xff]
  %v8185 = vld [vmem:[#allocation5 + $0x150] sm:$0xff]
  %v8186 = vld [vmem:[#allocation5 + $0x158] sm:$0xff]
  %v8187 = vld [vmem:[#allocation5 + $0x160] sm:$0xff]
  %v8188 = vld [vmem:[#allocation5 + $0x168] sm:$0xff]
  %v8189 = vld [vmem:[#allocation5 + $0x170] sm:$0xff]
  %v8190 = vld [vmem:[#allocation5 + $0x178] sm:$0xff]
  %v8191 = vld [vmem:[#allocation5 + $0x180] sm:$0xff]
  %v8192 = vld [vmem:[#allocation5 + $0x188] sm:$0xff]
  %v8193 = vld [vmem:[#allocation5 + $0x190] sm:$0xff]
  %v8194 = vld [vmem:[#allocation5 + $0x198] sm:$0xff]
  %v8195 = vld [vmem:[#allocation5 + $0x1a0] sm:$0xff]
  %v8196 = vld [vmem:[#allocation5 + $0x1a8] sm:$0xff]
  %v8197 = vld [vmem:[#allocation5 + $0x1b0] sm:$0xff]
  %v8198 = vld [vmem:[#allocation5 + $0x1b8] sm:$0xff]
  %v8199 = vld [vmem:[#allocation5 + $0x1c0] sm:$0xff]
  %v8200 = vld [vmem:[#allocation5 + $0x1c8] sm:$0xff]
  %v8201 = vld [vmem:[#allocation5 + $0x1d0] sm:$0xff]
  %v8202 = vld [vmem:[#allocation5 + $0x1d8] sm:$0xff]
  %v8203 = vld [vmem:[#allocation5 + $0x1e0] sm:$0xff]
  %v8204 = vld [vmem:[#allocation5 + $0x1e8] sm:$0xff]
  %v8205 = vld [vmem:[#allocation5 + $0x1f0] sm:$0xff]
  %v8206 = vld [vmem:[#allocation5 + $0x1f8] sm:$0xff]
  %v8207 = vld [vmem:[%s4] sm:$0xff]
  %v8208 = vld [vmem:[%s4 + $0x8] sm:$0xff]
  %v8209 = vld [vmem:[%s4 + $0x10] sm:$0xff]
  %v8210 = vld [vmem:[%s4 + $0x18] sm:$0xff]
  %v8211 = vld [vmem:[%s4 + $0x20] sm:$0xff]
  %v8212 = vld [vmem:[%s4 + $0x28] sm:$0xff]
  %v8213 = vld [vmem:[%s4 + $0x30] sm:$0xff]
  %v8214 = vld [vmem:[%s4 + $0x38] sm:$0xff]
  %v8215 = vld [vmem:[%s4 + $0x40] sm:$0xff]
  %vm8216 = vcmask 588800
  %v8218 = vsel %vm8216, %v8143, 0
  %v8221 = vsel %vm8216, %v8144, 0
  %v8224 = vsel %vm8216, %v8145, 0
  %v8227 = vsel %vm8216, %v8146, 0
  %v8230 = vsel %vm8216, %v8147, 0
  %v8233 = vsel %vm8216, %v8148, 0
  %v8236 = vsel %vm8216, %v8149, 0
  %v8239 = vsel %vm8216, %v8150, 0
  %v8242 = vsel %vm8216, %v8151, 0
  %v8245 = vsel %vm8216, %v8152, 0
  %v8248 = vsel %vm8216, %v8153, 0
  %v8251 = vsel %vm8216, %v8154, 0
  %v8254 = vsel %vm8216, %v8155, 0
  %v8257 = vsel %vm8216, %v8156, 0
  %v8260 = vsel %vm8216, %v8157, 0
  %v8263 = vsel %vm8216, %v8158, 0
  %v8266 = vsel %vm8216, %v8159, 0
  %v8269 = vsel %vm8216, %v8160, 0
  %v8272 = vsel %vm8216, %v8161, 0
  %v8275 = vsel %vm8216, %v8162, 0
  %v8278 = vsel %vm8216, %v8163, 0
  %v8281 = vsel %vm8216, %v8164, 0
  %v8284 = vsel %vm8216, %v8165, 0
  %v8287 = vsel %vm8216, %v8166, 0
  %v8290 = vsel %vm8216, %v8167, 0
  %v8293 = vsel %vm8216, %v8168, 0
  %v8296 = vsel %vm8216, %v8169, 0
  %v8299 = vsel %vm8216, %v8170, 0
  %v8302 = vsel %vm8216, %v8171, 0
  %v8305 = vsel %vm8216, %v8172, 0
  %v8308 = vsel %vm8216, %v8173, 0
  %v8311 = vsel %vm8216, %v8174, 0
  %v8314 = vsel %vm8216, %v8175, 0
  %v8317 = vsel %vm8216, %v8176, 0
  %v8320 = vsel %vm8216, %v8177, 0
  %v8323 = vsel %vm8216, %v8178, 0
  %v8326 = vsel %vm8216, %v8179, 0
  %v8329 = vsel %vm8216, %v8180, 0
  %v8332 = vsel %vm8216, %v8181, 0
  %v8335 = vsel %vm8216, %v8182, 0
  %v8338 = vsel %vm8216, %v8183, 0
  %v8341 = vsel %vm8216, %v8184, 0
  %v8344 = vsel %vm8216, %v8185, 0
  %v8347 = vsel %vm8216, %v8186, 0
  %v8350 = vsel %vm8216, %v8187, 0
  %v8353 = vsel %vm8216, %v8188, 0
  %v8356 = vsel %vm8216, %v8189, 0
  %v8359 = vsel %vm8216, %v8190, 0
  %v8362 = vsel %vm8216, %v8191, 0
  %v8365 = vsel %vm8216, %v8192, 0
  %v8368 = vsel %vm8216, %v8193, 0
  %v8371 = vsel %vm8216, %v8194, 0
  %v8374 = vsel %vm8216, %v8195, 0
  %v8377 = vsel %vm8216, %v8196, 0
  %v8380 = vsel %vm8216, %v8197, 0
  %v8383 = vsel %vm8216, %v8198, 0
  %v8386 = vsel %vm8216, %v8199, 0
  %v8389 = vsel %vm8216, %v8200, 0
  %v8392 = vsel %vm8216, %v8201, 0
  %v8395 = vsel %vm8216, %v8202, 0
  %v8398 = vsel %vm8216, %v8203, 0
  %v8401 = vsel %vm8216, %v8204, 0
  %v8404 = vsel %vm8216, %v8205, 0
  %v8407 = vsel %vm8216, %v8206, 0
  %8409 = vmatprep.subr.mxu0 0.0
  %8410 = vmatpush1.msra.mxu0 0.0
  %8411 = vmatprep.subr.mxu0 0.0
  %8412 = vmatpush1.msra.mxu0 0.0
  %8413 = vmatprep.subr.mxu0 0.0
  %8414 = vmatpush1.msra.mxu0 0.0
  %8415 = vmatprep.subr.mxu0 0.0
  %8416 = vmatpush1.msra.mxu0 0.0
  %8417 = vmatprep.subr.mxu0 0.0
  %8418 = vmatpush1.msra.mxu0 0.0
  %8419 = vmatprep.subr.mxu0 0.0
  %8420 = vmatpush1.msra.mxu0 0.0
  %8421 = vmatprep.subr.mxu0 0.0
  %8422 = vmatpush1.msra.mxu0 0.0
  %8423 = vmatprep.subr.mxu0 0.0
  %8424 = vmatpush1.msra.mxu0 %v8215
  %8425 = vmatprep.subr.mxu0 0.0
  %8426 = vmatpush1.msra.mxu0 %v8214
  %8427 = vmatprep.subr.mxu0 0.0
  %8428 = vmatpush1.msra.mxu0 %v8213
  %8429 = vmatprep.subr.mxu0 0.0
  %8430 = vmatpush1.msra.mxu0 %v8212
  %8431 = vmatprep.subr.mxu0 0.0
  %8432 = vmatpush1.msra.mxu0 %v8211
  %8433 = vmatprep.subr.mxu0 0.0
  %8434 = vmatpush1.msra.mxu0 %v8210
  %8435 = vmatprep.subr.mxu0 0.0
  %8436 = vmatpush1.msra.mxu0 %v8209
  %8437 = vmatprep.subr.mxu0 0.0
  %8438 = vmatpush1.msra.mxu0 %v8208
  %8439 = vmatprep.subr.mxu0 0.0
  %8440 = vmatpush1.msra.mxu0 %v8207
  %8441 = vmatprep.subr.mxu0 0.0
  %8442 = vmatpush2.msra.mxu0 0.0
  %8443 = vmatprep.subr.mxu0 0.0
  %8444 = vmatpush2.msra.mxu0 0.0
  %8445 = vmatprep.subr.mxu0 0.0
  %8446 = vmatpush2.msra.mxu0 0.0
  %8447 = vmatprep.subr.mxu0 0.0
  %8448 = vmatpush2.msra.mxu0 0.0
  %8449 = vmatprep.subr.mxu0 0.0
  %8450 = vmatpush2.msra.mxu0 0.0
  %8451 = vmatprep.subr.mxu0 0.0
  %8452 = vmatpush2.msra.mxu0 0.0
  %8453 = vmatprep.subr.mxu0 0.0
  %8454 = vmatpush2.msra.mxu0 0.0
  %8455 = vmatprep.subr.mxu0 0.0
  %8456 = vmatpush2.msra.mxu0 0.0
  %8457 = vmatprep.subr.mxu0 0.0
  %8458 = vmatpush2.msra.mxu0 0.0
  %8459 = vmatprep.subr.mxu0 0.0
  %8460 = vmatpush2.msra.mxu0 0.0
  %8461 = vmatprep.subr.mxu0 0.0
  %8462 = vmatpush2.msra.mxu0 0.0
  %8463 = vmatprep.subr.mxu0 0.0
  %8464 = vmatpush2.msra.mxu0 0.0
  %8465 = vmatprep.subr.mxu0 0.0
  %8466 = vmatpush2.msra.mxu0 0.0
  %8467 = vmatprep.subr.mxu0 0.0
  %8468 = vmatpush2.msra.mxu0 0.0
  %8469 = vmatprep.subr.mxu0 0.0
  %8470 = vmatpush2.msra.mxu0 0.0
  %8471 = vmatprep.subr.mxu0 0.0
  %8472 = vmatpush2.msra.mxu0 0.0
  %8473 = vmatprep.mubr.f32.mxu0 0.0
  %8474 = vmatmul.mubr.f32.gmra.mxu0 %v8218
  %v8475 = vpop.f32.mrf.mxu0
  %v8476 = vadd.f32 0.0, %v8475
  %v8477 = vpop.f32.mrf.mxu0
  %8478 = vmatprep.mubr.f32.mxu0 0.0
  %8479 = vmatmul.mubr.f32.gmra.mxu0 %v8221
  %v8480 = vpop.f32.mrf.mxu0
  %v8481 = vadd.f32 0.0, %v8480
  %v8482 = vpop.f32.mrf.mxu0
  %8483 = vmatprep.mubr.f32.mxu0 0.0
  %8484 = vmatmul.mubr.f32.gmra.mxu0 %v8224
  %v8485 = vpop.f32.mrf.mxu0
  %v8486 = vadd.f32 0.0, %v8485
  %v8487 = vpop.f32.mrf.mxu0
  %8488 = vmatprep.mubr.f32.mxu0 0.0
  %8489 = vmatmul.mubr.f32.gmra.mxu0 %v8227
  %v8490 = vpop.f32.mrf.mxu0
  %v8491 = vadd.f32 0.0, %v8490
  %v8492 = vpop.f32.mrf.mxu0
  %8493 = vmatprep.mubr.f32.mxu0 0.0
  %8494 = vmatmul.mubr.f32.gmra.mxu0 %v8230
  %v8495 = vpop.f32.mrf.mxu0
  %v8496 = vadd.f32 0.0, %v8495
  %v8497 = vpop.f32.mrf.mxu0
  %8498 = vmatprep.mubr.f32.mxu0 0.0
  %8499 = vmatmul.mubr.f32.gmra.mxu0 %v8233
  %v8500 = vpop.f32.mrf.mxu0
  %v8501 = vadd.f32 0.0, %v8500
  %v8502 = vpop.f32.mrf.mxu0
  %8503 = vmatprep.mubr.f32.mxu0 0.0
  %8504 = vmatmul.mubr.f32.gmra.mxu0 %v8236
  %v8505 = vpop.f32.mrf.mxu0
  %v8506 = vadd.f32 0.0, %v8505
  %v8507 = vpop.f32.mrf.mxu0
  %8508 = vmatprep.mubr.f32.mxu0 0.0
  %8509 = vmatmul.mubr.f32.gmra.mxu0 %v8239
  %v8510 = vpop.f32.mrf.mxu0
  %v8511 = vadd.f32 0.0, %v8510
  %v8512 = vpop.f32.mrf.mxu0
  %8513 = vmatprep.mubr.f32.mxu0 0.0
  %8514 = vmatmul.mubr.f32.gmra.mxu0 %v8242
  %v8515 = vpop.f32.mrf.mxu0
  %v8516 = vadd.f32 0.0, %v8515
  %v8517 = vpop.f32.mrf.mxu0
  %8518 = vmatprep.mubr.f32.mxu0 0.0
  %8519 = vmatmul.mubr.f32.gmra.mxu0 %v8245
  %v8520 = vpop.f32.mrf.mxu0
  %v8521 = vadd.f32 0.0, %v8520
  %v8522 = vpop.f32.mrf.mxu0
  %8523 = vmatprep.mubr.f32.mxu0 0.0
  %8524 = vmatmul.mubr.f32.gmra.mxu0 %v8248
  %v8525 = vpop.f32.mrf.mxu0
  %v8526 = vadd.f32 0.0, %v8525
  %v8527 = vpop.f32.mrf.mxu0
  %8528 = vmatprep.mubr.f32.mxu0 0.0
  %8529 = vmatmul.mubr.f32.gmra.mxu0 %v8251
  %v8530 = vpop.f32.mrf.mxu0
  %v8531 = vadd.f32 0.0, %v8530
  %v8532 = vpop.f32.mrf.mxu0
  %8533 = vmatprep.mubr.f32.mxu0 0.0
  %8534 = vmatmul.mubr.f32.gmra.mxu0 %v8254
  %v8535 = vpop.f32.mrf.mxu0
  %v8536 = vadd.f32 0.0, %v8535
  %v8537 = vpop.f32.mrf.mxu0
  %8538 = vmatprep.mubr.f32.mxu0 0.0
  %8539 = vmatmul.mubr.f32.gmra.mxu0 %v8257
  %v8540 = vpop.f32.mrf.mxu0
  %v8541 = vadd.f32 0.0, %v8540
  %v8542 = vpop.f32.mrf.mxu0
  %8543 = vmatprep.mubr.f32.mxu0 0.0
  %8544 = vmatmul.mubr.f32.gmra.mxu0 %v8260
  %v8545 = vpop.f32.mrf.mxu0
  %v8546 = vadd.f32 0.0, %v8545
  %v8547 = vpop.f32.mrf.mxu0
  %8548 = vmatprep.mubr.f32.mxu0 0.0
  %8549 = vmatmul.mubr.f32.gmra.mxu0 %v8263
  %v8550 = vpop.f32.mrf.mxu0
  %v8551 = vadd.f32 0.0, %v8550
  %v8552 = vpop.f32.mrf.mxu0
  %8553 = vmatprep.mubr.f32.mxu0 0.0
  %8554 = vmatmul.mubr.f32.gmra.mxu0 %v8266
  %v8555 = vpop.f32.mrf.mxu0
  %v8556 = vadd.f32 0.0, %v8555
  %v8557 = vpop.f32.mrf.mxu0
  %8558 = vmatprep.mubr.f32.mxu0 0.0
  %8559 = vmatmul.mubr.f32.gmra.mxu0 %v8269
  %v8560 = vpop.f32.mrf.mxu0
  %v8561 = vadd.f32 0.0, %v8560
  %v8562 = vpop.f32.mrf.mxu0
  %8563 = vmatprep.mubr.f32.mxu0 0.0
  %8564 = vmatmul.mubr.f32.gmra.mxu0 %v8272
  %v8565 = vpop.f32.mrf.mxu0
  %v8566 = vadd.f32 0.0, %v8565
  %v8567 = vpop.f32.mrf.mxu0
  %8568 = vmatprep.mubr.f32.mxu0 0.0
  %8569 = vmatmul.mubr.f32.gmra.mxu0 %v8275
  %v8570 = vpop.f32.mrf.mxu0
  %v8571 = vadd.f32 0.0, %v8570
  %v8572 = vpop.f32.mrf.mxu0
  %8573 = vmatprep.mubr.f32.mxu0 0.0
  %8574 = vmatmul.mubr.f32.gmra.mxu0 %v8278
  %v8575 = vpop.f32.mrf.mxu0
  %v8576 = vadd.f32 0.0, %v8575
  %v8577 = vpop.f32.mrf.mxu0
  %8578 = vmatprep.mubr.f32.mxu0 0.0
  %8579 = vmatmul.mubr.f32.gmra.mxu0 %v8281
  %v8580 = vpop.f32.mrf.mxu0
  %v8581 = vadd.f32 0.0, %v8580
  %v8582 = vpop.f32.mrf.mxu0
  %8583 = vmatprep.mubr.f32.mxu0 0.0
  %8584 = vmatmul.mubr.f32.gmra.mxu0 %v8284
  %v8585 = vpop.f32.mrf.mxu0
  %v8586 = vadd.f32 0.0, %v8585
  %v8587 = vpop.f32.mrf.mxu0
  %8588 = vmatprep.mubr.f32.mxu0 0.0
  %8589 = vmatmul.mubr.f32.gmra.mxu0 %v8287
  %v8590 = vpop.f32.mrf.mxu0
  %v8591 = vadd.f32 0.0, %v8590
  %v8592 = vpop.f32.mrf.mxu0
  %8593 = vmatprep.mubr.f32.mxu0 0.0
  %8594 = vmatmul.mubr.f32.gmra.mxu0 %v8290
  %v8595 = vpop.f32.mrf.mxu0
  %v8596 = vadd.f32 0.0, %v8595
  %v8597 = vpop.f32.mrf.mxu0
  %8598 = vmatprep.mubr.f32.mxu0 0.0
  %8599 = vmatmul.mubr.f32.gmra.mxu0 %v8293
  %v8600 = vpop.f32.mrf.mxu0
  %v8601 = vadd.f32 0.0, %v8600
  %v8602 = vpop.f32.mrf.mxu0
  %8603 = vmatprep.mubr.f32.mxu0 0.0
  %8604 = vmatmul.mubr.f32.gmra.mxu0 %v8296
  %v8605 = vpop.f32.mrf.mxu0
  %v8606 = vadd.f32 0.0, %v8605
  %v8607 = vpop.f32.mrf.mxu0
  %8608 = vmatprep.mubr.f32.mxu0 0.0
  %8609 = vmatmul.mubr.f32.gmra.mxu0 %v8299
  %v8610 = vpop.f32.mrf.mxu0
  %v8611 = vadd.f32 0.0, %v8610
  %v8612 = vpop.f32.mrf.mxu0
  %8613 = vmatprep.mubr.f32.mxu0 0.0
  %8614 = vmatmul.mubr.f32.gmra.mxu0 %v8302
  %v8615 = vpop.f32.mrf.mxu0
  %v8616 = vadd.f32 0.0, %v8615
  %v8617 = vpop.f32.mrf.mxu0
  %8618 = vmatprep.mubr.f32.mxu0 0.0
  %8619 = vmatmul.mubr.f32.gmra.mxu0 %v8305
  %v8620 = vpop.f32.mrf.mxu0
  %v8621 = vadd.f32 0.0, %v8620
  %v8622 = vpop.f32.mrf.mxu0
  %8623 = vmatprep.mubr.f32.mxu0 0.0
  %8624 = vmatmul.mubr.f32.gmra.mxu0 %v8308
  %v8625 = vpop.f32.mrf.mxu0
  %v8626 = vadd.f32 0.0, %v8625
  %v8627 = vpop.f32.mrf.mxu0
  %8628 = vmatprep.mubr.f32.mxu0 0.0
  %8629 = vmatmul.mubr.f32.gmra.mxu0 %v8311
  %v8630 = vpop.f32.mrf.mxu0
  %v8631 = vadd.f32 0.0, %v8630
  %v8632 = vpop.f32.mrf.mxu0
  %8633 = vmatprep.mubr.f32.mxu0 0.0
  %8634 = vmatmul.mubr.f32.gmra.mxu0 %v8314
  %v8635 = vpop.f32.mrf.mxu0
  %v8636 = vadd.f32 0.0, %v8635
  %v8637 = vpop.f32.mrf.mxu0
  %8638 = vmatprep.mubr.f32.mxu0 0.0
  %8639 = vmatmul.mubr.f32.gmra.mxu0 %v8317
  %v8640 = vpop.f32.mrf.mxu0
  %v8641 = vadd.f32 0.0, %v8640
  %v8642 = vpop.f32.mrf.mxu0
  %8643 = vmatprep.mubr.f32.mxu0 0.0
  %8644 = vmatmul.mubr.f32.gmra.mxu0 %v8320
  %v8645 = vpop.f32.mrf.mxu0
  %v8646 = vadd.f32 0.0, %v8645
  %v8647 = vpop.f32.mrf.mxu0
  %8648 = vmatprep.mubr.f32.mxu0 0.0
  %8649 = vmatmul.mubr.f32.gmra.mxu0 %v8323
  %v8650 = vpop.f32.mrf.mxu0
  %v8651 = vadd.f32 0.0, %v8650
  %v8652 = vpop.f32.mrf.mxu0
  %8653 = vmatprep.mubr.f32.mxu0 0.0
  %8654 = vmatmul.mubr.f32.gmra.mxu0 %v8326
  %v8655 = vpop.f32.mrf.mxu0
  %v8656 = vadd.f32 0.0, %v8655
  %v8657 = vpop.f32.mrf.mxu0
  %8658 = vmatprep.mubr.f32.mxu0 0.0
  %8659 = vmatmul.mubr.f32.gmra.mxu0 %v8329
  %v8660 = vpop.f32.mrf.mxu0
  %v8661 = vadd.f32 0.0, %v8660
  %v8662 = vpop.f32.mrf.mxu0
  %8663 = vmatprep.mubr.f32.mxu0 0.0
  %8664 = vmatmul.mubr.f32.gmra.mxu0 %v8332
  %v8665 = vpop.f32.mrf.mxu0
  %v8666 = vadd.f32 0.0, %v8665
  %v8667 = vpop.f32.mrf.mxu0
  %8668 = vmatprep.mubr.f32.mxu0 0.0
  %8669 = vmatmul.mubr.f32.gmra.mxu0 %v8335
  %v8670 = vpop.f32.mrf.mxu0
  %v8671 = vadd.f32 0.0, %v8670
  %v8672 = vpop.f32.mrf.mxu0
  %8673 = vmatprep.mubr.f32.mxu0 0.0
  %8674 = vmatmul.mubr.f32.gmra.mxu0 %v8338
  %v8675 = vpop.f32.mrf.mxu0
  %v8676 = vadd.f32 0.0, %v8675
  %v8677 = vpop.f32.mrf.mxu0
  %8678 = vmatprep.mubr.f32.mxu0 0.0
  %8679 = vmatmul.mubr.f32.gmra.mxu0 %v8341
  %v8680 = vpop.f32.mrf.mxu0
  %v8681 = vadd.f32 0.0, %v8680
  %v8682 = vpop.f32.mrf.mxu0
  %8683 = vmatprep.mubr.f32.mxu0 0.0
  %8684 = vmatmul.mubr.f32.gmra.mxu0 %v8344
  %v8685 = vpop.f32.mrf.mxu0
  %v8686 = vadd.f32 0.0, %v8685
  %v8687 = vpop.f32.mrf.mxu0
  %8688 = vmatprep.mubr.f32.mxu0 0.0
  %8689 = vmatmul.mubr.f32.gmra.mxu0 %v8347
  %v8690 = vpop.f32.mrf.mxu0
  %v8691 = vadd.f32 0.0, %v8690
  %v8692 = vpop.f32.mrf.mxu0
  %8693 = vmatprep.mubr.f32.mxu0 0.0
  %8694 = vmatmul.mubr.f32.gmra.mxu0 %v8350
  %v8695 = vpop.f32.mrf.mxu0
  %v8696 = vadd.f32 0.0, %v8695
  %v8697 = vpop.f32.mrf.mxu0
  %8698 = vmatprep.mubr.f32.mxu0 0.0
  %8699 = vmatmul.mubr.f32.gmra.mxu0 %v8353
  %v8700 = vpop.f32.mrf.mxu0
  %v8701 = vadd.f32 0.0, %v8700
  %v8702 = vpop.f32.mrf.mxu0
  %8703 = vmatprep.mubr.f32.mxu0 0.0
  %8704 = vmatmul.mubr.f32.gmra.mxu0 %v8356
  %v8705 = vpop.f32.mrf.mxu0
  %v8706 = vadd.f32 0.0, %v8705
  %v8707 = vpop.f32.mrf.mxu0
  %8708 = vmatprep.mubr.f32.mxu0 0.0
  %8709 = vmatmul.mubr.f32.gmra.mxu0 %v8359
  %v8710 = vpop.f32.mrf.mxu0
  %v8711 = vadd.f32 0.0, %v8710
  %v8712 = vpop.f32.mrf.mxu0
  %8713 = vmatprep.mubr.f32.mxu0 0.0
  %8714 = vmatmul.mubr.f32.gmra.mxu0 %v8362
  %v8715 = vpop.f32.mrf.mxu0
  %v8716 = vadd.f32 0.0, %v8715
  %v8717 = vpop.f32.mrf.mxu0
  %8718 = vmatprep.mubr.f32.mxu0 0.0
  %8719 = vmatmul.mubr.f32.gmra.mxu0 %v8365
  %v8720 = vpop.f32.mrf.mxu0
  %v8721 = vadd.f32 0.0, %v8720
  %v8722 = vpop.f32.mrf.mxu0
  %8723 = vmatprep.mubr.f32.mxu0 0.0
  %8724 = vmatmul.mubr.f32.gmra.mxu0 %v8368
  %v8725 = vpop.f32.mrf.mxu0
  %v8726 = vadd.f32 0.0, %v8725
  %v8727 = vpop.f32.mrf.mxu0
  %8728 = vmatprep.mubr.f32.mxu0 0.0
  %8729 = vmatmul.mubr.f32.gmra.mxu0 %v8371
  %v8730 = vpop.f32.mrf.mxu0
  %v8731 = vadd.f32 0.0, %v8730
  %v8732 = vpop.f32.mrf.mxu0
  %8733 = vmatprep.mubr.f32.mxu0 0.0
  %8734 = vmatmul.mubr.f32.gmra.mxu0 %v8374
  %v8735 = vpop.f32.mrf.mxu0
  %v8736 = vadd.f32 0.0, %v8735
  %v8737 = vpop.f32.mrf.mxu0
  %8738 = vmatprep.mubr.f32.mxu0 0.0
  %8739 = vmatmul.mubr.f32.gmra.mxu0 %v8377
  %v8740 = vpop.f32.mrf.mxu0
  %v8741 = vadd.f32 0.0, %v8740
  %v8742 = vpop.f32.mrf.mxu0
  %8743 = vmatprep.mubr.f32.mxu0 0.0
  %8744 = vmatmul.mubr.f32.gmra.mxu0 %v8380
  %v8745 = vpop.f32.mrf.mxu0
  %v8746 = vadd.f32 0.0, %v8745
  %v8747 = vpop.f32.mrf.mxu0
  %8748 = vmatprep.mubr.f32.mxu0 0.0
  %8749 = vmatmul.mubr.f32.gmra.mxu0 %v8383
  %v8750 = vpop.f32.mrf.mxu0
  %v8751 = vadd.f32 0.0, %v8750
  %v8752 = vpop.f32.mrf.mxu0
  %8753 = vmatprep.mubr.f32.mxu0 0.0
  %8754 = vmatmul.mubr.f32.gmra.mxu0 %v8386
  %v8755 = vpop.f32.mrf.mxu0
  %v8756 = vadd.f32 0.0, %v8755
  %v8757 = vpop.f32.mrf.mxu0
  %8758 = vmatprep.mubr.f32.mxu0 0.0
  %8759 = vmatmul.mubr.f32.gmra.mxu0 %v8389
  %v8760 = vpop.f32.mrf.mxu0
  %v8761 = vadd.f32 0.0, %v8760
  %v8762 = vpop.f32.mrf.mxu0
  %8763 = vmatprep.mubr.f32.mxu0 0.0
  %8764 = vmatmul.mubr.f32.gmra.mxu0 %v8392
  %v8765 = vpop.f32.mrf.mxu0
  %v8766 = vadd.f32 0.0, %v8765
  %v8767 = vpop.f32.mrf.mxu0
  %8768 = vmatprep.mubr.f32.mxu0 0.0
  %8769 = vmatmul.mubr.f32.gmra.mxu0 %v8395
  %v8770 = vpop.f32.mrf.mxu0
  %v8771 = vadd.f32 0.0, %v8770
  %v8772 = vpop.f32.mrf.mxu0
  %8773 = vmatprep.mubr.f32.mxu0 0.0
  %8774 = vmatmul.mubr.f32.gmra.mxu0 %v8398
  %v8775 = vpop.f32.mrf.mxu0
  %v8776 = vadd.f32 0.0, %v8775
  %v8777 = vpop.f32.mrf.mxu0
  %8778 = vmatprep.mubr.f32.mxu0 0.0
  %8779 = vmatmul.mubr.f32.gmra.mxu0 %v8401
  %v8780 = vpop.f32.mrf.mxu0
  %v8781 = vadd.f32 0.0, %v8780
  %v8782 = vpop.f32.mrf.mxu0
  %8783 = vmatprep.mubr.f32.mxu0 0.0
  %8784 = vmatmul.mubr.f32.gmra.mxu0 %v8404
  %v8785 = vpop.f32.mrf.mxu0
  %v8786 = vadd.f32 0.0, %v8785
  %v8787 = vpop.f32.mrf.mxu0
  %8788 = vmatprep.mubr.f32.mxu0 0.0
  %8789 = vmatmul.mubr.f32.gmra.mxu0 %v8407
  %v8790 = vpop.f32.mrf.mxu0
  %v8791 = vadd.f32 0.0, %v8790
  %v8792 = vpop.f32.mrf.mxu0
  %8793 = vdwg.mxu0
  %v8794 = vld [vmem:[%s5] sm:$0x1]
  %v8795 = vld [vmem:[%s6] sm:$0x1]
  %v8796 = vsel %vm4114, %v8476, 0.0
  %v8797 = vsel %vm4114, %v8481, 0.0
  %v8798 = vadd.f32 %v8796, %v8797
  %v8799 = vsel %vm4114, %v8486, 0.0
  %v8800 = vadd.f32 %v8798, %v8799
  %v8801 = vsel %vm4114, %v8491, 0.0
  %v8802 = vadd.f32 %v8800, %v8801
  %v8803 = vsel %vm4114, %v8496, 0.0
  %v8804 = vadd.f32 %v8802, %v8803
  %v8805 = vsel %vm4114, %v8501, 0.0
  %v8806 = vadd.f32 %v8804, %v8805
  %v8807 = vsel %vm4114, %v8506, 0.0
  %v8808 = vadd.f32 %v8806, %v8807
  %v8809 = vsel %vm4114, %v8511, 0.0
  %v8810 = vadd.f32 %v8808, %v8809
  %v8811 = vsel %vm4114, %v8516, 0.0
  %v8812 = vadd.f32 %v8810, %v8811
  %v8813 = vsel %vm4114, %v8521, 0.0
  %v8814 = vadd.f32 %v8812, %v8813
  %v8815 = vsel %vm4114, %v8526, 0.0
  %v8816 = vadd.f32 %v8814, %v8815
  %v8817 = vsel %vm4114, %v8531, 0.0
  %v8818 = vadd.f32 %v8816, %v8817
  %v8819 = vsel %vm4114, %v8536, 0.0
  %v8820 = vadd.f32 %v8818, %v8819
  %v8821 = vsel %vm4114, %v8541, 0.0
  %v8822 = vadd.f32 %v8820, %v8821
  %v8823 = vsel %vm4114, %v8546, 0.0
  %v8824 = vadd.f32 %v8822, %v8823
  %v8825 = vsel %vm4114, %v8551, 0.0
  %v8826 = vadd.f32 %v8824, %v8825
  %v8827 = vsel %vm4114, %v8556, 0.0
  %v8828 = vadd.f32 %v8826, %v8827
  %v8829 = vsel %vm4114, %v8561, 0.0
  %v8830 = vadd.f32 %v8828, %v8829
  %v8831 = vsel %vm4114, %v8566, 0.0
  %v8832 = vadd.f32 %v8830, %v8831
  %v8833 = vsel %vm4114, %v8571, 0.0
  %v8834 = vadd.f32 %v8832, %v8833
  %v8835 = vsel %vm4114, %v8576, 0.0
  %v8836 = vadd.f32 %v8834, %v8835
  %v8837 = vsel %vm4114, %v8581, 0.0
  %v8838 = vadd.f32 %v8836, %v8837
  %v8839 = vsel %vm4114, %v8586, 0.0
  %v8840 = vadd.f32 %v8838, %v8839
  %v8841 = vsel %vm4114, %v8591, 0.0
  %v8842 = vadd.f32 %v8840, %v8841
  %v8843 = vsel %vm4114, %v8596, 0.0
  %v8844 = vadd.f32 %v8842, %v8843
  %v8845 = vsel %vm4114, %v8601, 0.0
  %v8846 = vadd.f32 %v8844, %v8845
  %v8847 = vsel %vm4114, %v8606, 0.0
  %v8848 = vadd.f32 %v8846, %v8847
  %v8849 = vsel %vm4114, %v8611, 0.0
  %v8850 = vadd.f32 %v8848, %v8849
  %v8851 = vsel %vm4114, %v8616, 0.0
  %v8852 = vadd.f32 %v8850, %v8851
  %v8853 = vsel %vm4114, %v8621, 0.0
  %v8854 = vadd.f32 %v8852, %v8853
  %v8855 = vsel %vm4114, %v8626, 0.0
  %v8856 = vadd.f32 %v8854, %v8855
  %v8857 = vsel %vm4114, %v8631, 0.0
  %v8858 = vadd.f32 %v8856, %v8857
  %v8859 = vsel %vm4114, %v8636, 0.0
  %v8860 = vadd.f32 %v8858, %v8859
  %v8861 = vsel %vm4114, %v8641, 0.0
  %v8862 = vadd.f32 %v8860, %v8861
  %v8863 = vsel %vm4114, %v8646, 0.0
  %v8864 = vadd.f32 %v8862, %v8863
  %v8865 = vsel %vm4114, %v8651, 0.0
  %v8866 = vadd.f32 %v8864, %v8865
  %v8867 = vsel %vm4114, %v8656, 0.0
  %v8868 = vadd.f32 %v8866, %v8867
  %v8869 = vsel %vm4114, %v8661, 0.0
  %v8870 = vadd.f32 %v8868, %v8869
  %v8871 = vsel %vm4114, %v8666, 0.0
  %v8872 = vadd.f32 %v8870, %v8871
  %v8873 = vsel %vm4114, %v8671, 0.0
  %v8874 = vadd.f32 %v8872, %v8873
  %v8875 = vsel %vm4114, %v8676, 0.0
  %v8876 = vadd.f32 %v8874, %v8875
  %v8877 = vsel %vm4114, %v8681, 0.0
  %v8878 = vadd.f32 %v8876, %v8877
  %v8879 = vsel %vm4114, %v8686, 0.0
  %v8880 = vadd.f32 %v8878, %v8879
  %v8881 = vsel %vm4114, %v8691, 0.0
  %v8882 = vadd.f32 %v8880, %v8881
  %v8883 = vsel %vm4114, %v8696, 0.0
  %v8884 = vadd.f32 %v8882, %v8883
  %v8885 = vsel %vm4114, %v8701, 0.0
  %v8886 = vadd.f32 %v8884, %v8885
  %v8887 = vsel %vm4114, %v8706, 0.0
  %v8888 = vadd.f32 %v8886, %v8887
  %v8889 = vsel %vm4114, %v8711, 0.0
  %v8890 = vadd.f32 %v8888, %v8889
  %v8891 = vsel %vm4114, %v8716, 0.0
  %v8892 = vadd.f32 %v8890, %v8891
  %v8893 = vsel %vm4114, %v8721, 0.0
  %v8894 = vadd.f32 %v8892, %v8893
  %v8895 = vsel %vm4114, %v8726, 0.0
  %v8896 = vadd.f32 %v8894, %v8895
  %v8897 = vsel %vm4114, %v8731, 0.0
  %v8898 = vadd.f32 %v8896, %v8897
  %v8899 = vsel %vm4114, %v8736, 0.0
  %v8900 = vadd.f32 %v8898, %v8899
  %v8901 = vsel %vm4114, %v8741, 0.0
  %v8902 = vadd.f32 %v8900, %v8901
  %v8903 = vsel %vm4114, %v8746, 0.0
  %v8904 = vadd.f32 %v8902, %v8903
  %v8905 = vsel %vm4114, %v8751, 0.0
  %v8906 = vadd.f32 %v8904, %v8905
  %v8907 = vsel %vm4114, %v8756, 0.0
  %v8908 = vadd.f32 %v8906, %v8907
  %v8909 = vsel %vm4114, %v8761, 0.0
  %v8910 = vadd.f32 %v8908, %v8909
  %v8911 = vsel %vm4114, %v8766, 0.0
  %v8912 = vadd.f32 %v8910, %v8911
  %v8913 = vsel %vm4114, %v8771, 0.0
  %v8914 = vadd.f32 %v8912, %v8913
  %v8915 = vsel %vm4114, %v8776, 0.0
  %v8916 = vadd.f32 %v8914, %v8915
  %v8917 = vsel %vm4114, %v8781, 0.0
  %v8918 = vadd.f32 %v8916, %v8917
  %v8919 = vsel %vm4114, %v8786, 0.0
  %v8920 = vadd.f32 %v8918, %v8919
  %v8921 = vsel %vm4114, %v8791, 0.0
  %v8922 = vadd.f32 %v8920, %v8921
  %v8923 = vrot.slane %v8922, 4
  %v8924 = vadd.f32 %v8922, %v8923
  %v8925 = vrot.slane %v8924, 2
  %v8926 = vadd.f32 %v8924, %v8925
  %v8927 = vrot.slane %v8926, 1
  %v8928 = vadd.f32 %v8926, %v8927
  %v8929 = vmul.f32 %v8928, %v4248
  %v8930 = vsub.f32 %v8476, %v8929
  %v8931 = vsub.f32 %v8481, %v8929
  %v8932 = vsub.f32 %v8486, %v8929
  %v8933 = vsub.f32 %v8491, %v8929
  %v8934 = vsub.f32 %v8496, %v8929
  %v8935 = vsub.f32 %v8501, %v8929
  %v8936 = vsub.f32 %v8506, %v8929
  %v8937 = vsub.f32 %v8511, %v8929
  %v8938 = vsub.f32 %v8516, %v8929
  %v8939 = vsub.f32 %v8521, %v8929
  %v8940 = vsub.f32 %v8526, %v8929
  %v8941 = vsub.f32 %v8531, %v8929
  %v8942 = vsub.f32 %v8536, %v8929
  %v8943 = vsub.f32 %v8541, %v8929
  %v8944 = vsub.f32 %v8546, %v8929
  %v8945 = vsub.f32 %v8551, %v8929
  %v8946 = vsub.f32 %v8556, %v8929
  %v8947 = vsub.f32 %v8561, %v8929
  %v8948 = vsub.f32 %v8566, %v8929
  %v8949 = vsub.f32 %v8571, %v8929
  %v8950 = vsub.f32 %v8576, %v8929
  %v8951 = vsub.f32 %v8581, %v8929
  %v8952 = vsub.f32 %v8586, %v8929
  %v8953 = vsub.f32 %v8591, %v8929
  %v8954 = vsub.f32 %v8596, %v8929
  %v8955 = vsub.f32 %v8601, %v8929
  %v8956 = vsub.f32 %v8606, %v8929
  %v8957 = vsub.f32 %v8611, %v8929
  %v8958 = vsub.f32 %v8616, %v8929
  %v8959 = vsub.f32 %v8621, %v8929
  %v8960 = vsub.f32 %v8626, %v8929
  %v8961 = vsub.f32 %v8631, %v8929
  %v8962 = vsub.f32 %v8636, %v8929
  %v8963 = vsub.f32 %v8641, %v8929
  %v8964 = vsub.f32 %v8646, %v8929
  %v8965 = vsub.f32 %v8651, %v8929
  %v8966 = vsub.f32 %v8656, %v8929
  %v8967 = vsub.f32 %v8661, %v8929
  %v8968 = vsub.f32 %v8666, %v8929
  %v8969 = vsub.f32 %v8671, %v8929
  %v8970 = vsub.f32 %v8676, %v8929
  %v8971 = vsub.f32 %v8681, %v8929
  %v8972 = vsub.f32 %v8686, %v8929
  %v8973 = vsub.f32 %v8691, %v8929
  %v8974 = vsub.f32 %v8696, %v8929
  %v8975 = vsub.f32 %v8701, %v8929
  %v8976 = vsub.f32 %v8706, %v8929
  %v8977 = vsub.f32 %v8711, %v8929
  %v8978 = vsub.f32 %v8716, %v8929
  %v8979 = vsub.f32 %v8721, %v8929
  %v8980 = vsub.f32 %v8726, %v8929
  %v8981 = vsub.f32 %v8731, %v8929
  %v8982 = vsub.f32 %v8736, %v8929
  %v8983 = vsub.f32 %v8741, %v8929
  %v8984 = vsub.f32 %v8746, %v8929
  %v8985 = vsub.f32 %v8751, %v8929
  %v8986 = vsub.f32 %v8756, %v8929
  %v8987 = vsub.f32 %v8761, %v8929
  %v8988 = vsub.f32 %v8766, %v8929
  %v8989 = vsub.f32 %v8771, %v8929
  %v8990 = vsub.f32 %v8776, %v8929
  %v8991 = vsub.f32 %v8781, %v8929
  %v8992 = vsub.f32 %v8786, %v8929
  %v8993 = vsub.f32 %v8791, %v8929
  %v8994 = vmul.f32 %v8930, %v8930
  %v8995 = vmul.f32 %v8931, %v8931
  %v8996 = vmul.f32 %v8932, %v8932
  %v8997 = vmul.f32 %v8933, %v8933
  %v8998 = vmul.f32 %v8934, %v8934
  %v8999 = vmul.f32 %v8935, %v8935
  %v9000 = vmul.f32 %v8936, %v8936
  %v9001 = vmul.f32 %v8937, %v8937
  %v9002 = vmul.f32 %v8938, %v8938
  %v9003 = vmul.f32 %v8939, %v8939
  %v9004 = vmul.f32 %v8940, %v8940
  %v9005 = vmul.f32 %v8941, %v8941
  %v9006 = vmul.f32 %v8942, %v8942
  %v9007 = vmul.f32 %v8943, %v8943
  %v9008 = vmul.f32 %v8944, %v8944
  %v9009 = vmul.f32 %v8945, %v8945
  %v9010 = vmul.f32 %v8946, %v8946
  %v9011 = vmul.f32 %v8947, %v8947
  %v9012 = vmul.f32 %v8948, %v8948
  %v9013 = vmul.f32 %v8949, %v8949
  %v9014 = vmul.f32 %v8950, %v8950
  %v9015 = vmul.f32 %v8951, %v8951
  %v9016 = vmul.f32 %v8952, %v8952
  %v9017 = vmul.f32 %v8953, %v8953
  %v9018 = vmul.f32 %v8954, %v8954
  %v9019 = vmul.f32 %v8955, %v8955
  %v9020 = vmul.f32 %v8956, %v8956
  %v9021 = vmul.f32 %v8957, %v8957
  %v9022 = vmul.f32 %v8958, %v8958
  %v9023 = vmul.f32 %v8959, %v8959
  %v9024 = vmul.f32 %v8960, %v8960
  %v9025 = vmul.f32 %v8961, %v8961
  %v9026 = vmul.f32 %v8962, %v8962
  %v9027 = vmul.f32 %v8963, %v8963
  %v9028 = vmul.f32 %v8964, %v8964
  %v9029 = vmul.f32 %v8965, %v8965
  %v9030 = vmul.f32 %v8966, %v8966
  %v9031 = vmul.f32 %v8967, %v8967
  %v9032 = vmul.f32 %v8968, %v8968
  %v9033 = vmul.f32 %v8969, %v8969
  %v9034 = vmul.f32 %v8970, %v8970
  %v9035 = vmul.f32 %v8971, %v8971
  %v9036 = vmul.f32 %v8972, %v8972
  %v9037 = vmul.f32 %v8973, %v8973
  %v9038 = vmul.f32 %v8974, %v8974
  %v9039 = vmul.f32 %v8975, %v8975
  %v9040 = vmul.f32 %v8976, %v8976
  %v9041 = vmul.f32 %v8977, %v8977
  %v9042 = vmul.f32 %v8978, %v8978
  %v9043 = vmul.f32 %v8979, %v8979
  %v9044 = vmul.f32 %v8980, %v8980
  %v9045 = vmul.f32 %v8981, %v8981
  %v9046 = vmul.f32 %v8982, %v8982
  %v9047 = vmul.f32 %v8983, %v8983
  %v9048 = vmul.f32 %v8984, %v8984
  %v9049 = vmul.f32 %v8985, %v8985
  %v9050 = vmul.f32 %v8986, %v8986
  %v9051 = vmul.f32 %v8987, %v8987
  %v9052 = vmul.f32 %v8988, %v8988
  %v9053 = vmul.f32 %v8989, %v8989
  %v9054 = vmul.f32 %v8990, %v8990
  %v9055 = vmul.f32 %v8991, %v8991
  %v9056 = vmul.f32 %v8992, %v8992
  %v9057 = vmul.f32 %v8993, %v8993
  %v9058 = vsel %vm4114, %v8994, 0.0
  %v9059 = vsel %vm4114, %v8995, 0.0
  %v9060 = vadd.f32 %v9058, %v9059
  %v9061 = vsel %vm4114, %v8996, 0.0
  %v9062 = vadd.f32 %v9060, %v9061
  %v9063 = vsel %vm4114, %v8997, 0.0
  %v9064 = vadd.f32 %v9062, %v9063
  %v9065 = vsel %vm4114, %v8998, 0.0
  %v9066 = vadd.f32 %v9064, %v9065
  %v9067 = vsel %vm4114, %v8999, 0.0
  %v9068 = vadd.f32 %v9066, %v9067
  %v9069 = vsel %vm4114, %v9000, 0.0
  %v9070 = vadd.f32 %v9068, %v9069
  %v9071 = vsel %vm4114, %v9001, 0.0
  %v9072 = vadd.f32 %v9070, %v9071
  %v9073 = vsel %vm4114, %v9002, 0.0
  %v9074 = vadd.f32 %v9072, %v9073
  %v9075 = vsel %vm4114, %v9003, 0.0
  %v9076 = vadd.f32 %v9074, %v9075
  %v9077 = vsel %vm4114, %v9004, 0.0
  %v9078 = vadd.f32 %v9076, %v9077
  %v9079 = vsel %vm4114, %v9005, 0.0
  %v9080 = vadd.f32 %v9078, %v9079
  %v9081 = vsel %vm4114, %v9006, 0.0
  %v9082 = vadd.f32 %v9080, %v9081
  %v9083 = vsel %vm4114, %v9007, 0.0
  %v9084 = vadd.f32 %v9082, %v9083
  %v9085 = vsel %vm4114, %v9008, 0.0
  %v9086 = vadd.f32 %v9084, %v9085
  %v9087 = vsel %vm4114, %v9009, 0.0
  %v9088 = vadd.f32 %v9086, %v9087
  %v9089 = vsel %vm4114, %v9010, 0.0
  %v9090 = vadd.f32 %v9088, %v9089
  %v9091 = vsel %vm4114, %v9011, 0.0
  %v9092 = vadd.f32 %v9090, %v9091
  %v9093 = vsel %vm4114, %v9012, 0.0
  %v9094 = vadd.f32 %v9092, %v9093
  %v9095 = vsel %vm4114, %v9013, 0.0
  %v9096 = vadd.f32 %v9094, %v9095
  %v9097 = vsel %vm4114, %v9014, 0.0
  %v9098 = vadd.f32 %v9096, %v9097
  %v9099 = vsel %vm4114, %v9015, 0.0
  %v9100 = vadd.f32 %v9098, %v9099
  %v9101 = vsel %vm4114, %v9016, 0.0
  %v9102 = vadd.f32 %v9100, %v9101
  %v9103 = vsel %vm4114, %v9017, 0.0
  %v9104 = vadd.f32 %v9102, %v9103
  %v9105 = vsel %vm4114, %v9018, 0.0
  %v9106 = vadd.f32 %v9104, %v9105
  %v9107 = vsel %vm4114, %v9019, 0.0
  %v9108 = vadd.f32 %v9106, %v9107
  %v9109 = vsel %vm4114, %v9020, 0.0
  %v9110 = vadd.f32 %v9108, %v9109
  %v9111 = vsel %vm4114, %v9021, 0.0
  %v9112 = vadd.f32 %v9110, %v9111
  %v9113 = vsel %vm4114, %v9022, 0.0
  %v9114 = vadd.f32 %v9112, %v9113
  %v9115 = vsel %vm4114, %v9023, 0.0
  %v9116 = vadd.f32 %v9114, %v9115
  %v9117 = vsel %vm4114, %v9024, 0.0
  %v9118 = vadd.f32 %v9116, %v9117
  %v9119 = vsel %vm4114, %v9025, 0.0
  %v9120 = vadd.f32 %v9118, %v9119
  %v9121 = vsel %vm4114, %v9026, 0.0
  %v9122 = vadd.f32 %v9120, %v9121
  %v9123 = vsel %vm4114, %v9027, 0.0
  %v9124 = vadd.f32 %v9122, %v9123
  %v9125 = vsel %vm4114, %v9028, 0.0
  %v9126 = vadd.f32 %v9124, %v9125
  %v9127 = vsel %vm4114, %v9029, 0.0
  %v9128 = vadd.f32 %v9126, %v9127
  %v9129 = vsel %vm4114, %v9030, 0.0
  %v9130 = vadd.f32 %v9128, %v9129
  %v9131 = vsel %vm4114, %v9031, 0.0
  %v9132 = vadd.f32 %v9130, %v9131
  %v9133 = vsel %vm4114, %v9032, 0.0
  %v9134 = vadd.f32 %v9132, %v9133
  %v9135 = vsel %vm4114, %v9033, 0.0
  %v9136 = vadd.f32 %v9134, %v9135
  %v9137 = vsel %vm4114, %v9034, 0.0
  %v9138 = vadd.f32 %v9136, %v9137
  %v9139 = vsel %vm4114, %v9035, 0.0
  %v9140 = vadd.f32 %v9138, %v9139
  %v9141 = vsel %vm4114, %v9036, 0.0
  %v9142 = vadd.f32 %v9140, %v9141
  %v9143 = vsel %vm4114, %v9037, 0.0
  %v9144 = vadd.f32 %v9142, %v9143
  %v9145 = vsel %vm4114, %v9038, 0.0
  %v9146 = vadd.f32 %v9144, %v9145
  %v9147 = vsel %vm4114, %v9039, 0.0
  %v9148 = vadd.f32 %v9146, %v9147
  %v9149 = vsel %vm4114, %v9040, 0.0
  %v9150 = vadd.f32 %v9148, %v9149
  %v9151 = vsel %vm4114, %v9041, 0.0
  %v9152 = vadd.f32 %v9150, %v9151
  %v9153 = vsel %vm4114, %v9042, 0.0
  %v9154 = vadd.f32 %v9152, %v9153
  %v9155 = vsel %vm4114, %v9043, 0.0
  %v9156 = vadd.f32 %v9154, %v9155
  %v9157 = vsel %vm4114, %v9044, 0.0
  %v9158 = vadd.f32 %v9156, %v9157
  %v9159 = vsel %vm4114, %v9045, 0.0
  %v9160 = vadd.f32 %v9158, %v9159
  %v9161 = vsel %vm4114, %v9046, 0.0
  %v9162 = vadd.f32 %v9160, %v9161
  %v9163 = vsel %vm4114, %v9047, 0.0
  %v9164 = vadd.f32 %v9162, %v9163
  %v9165 = vsel %vm4114, %v9048, 0.0
  %v9166 = vadd.f32 %v9164, %v9165
  %v9167 = vsel %vm4114, %v9049, 0.0
  %v9168 = vadd.f32 %v9166, %v9167
  %v9169 = vsel %vm4114, %v9050, 0.0
  %v9170 = vadd.f32 %v9168, %v9169
  %v9171 = vsel %vm4114, %v9051, 0.0
  %v9172 = vadd.f32 %v9170, %v9171
  %v9173 = vsel %vm4114, %v9052, 0.0
  %v9174 = vadd.f32 %v9172, %v9173
  %v9175 = vsel %vm4114, %v9053, 0.0
  %v9176 = vadd.f32 %v9174, %v9175
  %v9177 = vsel %vm4114, %v9054, 0.0
  %v9178 = vadd.f32 %v9176, %v9177
  %v9179 = vsel %vm4114, %v9055, 0.0
  %v9180 = vadd.f32 %v9178, %v9179
  %v9181 = vsel %vm4114, %v9056, 0.0
  %v9182 = vadd.f32 %v9180, %v9181
  %v9183 = vsel %vm4114, %v9057, 0.0
  %v9184 = vadd.f32 %v9182, %v9183
  %v9185 = vrot.slane %v9184, 4
  %v9186 = vadd.f32 %v9184, %v9185
  %v9187 = vrot.slane %v9186, 2
  %v9188 = vadd.f32 %v9186, %v9187
  %v9189 = vrot.slane %v9188, 1
  %v9190 = vadd.f32 %v9188, %v9189
  %v9191 = vmul.f32 %v9190, %v4248
  %v9192 = vadd.f32 %v9191, 1e-05
  %v9193 = vrsqrt.pop %v9192
  %v9194 = vmul.f32 %v8930, %v9193
  %v9195 = vmul.f32 %v8931, %v9193
  %v9196 = vmul.f32 %v8932, %v9193
  %v9197 = vmul.f32 %v8933, %v9193
  %v9198 = vmul.f32 %v8934, %v9193
  %v9199 = vmul.f32 %v8935, %v9193
  %v9200 = vmul.f32 %v8936, %v9193
  %v9201 = vmul.f32 %v8937, %v9193
  %v9202 = vmul.f32 %v8938, %v9193
  %v9203 = vmul.f32 %v8939, %v9193
  %v9204 = vmul.f32 %v8940, %v9193
  %v9205 = vmul.f32 %v8941, %v9193
  %v9206 = vmul.f32 %v8942, %v9193
  %v9207 = vmul.f32 %v8943, %v9193
  %v9208 = vmul.f32 %v8944, %v9193
  %v9209 = vmul.f32 %v8945, %v9193
  %v9210 = vmul.f32 %v8946, %v9193
  %v9211 = vmul.f32 %v8947, %v9193
  %v9212 = vmul.f32 %v8948, %v9193
  %v9213 = vmul.f32 %v8949, %v9193
  %v9214 = vmul.f32 %v8950, %v9193
  %v9215 = vmul.f32 %v8951, %v9193
  %v9216 = vmul.f32 %v8952, %v9193
  %v9217 = vmul.f32 %v8953, %v9193
  %v9218 = vmul.f32 %v8954, %v9193
  %v9219 = vmul.f32 %v8955, %v9193
  %v9220 = vmul.f32 %v8956, %v9193
  %v9221 = vmul.f32 %v8957, %v9193
  %v9222 = vmul.f32 %v8958, %v9193
  %v9223 = vmul.f32 %v8959, %v9193
  %v9224 = vmul.f32 %v8960, %v9193
  %v9225 = vmul.f32 %v8961, %v9193
  %v9226 = vmul.f32 %v8962, %v9193
  %v9227 = vmul.f32 %v8963, %v9193
  %v9228 = vmul.f32 %v8964, %v9193
  %v9229 = vmul.f32 %v8965, %v9193
  %v9230 = vmul.f32 %v8966, %v9193
  %v9231 = vmul.f32 %v8967, %v9193
  %v9232 = vmul.f32 %v8968, %v9193
  %v9233 = vmul.f32 %v8969, %v9193
  %v9234 = vmul.f32 %v8970, %v9193
  %v9235 = vmul.f32 %v8971, %v9193
  %v9236 = vmul.f32 %v8972, %v9193
  %v9237 = vmul.f32 %v8973, %v9193
  %v9238 = vmul.f32 %v8974, %v9193
  %v9239 = vmul.f32 %v8975, %v9193
  %v9240 = vmul.f32 %v8976, %v9193
  %v9241 = vmul.f32 %v8977, %v9193
  %v9242 = vmul.f32 %v8978, %v9193
  %v9243 = vmul.f32 %v8979, %v9193
  %v9244 = vmul.f32 %v8980, %v9193
  %v9245 = vmul.f32 %v8981, %v9193
  %v9246 = vmul.f32 %v8982, %v9193
  %v9247 = vmul.f32 %v8983, %v9193
  %v9248 = vmul.f32 %v8984, %v9193
  %v9249 = vmul.f32 %v8985, %v9193
  %v9250 = vmul.f32 %v8986, %v9193
  %v9251 = vmul.f32 %v8987, %v9193
  %v9252 = vmul.f32 %v8988, %v9193
  %v9253 = vmul.f32 %v8989, %v9193
  %v9254 = vmul.f32 %v8990, %v9193
  %v9255 = vmul.f32 %v8991, %v9193
  %v9256 = vmul.f32 %v8992, %v9193
  %v9257 = vmul.f32 %v8993, %v9193
  %v9259 = vlaneseq
  %v9260 = vshrl.u32 %v9259, 7
  %v9261 = vsub.s32 0, %v9260
  %v9262 = vrot.slane %v8794, %v9261
  %v9264 = vmul.f32 %v9194, %v9262
  %v9265 = vmul.f32 %v9195, %v9262
  %v9266 = vmul.f32 %v9196, %v9262
  %v9267 = vmul.f32 %v9197, %v9262
  %v9268 = vmul.f32 %v9198, %v9262
  %v9269 = vmul.f32 %v9199, %v9262
  %v9270 = vmul.f32 %v9200, %v9262
  %v9271 = vmul.f32 %v9201, %v9262
  %v9272 = vmul.f32 %v9202, %v9262
  %v9273 = vmul.f32 %v9203, %v9262
  %v9274 = vmul.f32 %v9204, %v9262
  %v9275 = vmul.f32 %v9205, %v9262
  %v9276 = vmul.f32 %v9206, %v9262
  %v9277 = vmul.f32 %v9207, %v9262
  %v9278 = vmul.f32 %v9208, %v9262
  %v9279 = vmul.f32 %v9209, %v9262
  %v9280 = vmul.f32 %v9210, %v9262
  %v9281 = vmul.f32 %v9211, %v9262
  %v9282 = vmul.f32 %v9212, %v9262
  %v9283 = vmul.f32 %v9213, %v9262
  %v9284 = vmul.f32 %v9214, %v9262
  %v9285 = vmul.f32 %v9215, %v9262
  %v9286 = vmul.f32 %v9216, %v9262
  %v9287 = vmul.f32 %v9217, %v9262
  %v9288 = vmul.f32 %v9218, %v9262
  %v9289 = vmul.f32 %v9219, %v9262
  %v9290 = vmul.f32 %v9220, %v9262
  %v9291 = vmul.f32 %v9221, %v9262
  %v9292 = vmul.f32 %v9222, %v9262
  %v9293 = vmul.f32 %v9223, %v9262
  %v9294 = vmul.f32 %v9224, %v9262
  %v9295 = vmul.f32 %v9225, %v9262
  %v9296 = vmul.f32 %v9226, %v9262
  %v9297 = vmul.f32 %v9227, %v9262
  %v9298 = vmul.f32 %v9228, %v9262
  %v9299 = vmul.f32 %v9229, %v9262
  %v9300 = vmul.f32 %v9230, %v9262
  %v9301 = vmul.f32 %v9231, %v9262
  %v9302 = vmul.f32 %v9232, %v9262
  %v9303 = vmul.f32 %v9233, %v9262
  %v9304 = vmul.f32 %v9234, %v9262
  %v9305 = vmul.f32 %v9235, %v9262
  %v9306 = vmul.f32 %v9236, %v9262
  %v9307 = vmul.f32 %v9237, %v9262
  %v9308 = vmul.f32 %v9238, %v9262
  %v9309 = vmul.f32 %v9239, %v9262
  %v9310 = vmul.f32 %v9240, %v9262
  %v9311 = vmul.f32 %v9241, %v9262
  %v9312 = vmul.f32 %v9242, %v9262
  %v9313 = vmul.f32 %v9243, %v9262
  %v9314 = vmul.f32 %v9244, %v9262
  %v9315 = vmul.f32 %v9245, %v9262
  %v9316 = vmul.f32 %v9246, %v9262
  %v9317 = vmul.f32 %v9247, %v9262
  %v9318 = vmul.f32 %v9248, %v9262
  %v9319 = vmul.f32 %v9249, %v9262
  %v9320 = vmul.f32 %v9250, %v9262
  %v9321 = vmul.f32 %v9251, %v9262
  %v9322 = vmul.f32 %v9252, %v9262
  %v9323 = vmul.f32 %v9253, %v9262
  %v9324 = vmul.f32 %v9254, %v9262
  %v9325 = vmul.f32 %v9255, %v9262
  %v9326 = vmul.f32 %v9256, %v9262
  %v9327 = vmul.f32 %v9257, %v9262
  %v9329 = vlaneseq
  %v9330 = vshrl.u32 %v9329, 7
  %v9331 = vsub.s32 0, %v9330
  %v9332 = vrot.slane %v8795, %v9331
  %v9334 = vadd.f32 %v9264, %v9332
  %v9335 = vadd.f32 %v9265, %v9332
  %v9336 = vadd.f32 %v9266, %v9332
  %v9337 = vadd.f32 %v9267, %v9332
  %v9338 = vadd.f32 %v9268, %v9332
  %v9339 = vadd.f32 %v9269, %v9332
  %v9340 = vadd.f32 %v9270, %v9332
  %v9341 = vadd.f32 %v9271, %v9332
  %v9342 = vadd.f32 %v9272, %v9332
  %v9343 = vadd.f32 %v9273, %v9332
  %v9344 = vadd.f32 %v9274, %v9332
  %v9345 = vadd.f32 %v9275, %v9332
  %v9346 = vadd.f32 %v9276, %v9332
  %v9347 = vadd.f32 %v9277, %v9332
  %v9348 = vadd.f32 %v9278, %v9332
  %v9349 = vadd.f32 %v9279, %v9332
  %v9350 = vadd.f32 %v9280, %v9332
  %v9351 = vadd.f32 %v9281, %v9332
  %v9352 = vadd.f32 %v9282, %v9332
  %v9353 = vadd.f32 %v9283, %v9332
  %v9354 = vadd.f32 %v9284, %v9332
  %v9355 = vadd.f32 %v9285, %v9332
  %v9356 = vadd.f32 %v9286, %v9332
  %v9357 = vadd.f32 %v9287, %v9332
  %v9358 = vadd.f32 %v9288, %v9332
  %v9359 = vadd.f32 %v9289, %v9332
  %v9360 = vadd.f32 %v9290, %v9332
  %v9361 = vadd.f32 %v9291, %v9332
  %v9362 = vadd.f32 %v9292, %v9332
  %v9363 = vadd.f32 %v9293, %v9332
  %v9364 = vadd.f32 %v9294, %v9332
  %v9365 = vadd.f32 %v9295, %v9332
  %v9366 = vadd.f32 %v9296, %v9332
  %v9367 = vadd.f32 %v9297, %v9332
  %v9368 = vadd.f32 %v9298, %v9332
  %v9369 = vadd.f32 %v9299, %v9332
  %v9370 = vadd.f32 %v9300, %v9332
  %v9371 = vadd.f32 %v9301, %v9332
  %v9372 = vadd.f32 %v9302, %v9332
  %v9373 = vadd.f32 %v9303, %v9332
  %v9374 = vadd.f32 %v9304, %v9332
  %v9375 = vadd.f32 %v9305, %v9332
  %v9376 = vadd.f32 %v9306, %v9332
  %v9377 = vadd.f32 %v9307, %v9332
  %v9378 = vadd.f32 %v9308, %v9332
  %v9379 = vadd.f32 %v9309, %v9332
  %v9380 = vadd.f32 %v9310, %v9332
  %v9381 = vadd.f32 %v9311, %v9332
  %v9382 = vadd.f32 %v9312, %v9332
  %v9383 = vadd.f32 %v9313, %v9332
  %v9384 = vadd.f32 %v9314, %v9332
  %v9385 = vadd.f32 %v9315, %v9332
  %v9386 = vadd.f32 %v9316, %v9332
  %v9387 = vadd.f32 %v9317, %v9332
  %v9388 = vadd.f32 %v9318, %v9332
  %v9389 = vadd.f32 %v9319, %v9332
  %v9390 = vadd.f32 %v9320, %v9332
  %v9391 = vadd.f32 %v9321, %v9332
  %v9392 = vadd.f32 %v9322, %v9332
  %v9393 = vadd.f32 %v9323, %v9332
  %v9394 = vadd.f32 %v9324, %v9332
  %v9395 = vadd.f32 %v9325, %v9332
  %v9396 = vadd.f32 %v9326, %v9332
  %v9397 = vadd.f32 %v9327, %v9332
  %v9398 = vld [vmem:[%s7] sm:$0xf]
  %v9400 = vsel %vm99, %v35, 0
  %v9403 = vsel %vm99, %v36, 0
  %v9406 = vsel %vm99, %v37, 0
  %v9409 = vsel %vm99, %v38, 0
  %v9412 = vsel %vm99, %v39, 0
  %v9415 = vsel %vm99, %v40, 0
  %v9418 = vsel %vm99, %v41, 0
  %v9421 = vsel %vm99, %v42, 0
  %v9424 = vsel %vm99, %v43, 0
  %v9427 = vsel %vm99, %v44, 0
  %v9430 = vsel %vm99, %v45, 0
  %v9433 = vsel %vm99, %v46, 0
  %v9436 = vsel %vm99, %v47, 0
  %v9439 = vsel %vm99, %v48, 0
  %v9442 = vsel %vm99, %v49, 0
  %v9445 = vsel %vm99, %v50, 0
  %v9448 = vsel %vm99, %v51, 0
  %v9451 = vsel %vm99, %v52, 0
  %v9454 = vsel %vm99, %v53, 0
  %v9457 = vsel %vm99, %v54, 0
  %v9460 = vsel %vm99, %v55, 0
  %v9463 = vsel %vm99, %v56, 0
  %v9466 = vsel %vm99, %v57, 0
  %v9469 = vsel %vm99, %v58, 0
  %v9472 = vsel %vm99, %v59, 0
  %v9475 = vsel %vm99, %v60, 0
  %v9478 = vsel %vm99, %v61, 0
  %v9481 = vsel %vm99, %v62, 0
  %v9484 = vsel %vm99, %v63, 0
  %v9487 = vsel %vm99, %v64, 0
  %v9490 = vsel %vm99, %v65, 0
  %v9493 = vsel %vm99, %v66, 0
  %v9496 = vsel %vm99, %v67, 0
  %v9499 = vsel %vm99, %v68, 0
  %v9502 = vsel %vm99, %v69, 0
  %v9505 = vsel %vm99, %v70, 0
  %v9508 = vsel %vm99, %v71, 0
  %v9511 = vsel %vm99, %v72, 0
  %v9514 = vsel %vm99, %v73, 0
  %v9517 = vsel %vm99, %v74, 0
  %v9520 = vsel %vm99, %v75, 0
  %v9523 = vsel %vm99, %v76, 0
  %v9526 = vsel %vm99, %v77, 0
  %v9529 = vsel %vm99, %v78, 0
  %v9532 = vsel %vm99, %v79, 0
  %v9535 = vsel %vm99, %v80, 0
  %v9538 = vsel %vm99, %v81, 0
  %v9541 = vsel %vm99, %v82, 0
  %v9544 = vsel %vm99, %v83, 0
  %v9547 = vsel %vm99, %v84, 0
  %v9550 = vsel %vm99, %v85, 0
  %v9553 = vsel %vm99, %v86, 0
  %v9556 = vsel %vm99, %v87, 0
  %v9559 = vsel %vm99, %v88, 0
  %v9562 = vsel %vm99, %v89, 0
  %v9565 = vsel %vm99, %v90, 0
  %v9568 = vsel %vm99, %v91, 0
  %v9571 = vsel %vm99, %v92, 0
  %v9574 = vsel %vm99, %v93, 0
  %v9577 = vsel %vm99, %v94, 0
  %v9580 = vsel %vm99, %v95, 0
  %v9583 = vsel %vm99, %v96, 0
  %v9586 = vsel %vm99, %v97, 0
  %v9589 = vsel %vm99, %v98, 0
  %v9592 = vsel %vm3723, %v9398, 0
  %9594 = vmatprep.subr.mxu0 0.0
  %9595 = vmatpush1.msra.mxu0 0.0
  %9596 = vmatprep.subr.mxu0 0.0
  %9597 = vmatpush1.msra.mxu0 0.0
  %9598 = vmatprep.subr.mxu0 0.0
  %9599 = vmatpush1.msra.mxu0 0.0
  %9600 = vmatprep.subr.mxu0 0.0
  %9601 = vmatpush1.msra.mxu0 0.0
  %9602 = vmatprep.subr.mxu0 0.0
  %9603 = vmatpush1.msra.mxu0 0.0
  %9604 = vmatprep.subr.mxu0 0.0
  %9605 = vmatpush1.msra.mxu0 0.0
  %9606 = vmatprep.subr.mxu0 0.0
  %9607 = vmatpush1.msra.mxu0 0.0
  %9608 = vmatprep.subr.mxu0 0.0
  %9609 = vmatpush1.msra.mxu0 0.0
  %9610 = vmatprep.subr.mxu0 0.0
  %9611 = vmatpush1.msra.mxu0 0.0
  %9612 = vmatprep.subr.mxu0 0.0
  %9613 = vmatpush1.msra.mxu0 0.0
  %9614 = vmatprep.subr.mxu0 0.0
  %9615 = vmatpush1.msra.mxu0 0.0
  %9616 = vmatprep.subr.mxu0 0.0
  %9617 = vmatpush1.msra.mxu0 0.0
  %9618 = vmatprep.subr.mxu0 0.0
  %9619 = vmatpush1.msra.mxu0 0.0
  %9620 = vmatprep.subr.mxu0 0.0
  %9621 = vmatpush1.msra.mxu0 0.0
  %9622 = vmatprep.subr.mxu0 0.0
  %9623 = vmatpush1.msra.mxu0 0.0
  %9624 = vmatprep.subr.mxu0 0.0
  %9625 = vmatpush1.msra.mxu0 %v9592
  %9626 = vmatprep.subr.mxu0 0.0
  %9627 = vmatpush2.msra.mxu0 0.0
  %9628 = vmatprep.subr.mxu0 0.0
  %9629 = vmatpush2.msra.mxu0 0.0
  %9630 = vmatprep.subr.mxu0 0.0
  %9631 = vmatpush2.msra.mxu0 0.0
  %9632 = vmatprep.subr.mxu0 0.0
  %9633 = vmatpush2.msra.mxu0 0.0
  %9634 = vmatprep.subr.mxu0 0.0
  %9635 = vmatpush2.msra.mxu0 0.0
  %9636 = vmatprep.subr.mxu0 0.0
  %9637 = vmatpush2.msra.mxu0 0.0
  %9638 = vmatprep.subr.mxu0 0.0
  %9639 = vmatpush2.msra.mxu0 0.0
  %9640 = vmatprep.subr.mxu0 0.0
  %9641 = vmatpush2.msra.mxu0 0.0
  %9642 = vmatprep.subr.mxu0 0.0
  %9643 = vmatpush2.msra.mxu0 0.0
  %9644 = vmatprep.subr.mxu0 0.0
  %9645 = vmatpush2.msra.mxu0 0.0
  %9646 = vmatprep.subr.mxu0 0.0
  %9647 = vmatpush2.msra.mxu0 0.0
  %9648 = vmatprep.subr.mxu0 0.0
  %9649 = vmatpush2.msra.mxu0 0.0
  %9650 = vmatprep.subr.mxu0 0.0
  %9651 = vmatpush2.msra.mxu0 0.0
  %9652 = vmatprep.subr.mxu0 0.0
  %9653 = vmatpush2.msra.mxu0 0.0
  %9654 = vmatprep.subr.mxu0 0.0
  %9655 = vmatpush2.msra.mxu0 0.0
  %9656 = vmatprep.subr.mxu0 0.0
  %9657 = vmatpush2.msra.mxu0 0.0
  %9658 = vmatprep.mubr.f32.mxu0 0.0
  %9659 = vmatmul.mubr.f32.gmra.mxu0 %v9400
  %v9660 = vpop.f32.mrf.mxu0
  %v9661 = vadd.f32 0.0, %v9660
  %v9662 = vpop.f32.mrf.mxu0
  %9663 = vmatprep.mubr.f32.mxu0 0.0
  %9664 = vmatmul.mubr.f32.gmra.mxu0 %v9403
  %v9665 = vpop.f32.mrf.mxu0
  %v9666 = vadd.f32 0.0, %v9665
  %v9667 = vpop.f32.mrf.mxu0
  %9668 = vmatprep.mubr.f32.mxu0 0.0
  %9669 = vmatmul.mubr.f32.gmra.mxu0 %v9406
  %v9670 = vpop.f32.mrf.mxu0
  %v9671 = vadd.f32 0.0, %v9670
  %v9672 = vpop.f32.mrf.mxu0
  %9673 = vmatprep.mubr.f32.mxu0 0.0
  %9674 = vmatmul.mubr.f32.gmra.mxu0 %v9409
  %v9675 = vpop.f32.mrf.mxu0
  %v9676 = vadd.f32 0.0, %v9675
  %v9677 = vpop.f32.mrf.mxu0
  %9678 = vmatprep.mubr.f32.mxu0 0.0
  %9679 = vmatmul.mubr.f32.gmra.mxu0 %v9412
  %v9680 = vpop.f32.mrf.mxu0
  %v9681 = vadd.f32 0.0, %v9680
  %v9682 = vpop.f32.mrf.mxu0
  %9683 = vmatprep.mubr.f32.mxu0 0.0
  %9684 = vmatmul.mubr.f32.gmra.mxu0 %v9415
  %v9685 = vpop.f32.mrf.mxu0
  %v9686 = vadd.f32 0.0, %v9685
  %v9687 = vpop.f32.mrf.mxu0
  %9688 = vmatprep.mubr.f32.mxu0 0.0
  %9689 = vmatmul.mubr.f32.gmra.mxu0 %v9418
  %v9690 = vpop.f32.mrf.mxu0
  %v9691 = vadd.f32 0.0, %v9690
  %v9692 = vpop.f32.mrf.mxu0
  %9693 = vmatprep.mubr.f32.mxu0 0.0
  %9694 = vmatmul.mubr.f32.gmra.mxu0 %v9421
  %v9695 = vpop.f32.mrf.mxu0
  %v9696 = vadd.f32 0.0, %v9695
  %v9697 = vpop.f32.mrf.mxu0
  %9698 = vmatprep.mubr.f32.mxu0 0.0
  %9699 = vmatmul.mubr.f32.gmra.mxu0 %v9424
  %v9700 = vpop.f32.mrf.mxu0
  %v9701 = vadd.f32 0.0, %v9700
  %v9702 = vpop.f32.mrf.mxu0
  %9703 = vmatprep.mubr.f32.mxu0 0.0
  %9704 = vmatmul.mubr.f32.gmra.mxu0 %v9427
  %v9705 = vpop.f32.mrf.mxu0
  %v9706 = vadd.f32 0.0, %v9705
  %v9707 = vpop.f32.mrf.mxu0
  %9708 = vmatprep.mubr.f32.mxu0 0.0
  %9709 = vmatmul.mubr.f32.gmra.mxu0 %v9430
  %v9710 = vpop.f32.mrf.mxu0
  %v9711 = vadd.f32 0.0, %v9710
  %v9712 = vpop.f32.mrf.mxu0
  %9713 = vmatprep.mubr.f32.mxu0 0.0
  %9714 = vmatmul.mubr.f32.gmra.mxu0 %v9433
  %v9715 = vpop.f32.mrf.mxu0
  %v9716 = vadd.f32 0.0, %v9715
  %v9717 = vpop.f32.mrf.mxu0
  %9718 = vmatprep.mubr.f32.mxu0 0.0
  %9719 = vmatmul.mubr.f32.gmra.mxu0 %v9436
  %v9720 = vpop.f32.mrf.mxu0
  %v9721 = vadd.f32 0.0, %v9720
  %v9722 = vpop.f32.mrf.mxu0
  %9723 = vmatprep.mubr.f32.mxu0 0.0
  %9724 = vmatmul.mubr.f32.gmra.mxu0 %v9439
  %v9725 = vpop.f32.mrf.mxu0
  %v9726 = vadd.f32 0.0, %v9725
  %v9727 = vpop.f32.mrf.mxu0
  %9728 = vmatprep.mubr.f32.mxu0 0.0
  %9729 = vmatmul.mubr.f32.gmra.mxu0 %v9442
  %v9730 = vpop.f32.mrf.mxu0
  %v9731 = vadd.f32 0.0, %v9730
  %v9732 = vpop.f32.mrf.mxu0
  %9733 = vmatprep.mubr.f32.mxu0 0.0
  %9734 = vmatmul.mubr.f32.gmra.mxu0 %v9445
  %v9735 = vpop.f32.mrf.mxu0
  %v9736 = vadd.f32 0.0, %v9735
  %v9737 = vpop.f32.mrf.mxu0
  %9738 = vmatprep.mubr.f32.mxu0 0.0
  %9739 = vmatmul.mubr.f32.gmra.mxu0 %v9448
  %v9740 = vpop.f32.mrf.mxu0
  %v9741 = vadd.f32 0.0, %v9740
  %v9742 = vpop.f32.mrf.mxu0
  %9743 = vmatprep.mubr.f32.mxu0 0.0
  %9744 = vmatmul.mubr.f32.gmra.mxu0 %v9451
  %v9745 = vpop.f32.mrf.mxu0
  %v9746 = vadd.f32 0.0, %v9745
  %v9747 = vpop.f32.mrf.mxu0
  %9748 = vmatprep.mubr.f32.mxu0 0.0
  %9749 = vmatmul.mubr.f32.gmra.mxu0 %v9454
  %v9750 = vpop.f32.mrf.mxu0
  %v9751 = vadd.f32 0.0, %v9750
  %v9752 = vpop.f32.mrf.mxu0
  %9753 = vmatprep.mubr.f32.mxu0 0.0
  %9754 = vmatmul.mubr.f32.gmra.mxu0 %v9457
  %v9755 = vpop.f32.mrf.mxu0
  %v9756 = vadd.f32 0.0, %v9755
  %v9757 = vpop.f32.mrf.mxu0
  %9758 = vmatprep.mubr.f32.mxu0 0.0
  %9759 = vmatmul.mubr.f32.gmra.mxu0 %v9460
  %v9760 = vpop.f32.mrf.mxu0
  %v9761 = vadd.f32 0.0, %v9760
  %v9762 = vpop.f32.mrf.mxu0
  %9763 = vmatprep.mubr.f32.mxu0 0.0
  %9764 = vmatmul.mubr.f32.gmra.mxu0 %v9463
  %v9765 = vpop.f32.mrf.mxu0
  %v9766 = vadd.f32 0.0, %v9765
  %v9767 = vpop.f32.mrf.mxu0
  %9768 = vmatprep.mubr.f32.mxu0 0.0
  %9769 = vmatmul.mubr.f32.gmra.mxu0 %v9466
  %v9770 = vpop.f32.mrf.mxu0
  %v9771 = vadd.f32 0.0, %v9770
  %v9772 = vpop.f32.mrf.mxu0
  %9773 = vmatprep.mubr.f32.mxu0 0.0
  %9774 = vmatmul.mubr.f32.gmra.mxu0 %v9469
  %v9775 = vpop.f32.mrf.mxu0
  %v9776 = vadd.f32 0.0, %v9775
  %v9777 = vpop.f32.mrf.mxu0
  %9778 = vmatprep.mubr.f32.mxu0 0.0
  %9779 = vmatmul.mubr.f32.gmra.mxu0 %v9472
  %v9780 = vpop.f32.mrf.mxu0
  %v9781 = vadd.f32 0.0, %v9780
  %v9782 = vpop.f32.mrf.mxu0
  %9783 = vmatprep.mubr.f32.mxu0 0.0
  %9784 = vmatmul.mubr.f32.gmra.mxu0 %v9475
  %v9785 = vpop.f32.mrf.mxu0
  %v9786 = vadd.f32 0.0, %v9785
  %v9787 = vpop.f32.mrf.mxu0
  %9788 = vmatprep.mubr.f32.mxu0 0.0
  %9789 = vmatmul.mubr.f32.gmra.mxu0 %v9478
  %v9790 = vpop.f32.mrf.mxu0
  %v9791 = vadd.f32 0.0, %v9790
  %v9792 = vpop.f32.mrf.mxu0
  %9793 = vmatprep.mubr.f32.mxu0 0.0
  %9794 = vmatmul.mubr.f32.gmra.mxu0 %v9481
  %v9795 = vpop.f32.mrf.mxu0
  %v9796 = vadd.f32 0.0, %v9795
  %v9797 = vpop.f32.mrf.mxu0
  %9798 = vmatprep.mubr.f32.mxu0 0.0
  %9799 = vmatmul.mubr.f32.gmra.mxu0 %v9484
  %v9800 = vpop.f32.mrf.mxu0
  %v9801 = vadd.f32 0.0, %v9800
  %v9802 = vpop.f32.mrf.mxu0
  %9803 = vmatprep.mubr.f32.mxu0 0.0
  %9804 = vmatmul.mubr.f32.gmra.mxu0 %v9487
  %v9805 = vpop.f32.mrf.mxu0
  %v9806 = vadd.f32 0.0, %v9805
  %v9807 = vpop.f32.mrf.mxu0
  %9808 = vmatprep.mubr.f32.mxu0 0.0
  %9809 = vmatmul.mubr.f32.gmra.mxu0 %v9490
  %v9810 = vpop.f32.mrf.mxu0
  %v9811 = vadd.f32 0.0, %v9810
  %v9812 = vpop.f32.mrf.mxu0
  %9813 = vmatprep.mubr.f32.mxu0 0.0
  %9814 = vmatmul.mubr.f32.gmra.mxu0 %v9493
  %v9815 = vpop.f32.mrf.mxu0
  %v9816 = vadd.f32 0.0, %v9815
  %v9817 = vpop.f32.mrf.mxu0
  %9818 = vmatprep.mubr.f32.mxu0 0.0
  %9819 = vmatmul.mubr.f32.gmra.mxu0 %v9496
  %v9820 = vpop.f32.mrf.mxu0
  %v9821 = vadd.f32 0.0, %v9820
  %v9822 = vpop.f32.mrf.mxu0
  %9823 = vmatprep.mubr.f32.mxu0 0.0
  %9824 = vmatmul.mubr.f32.gmra.mxu0 %v9499
  %v9825 = vpop.f32.mrf.mxu0
  %v9826 = vadd.f32 0.0, %v9825
  %v9827 = vpop.f32.mrf.mxu0
  %9828 = vmatprep.mubr.f32.mxu0 0.0
  %9829 = vmatmul.mubr.f32.gmra.mxu0 %v9502
  %v9830 = vpop.f32.mrf.mxu0
  %v9831 = vadd.f32 0.0, %v9830
  %v9832 = vpop.f32.mrf.mxu0
  %9833 = vmatprep.mubr.f32.mxu0 0.0
  %9834 = vmatmul.mubr.f32.gmra.mxu0 %v9505
  %v9835 = vpop.f32.mrf.mxu0
  %v9836 = vadd.f32 0.0, %v9835
  %v9837 = vpop.f32.mrf.mxu0
  %9838 = vmatprep.mubr.f32.mxu0 0.0
  %9839 = vmatmul.mubr.f32.gmra.mxu0 %v9508
  %v9840 = vpop.f32.mrf.mxu0
  %v9841 = vadd.f32 0.0, %v9840
  %v9842 = vpop.f32.mrf.mxu0
  %9843 = vmatprep.mubr.f32.mxu0 0.0
  %9844 = vmatmul.mubr.f32.gmra.mxu0 %v9511
  %v9845 = vpop.f32.mrf.mxu0
  %v9846 = vadd.f32 0.0, %v9845
  %v9847 = vpop.f32.mrf.mxu0
  %9848 = vmatprep.mubr.f32.mxu0 0.0
  %9849 = vmatmul.mubr.f32.gmra.mxu0 %v9514
  %v9850 = vpop.f32.mrf.mxu0
  %v9851 = vadd.f32 0.0, %v9850
  %v9852 = vpop.f32.mrf.mxu0
  %9853 = vmatprep.mubr.f32.mxu0 0.0
  %9854 = vmatmul.mubr.f32.gmra.mxu0 %v9517
  %v9855 = vpop.f32.mrf.mxu0
  %v9856 = vadd.f32 0.0, %v9855
  %v9857 = vpop.f32.mrf.mxu0
  %9858 = vmatprep.mubr.f32.mxu0 0.0
  %9859 = vmatmul.mubr.f32.gmra.mxu0 %v9520
  %v9860 = vpop.f32.mrf.mxu0
  %v9861 = vadd.f32 0.0, %v9860
  %v9862 = vpop.f32.mrf.mxu0
  %9863 = vmatprep.mubr.f32.mxu0 0.0
  %9864 = vmatmul.mubr.f32.gmra.mxu0 %v9523
  %v9865 = vpop.f32.mrf.mxu0
  %v9866 = vadd.f32 0.0, %v9865
  %v9867 = vpop.f32.mrf.mxu0
  %9868 = vmatprep.mubr.f32.mxu0 0.0
  %9869 = vmatmul.mubr.f32.gmra.mxu0 %v9526
  %v9870 = vpop.f32.mrf.mxu0
  %v9871 = vadd.f32 0.0, %v9870
  %v9872 = vpop.f32.mrf.mxu0
  %9873 = vmatprep.mubr.f32.mxu0 0.0
  %9874 = vmatmul.mubr.f32.gmra.mxu0 %v9529
  %v9875 = vpop.f32.mrf.mxu0
  %v9876 = vadd.f32 0.0, %v9875
  %v9877 = vpop.f32.mrf.mxu0
  %9878 = vmatprep.mubr.f32.mxu0 0.0
  %9879 = vmatmul.mubr.f32.gmra.mxu0 %v9532
  %v9880 = vpop.f32.mrf.mxu0
  %v9881 = vadd.f32 0.0, %v9880
  %v9882 = vpop.f32.mrf.mxu0
  %9883 = vmatprep.mubr.f32.mxu0 0.0
  %9884 = vmatmul.mubr.f32.gmra.mxu0 %v9535
  %v9885 = vpop.f32.mrf.mxu0
  %v9886 = vadd.f32 0.0, %v9885
  %v9887 = vpop.f32.mrf.mxu0
  %9888 = vmatprep.mubr.f32.mxu0 0.0
  %9889 = vmatmul.mubr.f32.gmra.mxu0 %v9538
  %v9890 = vpop.f32.mrf.mxu0
  %v9891 = vadd.f32 0.0, %v9890
  %v9892 = vpop.f32.mrf.mxu0
  %9893 = vmatprep.mubr.f32.mxu0 0.0
  %9894 = vmatmul.mubr.f32.gmra.mxu0 %v9541
  %v9895 = vpop.f32.mrf.mxu0
  %v9896 = vadd.f32 0.0, %v9895
  %v9897 = vpop.f32.mrf.mxu0
  %9898 = vmatprep.mubr.f32.mxu0 0.0
  %9899 = vmatmul.mubr.f32.gmra.mxu0 %v9544
  %v9900 = vpop.f32.mrf.mxu0
  %v9901 = vadd.f32 0.0, %v9900
  %v9902 = vpop.f32.mrf.mxu0
  %9903 = vmatprep.mubr.f32.mxu0 0.0
  %9904 = vmatmul.mubr.f32.gmra.mxu0 %v9547
  %v9905 = vpop.f32.mrf.mxu0
  %v9906 = vadd.f32 0.0, %v9905
  %v9907 = vpop.f32.mrf.mxu0
  %9908 = vmatprep.mubr.f32.mxu0 0.0
  %9909 = vmatmul.mubr.f32.gmra.mxu0 %v9550
  %v9910 = vpop.f32.mrf.mxu0
  %v9911 = vadd.f32 0.0, %v9910
  %v9912 = vpop.f32.mrf.mxu0
  %9913 = vmatprep.mubr.f32.mxu0 0.0
  %9914 = vmatmul.mubr.f32.gmra.mxu0 %v9553
  %v9915 = vpop.f32.mrf.mxu0
  %v9916 = vadd.f32 0.0, %v9915
  %v9917 = vpop.f32.mrf.mxu0
  %9918 = vmatprep.mubr.f32.mxu0 0.0
  %9919 = vmatmul.mubr.f32.gmra.mxu0 %v9556
  %v9920 = vpop.f32.mrf.mxu0
  %v9921 = vadd.f32 0.0, %v9920
  %v9922 = vpop.f32.mrf.mxu0
  %9923 = vmatprep.mubr.f32.mxu0 0.0
  %9924 = vmatmul.mubr.f32.gmra.mxu0 %v9559
  %v9925 = vpop.f32.mrf.mxu0
  %v9926 = vadd.f32 0.0, %v9925
  %v9927 = vpop.f32.mrf.mxu0
  %9928 = vmatprep.mubr.f32.mxu0 0.0
  %9929 = vmatmul.mubr.f32.gmra.mxu0 %v9562
  %v9930 = vpop.f32.mrf.mxu0
  %v9931 = vadd.f32 0.0, %v9930
  %v9932 = vpop.f32.mrf.mxu0
  %9933 = vmatprep.mubr.f32.mxu0 0.0
  %9934 = vmatmul.mubr.f32.gmra.mxu0 %v9565
  %v9935 = vpop.f32.mrf.mxu0
  %v9936 = vadd.f32 0.0, %v9935
  %v9937 = vpop.f32.mrf.mxu0
  %9938 = vmatprep.mubr.f32.mxu0 0.0
  %9939 = vmatmul.mubr.f32.gmra.mxu0 %v9568
  %v9940 = vpop.f32.mrf.mxu0
  %v9941 = vadd.f32 0.0, %v9940
  %v9942 = vpop.f32.mrf.mxu0
  %9943 = vmatprep.mubr.f32.mxu0 0.0
  %9944 = vmatmul.mubr.f32.gmra.mxu0 %v9571
  %v9945 = vpop.f32.mrf.mxu0
  %v9946 = vadd.f32 0.0, %v9945
  %v9947 = vpop.f32.mrf.mxu0
  %9948 = vmatprep.mubr.f32.mxu0 0.0
  %9949 = vmatmul.mubr.f32.gmra.mxu0 %v9574
  %v9950 = vpop.f32.mrf.mxu0
  %v9951 = vadd.f32 0.0, %v9950
  %v9952 = vpop.f32.mrf.mxu0
  %9953 = vmatprep.mubr.f32.mxu0 0.0
  %9954 = vmatmul.mubr.f32.gmra.mxu0 %v9577
  %v9955 = vpop.f32.mrf.mxu0
  %v9956 = vadd.f32 0.0, %v9955
  %v9957 = vpop.f32.mrf.mxu0
  %9958 = vmatprep.mubr.f32.mxu0 0.0
  %9959 = vmatmul.mubr.f32.gmra.mxu0 %v9580
  %v9960 = vpop.f32.mrf.mxu0
  %v9961 = vadd.f32 0.0, %v9960
  %v9962 = vpop.f32.mrf.mxu0
  %9963 = vmatprep.mubr.f32.mxu0 0.0
  %9964 = vmatmul.mubr.f32.gmra.mxu0 %v9583
  %v9965 = vpop.f32.mrf.mxu0
  %v9966 = vadd.f32 0.0, %v9965
  %v9967 = vpop.f32.mrf.mxu0
  %9968 = vmatprep.mubr.f32.mxu0 0.0
  %9969 = vmatmul.mubr.f32.gmra.mxu0 %v9586
  %v9970 = vpop.f32.mrf.mxu0
  %v9971 = vadd.f32 0.0, %v9970
  %v9972 = vpop.f32.mrf.mxu0
  %9973 = vmatprep.mubr.f32.mxu0 0.0
  %9974 = vmatmul.mubr.f32.gmra.mxu0 %v9589
  %v9975 = vpop.f32.mrf.mxu0
  %v9976 = vadd.f32 0.0, %v9975
  %v9977 = vpop.f32.mrf.mxu0
  %9978 = vdwg.mxu0
  %v9979 = vld [vmem:[%s8] sm:$0x1]
  %v9980 = vld [vmem:[%s9] sm:$0x1]
  %v9981 = vsel %vm4114, %v9661, 0.0
  %v9982 = vsel %vm4114, %v9666, 0.0
  %v9983 = vadd.f32 %v9981, %v9982
  %v9984 = vsel %vm4114, %v9671, 0.0
  %v9985 = vadd.f32 %v9983, %v9984
  %v9986 = vsel %vm4114, %v9676, 0.0
  %v9987 = vadd.f32 %v9985, %v9986
  %v9988 = vsel %vm4114, %v9681, 0.0
  %v9989 = vadd.f32 %v9987, %v9988
  %v9990 = vsel %vm4114, %v9686, 0.0
  %v9991 = vadd.f32 %v9989, %v9990
  %v9992 = vsel %vm4114, %v9691, 0.0
  %v9993 = vadd.f32 %v9991, %v9992
  %v9994 = vsel %vm4114, %v9696, 0.0
  %v9995 = vadd.f32 %v9993, %v9994
  %v9996 = vsel %vm4114, %v9701, 0.0
  %v9997 = vadd.f32 %v9995, %v9996
  %v9998 = vsel %vm4114, %v9706, 0.0
  %v9999 = vadd.f32 %v9997, %v9998
  %v10000 = vsel %vm4114, %v9711, 0.0
  %v10001 = vadd.f32 %v9999, %v10000
  %v10002 = vsel %vm4114, %v9716, 0.0
  %v10003 = vadd.f32 %v10001, %v10002
  %v10004 = vsel %vm4114, %v9721, 0.0
  %v10005 = vadd.f32 %v10003, %v10004
  %v10006 = vsel %vm4114, %v9726, 0.0
  %v10007 = vadd.f32 %v10005, %v10006
  %v10008 = vsel %vm4114, %v9731, 0.0
  %v10009 = vadd.f32 %v10007, %v10008
  %v10010 = vsel %vm4114, %v9736, 0.0
  %v10011 = vadd.f32 %v10009, %v10010
  %v10012 = vsel %vm4114, %v9741, 0.0
  %v10013 = vadd.f32 %v10011, %v10012
  %v10014 = vsel %vm4114, %v9746, 0.0
  %v10015 = vadd.f32 %v10013, %v10014
  %v10016 = vsel %vm4114, %v9751, 0.0
  %v10017 = vadd.f32 %v10015, %v10016
  %v10018 = vsel %vm4114, %v9756, 0.0
  %v10019 = vadd.f32 %v10017, %v10018
  %v10020 = vsel %vm4114, %v9761, 0.0
  %v10021 = vadd.f32 %v10019, %v10020
  %v10022 = vsel %vm4114, %v9766, 0.0
  %v10023 = vadd.f32 %v10021, %v10022
  %v10024 = vsel %vm4114, %v9771, 0.0
  %v10025 = vadd.f32 %v10023, %v10024
  %v10026 = vsel %vm4114, %v9776, 0.0
  %v10027 = vadd.f32 %v10025, %v10026
  %v10028 = vsel %vm4114, %v9781, 0.0
  %v10029 = vadd.f32 %v10027, %v10028
  %v10030 = vsel %vm4114, %v9786, 0.0
  %v10031 = vadd.f32 %v10029, %v10030
  %v10032 = vsel %vm4114, %v9791, 0.0
  %v10033 = vadd.f32 %v10031, %v10032
  %v10034 = vsel %vm4114, %v9796, 0.0
  %v10035 = vadd.f32 %v10033, %v10034
  %v10036 = vsel %vm4114, %v9801, 0.0
  %v10037 = vadd.f32 %v10035, %v10036
  %v10038 = vsel %vm4114, %v9806, 0.0
  %v10039 = vadd.f32 %v10037, %v10038
  %v10040 = vsel %vm4114, %v9811, 0.0
  %v10041 = vadd.f32 %v10039, %v10040
  %v10042 = vsel %vm4114, %v9816, 0.0
  %v10043 = vadd.f32 %v10041, %v10042
  %v10044 = vsel %vm4114, %v9821, 0.0
  %v10045 = vadd.f32 %v10043, %v10044
  %v10046 = vsel %vm4114, %v9826, 0.0
  %v10047 = vadd.f32 %v10045, %v10046
  %v10048 = vsel %vm4114, %v9831, 0.0
  %v10049 = vadd.f32 %v10047, %v10048
  %v10050 = vsel %vm4114, %v9836, 0.0
  %v10051 = vadd.f32 %v10049, %v10050
  %v10052 = vsel %vm4114, %v9841, 0.0
  %v10053 = vadd.f32 %v10051, %v10052
  %v10054 = vsel %vm4114, %v9846, 0.0
  %v10055 = vadd.f32 %v10053, %v10054
  %v10056 = vsel %vm4114, %v9851, 0.0
  %v10057 = vadd.f32 %v10055, %v10056
  %v10058 = vsel %vm4114, %v9856, 0.0
  %v10059 = vadd.f32 %v10057, %v10058
  %v10060 = vsel %vm4114, %v9861, 0.0
  %v10061 = vadd.f32 %v10059, %v10060
  %v10062 = vsel %vm4114, %v9866, 0.0
  %v10063 = vadd.f32 %v10061, %v10062
  %v10064 = vsel %vm4114, %v9871, 0.0
  %v10065 = vadd.f32 %v10063, %v10064
  %v10066 = vsel %vm4114, %v9876, 0.0
  %v10067 = vadd.f32 %v10065, %v10066
  %v10068 = vsel %vm4114, %v9881, 0.0
  %v10069 = vadd.f32 %v10067, %v10068
  %v10070 = vsel %vm4114, %v9886, 0.0
  %v10071 = vadd.f32 %v10069, %v10070
  %v10072 = vsel %vm4114, %v9891, 0.0
  %v10073 = vadd.f32 %v10071, %v10072
  %v10074 = vsel %vm4114, %v9896, 0.0
  %v10075 = vadd.f32 %v10073, %v10074
  %v10076 = vsel %vm4114, %v9901, 0.0
  %v10077 = vadd.f32 %v10075, %v10076
  %v10078 = vsel %vm4114, %v9906, 0.0
  %v10079 = vadd.f32 %v10077, %v10078
  %v10080 = vsel %vm4114, %v9911, 0.0
  %v10081 = vadd.f32 %v10079, %v10080
  %v10082 = vsel %vm4114, %v9916, 0.0
  %v10083 = vadd.f32 %v10081, %v10082
  %v10084 = vsel %vm4114, %v9921, 0.0
  %v10085 = vadd.f32 %v10083, %v10084
  %v10086 = vsel %vm4114, %v9926, 0.0
  %v10087 = vadd.f32 %v10085, %v10086
  %v10088 = vsel %vm4114, %v9931, 0.0
  %v10089 = vadd.f32 %v10087, %v10088
  %v10090 = vsel %vm4114, %v9936, 0.0
  %v10091 = vadd.f32 %v10089, %v10090
  %v10092 = vsel %vm4114, %v9941, 0.0
  %v10093 = vadd.f32 %v10091, %v10092
  %v10094 = vsel %vm4114, %v9946, 0.0
  %v10095 = vadd.f32 %v10093, %v10094
  %v10096 = vsel %vm4114, %v9951, 0.0
  %v10097 = vadd.f32 %v10095, %v10096
  %v10098 = vsel %vm4114, %v9956, 0.0
  %v10099 = vadd.f32 %v10097, %v10098
  %v10100 = vsel %vm4114, %v9961, 0.0
  %v10101 = vadd.f32 %v10099, %v10100
  %v10102 = vsel %vm4114, %v9966, 0.0
  %v10103 = vadd.f32 %v10101, %v10102
  %v10104 = vsel %vm4114, %v9971, 0.0
  %v10105 = vadd.f32 %v10103, %v10104
  %v10106 = vsel %vm4114, %v9976, 0.0
  %v10107 = vadd.f32 %v10105, %v10106
  %v10108 = vrot.slane %v10107, 4
  %v10109 = vadd.f32 %v10107, %v10108
  %v10110 = vrot.slane %v10109, 2
  %v10111 = vadd.f32 %v10109, %v10110
  %v10112 = vrot.slane %v10111, 1
  %v10113 = vadd.f32 %v10111, %v10112
  %v10114 = vmul.f32 %v10113, %v4248
  %v10115 = vsub.f32 %v9661, %v10114
  %v10116 = vsub.f32 %v9666, %v10114
  %v10117 = vsub.f32 %v9671, %v10114
  %v10118 = vsub.f32 %v9676, %v10114
  %v10119 = vsub.f32 %v9681, %v10114
  %v10120 = vsub.f32 %v9686, %v10114
  %v10121 = vsub.f32 %v9691, %v10114
  %v10122 = vsub.f32 %v9696, %v10114
  %v10123 = vsub.f32 %v9701, %v10114
  %v10124 = vsub.f32 %v9706, %v10114
  %v10125 = vsub.f32 %v9711, %v10114
  %v10126 = vsub.f32 %v9716, %v10114
  %v10127 = vsub.f32 %v9721, %v10114
  %v10128 = vsub.f32 %v9726, %v10114
  %v10129 = vsub.f32 %v9731, %v10114
  %v10130 = vsub.f32 %v9736, %v10114
  %v10131 = vsub.f32 %v9741, %v10114
  %v10132 = vsub.f32 %v9746, %v10114
  %v10133 = vsub.f32 %v9751, %v10114
  %v10134 = vsub.f32 %v9756, %v10114
  %v10135 = vsub.f32 %v9761, %v10114
  %v10136 = vsub.f32 %v9766, %v10114
  %v10137 = vsub.f32 %v9771, %v10114
  %v10138 = vsub.f32 %v9776, %v10114
  %v10139 = vsub.f32 %v9781, %v10114
  %v10140 = vsub.f32 %v9786, %v10114
  %v10141 = vsub.f32 %v9791, %v10114
  %v10142 = vsub.f32 %v9796, %v10114
  %v10143 = vsub.f32 %v9801, %v10114
  %v10144 = vsub.f32 %v9806, %v10114
  %v10145 = vsub.f32 %v9811, %v10114
  %v10146 = vsub.f32 %v9816, %v10114
  %v10147 = vsub.f32 %v9821, %v10114
  %v10148 = vsub.f32 %v9826, %v10114
  %v10149 = vsub.f32 %v9831, %v10114
  %v10150 = vsub.f32 %v9836, %v10114
  %v10151 = vsub.f32 %v9841, %v10114
  %v10152 = vsub.f32 %v9846, %v10114
  %v10153 = vsub.f32 %v9851, %v10114
  %v10154 = vsub.f32 %v9856, %v10114
  %v10155 = vsub.f32 %v9861, %v10114
  %v10156 = vsub.f32 %v9866, %v10114
  %v10157 = vsub.f32 %v9871, %v10114
  %v10158 = vsub.f32 %v9876, %v10114
  %v10159 = vsub.f32 %v9881, %v10114
  %v10160 = vsub.f32 %v9886, %v10114
  %v10161 = vsub.f32 %v9891, %v10114
  %v10162 = vsub.f32 %v9896, %v10114
  %v10163 = vsub.f32 %v9901, %v10114
  %v10164 = vsub.f32 %v9906, %v10114
  %v10165 = vsub.f32 %v9911, %v10114
  %v10166 = vsub.f32 %v9916, %v10114
  %v10167 = vsub.f32 %v9921, %v10114
  %v10168 = vsub.f32 %v9926, %v10114
  %v10169 = vsub.f32 %v9931, %v10114
  %v10170 = vsub.f32 %v9936, %v10114
  %v10171 = vsub.f32 %v9941, %v10114
  %v10172 = vsub.f32 %v9946, %v10114
  %v10173 = vsub.f32 %v9951, %v10114
  %v10174 = vsub.f32 %v9956, %v10114
  %v10175 = vsub.f32 %v9961, %v10114
  %v10176 = vsub.f32 %v9966, %v10114
  %v10177 = vsub.f32 %v9971, %v10114
  %v10178 = vsub.f32 %v9976, %v10114
  %v10179 = vmul.f32 %v10115, %v10115
  %v10180 = vmul.f32 %v10116, %v10116
  %v10181 = vmul.f32 %v10117, %v10117
  %v10182 = vmul.f32 %v10118, %v10118
  %v10183 = vmul.f32 %v10119, %v10119
  %v10184 = vmul.f32 %v10120, %v10120
  %v10185 = vmul.f32 %v10121, %v10121
  %v10186 = vmul.f32 %v10122, %v10122
  %v10187 = vmul.f32 %v10123, %v10123
  %v10188 = vmul.f32 %v10124, %v10124
  %v10189 = vmul.f32 %v10125, %v10125
  %v10190 = vmul.f32 %v10126, %v10126
  %v10191 = vmul.f32 %v10127, %v10127
  %v10192 = vmul.f32 %v10128, %v10128
  %v10193 = vmul.f32 %v10129, %v10129
  %v10194 = vmul.f32 %v10130, %v10130
  %v10195 = vmul.f32 %v10131, %v10131
  %v10196 = vmul.f32 %v10132, %v10132
  %v10197 = vmul.f32 %v10133, %v10133
  %v10198 = vmul.f32 %v10134, %v10134
  %v10199 = vmul.f32 %v10135, %v10135
  %v10200 = vmul.f32 %v10136, %v10136
  %v10201 = vmul.f32 %v10137, %v10137
  %v10202 = vmul.f32 %v10138, %v10138
  %v10203 = vmul.f32 %v10139, %v10139
  %v10204 = vmul.f32 %v10140, %v10140
  %v10205 = vmul.f32 %v10141, %v10141
  %v10206 = vmul.f32 %v10142, %v10142
  %v10207 = vmul.f32 %v10143, %v10143
  %v10208 = vmul.f32 %v10144, %v10144
  %v10209 = vmul.f32 %v10145, %v10145
  %v10210 = vmul.f32 %v10146, %v10146
  %v10211 = vmul.f32 %v10147, %v10147
  %v10212 = vmul.f32 %v10148, %v10148
  %v10213 = vmul.f32 %v10149, %v10149
  %v10214 = vmul.f32 %v10150, %v10150
  %v10215 = vmul.f32 %v10151, %v10151
  %v10216 = vmul.f32 %v10152, %v10152
  %v10217 = vmul.f32 %v10153, %v10153
  %v10218 = vmul.f32 %v10154, %v10154
  %v10219 = vmul.f32 %v10155, %v10155
  %v10220 = vmul.f32 %v10156, %v10156
  %v10221 = vmul.f32 %v10157, %v10157
  %v10222 = vmul.f32 %v10158, %v10158
  %v10223 = vmul.f32 %v10159, %v10159
  %v10224 = vmul.f32 %v10160, %v10160
  %v10225 = vmul.f32 %v10161, %v10161
  %v10226 = vmul.f32 %v10162, %v10162
  %v10227 = vmul.f32 %v10163, %v10163
  %v10228 = vmul.f32 %v10164, %v10164
  %v10229 = vmul.f32 %v10165, %v10165
  %v10230 = vmul.f32 %v10166, %v10166
  %v10231 = vmul.f32 %v10167, %v10167
  %v10232 = vmul.f32 %v10168, %v10168
  %v10233 = vmul.f32 %v10169, %v10169
  %v10234 = vmul.f32 %v10170, %v10170
  %v10235 = vmul.f32 %v10171, %v10171
  %v10236 = vmul.f32 %v10172, %v10172
  %v10237 = vmul.f32 %v10173, %v10173
  %v10238 = vmul.f32 %v10174, %v10174
  %v10239 = vmul.f32 %v10175, %v10175
  %v10240 = vmul.f32 %v10176, %v10176
  %v10241 = vmul.f32 %v10177, %v10177
  %v10242 = vmul.f32 %v10178, %v10178
  %v10243 = vsel %vm4114, %v10179, 0.0
  %v10244 = vsel %vm4114, %v10180, 0.0
  %v10245 = vadd.f32 %v10243, %v10244
  %v10246 = vsel %vm4114, %v10181, 0.0
  %v10247 = vadd.f32 %v10245, %v10246
  %v10248 = vsel %vm4114, %v10182, 0.0
  %v10249 = vadd.f32 %v10247, %v10248
  %v10250 = vsel %vm4114, %v10183, 0.0
  %v10251 = vadd.f32 %v10249, %v10250
  %v10252 = vsel %vm4114, %v10184, 0.0
  %v10253 = vadd.f32 %v10251, %v10252
  %v10254 = vsel %vm4114, %v10185, 0.0
  %v10255 = vadd.f32 %v10253, %v10254
  %v10256 = vsel %vm4114, %v10186, 0.0
  %v10257 = vadd.f32 %v10255, %v10256
  %v10258 = vsel %vm4114, %v10187, 0.0
  %v10259 = vadd.f32 %v10257, %v10258
  %v10260 = vsel %vm4114, %v10188, 0.0
  %v10261 = vadd.f32 %v10259, %v10260
  %v10262 = vsel %vm4114, %v10189, 0.0
  %v10263 = vadd.f32 %v10261, %v10262
  %v10264 = vsel %vm4114, %v10190, 0.0
  %v10265 = vadd.f32 %v10263, %v10264
  %v10266 = vsel %vm4114, %v10191, 0.0
  %v10267 = vadd.f32 %v10265, %v10266
  %v10268 = vsel %vm4114, %v10192, 0.0
  %v10269 = vadd.f32 %v10267, %v10268
  %v10270 = vsel %vm4114, %v10193, 0.0
  %v10271 = vadd.f32 %v10269, %v10270
  %v10272 = vsel %vm4114, %v10194, 0.0
  %v10273 = vadd.f32 %v10271, %v10272
  %v10274 = vsel %vm4114, %v10195, 0.0
  %v10275 = vadd.f32 %v10273, %v10274
  %v10276 = vsel %vm4114, %v10196, 0.0
  %v10277 = vadd.f32 %v10275, %v10276
  %v10278 = vsel %vm4114, %v10197, 0.0
  %v10279 = vadd.f32 %v10277, %v10278
  %v10280 = vsel %vm4114, %v10198, 0.0
  %v10281 = vadd.f32 %v10279, %v10280
  %v10282 = vsel %vm4114, %v10199, 0.0
  %v10283 = vadd.f32 %v10281, %v10282
  %v10284 = vsel %vm4114, %v10200, 0.0
  %v10285 = vadd.f32 %v10283, %v10284
  %v10286 = vsel %vm4114, %v10201, 0.0
  %v10287 = vadd.f32 %v10285, %v10286
  %v10288 = vsel %vm4114, %v10202, 0.0
  %v10289 = vadd.f32 %v10287, %v10288
  %v10290 = vsel %vm4114, %v10203, 0.0
  %v10291 = vadd.f32 %v10289, %v10290
  %v10292 = vsel %vm4114, %v10204, 0.0
  %v10293 = vadd.f32 %v10291, %v10292
  %v10294 = vsel %vm4114, %v10205, 0.0
  %v10295 = vadd.f32 %v10293, %v10294
  %v10296 = vsel %vm4114, %v10206, 0.0
  %v10297 = vadd.f32 %v10295, %v10296
  %v10298 = vsel %vm4114, %v10207, 0.0
  %v10299 = vadd.f32 %v10297, %v10298
  %v10300 = vsel %vm4114, %v10208, 0.0
  %v10301 = vadd.f32 %v10299, %v10300
  %v10302 = vsel %vm4114, %v10209, 0.0
  %v10303 = vadd.f32 %v10301, %v10302
  %v10304 = vsel %vm4114, %v10210, 0.0
  %v10305 = vadd.f32 %v10303, %v10304
  %v10306 = vsel %vm4114, %v10211, 0.0
  %v10307 = vadd.f32 %v10305, %v10306
  %v10308 = vsel %vm4114, %v10212, 0.0
  %v10309 = vadd.f32 %v10307, %v10308
  %v10310 = vsel %vm4114, %v10213, 0.0
  %v10311 = vadd.f32 %v10309, %v10310
  %v10312 = vsel %vm4114, %v10214, 0.0
  %v10313 = vadd.f32 %v10311, %v10312
  %v10314 = vsel %vm4114, %v10215, 0.0
  %v10315 = vadd.f32 %v10313, %v10314
  %v10316 = vsel %vm4114, %v10216, 0.0
  %v10317 = vadd.f32 %v10315, %v10316
  %v10318 = vsel %vm4114, %v10217, 0.0
  %v10319 = vadd.f32 %v10317, %v10318
  %v10320 = vsel %vm4114, %v10218, 0.0
  %v10321 = vadd.f32 %v10319, %v10320
  %v10322 = vsel %vm4114, %v10219, 0.0
  %v10323 = vadd.f32 %v10321, %v10322
  %v10324 = vsel %vm4114, %v10220, 0.0
  %v10325 = vadd.f32 %v10323, %v10324
  %v10326 = vsel %vm4114, %v10221, 0.0
  %v10327 = vadd.f32 %v10325, %v10326
  %v10328 = vsel %vm4114, %v10222, 0.0
  %v10329 = vadd.f32 %v10327, %v10328
  %v10330 = vsel %vm4114, %v10223, 0.0
  %v10331 = vadd.f32 %v10329, %v10330
  %v10332 = vsel %vm4114, %v10224, 0.0
  %v10333 = vadd.f32 %v10331, %v10332
  %v10334 = vsel %vm4114, %v10225, 0.0
  %v10335 = vadd.f32 %v10333, %v10334
  %v10336 = vsel %vm4114, %v10226, 0.0
  %v10337 = vadd.f32 %v10335, %v10336
  %v10338 = vsel %vm4114, %v10227, 0.0
  %v10339 = vadd.f32 %v10337, %v10338
  %v10340 = vsel %vm4114, %v10228, 0.0
  %v10341 = vadd.f32 %v10339, %v10340
  %v10342 = vsel %vm4114, %v10229, 0.0
  %v10343 = vadd.f32 %v10341, %v10342
  %v10344 = vsel %vm4114, %v10230, 0.0
  %v10345 = vadd.f32 %v10343, %v10344
  %v10346 = vsel %vm4114, %v10231, 0.0
  %v10347 = vadd.f32 %v10345, %v10346
  %v10348 = vsel %vm4114, %v10232, 0.0
  %v10349 = vadd.f32 %v10347, %v10348
  %v10350 = vsel %vm4114, %v10233, 0.0
  %v10351 = vadd.f32 %v10349, %v10350
  %v10352 = vsel %vm4114, %v10234, 0.0
  %v10353 = vadd.f32 %v10351, %v10352
  %v10354 = vsel %vm4114, %v10235, 0.0
  %v10355 = vadd.f32 %v10353, %v10354
  %v10356 = vsel %vm4114, %v10236, 0.0
  %v10357 = vadd.f32 %v10355, %v10356
  %v10358 = vsel %vm4114, %v10237, 0.0
  %v10359 = vadd.f32 %v10357, %v10358
  %v10360 = vsel %vm4114, %v10238, 0.0
  %v10361 = vadd.f32 %v10359, %v10360
  %v10362 = vsel %vm4114, %v10239, 0.0
  %v10363 = vadd.f32 %v10361, %v10362
  %v10364 = vsel %vm4114, %v10240, 0.0
  %v10365 = vadd.f32 %v10363, %v10364
  %v10366 = vsel %vm4114, %v10241, 0.0
  %v10367 = vadd.f32 %v10365, %v10366
  %v10368 = vsel %vm4114, %v10242, 0.0
  %v10369 = vadd.f32 %v10367, %v10368
  %v10370 = vrot.slane %v10369, 4
  %v10371 = vadd.f32 %v10369, %v10370
  %v10372 = vrot.slane %v10371, 2
  %v10373 = vadd.f32 %v10371, %v10372
  %v10374 = vrot.slane %v10373, 1
  %v10375 = vadd.f32 %v10373, %v10374
  %v10376 = vmul.f32 %v10375, %v4248
  %v10377 = vadd.f32 %v10376, 1e-05
  %v10378 = vrsqrt.pop %v10377
  %v10379 = vmul.f32 %v10115, %v10378
  %v10380 = vmul.f32 %v10116, %v10378
  %v10381 = vmul.f32 %v10117, %v10378
  %v10382 = vmul.f32 %v10118, %v10378
  %v10383 = vmul.f32 %v10119, %v10378
  %v10384 = vmul.f32 %v10120, %v10378
  %v10385 = vmul.f32 %v10121, %v10378
  %v10386 = vmul.f32 %v10122, %v10378
  %v10387 = vmul.f32 %v10123, %v10378
  %v10388 = vmul.f32 %v10124, %v10378
  %v10389 = vmul.f32 %v10125, %v10378
  %v10390 = vmul.f32 %v10126, %v10378
  %v10391 = vmul.f32 %v10127, %v10378
  %v10392 = vmul.f32 %v10128, %v10378
  %v10393 = vmul.f32 %v10129, %v10378
  %v10394 = vmul.f32 %v10130, %v10378
  %v10395 = vmul.f32 %v10131, %v10378
  %v10396 = vmul.f32 %v10132, %v10378
  %v10397 = vmul.f32 %v10133, %v10378
  %v10398 = vmul.f32 %v10134, %v10378
  %v10399 = vmul.f32 %v10135, %v10378
  %v10400 = vmul.f32 %v10136, %v10378
  %v10401 = vmul.f32 %v10137, %v10378
  %v10402 = vmul.f32 %v10138, %v10378
  %v10403 = vmul.f32 %v10139, %v10378
  %v10404 = vmul.f32 %v10140, %v10378
  %v10405 = vmul.f32 %v10141, %v10378
  %v10406 = vmul.f32 %v10142, %v10378
  %v10407 = vmul.f32 %v10143, %v10378
  %v10408 = vmul.f32 %v10144, %v10378
  %v10409 = vmul.f32 %v10145, %v10378
  %v10410 = vmul.f32 %v10146, %v10378
  %v10411 = vmul.f32 %v10147, %v10378
  %v10412 = vmul.f32 %v10148, %v10378
  %v10413 = vmul.f32 %v10149, %v10378
  %v10414 = vmul.f32 %v10150, %v10378
  %v10415 = vmul.f32 %v10151, %v10378
  %v10416 = vmul.f32 %v10152, %v10378
  %v10417 = vmul.f32 %v10153, %v10378
  %v10418 = vmul.f32 %v10154, %v10378
  %v10419 = vmul.f32 %v10155, %v10378
  %v10420 = vmul.f32 %v10156, %v10378
  %v10421 = vmul.f32 %v10157, %v10378
  %v10422 = vmul.f32 %v10158, %v10378
  %v10423 = vmul.f32 %v10159, %v10378
  %v10424 = vmul.f32 %v10160, %v10378
  %v10425 = vmul.f32 %v10161, %v10378
  %v10426 = vmul.f32 %v10162, %v10378
  %v10427 = vmul.f32 %v10163, %v10378
  %v10428 = vmul.f32 %v10164, %v10378
  %v10429 = vmul.f32 %v10165, %v10378
  %v10430 = vmul.f32 %v10166, %v10378
  %v10431 = vmul.f32 %v10167, %v10378
  %v10432 = vmul.f32 %v10168, %v10378
  %v10433 = vmul.f32 %v10169, %v10378
  %v10434 = vmul.f32 %v10170, %v10378
  %v10435 = vmul.f32 %v10171, %v10378
  %v10436 = vmul.f32 %v10172, %v10378
  %v10437 = vmul.f32 %v10173, %v10378
  %v10438 = vmul.f32 %v10174, %v10378
  %v10439 = vmul.f32 %v10175, %v10378
  %v10440 = vmul.f32 %v10176, %v10378
  %v10441 = vmul.f32 %v10177, %v10378
  %v10442 = vmul.f32 %v10178, %v10378
  %v10444 = vlaneseq
  %v10445 = vshrl.u32 %v10444, 7
  %v10446 = vsub.s32 0, %v10445
  %v10447 = vrot.slane %v9979, %v10446
  %v10449 = vmul.f32 %v10379, %v10447
  %v10450 = vmul.f32 %v10380, %v10447
  %v10451 = vmul.f32 %v10381, %v10447
  %v10452 = vmul.f32 %v10382, %v10447
  %v10453 = vmul.f32 %v10383, %v10447
  %v10454 = vmul.f32 %v10384, %v10447
  %v10455 = vmul.f32 %v10385, %v10447
  %v10456 = vmul.f32 %v10386, %v10447
  %v10457 = vmul.f32 %v10387, %v10447
  %v10458 = vmul.f32 %v10388, %v10447
  %v10459 = vmul.f32 %v10389, %v10447
  %v10460 = vmul.f32 %v10390, %v10447
  %v10461 = vmul.f32 %v10391, %v10447
  %v10462 = vmul.f32 %v10392, %v10447
  %v10463 = vmul.f32 %v10393, %v10447
  %v10464 = vmul.f32 %v10394, %v10447
  %v10465 = vmul.f32 %v10395, %v10447
  %v10466 = vmul.f32 %v10396, %v10447
  %v10467 = vmul.f32 %v10397, %v10447
  %v10468 = vmul.f32 %v10398, %v10447
  %v10469 = vmul.f32 %v10399, %v10447
  %v10470 = vmul.f32 %v10400, %v10447
  %v10471 = vmul.f32 %v10401, %v10447
  %v10472 = vmul.f32 %v10402, %v10447
  %v10473 = vmul.f32 %v10403, %v10447
  %v10474 = vmul.f32 %v10404, %v10447
  %v10475 = vmul.f32 %v10405, %v10447
  %v10476 = vmul.f32 %v10406, %v10447
  %v10477 = vmul.f32 %v10407, %v10447
  %v10478 = vmul.f32 %v10408, %v10447
  %v10479 = vmul.f32 %v10409, %v10447
  %v10480 = vmul.f32 %v10410, %v10447
  %v10481 = vmul.f32 %v10411, %v10447
  %v10482 = vmul.f32 %v10412, %v10447
  %v10483 = vmul.f32 %v10413, %v10447
  %v10484 = vmul.f32 %v10414, %v10447
  %v10485 = vmul.f32 %v10415, %v10447
  %v10486 = vmul.f32 %v10416, %v10447
  %v10487 = vmul.f32 %v10417, %v10447
  %v10488 = vmul.f32 %v10418, %v10447
  %v10489 = vmul.f32 %v10419, %v10447
  %v10490 = vmul.f32 %v10420, %v10447
  %v10491 = vmul.f32 %v10421, %v10447
  %v10492 = vmul.f32 %v10422, %v10447
  %v10493 = vmul.f32 %v10423, %v10447
  %v10494 = vmul.f32 %v10424, %v10447
  %v10495 = vmul.f32 %v10425, %v10447
  %v10496 = vmul.f32 %v10426, %v10447
  %v10497 = vmul.f32 %v10427, %v10447
  %v10498 = vmul.f32 %v10428, %v10447
  %v10499 = vmul.f32 %v10429, %v10447
  %v10500 = vmul.f32 %v10430, %v10447
  %v10501 = vmul.f32 %v10431, %v10447
  %v10502 = vmul.f32 %v10432, %v10447
  %v10503 = vmul.f32 %v10433, %v10447
  %v10504 = vmul.f32 %v10434, %v10447
  %v10505 = vmul.f32 %v10435, %v10447
  %v10506 = vmul.f32 %v10436, %v10447
  %v10507 = vmul.f32 %v10437, %v10447
  %v10508 = vmul.f32 %v10438, %v10447
  %v10509 = vmul.f32 %v10439, %v10447
  %v10510 = vmul.f32 %v10440, %v10447
  %v10511 = vmul.f32 %v10441, %v10447
  %v10512 = vmul.f32 %v10442, %v10447
  %v10514 = vlaneseq
  %v10515 = vshrl.u32 %v10514, 7
  %v10516 = vsub.s32 0, %v10515
  %v10517 = vrot.slane %v9980, %v10516
  %v10519 = vadd.f32 %v10449, %v10517
  %v10520 = vadd.f32 %v10450, %v10517
  %v10521 = vadd.f32 %v10451, %v10517
  %v10522 = vadd.f32 %v10452, %v10517
  %v10523 = vadd.f32 %v10453, %v10517
  %v10524 = vadd.f32 %v10454, %v10517
  %v10525 = vadd.f32 %v10455, %v10517
  %v10526 = vadd.f32 %v10456, %v10517
  %v10527 = vadd.f32 %v10457, %v10517
  %v10528 = vadd.f32 %v10458, %v10517
  %v10529 = vadd.f32 %v10459, %v10517
  %v10530 = vadd.f32 %v10460, %v10517
  %v10531 = vadd.f32 %v10461, %v10517
  %v10532 = vadd.f32 %v10462, %v10517
  %v10533 = vadd.f32 %v10463, %v10517
  %v10534 = vadd.f32 %v10464, %v10517
  %v10535 = vadd.f32 %v10465, %v10517
  %v10536 = vadd.f32 %v10466, %v10517
  %v10537 = vadd.f32 %v10467, %v10517
  %v10538 = vadd.f32 %v10468, %v10517
  %v10539 = vadd.f32 %v10469, %v10517
  %v10540 = vadd.f32 %v10470, %v10517
  %v10541 = vadd.f32 %v10471, %v10517
  %v10542 = vadd.f32 %v10472, %v10517
  %v10543 = vadd.f32 %v10473, %v10517
  %v10544 = vadd.f32 %v10474, %v10517
  %v10545 = vadd.f32 %v10475, %v10517
  %v10546 = vadd.f32 %v10476, %v10517
  %v10547 = vadd.f32 %v10477, %v10517
  %v10548 = vadd.f32 %v10478, %v10517
  %v10549 = vadd.f32 %v10479, %v10517
  %v10550 = vadd.f32 %v10480, %v10517
  %v10551 = vadd.f32 %v10481, %v10517
  %v10552 = vadd.f32 %v10482, %v10517
  %v10553 = vadd.f32 %v10483, %v10517
  %v10554 = vadd.f32 %v10484, %v10517
  %v10555 = vadd.f32 %v10485, %v10517
  %v10556 = vadd.f32 %v10486, %v10517
  %v10557 = vadd.f32 %v10487, %v10517
  %v10558 = vadd.f32 %v10488, %v10517
  %v10559 = vadd.f32 %v10489, %v10517
  %v10560 = vadd.f32 %v10490, %v10517
  %v10561 = vadd.f32 %v10491, %v10517
  %v10562 = vadd.f32 %v10492, %v10517
  %v10563 = vadd.f32 %v10493, %v10517
  %v10564 = vadd.f32 %v10494, %v10517
  %v10565 = vadd.f32 %v10495, %v10517
  %v10566 = vadd.f32 %v10496, %v10517
  %v10567 = vadd.f32 %v10497, %v10517
  %v10568 = vadd.f32 %v10498, %v10517
  %v10569 = vadd.f32 %v10499, %v10517
  %v10570 = vadd.f32 %v10500, %v10517
  %v10571 = vadd.f32 %v10501, %v10517
  %v10572 = vadd.f32 %v10502, %v10517
  %v10573 = vadd.f32 %v10503, %v10517
  %v10574 = vadd.f32 %v10504, %v10517
  %v10575 = vadd.f32 %v10505, %v10517
  %v10576 = vadd.f32 %v10506, %v10517
  %v10577 = vadd.f32 %v10507, %v10517
  %v10578 = vadd.f32 %v10508, %v10517
  %v10579 = vadd.f32 %v10509, %v10517
  %v10580 = vadd.f32 %v10510, %v10517
  %v10581 = vadd.f32 %v10511, %v10517
  %v10582 = vadd.f32 %v10512, %v10517
  %v10583 = vadd.f32 %v9334, %v10519
  %v10584 = vadd.f32 %v9335, %v10520
  %v10585 = vadd.f32 %v9336, %v10521
  %v10586 = vadd.f32 %v9337, %v10522
  %v10587 = vadd.f32 %v9338, %v10523
  %v10588 = vadd.f32 %v9339, %v10524
  %v10589 = vadd.f32 %v9340, %v10525
  %v10590 = vadd.f32 %v9341, %v10526
  %v10591 = vadd.f32 %v9342, %v10527
  %v10592 = vadd.f32 %v9343, %v10528
  %v10593 = vadd.f32 %v9344, %v10529
  %v10594 = vadd.f32 %v9345, %v10530
  %v10595 = vadd.f32 %v9346, %v10531
  %v10596 = vadd.f32 %v9347, %v10532
  %v10597 = vadd.f32 %v9348, %v10533
  %v10598 = vadd.f32 %v9349, %v10534
  %v10599 = vadd.f32 %v9350, %v10535
  %v10600 = vadd.f32 %v9351, %v10536
  %v10601 = vadd.f32 %v9352, %v10537
  %v10602 = vadd.f32 %v9353, %v10538
  %v10603 = vadd.f32 %v9354, %v10539
  %v10604 = vadd.f32 %v9355, %v10540
  %v10605 = vadd.f32 %v9356, %v10541
  %v10606 = vadd.f32 %v9357, %v10542
  %v10607 = vadd.f32 %v9358, %v10543
  %v10608 = vadd.f32 %v9359, %v10544
  %v10609 = vadd.f32 %v9360, %v10545
  %v10610 = vadd.f32 %v9361, %v10546
  %v10611 = vadd.f32 %v9362, %v10547
  %v10612 = vadd.f32 %v9363, %v10548
  %v10613 = vadd.f32 %v9364, %v10549
  %v10614 = vadd.f32 %v9365, %v10550
  %v10615 = vadd.f32 %v9366, %v10551
  %v10616 = vadd.f32 %v9367, %v10552
  %v10617 = vadd.f32 %v9368, %v10553
  %v10618 = vadd.f32 %v9369, %v10554
  %v10619 = vadd.f32 %v9370, %v10555
  %v10620 = vadd.f32 %v9371, %v10556
  %v10621 = vadd.f32 %v9372, %v10557
  %v10622 = vadd.f32 %v9373, %v10558
  %v10623 = vadd.f32 %v9374, %v10559
  %v10624 = vadd.f32 %v9375, %v10560
  %v10625 = vadd.f32 %v9376, %v10561
  %v10626 = vadd.f32 %v9377, %v10562
  %v10627 = vadd.f32 %v9378, %v10563
  %v10628 = vadd.f32 %v9379, %v10564
  %v10629 = vadd.f32 %v9380, %v10565
  %v10630 = vadd.f32 %v9381, %v10566
  %v10631 = vadd.f32 %v9382, %v10567
  %v10632 = vadd.f32 %v9383, %v10568
  %v10633 = vadd.f32 %v9384, %v10569
  %v10634 = vadd.f32 %v9385, %v10570
  %v10635 = vadd.f32 %v9386, %v10571
  %v10636 = vadd.f32 %v9387, %v10572
  %v10637 = vadd.f32 %v9388, %v10573
  %v10638 = vadd.f32 %v9389, %v10574
  %v10639 = vadd.f32 %v9390, %v10575
  %v10640 = vadd.f32 %v9391, %v10576
  %v10641 = vadd.f32 %v9392, %v10577
  %v10642 = vadd.f32 %v9393, %v10578
  %v10643 = vadd.f32 %v9394, %v10579
  %v10644 = vadd.f32 %v9395, %v10580
  %v10645 = vadd.f32 %v9396, %v10581
  %v10646 = vadd.f32 %v9397, %v10582
  %v10647 = vmax.f32 %v10583, 0.0
  %v10648 = vmax.f32 %v10584, 0.0
  %v10649 = vmax.f32 %v10585, 0.0
  %v10650 = vmax.f32 %v10586, 0.0
  %v10651 = vmax.f32 %v10587, 0.0
  %v10652 = vmax.f32 %v10588, 0.0
  %v10653 = vmax.f32 %v10589, 0.0
  %v10654 = vmax.f32 %v10590, 0.0
  %v10655 = vmax.f32 %v10591, 0.0
  %v10656 = vmax.f32 %v10592, 0.0
  %v10657 = vmax.f32 %v10593, 0.0
  %v10658 = vmax.f32 %v10594, 0.0
  %v10659 = vmax.f32 %v10595, 0.0
  %v10660 = vmax.f32 %v10596, 0.0
  %v10661 = vmax.f32 %v10597, 0.0
  %v10662 = vmax.f32 %v10598, 0.0
  %v10663 = vmax.f32 %v10599, 0.0
  %v10664 = vmax.f32 %v10600, 0.0
  %v10665 = vmax.f32 %v10601, 0.0
  %v10666 = vmax.f32 %v10602, 0.0
  %v10667 = vmax.f32 %v10603, 0.0
  %v10668 = vmax.f32 %v10604, 0.0
  %v10669 = vmax.f32 %v10605, 0.0
  %v10670 = vmax.f32 %v10606, 0.0
  %v10671 = vmax.f32 %v10607, 0.0
  %v10672 = vmax.f32 %v10608, 0.0
  %v10673 = vmax.f32 %v10609, 0.0
  %v10674 = vmax.f32 %v10610, 0.0
  %v10675 = vmax.f32 %v10611, 0.0
  %v10676 = vmax.f32 %v10612, 0.0
  %v10677 = vmax.f32 %v10613, 0.0
  %v10678 = vmax.f32 %v10614, 0.0
  %v10679 = vmax.f32 %v10615, 0.0
  %v10680 = vmax.f32 %v10616, 0.0
  %v10681 = vmax.f32 %v10617, 0.0
  %v10682 = vmax.f32 %v10618, 0.0
  %v10683 = vmax.f32 %v10619, 0.0
  %v10684 = vmax.f32 %v10620, 0.0
  %v10685 = vmax.f32 %v10621, 0.0
  %v10686 = vmax.f32 %v10622, 0.0
  %v10687 = vmax.f32 %v10623, 0.0
  %v10688 = vmax.f32 %v10624, 0.0
  %v10689 = vmax.f32 %v10625, 0.0
  %v10690 = vmax.f32 %v10626, 0.0
  %v10691 = vmax.f32 %v10627, 0.0
  %v10692 = vmax.f32 %v10628, 0.0
  %v10693 = vmax.f32 %v10629, 0.0
  %v10694 = vmax.f32 %v10630, 0.0
  %v10695 = vmax.f32 %v10631, 0.0
  %v10696 = vmax.f32 %v10632, 0.0
  %v10697 = vmax.f32 %v10633, 0.0
  %v10698 = vmax.f32 %v10634, 0.0
  %v10699 = vmax.f32 %v10635, 0.0
  %v10700 = vmax.f32 %v10636, 0.0
  %v10701 = vmax.f32 %v10637, 0.0
  %v10702 = vmax.f32 %v10638, 0.0
  %v10703 = vmax.f32 %v10639, 0.0
  %v10704 = vmax.f32 %v10640, 0.0
  %v10705 = vmax.f32 %v10641, 0.0
  %v10706 = vmax.f32 %v10642, 0.0
  %v10707 = vmax.f32 %v10643, 0.0
  %v10708 = vmax.f32 %v10644, 0.0
  %v10709 = vmax.f32 %v10645, 0.0
  %v10710 = vmax.f32 %v10646, 0.0
  %10711 = vst.msk [vmem:[%s10] sm:$0xff] %vm4114, %v10647
  %10712 = vst.msk [vmem:[%s10 + $0x8] sm:$0xff] %vm4114, %v10648
  %10713 = vst.msk [vmem:[%s10 + $0x10] sm:$0xff] %vm4114, %v10649
  %10714 = vst.msk [vmem:[%s10 + $0x18] sm:$0xff] %vm4114, %v10650
  %10715 = vst.msk [vmem:[%s10 + $0x20] sm:$0xff] %vm4114, %v10651
  %10716 = vst.msk [vmem:[%s10 + $0x28] sm:$0xff] %vm4114, %v10652
  %10717 = vst.msk [vmem:[%s10 + $0x30] sm:$0xff] %vm4114, %v10653
  %10718 = vst.msk [vmem:[%s10 + $0x38] sm:$0xff] %vm4114, %v10654
  %10719 = vst.msk [vmem:[%s10 + $0x40] sm:$0xff] %vm4114, %v10655
  %10720 = vst.msk [vmem:[%s10 + $0x48] sm:$0xff] %vm4114, %v10656
  %10721 = vst.msk [vmem:[%s10 + $0x50] sm:$0xff] %vm4114, %v10657
  %10722 = vst.msk [vmem:[%s10 + $0x58] sm:$0xff] %vm4114, %v10658
  %10723 = vst.msk [vmem:[%s10 + $0x60] sm:$0xff] %vm4114, %v10659
  %10724 = vst.msk [vmem:[%s10 + $0x68] sm:$0xff] %vm4114, %v10660
  %10725 = vst.msk [vmem:[%s10 + $0x70] sm:$0xff] %vm4114, %v10661
  %10726 = vst.msk [vmem:[%s10 + $0x78] sm:$0xff] %vm4114, %v10662
  %10727 = vst.msk [vmem:[%s10 + $0x80] sm:$0xff] %vm4114, %v10663
  %10728 = vst.msk [vmem:[%s10 + $0x88] sm:$0xff] %vm4114, %v10664
  %10729 = vst.msk [vmem:[%s10 + $0x90] sm:$0xff] %vm4114, %v10665
  %10730 = vst.msk [vmem:[%s10 + $0x98] sm:$0xff] %vm4114, %v10666
  %10731 = vst.msk [vmem:[%s10 + $0xa0] sm:$0xff] %vm4114, %v10667
  %10732 = vst.msk [vmem:[%s10 + $0xa8] sm:$0xff] %vm4114, %v10668
  %10733 = vst.msk [vmem:[%s10 + $0xb0] sm:$0xff] %vm4114, %v10669
  %10734 = vst.msk [vmem:[%s10 + $0xb8] sm:$0xff] %vm4114, %v10670
  %10735 = vst.msk [vmem:[%s10 + $0xc0] sm:$0xff] %vm4114, %v10671
  %10736 = vst.msk [vmem:[%s10 + $0xc8] sm:$0xff] %vm4114, %v10672
  %10737 = vst.msk [vmem:[%s10 + $0xd0] sm:$0xff] %vm4114, %v10673
  %10738 = vst.msk [vmem:[%s10 + $0xd8] sm:$0xff] %vm4114, %v10674
  %10739 = vst.msk [vmem:[%s10 + $0xe0] sm:$0xff] %vm4114, %v10675
  %10740 = vst.msk [vmem:[%s10 + $0xe8] sm:$0xff] %vm4114, %v10676
  %10741 = vst.msk [vmem:[%s10 + $0xf0] sm:$0xff] %vm4114, %v10677
  %10742 = vst.msk [vmem:[%s10 + $0xf8] sm:$0xff] %vm4114, %v10678
  %10743 = vst.msk [vmem:[%s10 + $0x100] sm:$0xff] %vm4114, %v10679
  %10744 = vst.msk [vmem:[%s10 + $0x108] sm:$0xff] %vm4114, %v10680
  %10745 = vst.msk [vmem:[%s10 + $0x110] sm:$0xff] %vm4114, %v10681
  %10746 = vst.msk [vmem:[%s10 + $0x118] sm:$0xff] %vm4114, %v10682
  %10747 = vst.msk [vmem:[%s10 + $0x120] sm:$0xff] %vm4114, %v10683
  %10748 = vst.msk [vmem:[%s10 + $0x128] sm:$0xff] %vm4114, %v10684
  %10749 = vst.msk [vmem:[%s10 + $0x130] sm:$0xff] %vm4114, %v10685
  %10750 = vst.msk [vmem:[%s10 + $0x138] sm:$0xff] %vm4114, %v10686
  %10751 = vst.msk [vmem:[%s10 + $0x140] sm:$0xff] %vm4114, %v10687
  %10752 = vst.msk [vmem:[%s10 + $0x148] sm:$0xff] %vm4114, %v10688
  %10753 = vst.msk [vmem:[%s10 + $0x150] sm:$0xff] %vm4114, %v10689
  %10754 = vst.msk [vmem:[%s10 + $0x158] sm:$0xff] %vm4114, %v10690
  %10755 = vst.msk [vmem:[%s10 + $0x160] sm:$0xff] %vm4114, %v10691
  %10756 = vst.msk [vmem:[%s10 + $0x168] sm:$0xff] %vm4114, %v10692
  %10757 = vst.msk [vmem:[%s10 + $0x170] sm:$0xff] %vm4114, %v10693
  %10758 = vst.msk [vmem:[%s10 + $0x178] sm:$0xff] %vm4114, %v10694
  %10759 = vst.msk [vmem:[%s10 + $0x180] sm:$0xff] %vm4114, %v10695
  %10760 = vst.msk [vmem:[%s10 + $0x188] sm:$0xff] %vm4114, %v10696
  %10761 = vst.msk [vmem:[%s10 + $0x190] sm:$0xff] %vm4114, %v10697
  %10762 = vst.msk [vmem:[%s10 + $0x198] sm:$0xff] %vm4114, %v10698
  %10763 = vst.msk [vmem:[%s10 + $0x1a0] sm:$0xff] %vm4114, %v10699
  %10764 = vst.msk [vmem:[%s10 + $0x1a8] sm:$0xff] %vm4114, %v10700
  %10765 = vst.msk [vmem:[%s10 + $0x1b0] sm:$0xff] %vm4114, %v10701
  %10766 = vst.msk [vmem:[%s10 + $0x1b8] sm:$0xff] %vm4114, %v10702
  %10767 = vst.msk [vmem:[%s10 + $0x1c0] sm:$0xff] %vm4114, %v10703
  %10768 = vst.msk [vmem:[%s10 + $0x1c8] sm:$0xff] %vm4114, %v10704
  %10769 = vst.msk [vmem:[%s10 + $0x1d0] sm:$0xff] %vm4114, %v10705
  %10770 = vst.msk [vmem:[%s10 + $0x1d8] sm:$0xff] %vm4114, %v10706
  %10771 = vst.msk [vmem:[%s10 + $0x1e0] sm:$0xff] %vm4114, %v10707
  %10772 = vst.msk [vmem:[%s10 + $0x1e8] sm:$0xff] %vm4114, %v10708
  %10773 = vst.msk [vmem:[%s10 + $0x1f0] sm:$0xff] %vm4114, %v10709
  %10774 = vst.msk [vmem:[%s10 + $0x1f8] sm:$0xff] %vm4114, %v10710
  // Predicated region
  $region42: #{tpu_custom_call.1} parent=0 // pred_check
    _
  $region43: #{tpu_custom_call.1} parent=0 // pred_check_branch
    %10776 = sbr.rel (0) target = $region45
  $region44: #{tpu_custom_call.1} parent=0 // pred_region
    _
  $region45: #{tpu_custom_call.1} parent=0 // pred_fallthru
    _
  // Predicated region
  $region46: #{tpu_custom_call.1} parent=0 // pred_check
    _
  $region47: #{tpu_custom_call.1} parent=0 // pred_check_branch
    %10778 = sbr.rel (0) target = $region49
  $region48: #{tpu_custom_call.1} parent=0 // pred_region
    _
  $region49: #{tpu_custom_call.1} parent=0 // pred_fallthru
    _

</llo_original>
